<compile_context>
chip_gen: v6e
topology: v6e:2x2x1
jax: 0.10.0
libtpu: 0.0.40
codegen_flags: <defaults>
</compile_context>

<pallas_src>
import math
import numpy as np

import jax
import jax.numpy as jnp
from jax import lax
from jax.experimental import pallas as pl
from jax.experimental.pallas import tpu as pltpu

# ----------------------------- config (small, consistent with the module) ---
VOCAB_SIZE = 50
PAD_IDX = 0
EMBED = 16                 # config.embed_size
RNN_HIDDEN = 16            # config.rnn.hidden_size
RNN_OUT = RNN_HIDDEN * 2   # bidirectional LSTM output size (= 32)
NUM_HEADS = 4              # rnn_output_size < 512 -> 4 heads
HEAD_DIM = RNN_OUT // NUM_HEADS
GCN_HIDDEN = 32            # config.hidden_size
N_HIDDEN_LAYERS = 2        # config.n_hidden_layers

N_NODES = 16
SEQ_LEN = 8                # N_NODES * SEQ_LEN = 128 -> full MXU M dimension
N_GRAPHS = 2
SCORE_W = NUM_HEADS * SEQ_LEN   # compact attention-score slab width (= 32)

VMEM_SPEC = pl.BlockSpec(memory_space=pltpu.MemorySpace.VMEM)


# ----------------------------- single fused kernel ---------------------------
def _fused_encoder_kernel(
        emb_ref, kmask_ref, pool_ref, a_ref, memb_ref,
        w_ih_ref, w_hh_ref, b_lstm_ref,
        w_in_ref, b_in_ref, wsel_ref, wlsum_ref, whexp_ref, w_out_ref, b_out_ref,
        w_p_ref, b_p_ref, ln_g_ref, ln_b_ref,
        w_gin_ref, b_gin_ref, w_res_ref, b_res_ref,
        w_gcn_ref, b_gcn_ref, gcn_g_ref, gcn_b_ref,
        w_g1_ref, b_g1_ref, w_g2_ref, b_g2_ref,
        out_ref, rnn_ref):
    f32 = jnp.float32
    T, N, H, D = SEQ_LEN, N_NODES, RNN_HIDDEN, RNN_OUT
    TN = T * N

    # ---------------- bidirectional LSTM (both directions fused per step) ----
    # emb_ref row t*N+n = [emb(token t) | emb(token T-1-t)]  ->  one matmul gives
    # the x-gate contribution of every timestep for BOTH directions.
    xg_all = (jnp.dot(emb_ref[...], w_ih_ref[...], preferred_element_type=f32)
              + b_lstm_ref[...])                                 # (TN, 8H)
    w_hh = w_hh_ref[...]                                         # (2H, 8H) block-diag

    # packed gate-column order: [i_f,i_b, f_f,f_b, o_f,o_b, g_f,g_b] (each H wide)
    h_cat = jnp.zeros((N, 2 * H), f32)                           # [h_fwd | h_bwd]
    c_cat = jnp.zeros((N, 2 * H), f32)
    for s in range(T):                                           # fully unrolled, T small
        g = xg_all[s * N:(s + 1) * N, :] + jnp.dot(h_cat, w_hh, preferred_element_type=f32)
        sg = jax.nn.sigmoid(g[:, 0:6 * H])                       # one wide sigmoid push
        gg = jnp.tanh(g[:, 6 * H:8 * H])                         # one wide tanh push
        c_cat = sg[:, 2 * H:4 * H] * c_cat + sg[:, 0:2 * H] * gg
        h_cat = sg[:, 4 * H:6 * H] * jnp.tanh(c_cat)
        # write straight into the (TN, 2H) VMEM slab (no list/concat relayout)
        rnn_ref[s * N:(s + 1) * N, 0:H] = h_cat[:, 0:H]                      # fwd @ t=s
        rnn_ref[(T - 1 - s) * N:(T - s) * N, H:2 * H] = h_cat[:, H:2 * H]    # bwd @ t=T-1-s
    rnn = rnn_ref[...]                                           # (TN, 2H)
    # TODO(synk): backward direction also runs over padded tail positions (matches
    # an unpacked nn.LSTM call, not pack_padded_sequence).

    # ---------------- block-diagonal multi-head self-attention ---------------
    # q-scale (1/sqrt(head_dim)) is folded into w_in/b_in at init.
    qkv = jnp.dot(rnn, w_in_ref[...], preferred_element_type=f32) + b_in_ref[...]  # (TN, 3D)
    q = qkv[:, 0:D]
    kv = qkv[:, D:3 * D]                                         # [K | V]  (TN, 2D)

    wsel = [wsel_ref[d] for d in range(T)]                       # (D, heads*T) selectors
    s32 = jnp.zeros((TN, SCORE_W), f32)                          # compact scores, col h*T+d
    v_list = []
    for d in range(T):
        # time-major cyclic shift by d*N rows == same-node key at time (t+d) mod T
        kv_d = kv if d == 0 else jnp.concatenate([kv[d * N:, :], kv[:d * N, :]], axis=0)
        v_list.append(kv_d[:, D:2 * D])
        s32 = s32 + jnp.dot(q * kv_d[:, 0:D], wsel[d], preferred_element_type=f32)
    s32 = jnp.where(kmask_ref[...] > 0.5, s32, jnp.float32(-1e30))
    m = jnp.max(s32, axis=-1, keepdims=True)    # per-row max (>= each head's max -> exact softmax)
    p = jnp.exp(s32 - m)                        # ONE exp over the compact (128,32) slab
    l4 = jnp.dot(p, wlsum_ref[...], preferred_element_type=f32)  # (TN, heads) denominators

    ctx = jnp.zeros((TN, D), f32)
    for d in range(T):
        pe = lax.dot_general(p, wsel[d], (((1,), (1,)), ((), ())),
                             preferred_element_type=f32)         # expand p[:, h*T+d] over head lanes
        ctx = ctx + pe * v_list[d]
    inv = jnp.dot(pl.reciprocal(l4, approx=True), whexp_ref[...],
                  preferred_element_type=f32)                    # (TN, D)
    ctx = ctx * inv
    attn = jnp.dot(ctx, w_out_ref[...], preferred_element_type=f32) + b_out_ref[...]

    # ---------------- masked mean pool (one matmul) + proj + LayerNorm -------
    pooled = jnp.dot(pool_ref[...], attn, preferred_element_type=f32)   # (N, D)
    proj = jnp.dot(pooled, w_p_ref[...], preferred_element_type=f32) + b_p_ref[...]
    mu = jnp.mean(proj, axis=-1, keepdims=True)
    var = jnp.mean((proj - mu) ** 2, axis=-1, keepdims=True)
    node_emb = (proj - mu) * lax.rsqrt(var + 1e-5) * ln_g_ref[...] + ln_b_ref[...]

    # ---------------- GCN stack (dense sym-normalized adjacency) -------------
    # TODO(synk): at real graph sizes, tile the A @ H aggregation over node blocks
    # (dense N^2 adjacency would exceed v7x's 64 MiB VMEM) and add a parallel grid axis.
    a = a_ref[...]                                               # (N, N)
    hg = jnp.dot(a, jnp.dot(node_emb, w_gin_ref[...], preferred_element_type=f32),
                 preferred_element_type=f32) + b_gin_ref[...]
    hg = jnp.maximum(hg, 0.0)
    res = jnp.dot(node_emb, w_res_ref[...], preferred_element_type=f32) + b_res_ref[...]
    x = hg + res

    for l in range(N_HIDDEN_LAYERS):
        r = x
        y = jnp.dot(a, jnp.dot(x, w_gcn_ref[l], preferred_element_type=f32),
                    preferred_element_type=f32) + b_gcn_ref[l]
        # TODO(synk): torch_geometric LayerNorm(mode='graph') would normalize over all
        # nodes jointly; we use per-node (torch.nn.LayerNorm) semantics over features.
        mu = jnp.mean(y, axis=-1, keepdims=True)
        var = jnp.mean((y - mu) ** 2, axis=-1, keepdims=True)
        y = (y - mu) * lax.rsqrt(var + 1e-5) * gcn_g_ref[l] + gcn_b_ref[l]
        y = jnp.maximum(y, 0.0)                                  # dropout == identity at eval
        x = y + r

    # ---------------- GlobalAttention pooling (single matmul readout) --------
    g1 = jnp.maximum(jnp.dot(x, w_g1_ref[...], preferred_element_type=f32)
                     + b_g1_ref[...], 0.0)                       # (N, Hid//4)
    gate = jnp.dot(g1, w_g2_ref[...], preferred_element_type=f32) + b_g2_ref[...]   # (N, 1)

    memb = memb_ref[...]                                         # (N, G) one-hot membership
    sc = jnp.where(memb > 0.5, gate, jnp.float32(-1e30))
    mx = jnp.max(sc, axis=0, keepdims=True)                      # (1, G)
    e = jnp.where(memb > 0.5, jnp.exp(sc - mx), 0.0)
    alpha = e * pl.reciprocal(jnp.sum(e, axis=0, keepdims=True), approx=True)  # (N, G)
    out_ref[...] = lax.dot_general(alpha, x, (((0,), (0,)), ((), ())),
                                   preferred_element_type=f32)                 # (G, Hid)


# ----------------------------- wrapper ---------------------------------------
def memory_efficient_graph_encoder(params, tokens, edge_index, batch):
    N, T = tokens.shape
    TN = T * N

    # Embedding lookup, already flattened time-major (row = t*N + n), with the
    # backward direction's input pre-time-reversed (so the kernel's x-gate matmul
    # covers both directions and every step is one contiguous row slice).
    tok_tm = tokens.T                                                # (T, N)
    emb_fwd = jnp.take(params['embedding'], tok_tm.reshape(-1), axis=0)          # (TN, E)
    emb_bwd = jnp.take(params['embedding'], tok_tm[::-1].reshape(-1), axis=0)    # (TN, E)
    emb_cat = jnp.concatenate([emb_fwd, emb_bwd], axis=1)            # (TN, 2E)

    keep_tm = (tok_tm != PAD_IDX).astype(jnp.float32)                # (T, N); 1.0 = valid
    keep_flat = keep_tm.reshape(-1)                                  # (TN,)
    # key validity per relative offset delta (aligned with the kernel's row shift)
    kcols = jnp.stack([jnp.roll(keep_flat, -d * N) for d in range(T)], axis=1)   # (TN, T)
    kmask = jnp.tile(kcols, (1, NUM_HEADS))                          # (TN, heads*T)

    # masked-mean pooling as one matmul: P[n, t*N+n] = keep[t,n] / len[n]
    lengths = jnp.maximum(jnp.sum(keep_tm, axis=0), 1.0)             # (N,)
    col_n = jnp.arange(TN, dtype=jnp.int32) % N
    pool_mat = jnp.where(col_n[None, :] == jnp.arange(N, dtype=jnp.int32)[:, None],
                         keep_flat[None, :], 0.0) / lengths[:, None]             # (N, TN)

    # Dense symmetrically-normalized (A + I)  (exact GCNConv semantics for small graphs).
    src, dst = edge_index[0], edge_index[1]
    A = jnp.zeros((N, N), jnp.float32).at[dst, src].add(1.0)
    A_hat = A + jnp.eye(N, dtype=jnp.float32)
    deg = jnp.sum(A_hat, axis=1)
    dinv = 1.0 / jnp.sqrt(deg)
    a_norm = dinv[:, None] * A_hat * dinv[None, :]

    memb = (batch[:, None] == jnp.arange(N_GRAPHS)[None, :]).astype(jnp.float32)  # (N, G)

    args = (emb_cat, kmask, pool_mat, a_norm, memb,
            params['lstm_w_ih'], params['lstm_w_hh'], params['lstm_b'],
            params['attn_w_in'], params['attn_b_in'],
            params['attn_wsel'], params['attn_wlsum'], params['attn_whexp'],
            params['attn_w_out'], params['attn_b_out'],
            params['proj_w'], params['proj_b'], params['ln_gamma'], params['ln_beta'],
            params['gcn_in_w'], params['gcn_in_b'], params['res_w'], params['res_b'],
            params['gcn_w'], params['gcn_b'], params['gcn_gamma'], params['gcn_beta'],
            params['gate_w1'], params['gate_b1'], params['gate_w2'], params['gate_b2'])

    return pl.pallas_call(
        _fused_encoder_kernel,
        out_shape=jax.ShapeDtypeStruct((N_GRAPHS, GCN_HIDDEN), jnp.float32),
        in_specs=[VMEM_SPEC] * len(args),
        out_specs=VMEM_SPEC,
        scratch_shapes=[pltpu.VMEM((TN, RNN_OUT), jnp.float32)],
    )(*args)


# ----------------------------- parameter init (deterministic) ---------------
def init_params(key):
    ks = list(jax.random.split(key, 64))
    kit = iter(ks)

    def norm(shape, scale=0.1):
        return scale * jax.random.normal(next(kit), shape, dtype=jnp.float32)

    p = {}
    emb = norm((VOCAB_SIZE, EMBED))
    p['embedding'] = emb.at[PAD_IDX].set(0.0)                        # padding_idx row = 0

    # LSTM (1 layer, bidirectional), packed into big block matrices.
    # Gate-column order [i_f,i_b, f_f,f_b, o_f,o_b, g_f,g_b] (each H wide) so the
    # kernel runs one wide sigmoid + one wide tanh per step on contiguous slices.
    H = RNN_HIDDEN
    col = {('i', 'f'): 0, ('i', 'b'): H, ('f', 'f'): 2 * H, ('f', 'b'): 3 * H,
           ('o', 'f'): 4 * H, ('o', 'b'): 5 * H, ('g', 'f'): 6 * H, ('g', 'b'): 7 * H}
    w_ih = jnp.zeros((2 * EMBED, 8 * H), jnp.float32)    # rows 0:E fwd emb, E:2E reversed emb
    w_hh = jnp.zeros((2 * H, 8 * H), jnp.float32)        # rows 0:H h_fwd, H:2H h_bwd
    b_l = jnp.zeros((1, 8 * H), jnp.float32)
    for dct, roff in (('f', 0), ('b', 1)):
        for g in ('i', 'f', 'g', 'o'):                   # nn.LSTM gate math: i,f,g,o
            wih_g = norm((H, EMBED))
            whh_g = norm((H, H))
            bih_g = norm((H,))
            bhh_g = norm((H,))
            c = col[(g, dct)]
            w_ih = w_ih.at[roff * EMBED:(roff + 1) * EMBED, c:c + H].set(wih_g.T)
            w_hh = w_hh.at[roff * H:(roff + 1) * H, c:c + H].set(whh_g.T)
            b_l = b_l.at[0, c:c + H].set(bih_g + bhh_g)
    p['lstm_w_ih'] = w_ih
    p['lstm_w_hh'] = w_hh
    p['lstm_b'] = b_l

    # MultiheadAttention (embed_dim = RNN_OUT, 4 heads), fused in/out projections.
    D = RNN_OUT
    scale = 1.0 / math.sqrt(HEAD_DIM)
    in_w = norm((3 * D, D))
    in_b = norm((3 * D,))
    w_in = in_w.T                                        # (D, 3D) = [q|k|v] columns
    w_in = w_in.at[:, 0:D].multiply(scale)               # fold 1/sqrt(head_dim) into q-proj
    b_in = in_b.reshape(1, 3 * D).at[:, 0:D].multiply(scale)
    p['attn_w_in'] = w_in
    p['attn_b_in'] = b_in
    out_w = norm((D, D))
    out_b = norm((D,))
    p['attn_w_out'] = out_w.T
    p['attn_b_out'] = out_b.reshape(1, D)

    # Structural selector constants for block-diagonal attention (not trainable).
    wsel = np.zeros((SEQ_LEN, D, SCORE_W), np.float32)   # sum head lanes -> col h*T+delta
    wlsum = np.zeros((SCORE_W, NUM_HEADS), np.float32)   # per-head softmax denominator
    whexp = np.zeros((NUM_HEADS, D), np.float32)         # broadcast 1/l over head lanes
    for h in range(NUM_HEADS):
        wlsum[h * SEQ_LEN:(h + 1) * SEQ_LEN, h] = 1.0
        whexp[h, h * HEAD_DIM:(h + 1) * HEAD_DIM] = 1.0
        for d in range(SEQ_LEN):
            wsel[d, h * HEAD_DIM:(h + 1) * HEAD_DIM, h * SEQ_LEN + d] = 1.0
    p['attn_wsel'] = jnp.asarray(wsel)
    p['attn_wlsum'] = jnp.asarray(wlsum)
    p['attn_whexp'] = jnp.asarray(whexp)

    # output_proj + LayerNorm of statement encoder
    p['proj_w'] = norm((RNN_HIDDEN, RNN_OUT)).T          # (2H, H)
    p['proj_b'] = norm((RNN_HIDDEN,)).reshape(1, RNN_HIDDEN)
    p['ln_gamma'] = jnp.ones((1, RNN_HIDDEN), jnp.float32)
    p['ln_beta'] = jnp.zeros((1, RNN_HIDDEN), jnp.float32)

    # GCN layers (weights stored transposed for X @ W^T)
    p['gcn_in_w'] = norm((GCN_HIDDEN, RNN_HIDDEN)).T
    p['gcn_in_b'] = jnp.zeros((1, GCN_HIDDEN), jnp.float32)
    p['res_w'] = norm((GCN_HIDDEN, RNN_HIDDEN)).T
    p['res_b'] = norm((GCN_HIDDEN,)).reshape(1, GCN_HIDDEN)
    p['gcn_w'] = jnp.stack([norm((GCN_HIDDEN, GCN_HIDDEN)).T
                            for _ in range(N_HIDDEN_LAYERS)])        # (L, Hid, Hid)
    p['gcn_b'] = jnp.zeros((N_HIDDEN_LAYERS, 1, GCN_HIDDEN), jnp.float32)
    p['gcn_gamma'] = jnp.ones((N_HIDDEN_LAYERS, 1, GCN_HIDDEN), jnp.float32)
    p['gcn_beta'] = jnp.zeros((N_HIDDEN_LAYERS, 1, GCN_HIDDEN), jnp.float32)

    # GlobalAttention gate MLP: Linear(Hid, Hid//4) -> ReLU -> Linear(Hid//4, 1)
    p['gate_w1'] = norm((GCN_HIDDEN // 4, GCN_HIDDEN)).T
    p['gate_b1'] = norm((GCN_HIDDEN // 4,)).reshape(1, GCN_HIDDEN // 4)
    p['gate_w2'] = norm((1, GCN_HIDDEN // 4)).T
    p['gate_b2'] = norm((1,)).reshape(1, 1)
    return p


# ----------------------------- main ------------------------------------------
if __name__ == "__main__":
    key = jax.random.PRNGKey(0)
    pkey, tkey = jax.random.split(key)
    params = init_params(pkey)

    tokens = jax.random.randint(tkey, (N_NODES, SEQ_LEN), 0, VOCAB_SIZE, dtype=jnp.int32)
    tokens = tokens.at[:, 0].set(jnp.maximum(tokens[:, 0], 1))       # >=1 non-pad token/node

    half = N_NODES // 2
    batch = jnp.concatenate([jnp.zeros(half, jnp.int32),
                             jnp.ones(N_NODES - half, jnp.int32)])
    src, dst = [], []
    for off in (0, half):                                            # ring inside each graph
        for i in range(half):
            src.append(off + i)
            dst.append(off + (i + 1) % half)
    src += [0, half]                                                 # extra within-graph edges
    dst += [half // 2, half + half // 2]
    edge_index = jnp.array([src, dst], dtype=jnp.int32)

    fwd = jax.jit(memory_efficient_graph_encoder)
    out = fwd(params, tokens, edge_index, batch)
    jax.block_until_ready(out)
    assert out.shape == (N_GRAPHS, GCN_HIDDEN) and out.dtype == jnp.float32
    assert bool(jnp.all(jnp.isfinite(out)))
    print("KERNEL_OK")
</pallas_src>

<mosaic_0001>
module attributes {stable_mosaic.version = 11 : i64} {
  func.func @_fused_encoder_kernel(%arg0: memref<128x32xf32, #tpu.memory_space<vmem>>, %arg1: memref<128x32xf32, #tpu.memory_space<vmem>>, %arg2: memref<16x128xf32, #tpu.memory_space<vmem>>, %arg3: memref<16x16xf32, #tpu.memory_space<vmem>>, %arg4: memref<16x2xf32, #tpu.memory_space<vmem>>, %arg5: memref<32x128xf32, #tpu.memory_space<vmem>>, %arg6: memref<32x128xf32, #tpu.memory_space<vmem>>, %arg7: memref<1x128xf32, #tpu.memory_space<vmem>>, %arg8: memref<32x96xf32, #tpu.memory_space<vmem>>, %arg9: memref<1x96xf32, #tpu.memory_space<vmem>>, %arg10: memref<8x32x32xf32, #tpu.memory_space<vmem>>, %arg11: memref<32x4xf32, #tpu.memory_space<vmem>>, %arg12: memref<4x32xf32, #tpu.memory_space<vmem>>, %arg13: memref<32x32xf32, #tpu.memory_space<vmem>>, %arg14: memref<1x32xf32, #tpu.memory_space<vmem>>, %arg15: memref<32x16xf32, #tpu.memory_space<vmem>>, %arg16: memref<1x16xf32, #tpu.memory_space<vmem>>, %arg17: memref<1x16xf32, #tpu.memory_space<vmem>>, %arg18: memref<1x16xf32, #tpu.memory_space<vmem>>, %arg19: memref<16x32xf32, #tpu.memory_space<vmem>>, %arg20: memref<1x32xf32, #tpu.memory_space<vmem>>, %arg21: memref<16x32xf32, #tpu.memory_space<vmem>>, %arg22: memref<1x32xf32, #tpu.memory_space<vmem>>, %arg23: memref<2x32x32xf32, #tpu.memory_space<vmem>>, %arg24: memref<2x1x32xf32, #tpu.memory_space<vmem>>, %arg25: memref<2x1x32xf32, #tpu.memory_space<vmem>>, %arg26: memref<2x1x32xf32, #tpu.memory_space<vmem>>, %arg27: memref<32x8xf32, #tpu.memory_space<vmem>>, %arg28: memref<1x8xf32, #tpu.memory_space<vmem>>, %arg29: memref<8x1xf32, #tpu.memory_space<vmem>>, %arg30: memref<1x1xf32, #tpu.memory_space<vmem>>, %arg31: memref<2x32xf32, #tpu.memory_space<vmem>>, %arg32: memref<128x32xf32, #tpu.memory_space<vmem>>) attributes {dimension_semantics = [], scalar_prefetch = 0 : i64, scratch_operands = 1 : i64, tpu.core_type = #tpu.core_type<tc>} {
    %c0 = arith.constant 0 : index
    %c0_0 = arith.constant 0 : index
    %0 = vector.load %arg0[%c0, %c0_0] : memref<128x32xf32, #tpu.memory_space<vmem>>, vector<128x32xf32>
    %c0_1 = arith.constant 0 : index
    %c0_2 = arith.constant 0 : index
    %1 = vector.load %arg5[%c0_1, %c0_2] : memref<32x128xf32, #tpu.memory_space<vmem>>, vector<32x128xf32>
    %cst = arith.constant dense<0.000000e+00> : vector<128x128xf32>
    %2 = tpu.matmul %0, %1, %cst {dimension_numbers = #tpu.dot_dimension_numbers<[1], [0], [0], [1], [0, 0, 1, 1], [], []>} : vector<128x32xf32>, vector<32x128xf32>, vector<128x128xf32> -> vector<128x128xf32>
    %c0_3 = arith.constant 0 : index
    %c0_4 = arith.constant 0 : index
    %3 = vector.load %arg7[%c0_3, %c0_4] : memref<1x128xf32, #tpu.memory_space<vmem>>, vector<1x128xf32>
    %4 = vector.broadcast %3 : vector<1x128xf32> to vector<128x128xf32>
    %5 = arith.addf %2, %4 : vector<128x128xf32>
    %c0_5 = arith.constant 0 : index
    %c0_6 = arith.constant 0 : index
    %6 = vector.load %arg6[%c0_5, %c0_6] : memref<32x128xf32, #tpu.memory_space<vmem>>, vector<32x128xf32>
    %cst_7 = arith.constant 0.000000e+00 : f32
    %7 = vector.broadcast %cst_7 : f32 to vector<16x32xf32>
    %cst_8 = arith.constant 0.000000e+00 : f32
    %8 = vector.broadcast %cst_8 : f32 to vector<16x32xf32>
    %9 = vector.extract_strided_slice %5 {offsets = [0, 0], sizes = [16, 128], strides = [1, 1]} : vector<128x128xf32> to vector<16x128xf32>
    %cst_9 = arith.constant dense<0.000000e+00> : vector<16x128xf32>
    %10 = tpu.matmul %7, %6, %cst_9 {dimension_numbers = #tpu.dot_dimension_numbers<[1], [0], [0], [1], [0, 0, 1, 1], [], []>} : vector<16x32xf32>, vector<32x128xf32>, vector<16x128xf32> -> vector<16x128xf32>
    %11 = arith.addf %9, %10 : vector<16x128xf32>
    %12 = vector.extract_strided_slice %11 {offsets = [0, 0], sizes = [16, 96], strides = [1, 1]} : vector<16x128xf32> to vector<16x96xf32>
    %13 = arith.negf %12 : vector<16x96xf32>
    %14 = math.exp %13 : vector<16x96xf32>
    %cst_10 = arith.constant 1.000000e+00 : f32
    %15 = vector.broadcast %cst_10 : f32 to vector<16x96xf32>
    %16 = arith.addf %15, %14 : vector<16x96xf32>
    %17 = arith.divf %15, %16 : vector<16x96xf32>
    %18 = vector.extract_strided_slice %11 {offsets = [0, 96], sizes = [16, 32], strides = [1, 1]} : vector<16x128xf32> to vector<16x32xf32>
    %19 = math.tanh %18 : vector<16x32xf32>
    %20 = vector.extract_strided_slice %17 {offsets = [0, 32], sizes = [16, 32], strides = [1, 1]} : vector<16x96xf32> to vector<16x32xf32>
    %21 = arith.mulf %20, %8 : vector<16x32xf32>
    %22 = vector.extract_strided_slice %17 {offsets = [0, 0], sizes = [16, 32], strides = [1, 1]} : vector<16x96xf32> to vector<16x32xf32>
    %23 = arith.mulf %22, %19 : vector<16x32xf32>
    %24 = arith.addf %21, %23 : vector<16x32xf32>
    %25 = vector.extract_strided_slice %17 {offsets = [0, 64], sizes = [16, 32], strides = [1, 1]} : vector<16x96xf32> to vector<16x32xf32>
    %26 = math.tanh %24 : vector<16x32xf32>
    %27 = arith.mulf %25, %26 : vector<16x32xf32>
    %28 = vector.extract_strided_slice %27 {offsets = [0, 0], sizes = [16, 16], strides = [1, 1]} : vector<16x32xf32> to vector<16x16xf32>
    %c0_11 = arith.constant 0 : index
    %c0_12 = arith.constant 0 : index
    %29 = vector.load %arg32[%c0_11, %c0_12] : memref<128x32xf32, #tpu.memory_space<vmem>>, vector<16x16xf32>
    tpu.vector_store %arg32[%c0_11, %c0_12], %28 {strides = array<i32>} : memref<128x32xf32, #tpu.memory_space<vmem>>, vector<16x16xf32>,
    %30 = vector.extract_strided_slice %27 {offsets = [0, 16], sizes = [16, 16], strides = [1, 1]} : vector<16x32xf32> to vector<16x16xf32>
    %c112 = arith.constant 112 : index
    %c16 = arith.constant 16 : index
    %31 = vector.load %arg32[%c112, %c16] : memref<128x32xf32, #tpu.memory_space<vmem>>, vector<16x16xf32>
    tpu.vector_store %arg32[%c112, %c16], %30 {strides = array<i32>} : memref<128x32xf32, #tpu.memory_space<vmem>>, vector<16x16xf32>,
    %32 = vector.extract_strided_slice %5 {offsets = [16, 0], sizes = [16, 128], strides = [1, 1]} : vector<128x128xf32> to vector<16x128xf32>
    %cst_13 = arith.constant dense<0.000000e+00> : vector<16x128xf32>
    %33 = tpu.matmul %27, %6, %cst_13 {dimension_numbers = #tpu.dot_dimension_numbers<[1], [0], [0], [1], [0, 0, 1, 1], [], []>} : vector<16x32xf32>, vector<32x128xf32>, vector<16x128xf32> -> vector<16x128xf32>
    %34 = arith.addf %32, %33 : vector<16x128xf32>
    %35 = vector.extract_strided_slice %34 {offsets = [0, 0], sizes = [16, 96], strides = [1, 1]} : vector<16x128xf32> to vector<16x96xf32>
    %36 = arith.negf %35 : vector<16x96xf32>
    %37 = math.exp %36 : vector<16x96xf32>
    %cst_14 = arith.constant 1.000000e+00 : f32
    %38 = vector.broadcast %cst_14 : f32 to vector<16x96xf32>
    %39 = arith.addf %38, %37 : vector<16x96xf32>
    %40 = arith.divf %38, %39 : vector<16x96xf32>
    %41 = vector.extract_strided_slice %34 {offsets = [0, 96], sizes = [16, 32], strides = [1, 1]} : vector<16x128xf32> to vector<16x32xf32>
    %42 = math.tanh %41 : vector<16x32xf32>
    %43 = vector.extract_strided_slice %40 {offsets = [0, 32], sizes = [16, 32], strides = [1, 1]} : vector<16x96xf32> to vector<16x32xf32>
    %44 = arith.mulf %43, %24 : vector<16x32xf32>
    %45 = vector.extract_strided_slice %40 {offsets = [0, 0], sizes = [16, 32], strides = [1, 1]} : vector<16x96xf32> to vector<16x32xf32>
    %46 = arith.mulf %45, %42 : vector<16x32xf32>
    %47 = arith.addf %44, %46 : vector<16x32xf32>
    %48 = vector.extract_strided_slice %40 {offsets = [0, 64], sizes = [16, 32], strides = [1, 1]} : vector<16x96xf32> to vector<16x32xf32>
    %49 = math.tanh %47 : vector<16x32xf32>
    %50 = arith.mulf %48, %49 : vector<16x32xf32>
    %51 = vector.extract_strided_slice %50 {offsets = [0, 0], sizes = [16, 16], strides = [1, 1]} : vector<16x32xf32> to vector<16x16xf32>
    %c16_15 = arith.constant 16 : index
    %c0_16 = arith.constant 0 : index
    %52 = vector.load %arg32[%c16_15, %c0_16] : memref<128x32xf32, #tpu.memory_space<vmem>>, vector<16x16xf32>
    tpu.vector_store %arg32[%c16_15, %c0_16], %51 {strides = array<i32>} : memref<128x32xf32, #tpu.memory_space<vmem>>, vector<16x16xf32>,
    %53 = vector.extract_strided_slice %50 {offsets = [0, 16], sizes = [16, 16], strides = [1, 1]} : vector<16x32xf32> to vector<16x16xf32>
    %c96 = arith.constant 96 : index
    %c16_17 = arith.constant 16 : index
    %54 = vector.load %arg32[%c96, %c16_17] : memref<128x32xf32, #tpu.memory_space<vmem>>, vector<16x16xf32>
    tpu.vector_store %arg32[%c96, %c16_17], %53 {strides = array<i32>} : memref<128x32xf32, #tpu.memory_space<vmem>>, vector<16x16xf32>,
    %55 = vector.extract_strided_slice %5 {offsets = [32, 0], sizes = [16, 128], strides = [1, 1]} : vector<128x128xf32> to vector<16x128xf32>
    %cst_18 = arith.constant dense<0.000000e+00> : vector<16x128xf32>
    %56 = tpu.matmul %50, %6, %cst_18 {dimension_numbers = #tpu.dot_dimension_numbers<[1], [0], [0], [1], [0, 0, 1, 1], [], []>} : vector<16x32xf32>, vector<32x128xf32>, vector<16x128xf32> -> vector<16x128xf32>
    %57 = arith.addf %55, %56 : vector<16x128xf32>
    %58 = vector.extract_strided_slice %57 {offsets = [0, 0], sizes = [16, 96], strides = [1, 1]} : vector<16x128xf32> to vector<16x96xf32>
    %59 = arith.negf %58 : vector<16x96xf32>
    %60 = math.exp %59 : vector<16x96xf32>
    %cst_19 = arith.constant 1.000000e+00 : f32
    %61 = vector.broadcast %cst_19 : f32 to vector<16x96xf32>
    %62 = arith.addf %61, %60 : vector<16x96xf32>
    %63 = arith.divf %61, %62 : vector<16x96xf32>
    %64 = vector.extract_strided_slice %57 {offsets = [0, 96], sizes = [16, 32], strides = [1, 1]} : vector<16x128xf32> to vector<16x32xf32>
    %65 = math.tanh %64 : vector<16x32xf32>
    %66 = vector.extract_strided_slice %63 {offsets = [0, 32], sizes = [16, 32], strides = [1, 1]} : vector<16x96xf32> to vector<16x32xf32>
    %67 = arith.mulf %66, %47 : vector<16x32xf32>
    %68 = vector.extract_strided_slice %63 {offsets = [0, 0], sizes = [16, 32], strides = [1, 1]} : vector<16x96xf32> to vector<16x32xf32>
    %69 = arith.mulf %68, %65 : vector<16x32xf32>
    %70 = arith.addf %67, %69 : vector<16x32xf32>
    %71 = vector.extract_strided_slice %63 {offsets = [0, 64], sizes = [16, 32], strides = [1, 1]} : vector<16x96xf32> to vector<16x32xf32>
    %72 = math.tanh %70 : vector<16x32xf32>
    %73 = arith.mulf %71, %72 : vector<16x32xf32>
    %74 = vector.extract_strided_slice %73 {offsets = [0, 0], sizes = [16, 16], strides = [1, 1]} : vector<16x32xf32> to vector<16x16xf32>
    %c32 = arith.constant 32 : index
    %c0_20 = arith.constant 0 : index
    %75 = vector.load %arg32[%c32, %c0_20] : memref<128x32xf32, #tpu.memory_space<vmem>>, vector<16x16xf32>
    tpu.vector_store %arg32[%c32, %c0_20], %74 {strides = array<i32>} : memref<128x32xf32, #tpu.memory_space<vmem>>, vector<16x16xf32>,
    %76 = vector.extract_strided_slice %73 {offsets = [0, 16], sizes = [16, 16], strides = [1, 1]} : vector<16x32xf32> to vector<16x16xf32>
    %c80 = arith.constant 80 : index
    %c16_21 = arith.constant 16 : index
    %77 = vector.load %arg32[%c80, %c16_21] : memref<128x32xf32, #tpu.memory_space<vmem>>, vector<16x16xf32>
    tpu.vector_store %arg32[%c80, %c16_21], %76 {strides = array<i32>} : memref<128x32xf32, #tpu.memory_space<vmem>>, vector<16x16xf32>,
    %78 = vector.extract_strided_slice %5 {offsets = [48, 0], sizes = [16, 128], strides = [1, 1]} : vector<128x128xf32> to vector<16x128xf32>
    %cst_22 = arith.constant dense<0.000000e+00> : vector<16x128xf32>
    %79 = tpu.matmul %73, %6, %cst_22 {dimension_numbers = #tpu.dot_dimension_numbers<[1], [0], [0], [1], [0, 0, 1, 1], [], []>} : vector<16x32xf32>, vector<32x128xf32>, vector<16x128xf32> -> vector<16x128xf32>
    %80 = arith.addf %78, %79 : vector<16x128xf32>
    %81 = vector.extract_strided_slice %80 {offsets = [0, 0], sizes = [16, 96], strides = [1, 1]} : vector<16x128xf32> to vector<16x96xf32>
    %82 = arith.negf %81 : vector<16x96xf32>
    %83 = math.exp %82 : vector<16x96xf32>
    %cst_23 = arith.constant 1.000000e+00 : f32
    %84 = vector.broadcast %cst_23 : f32 to vector<16x96xf32>
    %85 = arith.addf %84, %83 : vector<16x96xf32>
    %86 = arith.divf %84, %85 : vector<16x96xf32>
    %87 = vector.extract_strided_slice %80 {offsets = [0, 96], sizes = [16, 32], strides = [1, 1]} : vector<16x128xf32> to vector<16x32xf32>
    %88 = math.tanh %87 : vector<16x32xf32>
    %89 = vector.extract_strided_slice %86 {offsets = [0, 32], sizes = [16, 32], strides = [1, 1]} : vector<16x96xf32> to vector<16x32xf32>
    %90 = arith.mulf %89, %70 : vector<16x32xf32>
    %91 = vector.extract_strided_slice %86 {offsets = [0, 0], sizes = [16, 32], strides = [1, 1]} : vector<16x96xf32> to vector<16x32xf32>
    %92 = arith.mulf %91, %88 : vector<16x32xf32>
    %93 = arith.addf %90, %92 : vector<16x32xf32>
    %94 = vector.extract_strided_slice %86 {offsets = [0, 64], sizes = [16, 32], strides = [1, 1]} : vector<16x96xf32> to vector<16x32xf32>
    %95 = math.tanh %93 : vector<16x32xf32>
    %96 = arith.mulf %94, %95 : vector<16x32xf32>
    %97 = vector.extract_strided_slice %96 {offsets = [0, 0], sizes = [16, 16], strides = [1, 1]} : vector<16x32xf32> to vector<16x16xf32>
    %c48 = arith.constant 48 : index
    %c0_24 = arith.constant 0 : index
    %98 = vector.load %arg32[%c48, %c0_24] : memref<128x32xf32, #tpu.memory_space<vmem>>, vector<16x16xf32>
    tpu.vector_store %arg32[%c48, %c0_24], %97 {strides = array<i32>} : memref<128x32xf32, #tpu.memory_space<vmem>>, vector<16x16xf32>,
    %99 = vector.extract_strided_slice %96 {offsets = [0, 16], sizes = [16, 16], strides = [1, 1]} : vector<16x32xf32> to vector<16x16xf32>
    %c64 = arith.constant 64 : index
    %c16_25 = arith.constant 16 : index
    %100 = vector.load %arg32[%c64, %c16_25] : memref<128x32xf32, #tpu.memory_space<vmem>>, vector<16x16xf32>
    tpu.vector_store %arg32[%c64, %c16_25], %99 {strides = array<i32>} : memref<128x32xf32, #tpu.memory_space<vmem>>, vector<16x16xf32>,
    %101 = vector.extract_strided_slice %5 {offsets = [64, 0], sizes = [16, 128], strides = [1, 1]} : vector<128x128xf32> to vector<16x128xf32>
    %cst_26 = arith.constant dense<0.000000e+00> : vector<16x128xf32>
    %102 = tpu.matmul %96, %6, %cst_26 {dimension_numbers = #tpu.dot_dimension_numbers<[1], [0], [0], [1], [0, 0, 1, 1], [], []>} : vector<16x32xf32>, vector<32x128xf32>, vector<16x128xf32> -> vector<16x128xf32>
    %103 = arith.addf %101, %102 : vector<16x128xf32>
    %104 = vector.extract_strided_slice %103 {offsets = [0, 0], sizes = [16, 96], strides = [1, 1]} : vector<16x128xf32> to vector<16x96xf32>
    %105 = arith.negf %104 : vector<16x96xf32>
    %106 = math.exp %105 : vector<16x96xf32>
    %cst_27 = arith.constant 1.000000e+00 : f32
    %107 = vector.broadcast %cst_27 : f32 to vector<16x96xf32>
    %108 = arith.addf %107, %106 : vector<16x96xf32>
    %109 = arith.divf %107, %108 : vector<16x96xf32>
    %110 = vector.extract_strided_slice %103 {offsets = [0, 96], sizes = [16, 32], strides = [1, 1]} : vector<16x128xf32> to vector<16x32xf32>
    %111 = math.tanh %110 : vector<16x32xf32>
    %112 = vector.extract_strided_slice %109 {offsets = [0, 32], sizes = [16, 32], strides = [1, 1]} : vector<16x96xf32> to vector<16x32xf32>
    %113 = arith.mulf %112, %93 : vector<16x32xf32>
    %114 = vector.extract_strided_slice %109 {offsets = [0, 0], sizes = [16, 32], strides = [1, 1]} : vector<16x96xf32> to vector<16x32xf32>
    %115 = arith.mulf %114, %111 : vector<16x32xf32>
    %116 = arith.addf %113, %115 : vector<16x32xf32>
    %117 = vector.extract_strided_slice %109 {offsets = [0, 64], sizes = [16, 32], strides = [1, 1]} : vector<16x96xf32> to vector<16x32xf32>
    %118 = math.tanh %116 : vector<16x32xf32>
    %119 = arith.mulf %117, %118 : vector<16x32xf32>
    %120 = vector.extract_strided_slice %119 {offsets = [0, 0], sizes = [16, 16], strides = [1, 1]} : vector<16x32xf32> to vector<16x16xf32>
    %c64_28 = arith.constant 64 : index
    %c0_29 = arith.constant 0 : index
    %121 = vector.load %arg32[%c64_28, %c0_29] : memref<128x32xf32, #tpu.memory_space<vmem>>, vector<16x16xf32>
    tpu.vector_store %arg32[%c64_28, %c0_29], %120 {strides = array<i32>} : memref<128x32xf32, #tpu.memory_space<vmem>>, vector<16x16xf32>,
    %122 = vector.extract_strided_slice %119 {offsets = [0, 16], sizes = [16, 16], strides = [1, 1]} : vector<16x32xf32> to vector<16x16xf32>
    %c48_30 = arith.constant 48 : index
    %c16_31 = arith.constant 16 : index
    %123 = vector.load %arg32[%c48_30, %c16_31] : memref<128x32xf32, #tpu.memory_space<vmem>>, vector<16x16xf32>
    tpu.vector_store %arg32[%c48_30, %c16_31], %122 {strides = array<i32>} : memref<128x32xf32, #tpu.memory_space<vmem>>, vector<16x16xf32>,
    %124 = vector.extract_strided_slice %5 {offsets = [80, 0], sizes = [16, 128], strides = [1, 1]} : vector<128x128xf32> to vector<16x128xf32>
    %cst_32 = arith.constant dense<0.000000e+00> : vector<16x128xf32>
    %125 = tpu.matmul %119, %6, %cst_32 {dimension_numbers = #tpu.dot_dimension_numbers<[1], [0], [0], [1], [0, 0, 1, 1], [], []>} : vector<16x32xf32>, vector<32x128xf32>, vector<16x128xf32> -> vector<16x128xf32>
    %126 = arith.addf %124, %125 : vector<16x128xf32>
    %127 = vector.extract_strided_slice %126 {offsets = [0, 0], sizes = [16, 96], strides = [1, 1]} : vector<16x128xf32> to vector<16x96xf32>
    %128 = arith.negf %127 : vector<16x96xf32>
    %129 = math.exp %128 : vector<16x96xf32>
    %cst_33 = arith.constant 1.000000e+00 : f32
    %130 = vector.broadcast %cst_33 : f32 to vector<16x96xf32>
    %131 = arith.addf %130, %129 : vector<16x96xf32>
    %132 = arith.divf %130, %131 : vector<16x96xf32>
    %133 = vector.extract_strided_slice %126 {offsets = [0, 96], sizes = [16, 32], strides = [1, 1]} : vector<16x128xf32> to vector<16x32xf32>
    %134 = math.tanh %133 : vector<16x32xf32>
    %135 = vector.extract_strided_slice %132 {offsets = [0, 32], sizes = [16, 32], strides = [1, 1]} : vector<16x96xf32> to vector<16x32xf32>
    %136 = arith.mulf %135, %116 : vector<16x32xf32>
    %137 = vector.extract_strided_slice %132 {offsets = [0, 0], sizes = [16, 32], strides = [1, 1]} : vector<16x96xf32> to vector<16x32xf32>
    %138 = arith.mulf %137, %134 : vector<16x32xf32>
    %139 = arith.addf %136, %138 : vector<16x32xf32>
    %140 = vector.extract_strided_slice %132 {offsets = [0, 64], sizes = [16, 32], strides = [1, 1]} : vector<16x96xf32> to vector<16x32xf32>
    %141 = math.tanh %139 : vector<16x32xf32>
    %142 = arith.mulf %140, %141 : vector<16x32xf32>
    %143 = vector.extract_strided_slice %142 {offsets = [0, 0], sizes = [16, 16], strides = [1, 1]} : vector<16x32xf32> to vector<16x16xf32>
    %c80_34 = arith.constant 80 : index
    %c0_35 = arith.constant 0 : index
    %144 = vector.load %arg32[%c80_34, %c0_35] : memref<128x32xf32, #tpu.memory_space<vmem>>, vector<16x16xf32>
    tpu.vector_store %arg32[%c80_34, %c0_35], %143 {strides = array<i32>} : memref<128x32xf32, #tpu.memory_space<vmem>>, vector<16x16xf32>,
    %145 = vector.extract_strided_slice %142 {offsets = [0, 16], sizes = [16, 16], strides = [1, 1]} : vector<16x32xf32> to vector<16x16xf32>
    %c32_36 = arith.constant 32 : index
    %c16_37 = arith.constant 16 : index
    %146 = vector.load %arg32[%c32_36, %c16_37] : memref<128x32xf32, #tpu.memory_space<vmem>>, vector<16x16xf32>
    tpu.vector_store %arg32[%c32_36, %c16_37], %145 {strides = array<i32>} : memref<128x32xf32, #tpu.memory_space<vmem>>, vector<16x16xf32>,
    %147 = vector.extract_strided_slice %5 {offsets = [96, 0], sizes = [16, 128], strides = [1, 1]} : vector<128x128xf32> to vector<16x128xf32>
    %cst_38 = arith.constant dense<0.000000e+00> : vector<16x128xf32>
    %148 = tpu.matmul %142, %6, %cst_38 {dimension_numbers = #tpu.dot_dimension_numbers<[1], [0], [0], [1], [0, 0, 1, 1], [], []>} : vector<16x32xf32>, vector<32x128xf32>, vector<16x128xf32> -> vector<16x128xf32>
    %149 = arith.addf %147, %148 : vector<16x128xf32>
    %150 = vector.extract_strided_slice %149 {offsets = [0, 0], sizes = [16, 96], strides = [1, 1]} : vector<16x128xf32> to vector<16x96xf32>
    %151 = arith.negf %150 : vector<16x96xf32>
    %152 = math.exp %151 : vector<16x96xf32>
    %cst_39 = arith.constant 1.000000e+00 : f32
    %153 = vector.broadcast %cst_39 : f32 to vector<16x96xf32>
    %154 = arith.addf %153, %152 : vector<16x96xf32>
    %155 = arith.divf %153, %154 : vector<16x96xf32>
    %156 = vector.extract_strided_slice %149 {offsets = [0, 96], sizes = [16, 32], strides = [1, 1]} : vector<16x128xf32> to vector<16x32xf32>
    %157 = math.tanh %156 : vector<16x32xf32>
    %158 = vector.extract_strided_slice %155 {offsets = [0, 32], sizes = [16, 32], strides = [1, 1]} : vector<16x96xf32> to vector<16x32xf32>
    %159 = arith.mulf %158, %139 : vector<16x32xf32>
    %160 = vector.extract_strided_slice %155 {offsets = [0, 0], sizes = [16, 32], strides = [1, 1]} : vector<16x96xf32> to vector<16x32xf32>
    %161 = arith.mulf %160, %157 : vector<16x32xf32>
    %162 = arith.addf %159, %161 : vector<16x32xf32>
    %163 = vector.extract_strided_slice %155 {offsets = [0, 64], sizes = [16, 32], strides = [1, 1]} : vector<16x96xf32> to vector<16x32xf32>
    %164 = math.tanh %162 : vector<16x32xf32>
    %165 = arith.mulf %163, %164 : vector<16x32xf32>
    %166 = vector.extract_strided_slice %165 {offsets = [0, 0], sizes = [16, 16], strides = [1, 1]} : vector<16x32xf32> to vector<16x16xf32>
    %c96_40 = arith.constant 96 : index
    %c0_41 = arith.constant 0 : index
    %167 = vector.load %arg32[%c96_40, %c0_41] : memref<128x32xf32, #tpu.memory_space<vmem>>, vector<16x16xf32>
    tpu.vector_store %arg32[%c96_40, %c0_41], %166 {strides = array<i32>} : memref<128x32xf32, #tpu.memory_space<vmem>>, vector<16x16xf32>,
    %168 = vector.extract_strided_slice %165 {offsets = [0, 16], sizes = [16, 16], strides = [1, 1]} : vector<16x32xf32> to vector<16x16xf32>
    %c16_42 = arith.constant 16 : index
    %c16_43 = arith.constant 16 : index
    %169 = vector.load %arg32[%c16_42, %c16_43] : memref<128x32xf32, #tpu.memory_space<vmem>>, vector<16x16xf32>
    tpu.vector_store %arg32[%c16_42, %c16_43], %168 {strides = array<i32>} : memref<128x32xf32, #tpu.memory_space<vmem>>, vector<16x16xf32>,
    %170 = vector.extract_strided_slice %5 {offsets = [112, 0], sizes = [16, 128], strides = [1, 1]} : vector<128x128xf32> to vector<16x128xf32>
    %cst_44 = arith.constant dense<0.000000e+00> : vector<16x128xf32>
    %171 = tpu.matmul %165, %6, %cst_44 {dimension_numbers = #tpu.dot_dimension_numbers<[1], [0], [0], [1], [0, 0, 1, 1], [], []>} : vector<16x32xf32>, vector<32x128xf32>, vector<16x128xf32> -> vector<16x128xf32>
    %172 = arith.addf %170, %171 : vector<16x128xf32>
    %173 = vector.extract_strided_slice %172 {offsets = [0, 0], sizes = [16, 96], strides = [1, 1]} : vector<16x128xf32> to vector<16x96xf32>
    %174 = arith.negf %173 : vector<16x96xf32>
    %175 = math.exp %174 : vector<16x96xf32>
    %cst_45 = arith.constant 1.000000e+00 : f32
    %176 = vector.broadcast %cst_45 : f32 to vector<16x96xf32>
    %177 = arith.addf %176, %175 : vector<16x96xf32>
    %178 = arith.divf %176, %177 : vector<16x96xf32>
    %179 = vector.extract_strided_slice %172 {offsets = [0, 96], sizes = [16, 32], strides = [1, 1]} : vector<16x128xf32> to vector<16x32xf32>
    %180 = math.tanh %179 : vector<16x32xf32>
    %181 = vector.extract_strided_slice %178 {offsets = [0, 32], sizes = [16, 32], strides = [1, 1]} : vector<16x96xf32> to vector<16x32xf32>
    %182 = arith.mulf %181, %162 : vector<16x32xf32>
    %183 = vector.extract_strided_slice %178 {offsets = [0, 0], sizes = [16, 32], strides = [1, 1]} : vector<16x96xf32> to vector<16x32xf32>
    %184 = arith.mulf %183, %180 : vector<16x32xf32>
    %185 = arith.addf %182, %184 : vector<16x32xf32>
    %186 = vector.extract_strided_slice %178 {offsets = [0, 64], sizes = [16, 32], strides = [1, 1]} : vector<16x96xf32> to vector<16x32xf32>
    %187 = math.tanh %185 : vector<16x32xf32>
    %188 = arith.mulf %186, %187 : vector<16x32xf32>
    %189 = vector.extract_strided_slice %188 {offsets = [0, 0], sizes = [16, 16], strides = [1, 1]} : vector<16x32xf32> to vector<16x16xf32>
    %c112_46 = arith.constant 112 : index
    %c0_47 = arith.constant 0 : index
    %190 = vector.load %arg32[%c112_46, %c0_47] : memref<128x32xf32, #tpu.memory_space<vmem>>, vector<16x16xf32>
    tpu.vector_store %arg32[%c112_46, %c0_47], %189 {strides = array<i32>} : memref<128x32xf32, #tpu.memory_space<vmem>>, vector<16x16xf32>,
    %191 = vector.extract_strided_slice %188 {offsets = [0, 16], sizes = [16, 16], strides = [1, 1]} : vector<16x32xf32> to vector<16x16xf32>
    %c0_48 = arith.constant 0 : index
    %c16_49 = arith.constant 16 : index
    %192 = vector.load %arg32[%c0_48, %c16_49] : memref<128x32xf32, #tpu.memory_space<vmem>>, vector<16x16xf32>
    tpu.vector_store %arg32[%c0_48, %c16_49], %191 {strides = array<i32>} : memref<128x32xf32, #tpu.memory_space<vmem>>, vector<16x16xf32>,
    %c0_50 = arith.constant 0 : index
    %c0_51 = arith.constant 0 : index
    %193 = vector.load %arg32[%c0_50, %c0_51] : memref<128x32xf32, #tpu.memory_space<vmem>>, vector<128x32xf32>
    %c0_52 = arith.constant 0 : index
    %c0_53 = arith.constant 0 : index
    %194 = vector.load %arg8[%c0_52, %c0_53] : memref<32x96xf32, #tpu.memory_space<vmem>>, vector<32x96xf32>
    %cst_54 = arith.constant dense<0.000000e+00> : vector<128x96xf32>
    %195 = tpu.matmul %193, %194, %cst_54 {dimension_numbers = #tpu.dot_dimension_numbers<[1], [0], [0], [1], [0, 0, 1, 1], [], []>} : vector<128x32xf32>, vector<32x96xf32>, vector<128x96xf32> -> vector<128x96xf32>
    %c0_55 = arith.constant 0 : index
    %c0_56 = arith.constant 0 : index
    %196 = vector.load %arg9[%c0_55, %c0_56] : memref<1x96xf32, #tpu.memory_space<vmem>>, vector<1x96xf32>
    %197 = vector.broadcast %196 : vector<1x96xf32> to vector<128x96xf32>
    %198 = arith.addf %195, %197 : vector<128x96xf32>
    %199 = vector.extract_strided_slice %198 {offsets = [0, 0], sizes = [128, 32], strides = [1, 1]} : vector<128x96xf32> to vector<128x32xf32>
    %200 = vector.extract_strided_slice %198 {offsets = [0, 32], sizes = [128, 64], strides = [1, 1]} : vector<128x96xf32> to vector<128x64xf32>
    %c0_57 = arith.constant 0 : index
    %c0_58 = arith.constant 0 : index
    %c0_59 = arith.constant 0 : index
    %201 = vector.load %arg10[%c0_57, %c0_58, %c0_59] : memref<8x32x32xf32, #tpu.memory_space<vmem>>, vector<1x32x32xf32>
    %202 = vector.shape_cast %201 : vector<1x32x32xf32> to vector<32x32xf32>
    %c1 = arith.constant 1 : index
    %c0_60 = arith.constant 0 : index
    %c0_61 = arith.constant 0 : index
    %203 = vector.load %arg10[%c1, %c0_60, %c0_61] : memref<8x32x32xf32, #tpu.memory_space<vmem>>, vector<1x32x32xf32>
    %204 = vector.shape_cast %203 : vector<1x32x32xf32> to vector<32x32xf32>
    %c2 = arith.constant 2 : index
    %c0_62 = arith.constant 0 : index
    %c0_63 = arith.constant 0 : index
    %205 = vector.load %arg10[%c2, %c0_62, %c0_63] : memref<8x32x32xf32, #tpu.memory_space<vmem>>, vector<1x32x32xf32>
    %206 = vector.shape_cast %205 : vector<1x32x32xf32> to vector<32x32xf32>
    %c3 = arith.constant 3 : index
    %c0_64 = arith.constant 0 : index
    %c0_65 = arith.constant 0 : index
    %207 = vector.load %arg10[%c3, %c0_64, %c0_65] : memref<8x32x32xf32, #tpu.memory_space<vmem>>, vector<1x32x32xf32>
    %208 = vector.shape_cast %207 : vector<1x32x32xf32> to vector<32x32xf32>
    %c4 = arith.constant 4 : index
    %c0_66 = arith.constant 0 : index
    %c0_67 = arith.constant 0 : index
    %209 = vector.load %arg10[%c4, %c0_66, %c0_67] : memref<8x32x32xf32, #tpu.memory_space<vmem>>, vector<1x32x32xf32>
    %210 = vector.shape_cast %209 : vector<1x32x32xf32> to vector<32x32xf32>
    %c5 = arith.constant 5 : index
    %c0_68 = arith.constant 0 : index
    %c0_69 = arith.constant 0 : index
    %211 = vector.load %arg10[%c5, %c0_68, %c0_69] : memref<8x32x32xf32, #tpu.memory_space<vmem>>, vector<1x32x32xf32>
    %212 = vector.shape_cast %211 : vector<1x32x32xf32> to vector<32x32xf32>
    %c6 = arith.constant 6 : index
    %c0_70 = arith.constant 0 : index
    %c0_71 = arith.constant 0 : index
    %213 = vector.load %arg10[%c6, %c0_70, %c0_71] : memref<8x32x32xf32, #tpu.memory_space<vmem>>, vector<1x32x32xf32>
    %214 = vector.shape_cast %213 : vector<1x32x32xf32> to vector<32x32xf32>
    %c7 = arith.constant 7 : index
    %c0_72 = arith.constant 0 : index
    %c0_73 = arith.constant 0 : index
    %215 = vector.load %arg10[%c7, %c0_72, %c0_73] : memref<8x32x32xf32, #tpu.memory_space<vmem>>, vector<1x32x32xf32>
    %216 = vector.shape_cast %215 : vector<1x32x32xf32> to vector<32x32xf32>
    %cst_74 = arith.constant 0.000000e+00 : f32
    %217 = vector.broadcast %cst_74 : f32 to vector<128x32xf32>
    %218 = vector.extract_strided_slice %200 {offsets = [0, 32], sizes = [128, 32], strides = [1, 1]} : vector<128x64xf32> to vector<128x32xf32>
    %219 = vector.extract_strided_slice %200 {offsets = [0, 0], sizes = [128, 32], strides = [1, 1]} : vector<128x64xf32> to vector<128x32xf32>
    %220 = arith.mulf %199, %219 : vector<128x32xf32>
    %cst_75 = arith.constant dense<0.000000e+00> : vector<128x32xf32>
    %221 = tpu.matmul %220, %202, %cst_75 {dimension_numbers = #tpu.dot_dimension_numbers<[1], [0], [0], [1], [0, 0, 1, 1], [], []>} : vector<128x32xf32>, vector<32x32xf32>, vector<128x32xf32> -> vector<128x32xf32>
    %222 = arith.addf %217, %221 : vector<128x32xf32>
    %223 = vector.extract_strided_slice %200 {offsets = [16, 0], sizes = [112, 64], strides = [1, 1]} : vector<128x64xf32> to vector<112x64xf32>
    %224 = vector.extract_strided_slice %200 {offsets = [0, 0], sizes = [16, 64], strides = [1, 1]} : vector<128x64xf32> to vector<16x64xf32>
    %225 = tpu.concatenate %223, %224 in 0 : vector<112x64xf32>, vector<16x64xf32> -> vector<128x64xf32>
    %226 = vector.extract_strided_slice %225 {offsets = [0, 32], sizes = [128, 32], strides = [1, 1]} : vector<128x64xf32> to vector<128x32xf32>
    %227 = vector.extract_strided_slice %225 {offsets = [0, 0], sizes = [128, 32], strides = [1, 1]} : vector<128x64xf32> to vector<128x32xf32>
    %228 = arith.mulf %199, %227 : vector<128x32xf32>
    %cst_76 = arith.constant dense<0.000000e+00> : vector<128x32xf32>
    %229 = tpu.matmul %228, %204, %cst_76 {dimension_numbers = #tpu.dot_dimension_numbers<[1], [0], [0], [1], [0, 0, 1, 1], [], []>} : vector<128x32xf32>, vector<32x32xf32>, vector<128x32xf32> -> vector<128x32xf32>
    %230 = arith.addf %222, %229 : vector<128x32xf32>
    %231 = vector.extract_strided_slice %200 {offsets = [32, 0], sizes = [96, 64], strides = [1, 1]} : vector<128x64xf32> to vector<96x64xf32>
    %232 = vector.extract_strided_slice %200 {offsets = [0, 0], sizes = [32, 64], strides = [1, 1]} : vector<128x64xf32> to vector<32x64xf32>
    %233 = tpu.concatenate %231, %232 in 0 : vector<96x64xf32>, vector<32x64xf32> -> vector<128x64xf32>
    %234 = vector.extract_strided_slice %233 {offsets = [0, 32], sizes = [128, 32], strides = [1, 1]} : vector<128x64xf32> to vector<128x32xf32>
    %235 = vector.extract_strided_slice %233 {offsets = [0, 0], sizes = [128, 32], strides = [1, 1]} : vector<128x64xf32> to vector<128x32xf32>
    %236 = arith.mulf %199, %235 : vector<128x32xf32>
    %cst_77 = arith.constant dense<0.000000e+00> : vector<128x32xf32>
    %237 = tpu.matmul %236, %206, %cst_77 {dimension_numbers = #tpu.dot_dimension_numbers<[1], [0], [0], [1], [0, 0, 1, 1], [], []>} : vector<128x32xf32>, vector<32x32xf32>, vector<128x32xf32> -> vector<128x32xf32>
    %238 = arith.addf %230, %237 : vector<128x32xf32>
    %239 = vector.extract_strided_slice %200 {offsets = [48, 0], sizes = [80, 64], strides = [1, 1]} : vector<128x64xf32> to vector<80x64xf32>
    %240 = vector.extract_strided_slice %200 {offsets = [0, 0], sizes = [48, 64], strides = [1, 1]} : vector<128x64xf32> to vector<48x64xf32>
    %241 = tpu.concatenate %239, %240 in 0 : vector<80x64xf32>, vector<48x64xf32> -> vector<128x64xf32>
    %242 = vector.extract_strided_slice %241 {offsets = [0, 32], sizes = [128, 32], strides = [1, 1]} : vector<128x64xf32> to vector<128x32xf32>
    %243 = vector.extract_strided_slice %241 {offsets = [0, 0], sizes = [128, 32], strides = [1, 1]} : vector<128x64xf32> to vector<128x32xf32>
    %244 = arith.mulf %199, %243 : vector<128x32xf32>
    %cst_78 = arith.constant dense<0.000000e+00> : vector<128x32xf32>
    %245 = tpu.matmul %244, %208, %cst_78 {dimension_numbers = #tpu.dot_dimension_numbers<[1], [0], [0], [1], [0, 0, 1, 1], [], []>} : vector<128x32xf32>, vector<32x32xf32>, vector<128x32xf32> -> vector<128x32xf32>
    %246 = arith.addf %238, %245 : vector<128x32xf32>
    %247 = vector.extract_strided_slice %200 {offsets = [64, 0], sizes = [64, 64], strides = [1, 1]} : vector<128x64xf32> to vector<64x64xf32>
    %248 = vector.extract_strided_slice %200 {offsets = [0, 0], sizes = [64, 64], strides = [1, 1]} : vector<128x64xf32> to vector<64x64xf32>
    %249 = tpu.concatenate %247, %248 in 0 : vector<64x64xf32>, vector<64x64xf32> -> vector<128x64xf32>
    %250 = vector.extract_strided_slice %249 {offsets = [0, 32], sizes = [128, 32], strides = [1, 1]} : vector<128x64xf32> to vector<128x32xf32>
    %251 = vector.extract_strided_slice %249 {offsets = [0, 0], sizes = [128, 32], strides = [1, 1]} : vector<128x64xf32> to vector<128x32xf32>
    %252 = arith.mulf %199, %251 : vector<128x32xf32>
    %cst_79 = arith.constant dense<0.000000e+00> : vector<128x32xf32>
    %253 = tpu.matmul %252, %210, %cst_79 {dimension_numbers = #tpu.dot_dimension_numbers<[1], [0], [0], [1], [0, 0, 1, 1], [], []>} : vector<128x32xf32>, vector<32x32xf32>, vector<128x32xf32> -> vector<128x32xf32>
    %254 = arith.addf %246, %253 : vector<128x32xf32>
    %255 = vector.extract_strided_slice %200 {offsets = [80, 0], sizes = [48, 64], strides = [1, 1]} : vector<128x64xf32> to vector<48x64xf32>
    %256 = vector.extract_strided_slice %200 {offsets = [0, 0], sizes = [80, 64], strides = [1, 1]} : vector<128x64xf32> to vector<80x64xf32>
    %257 = tpu.concatenate %255, %256 in 0 : vector<48x64xf32>, vector<80x64xf32> -> vector<128x64xf32>
    %258 = vector.extract_strided_slice %257 {offsets = [0, 32], sizes = [128, 32], strides = [1, 1]} : vector<128x64xf32> to vector<128x32xf32>
    %259 = vector.extract_strided_slice %257 {offsets = [0, 0], sizes = [128, 32], strides = [1, 1]} : vector<128x64xf32> to vector<128x32xf32>
    %260 = arith.mulf %199, %259 : vector<128x32xf32>
    %cst_80 = arith.constant dense<0.000000e+00> : vector<128x32xf32>
    %261 = tpu.matmul %260, %212, %cst_80 {dimension_numbers = #tpu.dot_dimension_numbers<[1], [0], [0], [1], [0, 0, 1, 1], [], []>} : vector<128x32xf32>, vector<32x32xf32>, vector<128x32xf32> -> vector<128x32xf32>
    %262 = arith.addf %254, %261 : vector<128x32xf32>
    %263 = vector.extract_strided_slice %200 {offsets = [96, 0], sizes = [32, 64], strides = [1, 1]} : vector<128x64xf32> to vector<32x64xf32>
    %264 = vector.extract_strided_slice %200 {offsets = [0, 0], sizes = [96, 64], strides = [1, 1]} : vector<128x64xf32> to vector<96x64xf32>
    %265 = tpu.concatenate %263, %264 in 0 : vector<32x64xf32>, vector<96x64xf32> -> vector<128x64xf32>
    %266 = vector.extract_strided_slice %265 {offsets = [0, 32], sizes = [128, 32], strides = [1, 1]} : vector<128x64xf32> to vector<128x32xf32>
    %267 = vector.extract_strided_slice %265 {offsets = [0, 0], sizes = [128, 32], strides = [1, 1]} : vector<128x64xf32> to vector<128x32xf32>
    %268 = arith.mulf %199, %267 : vector<128x32xf32>
    %cst_81 = arith.constant dense<0.000000e+00> : vector<128x32xf32>
    %269 = tpu.matmul %268, %214, %cst_81 {dimension_numbers = #tpu.dot_dimension_numbers<[1], [0], [0], [1], [0, 0, 1, 1], [], []>} : vector<128x32xf32>, vector<32x32xf32>, vector<128x32xf32> -> vector<128x32xf32>
    %270 = arith.addf %262, %269 : vector<128x32xf32>
    %271 = vector.extract_strided_slice %200 {offsets = [112, 0], sizes = [16, 64], strides = [1, 1]} : vector<128x64xf32> to vector<16x64xf32>
    %272 = vector.extract_strided_slice %200 {offsets = [0, 0], sizes = [112, 64], strides = [1, 1]} : vector<128x64xf32> to vector<112x64xf32>
    %273 = tpu.concatenate %271, %272 in 0 : vector<16x64xf32>, vector<112x64xf32> -> vector<128x64xf32>
    %274 = vector.extract_strided_slice %273 {offsets = [0, 32], sizes = [128, 32], strides = [1, 1]} : vector<128x64xf32> to vector<128x32xf32>
    %275 = vector.extract_strided_slice %273 {offsets = [0, 0], sizes = [128, 32], strides = [1, 1]} : vector<128x64xf32> to vector<128x32xf32>
    %276 = arith.mulf %199, %275 : vector<128x32xf32>
    %cst_82 = arith.constant dense<0.000000e+00> : vector<128x32xf32>
    %277 = tpu.matmul %276, %216, %cst_82 {dimension_numbers = #tpu.dot_dimension_numbers<[1], [0], [0], [1], [0, 0, 1, 1], [], []>} : vector<128x32xf32>, vector<32x32xf32>, vector<128x32xf32> -> vector<128x32xf32>
    %278 = arith.addf %270, %277 : vector<128x32xf32>
    %c0_83 = arith.constant 0 : index
    %c0_84 = arith.constant 0 : index
    %279 = vector.load %arg1[%c0_83, %c0_84] : memref<128x32xf32, #tpu.memory_space<vmem>>, vector<128x32xf32>
    %cst_85 = arith.constant 5.000000e-01 : f32
    %280 = vector.broadcast %cst_85 : f32 to vector<128x32xf32>
    %281 = arith.cmpf ogt, %279, %280 : vector<128x32xf32>
    %cst_86 = arith.constant -1.000000e+30 : f32
    %282 = vector.broadcast %cst_86 : f32 to vector<128x32xf32>
    %283 = arith.select %281, %278, %282 : vector<128x32xi1>, vector<128x32xf32>
    %cst_87 = arith.constant dense<0xFF800000> : vector<128xf32>
    %284 = vector.multi_reduction <maximumf>, %283, %cst_87 [1] : vector<128x32xf32> to vector<128xf32>
    %285 = vector.shape_cast %284 : vector<128xf32> to vector<128x1xf32>
    %286 = vector.broadcast %285 : vector<128x1xf32> to vector<128x32xf32>
    %287 = arith.subf %283, %286 : vector<128x32xf32>
    %288 = math.exp %287 : vector<128x32xf32>
    %c0_88 = arith.constant 0 : index
    %c0_89 = arith.constant 0 : index
    %289 = vector.load %arg11[%c0_88, %c0_89] : memref<32x4xf32, #tpu.memory_space<vmem>>, vector<32x4xf32>
    %cst_90 = arith.constant dense<0.000000e+00> : vector<128x4xf32>
    %290 = tpu.matmul %288, %289, %cst_90 {dimension_numbers = #tpu.dot_dimension_numbers<[1], [0], [0], [1], [0, 0, 1, 1], [], []>} : vector<128x32xf32>, vector<32x4xf32>, vector<128x4xf32> -> vector<128x4xf32>
    %cst_91 = arith.constant 0.000000e+00 : f32
    %291 = vector.broadcast %cst_91 : f32 to vector<128x32xf32>
    %cst_92 = arith.constant dense<0.000000e+00> : vector<128x32xf32>
    %292 = tpu.matmul %288, %202, %cst_92 {dimension_numbers = #tpu.dot_dimension_numbers<[1], [1], [0], [0], [0, 0, 1, 0], [], []>} : vector<128x32xf32>, vector<32x32xf32>, vector<128x32xf32> -> vector<128x32xf32>
    %293 = arith.mulf %292, %218 : vector<128x32xf32>
    %294 = arith.addf %291, %293 : vector<128x32xf32>
    %cst_93 = arith.constant dense<0.000000e+00> : vector<128x32xf32>
    %295 = tpu.matmul %288, %204, %cst_93 {dimension_numbers = #tpu.dot_dimension_numbers<[1], [1], [0], [0], [0, 0, 1, 0], [], []>} : vector<128x32xf32>, vector<32x32xf32>, vector<128x32xf32> -> vector<128x32xf32>
    %296 = arith.mulf %295, %226 : vector<128x32xf32>
    %297 = arith.addf %294, %296 : vector<128x32xf32>
    %cst_94 = arith.constant dense<0.000000e+00> : vector<128x32xf32>
    %298 = tpu.matmul %288, %206, %cst_94 {dimension_numbers = #tpu.dot_dimension_numbers<[1], [1], [0], [0], [0, 0, 1, 0], [], []>} : vector<128x32xf32>, vector<32x32xf32>, vector<128x32xf32> -> vector<128x32xf32>
    %299 = arith.mulf %298, %234 : vector<128x32xf32>
    %300 = arith.addf %297, %299 : vector<128x32xf32>
    %cst_95 = arith.constant dense<0.000000e+00> : vector<128x32xf32>
    %301 = tpu.matmul %288, %208, %cst_95 {dimension_numbers = #tpu.dot_dimension_numbers<[1], [1], [0], [0], [0, 0, 1, 0], [], []>} : vector<128x32xf32>, vector<32x32xf32>, vector<128x32xf32> -> vector<128x32xf32>
    %302 = arith.mulf %301, %242 : vector<128x32xf32>
    %303 = arith.addf %300, %302 : vector<128x32xf32>
    %cst_96 = arith.constant dense<0.000000e+00> : vector<128x32xf32>
    %304 = tpu.matmul %288, %210, %cst_96 {dimension_numbers = #tpu.dot_dimension_numbers<[1], [1], [0], [0], [0, 0, 1, 0], [], []>} : vector<128x32xf32>, vector<32x32xf32>, vector<128x32xf32> -> vector<128x32xf32>
    %305 = arith.mulf %304, %250 : vector<128x32xf32>
    %306 = arith.addf %303, %305 : vector<128x32xf32>
    %cst_97 = arith.constant dense<0.000000e+00> : vector<128x32xf32>
    %307 = tpu.matmul %288, %212, %cst_97 {dimension_numbers = #tpu.dot_dimension_numbers<[1], [1], [0], [0], [0, 0, 1, 0], [], []>} : vector<128x32xf32>, vector<32x32xf32>, vector<128x32xf32> -> vector<128x32xf32>
    %308 = arith.mulf %307, %258 : vector<128x32xf32>
    %309 = arith.addf %306, %308 : vector<128x32xf32>
    %cst_98 = arith.constant dense<0.000000e+00> : vector<128x32xf32>
    %310 = tpu.matmul %288, %214, %cst_98 {dimension_numbers = #tpu.dot_dimension_numbers<[1], [1], [0], [0], [0, 0, 1, 0], [], []>} : vector<128x32xf32>, vector<32x32xf32>, vector<128x32xf32> -> vector<128x32xf32>
    %311 = arith.mulf %310, %266 : vector<128x32xf32>
    %312 = arith.addf %309, %311 : vector<128x32xf32>
    %cst_99 = arith.constant dense<0.000000e+00> : vector<128x32xf32>
    %313 = tpu.matmul %288, %216, %cst_99 {dimension_numbers = #tpu.dot_dimension_numbers<[1], [1], [0], [0], [0, 0, 1, 0], [], []>} : vector<128x32xf32>, vector<32x32xf32>, vector<128x32xf32> -> vector<128x32xf32>
    %314 = arith.mulf %313, %274 : vector<128x32xf32>
    %315 = arith.addf %312, %314 : vector<128x32xf32>
    %316 = tpu.reciprocal %290 {approx = true} : vector<128x4xf32> -> vector<128x4xf32>
    %c0_100 = arith.constant 0 : index
    %c0_101 = arith.constant 0 : index
    %317 = vector.load %arg12[%c0_100, %c0_101] : memref<4x32xf32, #tpu.memory_space<vmem>>, vector<4x32xf32>
    %cst_102 = arith.constant dense<0.000000e+00> : vector<128x32xf32>
    %318 = tpu.matmul %316, %317, %cst_102 {dimension_numbers = #tpu.dot_dimension_numbers<[1], [0], [0], [1], [0, 0, 1, 1], [], []>} : vector<128x4xf32>, vector<4x32xf32>, vector<128x32xf32> -> vector<128x32xf32>
    %319 = arith.mulf %315, %318 : vector<128x32xf32>
    %c0_103 = arith.constant 0 : index
    %c0_104 = arith.constant 0 : index
    %320 = vector.load %arg13[%c0_103, %c0_104] : memref<32x32xf32, #tpu.memory_space<vmem>>, vector<32x32xf32>
    %cst_105 = arith.constant dense<0.000000e+00> : vector<128x32xf32>
    %321 = tpu.matmul %319, %320, %cst_105 {dimension_numbers = #tpu.dot_dimension_numbers<[1], [0], [0], [1], [0, 0, 1, 1], [], []>} : vector<128x32xf32>, vector<32x32xf32>, vector<128x32xf32> -> vector<128x32xf32>
    %c0_106 = arith.constant 0 : index
    %c0_107 = arith.constant 0 : index
    %322 = vector.load %arg14[%c0_106, %c0_107] : memref<1x32xf32, #tpu.memory_space<vmem>>, vector<1x32xf32>
    %323 = vector.broadcast %322 : vector<1x32xf32> to vector<128x32xf32>
    %324 = arith.addf %321, %323 : vector<128x32xf32>
    %c0_108 = arith.constant 0 : index
    %c0_109 = arith.constant 0 : index
    %325 = vector.load %arg2[%c0_108, %c0_109] : memref<16x128xf32, #tpu.memory_space<vmem>>, vector<16x128xf32>
    %cst_110 = arith.constant dense<0.000000e+00> : vector<16x32xf32>
    %326 = tpu.matmul %325, %324, %cst_110 {dimension_numbers = #tpu.dot_dimension_numbers<[1], [0], [0], [1], [0, 0, 1, 1], [], []>} : vector<16x128xf32>, vector<128x32xf32>, vector<16x32xf32> -> vector<16x32xf32>
    %c0_111 = arith.constant 0 : index
    %c0_112 = arith.constant 0 : index
    %327 = vector.load %arg15[%c0_111, %c0_112] : memref<32x16xf32, #tpu.memory_space<vmem>>, vector<32x16xf32>
    %cst_113 = arith.constant dense<0.000000e+00> : vector<16x16xf32>
    %328 = tpu.matmul %326, %327, %cst_113 {dimension_numbers = #tpu.dot_dimension_numbers<[1], [0], [0], [1], [0, 0, 1, 1], [], []>} : vector<16x32xf32>, vector<32x16xf32>, vector<16x16xf32> -> vector<16x16xf32>
    %c0_114 = arith.constant 0 : index
    %c0_115 = arith.constant 0 : index
    %329 = vector.load %arg16[%c0_114, %c0_115] : memref<1x16xf32, #tpu.memory_space<vmem>>, vector<1x16xf32>
    %330 = vector.broadcast %329 : vector<1x16xf32> to vector<16x16xf32>
    %331 = arith.addf %328, %330 : vector<16x16xf32>
    %cst_116 = arith.constant dense<0.000000e+00> : vector<16xf32>
    %332 = vector.multi_reduction <add>, %331, %cst_116 [1] : vector<16x16xf32> to vector<16xf32>
    %333 = vector.shape_cast %332 : vector<16xf32> to vector<16x1xf32>
    %cst_117 = arith.constant 1.600000e+01 : f32
    %334 = vector.broadcast %cst_117 : f32 to vector<16x1xf32>
    %335 = arith.divf %333, %334 : vector<16x1xf32>
    %336 = vector.broadcast %335 : vector<16x1xf32> to vector<16x16xf32>
    %337 = arith.subf %331, %336 : vector<16x16xf32>
    %338 = arith.mulf %337, %337 : vector<16x16xf32>
    %cst_118 = arith.constant dense<0.000000e+00> : vector<16xf32>
    %339 = vector.multi_reduction <add>, %338, %cst_118 [1] : vector<16x16xf32> to vector<16xf32>
    %340 = vector.shape_cast %339 : vector<16xf32> to vector<16x1xf32>
    %cst_119 = arith.constant 1.600000e+01 : f32
    %341 = vector.broadcast %cst_119 : f32 to vector<16x1xf32>
    %342 = arith.divf %340, %341 : vector<16x1xf32>
    %343 = vector.broadcast %335 : vector<16x1xf32> to vector<16x16xf32>
    %344 = arith.subf %331, %343 : vector<16x16xf32>
    %cst_120 = arith.constant 9.99999974E-6 : f32
    %345 = vector.broadcast %cst_120 : f32 to vector<16x1xf32>
    %346 = arith.addf %342, %345 : vector<16x1xf32>
    %347 = math.rsqrt %346 : vector<16x1xf32>
    %348 = vector.broadcast %347 : vector<16x1xf32> to vector<16x16xf32>
    %349 = arith.mulf %344, %348 : vector<16x16xf32>
    %c0_121 = arith.constant 0 : index
    %c0_122 = arith.constant 0 : index
    %350 = vector.load %arg17[%c0_121, %c0_122] : memref<1x16xf32, #tpu.memory_space<vmem>>, vector<1x16xf32>
    %351 = vector.broadcast %350 : vector<1x16xf32> to vector<16x16xf32>
    %352 = arith.mulf %349, %351 : vector<16x16xf32>
    %c0_123 = arith.constant 0 : index
    %c0_124 = arith.constant 0 : index
    %353 = vector.load %arg18[%c0_123, %c0_124] : memref<1x16xf32, #tpu.memory_space<vmem>>, vector<1x16xf32>
    %354 = vector.broadcast %353 : vector<1x16xf32> to vector<16x16xf32>
    %355 = arith.addf %352, %354 : vector<16x16xf32>
    %c0_125 = arith.constant 0 : index
    %c0_126 = arith.constant 0 : index
    %356 = vector.load %arg3[%c0_125, %c0_126] : memref<16x16xf32, #tpu.memory_space<vmem>>, vector<16x16xf32>
    %c0_127 = arith.constant 0 : index
    %c0_128 = arith.constant 0 : index
    %357 = vector.load %arg19[%c0_127, %c0_128] : memref<16x32xf32, #tpu.memory_space<vmem>>, vector<16x32xf32>
    %cst_129 = arith.constant dense<0.000000e+00> : vector<16x32xf32>
    %358 = tpu.matmul %355, %357, %cst_129 {dimension_numbers = #tpu.dot_dimension_numbers<[1], [0], [0], [1], [0, 0, 1, 1], [], []>} : vector<16x16xf32>, vector<16x32xf32>, vector<16x32xf32> -> vector<16x32xf32>
    %cst_130 = arith.constant dense<0.000000e+00> : vector<16x32xf32>
    %359 = tpu.matmul %356, %358, %cst_130 {dimension_numbers = #tpu.dot_dimension_numbers<[1], [0], [0], [1], [0, 0, 1, 1], [], []>} : vector<16x16xf32>, vector<16x32xf32>, vector<16x32xf32> -> vector<16x32xf32>
    %c0_131 = arith.constant 0 : index
    %c0_132 = arith.constant 0 : index
    %360 = vector.load %arg20[%c0_131, %c0_132] : memref<1x32xf32, #tpu.memory_space<vmem>>, vector<1x32xf32>
    %361 = vector.broadcast %360 : vector<1x32xf32> to vector<16x32xf32>
    %362 = arith.addf %359, %361 : vector<16x32xf32>
    %cst_133 = arith.constant 0.000000e+00 : f32
    %363 = vector.broadcast %cst_133 : f32 to vector<16x32xf32>
    %364 = arith.maximumf %362, %363 : vector<16x32xf32>
    %c0_134 = arith.constant 0 : index
    %c0_135 = arith.constant 0 : index
    %365 = vector.load %arg21[%c0_134, %c0_135] : memref<16x32xf32, #tpu.memory_space<vmem>>, vector<16x32xf32>
    %cst_136 = arith.constant dense<0.000000e+00> : vector<16x32xf32>
    %366 = tpu.matmul %355, %365, %cst_136 {dimension_numbers = #tpu.dot_dimension_numbers<[1], [0], [0], [1], [0, 0, 1, 1], [], []>} : vector<16x16xf32>, vector<16x32xf32>, vector<16x32xf32> -> vector<16x32xf32>
    %c0_137 = arith.constant 0 : index
    %c0_138 = arith.constant 0 : index
    %367 = vector.load %arg22[%c0_137, %c0_138] : memref<1x32xf32, #tpu.memory_space<vmem>>, vector<1x32xf32>
    %368 = vector.broadcast %367 : vector<1x32xf32> to vector<16x32xf32>
    %369 = arith.addf %366, %368 : vector<16x32xf32>
    %370 = arith.addf %364, %369 : vector<16x32xf32>
    %c0_139 = arith.constant 0 : index
    %c0_140 = arith.constant 0 : index
    %c0_141 = arith.constant 0 : index
    %371 = vector.load %arg23[%c0_139, %c0_140, %c0_141] : memref<2x32x32xf32, #tpu.memory_space<vmem>>, vector<1x32x32xf32>
    %372 = vector.shape_cast %371 : vector<1x32x32xf32> to vector<32x32xf32>
    %cst_142 = arith.constant dense<0.000000e+00> : vector<16x32xf32>
    %373 = tpu.matmul %370, %372, %cst_142 {dimension_numbers = #tpu.dot_dimension_numbers<[1], [0], [0], [1], [0, 0, 1, 1], [], []>} : vector<16x32xf32>, vector<32x32xf32>, vector<16x32xf32> -> vector<16x32xf32>
    %cst_143 = arith.constant dense<0.000000e+00> : vector<16x32xf32>
    %374 = tpu.matmul %356, %373, %cst_143 {dimension_numbers = #tpu.dot_dimension_numbers<[1], [0], [0], [1], [0, 0, 1, 1], [], []>} : vector<16x16xf32>, vector<16x32xf32>, vector<16x32xf32> -> vector<16x32xf32>
    %c0_144 = arith.constant 0 : index
    %c0_145 = arith.constant 0 : index
    %c0_146 = arith.constant 0 : index
    %375 = vector.load %arg24[%c0_144, %c0_145, %c0_146] : memref<2x1x32xf32, #tpu.memory_space<vmem>>, vector<1x1x32xf32>
    %376 = vector.shape_cast %375 : vector<1x1x32xf32> to vector<1x32xf32>
    %377 = vector.broadcast %376 : vector<1x32xf32> to vector<16x32xf32>
    %378 = arith.addf %374, %377 : vector<16x32xf32>
    %cst_147 = arith.constant dense<0.000000e+00> : vector<16xf32>
    %379 = vector.multi_reduction <add>, %378, %cst_147 [1] : vector<16x32xf32> to vector<16xf32>
    %380 = vector.shape_cast %379 : vector<16xf32> to vector<16x1xf32>
    %cst_148 = arith.constant 3.200000e+01 : f32
    %381 = vector.broadcast %cst_148 : f32 to vector<16x1xf32>
    %382 = arith.divf %380, %381 : vector<16x1xf32>
    %383 = vector.broadcast %382 : vector<16x1xf32> to vector<16x32xf32>
    %384 = arith.subf %378, %383 : vector<16x32xf32>
    %385 = arith.mulf %384, %384 : vector<16x32xf32>
    %cst_149 = arith.constant dense<0.000000e+00> : vector<16xf32>
    %386 = vector.multi_reduction <add>, %385, %cst_149 [1] : vector<16x32xf32> to vector<16xf32>
    %387 = vector.shape_cast %386 : vector<16xf32> to vector<16x1xf32>
    %cst_150 = arith.constant 3.200000e+01 : f32
    %388 = vector.broadcast %cst_150 : f32 to vector<16x1xf32>
    %389 = arith.divf %387, %388 : vector<16x1xf32>
    %390 = vector.broadcast %382 : vector<16x1xf32> to vector<16x32xf32>
    %391 = arith.subf %378, %390 : vector<16x32xf32>
    %cst_151 = arith.constant 9.99999974E-6 : f32
    %392 = vector.broadcast %cst_151 : f32 to vector<16x1xf32>
    %393 = arith.addf %389, %392 : vector<16x1xf32>
    %394 = math.rsqrt %393 : vector<16x1xf32>
    %395 = vector.broadcast %394 : vector<16x1xf32> to vector<16x32xf32>
    %396 = arith.mulf %391, %395 : vector<16x32xf32>
    %c0_152 = arith.constant 0 : index
    %c0_153 = arith.constant 0 : index
    %c0_154 = arith.constant 0 : index
    %397 = vector.load %arg25[%c0_152, %c0_153, %c0_154] : memref<2x1x32xf32, #tpu.memory_space<vmem>>, vector<1x1x32xf32>
    %398 = vector.shape_cast %397 : vector<1x1x32xf32> to vector<1x32xf32>
    %399 = vector.broadcast %398 : vector<1x32xf32> to vector<16x32xf32>
    %400 = arith.mulf %396, %399 : vector<16x32xf32>
    %c0_155 = arith.constant 0 : index
    %c0_156 = arith.constant 0 : index
    %c0_157 = arith.constant 0 : index
    %401 = vector.load %arg26[%c0_155, %c0_156, %c0_157] : memref<2x1x32xf32, #tpu.memory_space<vmem>>, vector<1x1x32xf32>
    %402 = vector.shape_cast %401 : vector<1x1x32xf32> to vector<1x32xf32>
    %403 = vector.broadcast %402 : vector<1x32xf32> to vector<16x32xf32>
    %404 = arith.addf %400, %403 : vector<16x32xf32>
    %cst_158 = arith.constant 0.000000e+00 : f32
    %405 = vector.broadcast %cst_158 : f32 to vector<16x32xf32>
    %406 = arith.maximumf %404, %405 : vector<16x32xf32>
    %407 = arith.addf %406, %370 : vector<16x32xf32>
    %c1_159 = arith.constant 1 : index
    %c0_160 = arith.constant 0 : index
    %c0_161 = arith.constant 0 : index
    %408 = vector.load %arg23[%c1_159, %c0_160, %c0_161] : memref<2x32x32xf32, #tpu.memory_space<vmem>>, vector<1x32x32xf32>
    %409 = vector.shape_cast %408 : vector<1x32x32xf32> to vector<32x32xf32>
    %cst_162 = arith.constant dense<0.000000e+00> : vector<16x32xf32>
    %410 = tpu.matmul %407, %409, %cst_162 {dimension_numbers = #tpu.dot_dimension_numbers<[1], [0], [0], [1], [0, 0, 1, 1], [], []>} : vector<16x32xf32>, vector<32x32xf32>, vector<16x32xf32> -> vector<16x32xf32>
    %cst_163 = arith.constant dense<0.000000e+00> : vector<16x32xf32>
    %411 = tpu.matmul %356, %410, %cst_163 {dimension_numbers = #tpu.dot_dimension_numbers<[1], [0], [0], [1], [0, 0, 1, 1], [], []>} : vector<16x16xf32>, vector<16x32xf32>, vector<16x32xf32> -> vector<16x32xf32>
    %c1_164 = arith.constant 1 : index
    %c0_165 = arith.constant 0 : index
    %c0_166 = arith.constant 0 : index
    %412 = vector.load %arg24[%c1_164, %c0_165, %c0_166] : memref<2x1x32xf32, #tpu.memory_space<vmem>>, vector<1x1x32xf32>
    %413 = vector.shape_cast %412 : vector<1x1x32xf32> to vector<1x32xf32>
    %414 = vector.broadcast %413 : vector<1x32xf32> to vector<16x32xf32>
    %415 = arith.addf %411, %414 : vector<16x32xf32>
    %cst_167 = arith.constant dense<0.000000e+00> : vector<16xf32>
    %416 = vector.multi_reduction <add>, %415, %cst_167 [1] : vector<16x32xf32> to vector<16xf32>
    %417 = vector.shape_cast %416 : vector<16xf32> to vector<16x1xf32>
    %cst_168 = arith.constant 3.200000e+01 : f32
    %418 = vector.broadcast %cst_168 : f32 to vector<16x1xf32>
    %419 = arith.divf %417, %418 : vector<16x1xf32>
    %420 = vector.broadcast %419 : vector<16x1xf32> to vector<16x32xf32>
    %421 = arith.subf %415, %420 : vector<16x32xf32>
    %422 = arith.mulf %421, %421 : vector<16x32xf32>
    %cst_169 = arith.constant dense<0.000000e+00> : vector<16xf32>
    %423 = vector.multi_reduction <add>, %422, %cst_169 [1] : vector<16x32xf32> to vector<16xf32>
    %424 = vector.shape_cast %423 : vector<16xf32> to vector<16x1xf32>
    %cst_170 = arith.constant 3.200000e+01 : f32
    %425 = vector.broadcast %cst_170 : f32 to vector<16x1xf32>
    %426 = arith.divf %424, %425 : vector<16x1xf32>
    %427 = vector.broadcast %419 : vector<16x1xf32> to vector<16x32xf32>
    %428 = arith.subf %415, %427 : vector<16x32xf32>
    %cst_171 = arith.constant 9.99999974E-6 : f32
    %429 = vector.broadcast %cst_171 : f32 to vector<16x1xf32>
    %430 = arith.addf %426, %429 : vector<16x1xf32>
    %431 = math.rsqrt %430 : vector<16x1xf32>
    %432 = vector.broadcast %431 : vector<16x1xf32> to vector<16x32xf32>
    %433 = arith.mulf %428, %432 : vector<16x32xf32>
    %c1_172 = arith.constant 1 : index
    %c0_173 = arith.constant 0 : index
    %c0_174 = arith.constant 0 : index
    %434 = vector.load %arg25[%c1_172, %c0_173, %c0_174] : memref<2x1x32xf32, #tpu.memory_space<vmem>>, vector<1x1x32xf32>
    %435 = vector.shape_cast %434 : vector<1x1x32xf32> to vector<1x32xf32>
    %436 = vector.broadcast %435 : vector<1x32xf32> to vector<16x32xf32>
    %437 = arith.mulf %433, %436 : vector<16x32xf32>
    %c1_175 = arith.constant 1 : index
    %c0_176 = arith.constant 0 : index
    %c0_177 = arith.constant 0 : index
    %438 = vector.load %arg26[%c1_175, %c0_176, %c0_177] : memref<2x1x32xf32, #tpu.memory_space<vmem>>, vector<1x1x32xf32>
    %439 = vector.shape_cast %438 : vector<1x1x32xf32> to vector<1x32xf32>
    %440 = vector.broadcast %439 : vector<1x32xf32> to vector<16x32xf32>
    %441 = arith.addf %437, %440 : vector<16x32xf32>
    %cst_178 = arith.constant 0.000000e+00 : f32
    %442 = vector.broadcast %cst_178 : f32 to vector<16x32xf32>
    %443 = arith.maximumf %441, %442 : vector<16x32xf32>
    %444 = arith.addf %443, %407 : vector<16x32xf32>
    %c0_179 = arith.constant 0 : index
    %c0_180 = arith.constant 0 : index
    %445 = vector.load %arg27[%c0_179, %c0_180] : memref<32x8xf32, #tpu.memory_space<vmem>>, vector<32x8xf32>
    %cst_181 = arith.constant dense<0.000000e+00> : vector<16x8xf32>
    %446 = tpu.matmul %444, %445, %cst_181 {dimension_numbers = #tpu.dot_dimension_numbers<[1], [0], [0], [1], [0, 0, 1, 1], [], []>} : vector<16x32xf32>, vector<32x8xf32>, vector<16x8xf32> -> vector<16x8xf32>
    %c0_182 = arith.constant 0 : index
    %c0_183 = arith.constant 0 : index
    %447 = vector.load %arg28[%c0_182, %c0_183] : memref<1x8xf32, #tpu.memory_space<vmem>>, vector<1x8xf32>
    %448 = vector.broadcast %447 : vector<1x8xf32> to vector<16x8xf32>
    %449 = arith.addf %446, %448 : vector<16x8xf32>
    %cst_184 = arith.constant 0.000000e+00 : f32
    %450 = vector.broadcast %cst_184 : f32 to vector<16x8xf32>
    %451 = arith.maximumf %449, %450 : vector<16x8xf32>
    %c0_185 = arith.constant 0 : index
    %c0_186 = arith.constant 0 : index
    %452 = vector.load %arg29[%c0_185, %c0_186] : memref<8x1xf32, #tpu.memory_space<vmem>>, vector<8x1xf32>
    %cst_187 = arith.constant dense<0.000000e+00> : vector<16x1xf32>
    %453 = tpu.matmul %451, %452, %cst_187 {dimension_numbers = #tpu.dot_dimension_numbers<[1], [0], [0], [1], [0, 0, 1, 1], [], []>} : vector<16x8xf32>, vector<8x1xf32>, vector<16x1xf32> -> vector<16x1xf32>
    %c0_188 = arith.constant 0 : index
    %c0_189 = arith.constant 0 : index
    %454 = vector.load %arg30[%c0_188, %c0_189] : memref<1x1xf32, #tpu.memory_space<vmem>>, vector<1x1xf32>
    %455 = vector.broadcast %454 : vector<1x1xf32> to vector<16x1xf32>
    %456 = arith.addf %453, %455 : vector<16x1xf32>
    %c0_190 = arith.constant 0 : index
    %c0_191 = arith.constant 0 : index
    %457 = vector.load %arg4[%c0_190, %c0_191] : memref<16x2xf32, #tpu.memory_space<vmem>>, vector<16x2xf32>
    %cst_192 = arith.constant 5.000000e-01 : f32
    %458 = vector.broadcast %cst_192 : f32 to vector<16x2xf32>
    %459 = arith.cmpf ogt, %457, %458 : vector<16x2xf32>
    %cst_193 = arith.constant -1.000000e+30 : f32
    %460 = vector.shape_cast %456 : vector<16x1xf32> to vector<16x1xf32>
    %461 = vector.broadcast %460 : vector<16x1xf32> to vector<16x2xf32>
    %462 = vector.broadcast %cst_193 : f32 to vector<16x2xf32>
    %463 = arith.select %459, %461, %462 : vector<16x2xi1>, vector<16x2xf32>
    %cst_194 = arith.constant dense<0xFF800000> : vector<2xf32>
    %464 = vector.multi_reduction <maximumf>, %463, %cst_194 [0] : vector<16x2xf32> to vector<2xf32>
    %465 = vector.shape_cast %464 : vector<2xf32> to vector<1x2xf32>
    %cst_195 = arith.constant 5.000000e-01 : f32
    %466 = vector.broadcast %cst_195 : f32 to vector<16x2xf32>
    %467 = arith.cmpf ogt, %457, %466 : vector<16x2xf32>
    %468 = vector.broadcast %465 : vector<1x2xf32> to vector<16x2xf32>
    %469 = arith.subf %463, %468 : vector<16x2xf32>
    %470 = math.exp %469 : vector<16x2xf32>
    %cst_196 = arith.constant 0.000000e+00 : f32
    %471 = vector.broadcast %cst_196 : f32 to vector<16x2xf32>
    %472 = arith.select %467, %470, %471 : vector<16x2xi1>, vector<16x2xf32>
    %cst_197 = arith.constant dense<0.000000e+00> : vector<2xf32>
    %473 = vector.multi_reduction <add>, %472, %cst_197 [0] : vector<16x2xf32> to vector<2xf32>
    %474 = vector.shape_cast %473 : vector<2xf32> to vector<1x2xf32>
    %475 = tpu.reciprocal %474 {approx = true} : vector<1x2xf32> -> vector<1x2xf32>
    %476 = vector.broadcast %475 : vector<1x2xf32> to vector<16x2xf32>
    %477 = arith.mulf %472, %476 : vector<16x2xf32>
    %cst_198 = arith.constant dense<0.000000e+00> : vector<2x32xf32>
    %478 = tpu.matmul %477, %444, %cst_198 {dimension_numbers = #tpu.dot_dimension_numbers<[0], [0], [1], [1], [0, 1, 1, 1], [], []>} : vector<16x2xf32>, vector<16x32xf32>, vector<2x32xf32> -> vector<2x32xf32>
    %c0_199 = arith.constant 0 : index
    %c0_200 = arith.constant 0 : index
    %479 = vector.load %arg31[%c0_199, %c0_200] : memref<2x32xf32, #tpu.memory_space<vmem>>, vector<2x32xf32>
    tpu.vector_store %arg31[%c0_199, %c0_200], %478 {strides = array<i32>} : memref<2x32xf32, #tpu.memory_space<vmem>>, vector<2x32xf32>,
    return
  }
}

</mosaic_0001>

<llo_original>
// kernel: memory_efficient_graph_encoder.1
$region0: #{memory_efficient_graph_encoder.1}
  #allocation0 [shape = 'u32[]', space=smem, size = 0x4, offset = 0x4, fixed_abs, tag = 'smem constant byte address 0x4 - core index']
  #allocation1 [shape = 'u32[144,128]{1,0:T(1,128)}', space=vmem, size = 0x12000, scoped, tag = 'internal scratch']
  #allocation2 [shape = 'f32[128,32]{1,0:T(8,128)}', space=vmem, size = 0x10000, scoped, tag = 'scratch operand']
  #allocation3 [shape = 'f32[1,1]{1,0:T(1,128)S(1)}', space=vmem, size = 0x200, scoped, tag = 'scoped memory for memory_efficient_graph_encoder.1']
  %s0 = inlined_call_operand.smem [shape: u32[32], index: -1, kind: input, shape index: {}]
  %s1 = sld [smem:[%s0]]
  %s2 = scalar_lea.smem %s0, 1
  %s3 = sld [smem:[%s2]]
  %s4 = scalar_lea.smem %s0, 2
  %s5 = sld [smem:[%s4]]
  %s6 = scalar_lea.smem %s0, 3
  %s7 = sld [smem:[%s6]]
  %s8 = scalar_lea.smem %s0, 4
  %s9 = sld [smem:[%s8]]
  %s10 = scalar_lea.smem %s0, 5
  %s11 = sld [smem:[%s10]]
  %s12 = scalar_lea.smem %s0, 6
  %s13 = sld [smem:[%s12]]
  %s14 = scalar_lea.smem %s0, 7
  %s15 = sld [smem:[%s14]]
  %s16 = scalar_lea.smem %s0, 8
  %s17 = sld [smem:[%s16]]
  %s18 = scalar_lea.smem %s0, 9
  %s19 = sld [smem:[%s18]]
  %s20 = scalar_lea.smem %s0, 10
  %s21 = sld [smem:[%s20]]
  %s22 = scalar_lea.smem %s0, 11
  %s23 = sld [smem:[%s22]]
  %s24 = scalar_lea.smem %s0, 12
  %s25 = sld [smem:[%s24]]
  %s26 = scalar_lea.smem %s0, 13
  %s27 = sld [smem:[%s26]]
  %s28 = scalar_lea.smem %s0, 14
  %s29 = sld [smem:[%s28]]
  %s30 = scalar_lea.smem %s0, 15
  %s31 = sld [smem:[%s30]]
  %s32 = scalar_lea.smem %s0, 16
  %s33 = sld [smem:[%s32]]
  %s34 = scalar_lea.smem %s0, 17
  %s35 = sld [smem:[%s34]]
  %s36 = scalar_lea.smem %s0, 18
  %s37 = sld [smem:[%s36]]
  %s38 = scalar_lea.smem %s0, 19
  %s39 = sld [smem:[%s38]]
  %s40 = scalar_lea.smem %s0, 20
  %s41 = sld [smem:[%s40]]
  %s42 = scalar_lea.smem %s0, 21
  %s43 = sld [smem:[%s42]]
  %s44 = scalar_lea.smem %s0, 22
  %s45 = sld [smem:[%s44]]
  %s46 = scalar_lea.smem %s0, 23
  %s47 = sld [smem:[%s46]]
  %s48 = scalar_lea.smem %s0, 24
  %s49 = sld [smem:[%s48]]
  %s50 = scalar_lea.smem %s0, 25
  %s51 = sld [smem:[%s50]]
  %s52 = scalar_lea.smem %s0, 26
  %s53 = sld [smem:[%s52]]
  %s54 = scalar_lea.smem %s0, 27
  %s55 = sld [smem:[%s54]]
  %s56 = scalar_lea.smem %s0, 28
  %s57 = sld [smem:[%s56]]
  %s58 = scalar_lea.smem %s0, 29
  %s59 = sld [smem:[%s58]]
  %s60 = scalar_lea.smem %s0, 30
  %s61 = sld [smem:[%s60]]
  %s62 = scalar_lea.smem %s0, 31
  %s63 = sld [smem:[%s62]]
  %s64 = sld [smem:[#allocation0]]
  $region134: #{memory_efficient_graph_encoder.1} parent=0
    _
  %s66 = ssub.s32 1, %s64
  %s67 = scalar_select 0, %s66, %s64
  %v68 = vstv %s61
  %69 = vst [vmem:[#allocation3] sm:$0x1] %v68
  $region1: #{memory_efficient_graph_encoder.1} parent=0
    #allocation4 [shape = 'u8[1024]{0}', space=vmem, size = 0x400, scoped, tag = 'output window, operand 0, single buffered']
    #allocation5 [shape = 's32[1]{0}', space=sflag, size = 0x4, scoped, tag = 'scoped memory for memory_efficient_graph_encoder.1']
    %70 = vsyncpa [#allocation5], 0
    // Predicated region
    $region2: #{memory_efficient_graph_encoder.1} parent=1 // pred_check
      _
    $region3: #{memory_efficient_graph_encoder.1} parent=1 // pred_check_branch
      %72 = sbr.rel (0) target = $region5
    $region4: #{memory_efficient_graph_encoder.1} parent=1 // pred_region
      _
    $region5: #{memory_efficient_graph_encoder.1} parent=1 // pred_fallthru
      _
    // Predicated region
    $region6: #{memory_efficient_graph_encoder.1} parent=1 // pred_check
      _
    $region7: #{memory_efficient_graph_encoder.1} parent=1 // pred_check_branch
      %74 = sbr.rel (0) target = $region9
    $region8: #{memory_efficient_graph_encoder.1} parent=1 // pred_region
      _
    $region9: #{memory_efficient_graph_encoder.1} parent=1 // pred_fallthru
      _
    // Predicated region
    $region10: #{memory_efficient_graph_encoder.1} parent=1 // pred_check
      _
    $region11: #{memory_efficient_graph_encoder.1} parent=1 // pred_check_branch
      %76 = sbr.rel (0) target = $region13
    $region12: #{memory_efficient_graph_encoder.1} parent=1 // pred_region
      _
    $region13: #{memory_efficient_graph_encoder.1} parent=1 // pred_fallthru
      _
    // Predicated region
    $region14: #{memory_efficient_graph_encoder.1} parent=1 // pred_check
      _
    $region15: #{memory_efficient_graph_encoder.1} parent=1 // pred_check_branch
      %78 = sbr.rel (0) target = $region17
    $region16: #{memory_efficient_graph_encoder.1} parent=1 // pred_region
      _
    $region17: #{memory_efficient_graph_encoder.1} parent=1 // pred_fallthru
      _
    // Predicated region
    $region18: #{memory_efficient_graph_encoder.1} parent=1 // pred_check
      _
    $region19: #{memory_efficient_graph_encoder.1} parent=1 // pred_check_branch
      %80 = sbr.rel (0) target = $region21
    $region20: #{memory_efficient_graph_encoder.1} parent=1 // pred_region
      _
    $region21: #{memory_efficient_graph_encoder.1} parent=1 // pred_fallthru
      _
    // Predicated region
    $region22: #{memory_efficient_graph_encoder.1} parent=1 // pred_check
      _
    $region23: #{memory_efficient_graph_encoder.1} parent=1 // pred_check_branch
      %82 = sbr.rel (0) target = $region25
    $region24: #{memory_efficient_graph_encoder.1} parent=1 // pred_region
      _
    $region25: #{memory_efficient_graph_encoder.1} parent=1 // pred_fallthru
      _
    // Predicated region
    $region26: #{memory_efficient_graph_encoder.1} parent=1 // pred_check
      _
    $region27: #{memory_efficient_graph_encoder.1} parent=1 // pred_check_branch
      %84 = sbr.rel (0) target = $region29
    $region28: #{memory_efficient_graph_encoder.1} parent=1 // pred_region
      _
    $region29: #{memory_efficient_graph_encoder.1} parent=1 // pred_fallthru
      _
    // Predicated region
    $region30: #{memory_efficient_graph_encoder.1} parent=1 // pred_check
      _
    $region31: #{memory_efficient_graph_encoder.1} parent=1 // pred_check_branch
      %86 = sbr.rel (0) target = $region33
    $region32: #{memory_efficient_graph_encoder.1} parent=1 // pred_region
      _
    $region33: #{memory_efficient_graph_encoder.1} parent=1 // pred_fallthru
      _
    // Predicated region
    $region34: #{memory_efficient_graph_encoder.1} parent=1 // pred_check
      _
    $region35: #{memory_efficient_graph_encoder.1} parent=1 // pred_check_branch
      %88 = sbr.rel (0) target = $region37
    $region36: #{memory_efficient_graph_encoder.1} parent=1 // pred_region
      _
    $region37: #{memory_efficient_graph_encoder.1} parent=1 // pred_fallthru
      _
    // Predicated region
    $region38: #{memory_efficient_graph_encoder.1} parent=1 // pred_check
      _
    $region39: #{memory_efficient_graph_encoder.1} parent=1 // pred_check_branch
      %90 = sbr.rel (0) target = $region41
    $region40: #{memory_efficient_graph_encoder.1} parent=1 // pred_region
      _
    $region41: #{memory_efficient_graph_encoder.1} parent=1 // pred_fallthru
      _
    // Predicated region
    $region42: #{memory_efficient_graph_encoder.1} parent=1 // pred_check
      _
    $region43: #{memory_efficient_graph_encoder.1} parent=1 // pred_check_branch
      %92 = sbr.rel (0) target = $region45
    $region44: #{memory_efficient_graph_encoder.1} parent=1 // pred_region
      _
    $region45: #{memory_efficient_graph_encoder.1} parent=1 // pred_fallthru
      _
    // Predicated region
    $region46: #{memory_efficient_graph_encoder.1} parent=1 // pred_check
      _
    $region47: #{memory_efficient_graph_encoder.1} parent=1 // pred_check_branch
      %94 = sbr.rel (0) target = $region49
    $region48: #{memory_efficient_graph_encoder.1} parent=1 // pred_region
      _
    $region49: #{memory_efficient_graph_encoder.1} parent=1 // pred_fallthru
      _
    // Predicated region
    $region50: #{memory_efficient_graph_encoder.1} parent=1 // pred_check
      _
    $region51: #{memory_efficient_graph_encoder.1} parent=1 // pred_check_branch
      %96 = sbr.rel (0) target = $region53
    $region52: #{memory_efficient_graph_encoder.1} parent=1 // pred_region
      _
    $region53: #{memory_efficient_graph_encoder.1} parent=1 // pred_fallthru
      _
    // Predicated region
    $region54: #{memory_efficient_graph_encoder.1} parent=1 // pred_check
      _
    $region55: #{memory_efficient_graph_encoder.1} parent=1 // pred_check_branch
      %98 = sbr.rel (0) target = $region57
    $region56: #{memory_efficient_graph_encoder.1} parent=1 // pred_region
      _
    $region57: #{memory_efficient_graph_encoder.1} parent=1 // pred_fallthru
      _
    // Predicated region
    $region58: #{memory_efficient_graph_encoder.1} parent=1 // pred_check
      _
    $region59: #{memory_efficient_graph_encoder.1} parent=1 // pred_check_branch
      %100 = sbr.rel (0) target = $region61
    $region60: #{memory_efficient_graph_encoder.1} parent=1 // pred_region
      _
    $region61: #{memory_efficient_graph_encoder.1} parent=1 // pred_fallthru
      _
    // Predicated region
    $region62: #{memory_efficient_graph_encoder.1} parent=1 // pred_check
      _
    $region63: #{memory_efficient_graph_encoder.1} parent=1 // pred_check_branch
      %102 = sbr.rel (0) target = $region65
    $region64: #{memory_efficient_graph_encoder.1} parent=1 // pred_region
      _
    $region65: #{memory_efficient_graph_encoder.1} parent=1 // pred_fallthru
      _
    // Predicated region
    $region66: #{memory_efficient_graph_encoder.1} parent=1 // pred_check
      _
    $region67: #{memory_efficient_graph_encoder.1} parent=1 // pred_check_branch
      %104 = sbr.rel (0) target = $region69
    $region68: #{memory_efficient_graph_encoder.1} parent=1 // pred_region
      _
    $region69: #{memory_efficient_graph_encoder.1} parent=1 // pred_fallthru
      _
    // Predicated region
    $region70: #{memory_efficient_graph_encoder.1} parent=1 // pred_check
      _
    $region71: #{memory_efficient_graph_encoder.1} parent=1 // pred_check_branch
      %106 = sbr.rel (0) target = $region73
    $region72: #{memory_efficient_graph_encoder.1} parent=1 // pred_region
      _
    $region73: #{memory_efficient_graph_encoder.1} parent=1 // pred_fallthru
      _
    // Predicated region
    $region74: #{memory_efficient_graph_encoder.1} parent=1 // pred_check
      _
    $region75: #{memory_efficient_graph_encoder.1} parent=1 // pred_check_branch
      %108 = sbr.rel (0) target = $region77
    $region76: #{memory_efficient_graph_encoder.1} parent=1 // pred_region
      _
    $region77: #{memory_efficient_graph_encoder.1} parent=1 // pred_fallthru
      _
    // Predicated region
    $region78: #{memory_efficient_graph_encoder.1} parent=1 // pred_check
      _
    $region79: #{memory_efficient_graph_encoder.1} parent=1 // pred_check_branch
      %110 = sbr.rel (0) target = $region81
    $region80: #{memory_efficient_graph_encoder.1} parent=1 // pred_region
      _
    $region81: #{memory_efficient_graph_encoder.1} parent=1 // pred_fallthru
      _
    // Predicated region
    $region82: #{memory_efficient_graph_encoder.1} parent=1 // pred_check
      _
    $region83: #{memory_efficient_graph_encoder.1} parent=1 // pred_check_branch
      %112 = sbr.rel (0) target = $region85
    $region84: #{memory_efficient_graph_encoder.1} parent=1 // pred_region
      _
    $region85: #{memory_efficient_graph_encoder.1} parent=1 // pred_fallthru
      _
    // Predicated region
    $region86: #{memory_efficient_graph_encoder.1} parent=1 // pred_check
      _
    $region87: #{memory_efficient_graph_encoder.1} parent=1 // pred_check_branch
      %114 = sbr.rel (0) target = $region89
    $region88: #{memory_efficient_graph_encoder.1} parent=1 // pred_region
      _
    $region89: #{memory_efficient_graph_encoder.1} parent=1 // pred_fallthru
      _
    // Predicated region
    $region90: #{memory_efficient_graph_encoder.1} parent=1 // pred_check
      _
    $region91: #{memory_efficient_graph_encoder.1} parent=1 // pred_check_branch
      %116 = sbr.rel (0) target = $region93
    $region92: #{memory_efficient_graph_encoder.1} parent=1 // pred_region
      _
    $region93: #{memory_efficient_graph_encoder.1} parent=1 // pred_fallthru
      _
    // Predicated region
    $region94: #{memory_efficient_graph_encoder.1} parent=1 // pred_check
      _
    $region95: #{memory_efficient_graph_encoder.1} parent=1 // pred_check_branch
      %118 = sbr.rel (0) target = $region97
    $region96: #{memory_efficient_graph_encoder.1} parent=1 // pred_region
      _
    $region97: #{memory_efficient_graph_encoder.1} parent=1 // pred_fallthru
      _
    // Predicated region
    $region98: #{memory_efficient_graph_encoder.1} parent=1 // pred_check
      _
    $region99: #{memory_efficient_graph_encoder.1} parent=1 // pred_check_branch
      %120 = sbr.rel (0) target = $region101
    $region100: #{memory_efficient_graph_encoder.1} parent=1 // pred_region
      _
    $region101: #{memory_efficient_graph_encoder.1} parent=1 // pred_fallthru
      _
    // Predicated region
    $region102: #{memory_efficient_graph_encoder.1} parent=1 // pred_check
      _
    $region103: #{memory_efficient_graph_encoder.1} parent=1 // pred_check_branch
      %122 = sbr.rel (0) target = $region105
    $region104: #{memory_efficient_graph_encoder.1} parent=1 // pred_region
      _
    $region105: #{memory_efficient_graph_encoder.1} parent=1 // pred_fallthru
      _
    // Predicated region
    $region106: #{memory_efficient_graph_encoder.1} parent=1 // pred_check
      _
    $region107: #{memory_efficient_graph_encoder.1} parent=1 // pred_check_branch
      %124 = sbr.rel (0) target = $region109
    $region108: #{memory_efficient_graph_encoder.1} parent=1 // pred_region
      _
    $region109: #{memory_efficient_graph_encoder.1} parent=1 // pred_fallthru
      _
    // Predicated region
    $region110: #{memory_efficient_graph_encoder.1} parent=1 // pred_check
      _
    $region111: #{memory_efficient_graph_encoder.1} parent=1 // pred_check_branch
      %126 = sbr.rel (0) target = $region113
    $region112: #{memory_efficient_graph_encoder.1} parent=1 // pred_region
      _
    $region113: #{memory_efficient_graph_encoder.1} parent=1 // pred_fallthru
      _
    // Predicated region
    $region114: #{memory_efficient_graph_encoder.1} parent=1 // pred_check
      _
    $region115: #{memory_efficient_graph_encoder.1} parent=1 // pred_check_branch
      %128 = sbr.rel (0) target = $region117
    $region116: #{memory_efficient_graph_encoder.1} parent=1 // pred_region
      _
    $region117: #{memory_efficient_graph_encoder.1} parent=1 // pred_fallthru
      _
    // Predicated region
    $region118: #{memory_efficient_graph_encoder.1} parent=1 // pred_check
      _
    $region119: #{memory_efficient_graph_encoder.1} parent=1 // pred_check_branch
      %130 = sbr.rel (0) target = $region121
    $region120: #{memory_efficient_graph_encoder.1} parent=1 // pred_region
      _
    $region121: #{memory_efficient_graph_encoder.1} parent=1 // pred_fallthru
      _
    // Predicated region
    $region122: #{memory_efficient_graph_encoder.1} parent=1 // pred_check
      _
    $region123: #{memory_efficient_graph_encoder.1} parent=1 // pred_check_branch
      %132 = sbr.rel (0) target = $region125
    $region124: #{memory_efficient_graph_encoder.1} parent=1 // pred_region
      _
    $region125: #{memory_efficient_graph_encoder.1} parent=1 // pred_fallthru
      _
    %v133 = vld [vmem:[%s1] sm:$0xff]
    %v134 = vld [vmem:[%s1 + $0x8] sm:$0xff]
    %v135 = vld [vmem:[%s1 + $0x10] sm:$0xff]
    %v136 = vld [vmem:[%s1 + $0x18] sm:$0xff]
    %v137 = vld [vmem:[%s1 + $0x20] sm:$0xff]
    %v138 = vld [vmem:[%s1 + $0x28] sm:$0xff]
    %v139 = vld [vmem:[%s1 + $0x30] sm:$0xff]
    %v140 = vld [vmem:[%s1 + $0x38] sm:$0xff]
    %v141 = vld [vmem:[%s1 + $0x40] sm:$0xff]
    %v142 = vld [vmem:[%s1 + $0x48] sm:$0xff]
    %v143 = vld [vmem:[%s1 + $0x50] sm:$0xff]
    %v144 = vld [vmem:[%s1 + $0x58] sm:$0xff]
    %v145 = vld [vmem:[%s1 + $0x60] sm:$0xff]
    %v146 = vld [vmem:[%s1 + $0x68] sm:$0xff]
    %v147 = vld [vmem:[%s1 + $0x70] sm:$0xff]
    %v148 = vld [vmem:[%s1 + $0x78] sm:$0xff]
    %v149 = vld [vmem:[%s11] sm:$0xff]
    %v150 = vld [vmem:[%s11 + $0x8] sm:$0xff]
    %v151 = vld [vmem:[%s11 + $0x10] sm:$0xff]
    %v152 = vld [vmem:[%s11 + $0x18] sm:$0xff]
    %v153 = vld [vmem:[%s15] sm:$0x1]
    %v155 = vlaneseq
    %v156 = vshrl.u32 %v155, 7
    %v157 = vsub.s32 0, %v156
    %v158 = vrot.slane %v153, %v157
    %vm160 = vcmask 261120
    %v162 = vsel %vm160, %v133, 0
    %v165 = vsel %vm160, %v134, 0
    %v168 = vsel %vm160, %v135, 0
    %v171 = vsel %vm160, %v136, 0
    %v174 = vsel %vm160, %v137, 0
    %v177 = vsel %vm160, %v138, 0
    %v180 = vsel %vm160, %v139, 0
    %v183 = vsel %vm160, %v140, 0
    %v186 = vsel %vm160, %v141, 0
    %v189 = vsel %vm160, %v142, 0
    %v192 = vsel %vm160, %v143, 0
    %v195 = vsel %vm160, %v144, 0
    %v198 = vsel %vm160, %v145, 0
    %v201 = vsel %vm160, %v146, 0
    %v204 = vsel %vm160, %v147, 0
    %v207 = vsel %vm160, %v148, 0
    %209 = vmatprep.subr.mxu0 0.0
    %210 = vmatpush1.msra.mxu0 0.0
    %211 = vmatprep.subr.mxu0 0.0
    %212 = vmatpush1.msra.mxu0 0.0
    %213 = vmatprep.subr.mxu0 0.0
    %214 = vmatpush1.msra.mxu0 0.0
    %215 = vmatprep.subr.mxu0 0.0
    %216 = vmatpush1.msra.mxu0 0.0
    %217 = vmatprep.subr.mxu0 0.0
    %218 = vmatpush1.msra.mxu0 0.0
    %219 = vmatprep.subr.mxu0 0.0
    %220 = vmatpush1.msra.mxu0 0.0
    %221 = vmatprep.subr.mxu0 0.0
    %222 = vmatpush1.msra.mxu0 0.0
    %223 = vmatprep.subr.mxu0 0.0
    %224 = vmatpush1.msra.mxu0 0.0
    %225 = vmatprep.subr.mxu0 0.0
    %226 = vmatpush1.msra.mxu0 0.0
    %227 = vmatprep.subr.mxu0 0.0
    %228 = vmatpush1.msra.mxu0 0.0
    %229 = vmatprep.subr.mxu0 0.0
    %230 = vmatpush1.msra.mxu0 0.0
    %231 = vmatprep.subr.mxu0 0.0
    %232 = vmatpush1.msra.mxu0 0.0
    %233 = vmatprep.subr.mxu0 0.0
    %234 = vmatpush1.msra.mxu0 %v152
    %235 = vmatprep.subr.mxu0 0.0
    %236 = vmatpush1.msra.mxu0 %v151
    %237 = vmatprep.subr.mxu0 0.0
    %238 = vmatpush1.msra.mxu0 %v150
    %239 = vmatprep.subr.mxu0 0.0
    %240 = vmatpush1.msra.mxu0 %v149
    %241 = vmatprep.subr.mxu0 0.0
    %242 = vmatpush2.msra.mxu0 0.0
    %243 = vmatprep.subr.mxu0 0.0
    %244 = vmatpush2.msra.mxu0 0.0
    %245 = vmatprep.subr.mxu0 0.0
    %246 = vmatpush2.msra.mxu0 0.0
    %247 = vmatprep.subr.mxu0 0.0
    %248 = vmatpush2.msra.mxu0 0.0
    %249 = vmatprep.subr.mxu0 0.0
    %250 = vmatpush2.msra.mxu0 0.0
    %251 = vmatprep.subr.mxu0 0.0
    %252 = vmatpush2.msra.mxu0 0.0
    %253 = vmatprep.subr.mxu0 0.0
    %254 = vmatpush2.msra.mxu0 0.0
    %255 = vmatprep.subr.mxu0 0.0
    %256 = vmatpush2.msra.mxu0 0.0
    %257 = vmatprep.subr.mxu0 0.0
    %258 = vmatpush2.msra.mxu0 0.0
    %259 = vmatprep.subr.mxu0 0.0
    %260 = vmatpush2.msra.mxu0 0.0
    %261 = vmatprep.subr.mxu0 0.0
    %262 = vmatpush2.msra.mxu0 0.0
    %263 = vmatprep.subr.mxu0 0.0
    %264 = vmatpush2.msra.mxu0 0.0
    %265 = vmatprep.subr.mxu0 0.0
    %266 = vmatpush2.msra.mxu0 0.0
    %267 = vmatprep.subr.mxu0 0.0
    %268 = vmatpush2.msra.mxu0 0.0
    %269 = vmatprep.subr.mxu0 0.0
    %270 = vmatpush2.msra.mxu0 0.0
    %271 = vmatprep.subr.mxu0 0.0
    %272 = vmatpush2.msra.mxu0 0.0
    %273 = vmatprep.mubr.f32.mxu0 0.0
    %274 = vmatmul.mubr.f32.gmra.mxu0 %v162
    %v275 = vpop.f32.mrf.mxu0
    %v276 = vadd.f32 %v158, %v275
    %v277 = vpop.f32.mrf.mxu0
    %278 = vmatprep.mubr.f32.mxu0 0.0
    %279 = vmatmul.mubr.f32.gmra.mxu0 %v165
    %v280 = vpop.f32.mrf.mxu0
    %v281 = vadd.f32 %v158, %v280
    %v282 = vpop.f32.mrf.mxu0
    %283 = vmatprep.mubr.f32.mxu0 0.0
    %284 = vmatmul.mubr.f32.gmra.mxu0 %v168
    %v285 = vpop.f32.mrf.mxu0
    %v286 = vadd.f32 %v158, %v285
    %v287 = vpop.f32.mrf.mxu0
    %288 = vmatprep.mubr.f32.mxu0 0.0
    %289 = vmatmul.mubr.f32.gmra.mxu0 %v171
    %v290 = vpop.f32.mrf.mxu0
    %v291 = vadd.f32 %v158, %v290
    %v292 = vpop.f32.mrf.mxu0
    %293 = vmatprep.mubr.f32.mxu0 0.0
    %294 = vmatmul.mubr.f32.gmra.mxu0 %v174
    %v295 = vpop.f32.mrf.mxu0
    %v296 = vadd.f32 %v158, %v295
    %v297 = vpop.f32.mrf.mxu0
    %298 = vmatprep.mubr.f32.mxu0 0.0
    %299 = vmatmul.mubr.f32.gmra.mxu0 %v177
    %v300 = vpop.f32.mrf.mxu0
    %v301 = vadd.f32 %v158, %v300
    %v302 = vpop.f32.mrf.mxu0
    %303 = vmatprep.mubr.f32.mxu0 0.0
    %304 = vmatmul.mubr.f32.gmra.mxu0 %v180
    %v305 = vpop.f32.mrf.mxu0
    %v306 = vadd.f32 %v158, %v305
    %v307 = vpop.f32.mrf.mxu0
    %308 = vmatprep.mubr.f32.mxu0 0.0
    %309 = vmatmul.mubr.f32.gmra.mxu0 %v183
    %v310 = vpop.f32.mrf.mxu0
    %v311 = vadd.f32 %v158, %v310
    %v312 = vpop.f32.mrf.mxu0
    %313 = vmatprep.mubr.f32.mxu0 0.0
    %314 = vmatmul.mubr.f32.gmra.mxu0 %v186
    %v315 = vpop.f32.mrf.mxu0
    %v316 = vadd.f32 %v158, %v315
    %v317 = vpop.f32.mrf.mxu0
    %318 = vmatprep.mubr.f32.mxu0 0.0
    %319 = vmatmul.mubr.f32.gmra.mxu0 %v189
    %v320 = vpop.f32.mrf.mxu0
    %v321 = vadd.f32 %v158, %v320
    %v322 = vpop.f32.mrf.mxu0
    %323 = vmatprep.mubr.f32.mxu0 0.0
    %324 = vmatmul.mubr.f32.gmra.mxu0 %v192
    %v325 = vpop.f32.mrf.mxu0
    %v326 = vadd.f32 %v158, %v325
    %v327 = vpop.f32.mrf.mxu0
    %328 = vmatprep.mubr.f32.mxu0 0.0
    %329 = vmatmul.mubr.f32.gmra.mxu0 %v195
    %v330 = vpop.f32.mrf.mxu0
    %v331 = vadd.f32 %v158, %v330
    %v332 = vpop.f32.mrf.mxu0
    %333 = vmatprep.mubr.f32.mxu0 0.0
    %334 = vmatmul.mubr.f32.gmra.mxu0 %v198
    %v335 = vpop.f32.mrf.mxu0
    %v336 = vadd.f32 %v158, %v335
    %v337 = vpop.f32.mrf.mxu0
    %338 = vmatprep.mubr.f32.mxu0 0.0
    %339 = vmatmul.mubr.f32.gmra.mxu0 %v201
    %v340 = vpop.f32.mrf.mxu0
    %v341 = vadd.f32 %v158, %v340
    %v342 = vpop.f32.mrf.mxu0
    %343 = vmatprep.mubr.f32.mxu0 0.0
    %344 = vmatmul.mubr.f32.gmra.mxu0 %v204
    %v345 = vpop.f32.mrf.mxu0
    %v346 = vadd.f32 %v158, %v345
    %v347 = vpop.f32.mrf.mxu0
    %348 = vmatprep.mubr.f32.mxu0 0.0
    %349 = vmatmul.mubr.f32.gmra.mxu0 %v207
    %v350 = vpop.f32.mrf.mxu0
    %v351 = vadd.f32 %v158, %v350
    %v352 = vpop.f32.mrf.mxu0
    %353 = vdwg.mxu0
    %v354 = vld [vmem:[%s13] sm:$0xff]
    %v355 = vld [vmem:[%s13 + $0x8] sm:$0xff]
    %v356 = vld [vmem:[%s13 + $0x10] sm:$0xff]
    %v357 = vld [vmem:[%s13 + $0x18] sm:$0xff]
    %v359 = vsel %vm160, 0.0, 0
    %361 = vmatprep.subr.mxu0 0.0
    %362 = vmatpush1.msra.mxu0 0.0
    %363 = vmatprep.subr.mxu0 0.0
    %364 = vmatpush1.msra.mxu0 0.0
    %365 = vmatprep.subr.mxu0 0.0
    %366 = vmatpush1.msra.mxu0 0.0
    %367 = vmatprep.subr.mxu0 0.0
    %368 = vmatpush1.msra.mxu0 0.0
    %369 = vmatprep.subr.mxu0 0.0
    %370 = vmatpush1.msra.mxu0 0.0
    %371 = vmatprep.subr.mxu0 0.0
    %372 = vmatpush1.msra.mxu0 0.0
    %373 = vmatprep.subr.mxu0 0.0
    %374 = vmatpush1.msra.mxu0 0.0
    %375 = vmatprep.subr.mxu0 0.0
    %376 = vmatpush1.msra.mxu0 0.0
    %377 = vmatprep.subr.mxu0 0.0
    %378 = vmatpush1.msra.mxu0 0.0
    %379 = vmatprep.subr.mxu0 0.0
    %380 = vmatpush1.msra.mxu0 0.0
    %381 = vmatprep.subr.mxu0 0.0
    %382 = vmatpush1.msra.mxu0 0.0
    %383 = vmatprep.subr.mxu0 0.0
    %384 = vmatpush1.msra.mxu0 0.0
    %385 = vmatprep.subr.mxu0 0.0
    %386 = vmatpush1.msra.mxu0 %v357
    %387 = vmatprep.subr.mxu0 0.0
    %388 = vmatpush1.msra.mxu0 %v356
    %389 = vmatprep.subr.mxu0 0.0
    %390 = vmatpush1.msra.mxu0 %v355
    %391 = vmatprep.subr.mxu0 0.0
    %392 = vmatpush1.msra.mxu0 %v354
    %393 = vmatprep.subr.mxu0 0.0
    %394 = vmatpush2.msra.mxu0 0.0
    %395 = vmatprep.subr.mxu0 0.0
    %396 = vmatpush2.msra.mxu0 0.0
    %397 = vmatprep.subr.mxu0 0.0
    %398 = vmatpush2.msra.mxu0 0.0
    %399 = vmatprep.subr.mxu0 0.0
    %400 = vmatpush2.msra.mxu0 0.0
    %401 = vmatprep.subr.mxu0 0.0
    %402 = vmatpush2.msra.mxu0 0.0
    %403 = vmatprep.subr.mxu0 0.0
    %404 = vmatpush2.msra.mxu0 0.0
    %405 = vmatprep.subr.mxu0 0.0
    %406 = vmatpush2.msra.mxu0 0.0
    %407 = vmatprep.subr.mxu0 0.0
    %408 = vmatpush2.msra.mxu0 0.0
    %409 = vmatprep.subr.mxu0 0.0
    %410 = vmatpush2.msra.mxu0 0.0
    %411 = vmatprep.subr.mxu0 0.0
    %412 = vmatpush2.msra.mxu0 0.0
    %413 = vmatprep.subr.mxu0 0.0
    %414 = vmatpush2.msra.mxu0 0.0
    %415 = vmatprep.subr.mxu0 0.0
    %416 = vmatpush2.msra.mxu0 0.0
    %417 = vmatprep.subr.mxu0 0.0
    %418 = vmatpush2.msra.mxu0 0.0
    %419 = vmatprep.subr.mxu0 0.0
    %420 = vmatpush2.msra.mxu0 0.0
    %421 = vmatprep.subr.mxu0 0.0
    %422 = vmatpush2.msra.mxu0 0.0
    %423 = vmatprep.subr.mxu0 0.0
    %424 = vmatpush2.msra.mxu0 0.0
    %425 = vmatprep.mubr.f32.mxu0 0.0
    %426 = vmatmul.mubr.f32.gmra.mxu0 %v359
    %v427 = vpop.f32.mrf.mxu0
    %v428 = vadd.f32 0.0, %v427
    %v429 = vpop.f32.mrf.mxu0
    %430 = vmatprep.mubr.f32.mxu0 0.0
    %431 = vmatmul.mubr.f32.gmra.mxu0 %v359
    %v432 = vpop.f32.mrf.mxu0
    %v433 = vadd.f32 0.0, %v432
    %v434 = vpop.f32.mrf.mxu0
    %435 = vdwg.mxu0
    %v436 = vadd.f32 %v276, %v428
    %v437 = vadd.f32 %v281, %v433
    %v438 = vxor.u32 %v436, 2147483648
    %v439 = vxor.u32 %v437, 2147483648
    %v440 = vmul.f32 %v438, 1.442695
    %v441 = vpow.pop %v440
    %v442 = vmul.f32 %v439, 1.442695
    %v443 = vpow.pop %v442
    %v444 = vadd.f32 %v441, 1.0
    %v445 = vadd.f32 %v443, 1.0
    %v446 = vrcp.pop %v444
    %v447 = vmul.f32 1.0, %v446
    %v448 = vrcp.pop %v445
    %v449 = vmul.f32 1.0, %v448
    %v450 = vtanh.pop %v436
    %v451 = vtanh.pop %v437
    %v452 = vmul.f32 %v447, 0.0
    %v453 = vmul.f32 %v449, 0.0
    %456 = vrot.lane.b32.xlu0 %v450, 32
    %v457 = vpop.permute.xlu0 %456
    %458 = vrot.lane.b32.xlu0 %v451, 32
    %v459 = vpop.permute.xlu0 %458
    %v462 = vmul.f32 %v447, %v457
    %v463 = vmul.f32 %v449, %v459
    %466 = vrot.lane.b32.xlu0 %v462, 32
    %v467 = vpop.permute.xlu0 %466
    %468 = vrot.lane.b32.xlu0 %v463, 32
    %v469 = vpop.permute.xlu0 %468
    %v472 = vadd.f32 %v452, %v467
    %v473 = vadd.f32 %v453, %v469
    %v474 = vtanh.pop %v472
    %v475 = vtanh.pop %v473
    %478 = vrot.lane.b32.xlu0 %v474, 32
    %v479 = vpop.permute.xlu0 %478
    %480 = vrot.lane.b32.xlu0 %v475, 32
    %v481 = vpop.permute.xlu0 %480
    %v484 = vmul.f32 %v447, %v479
    %v485 = vmul.f32 %v449, %v481
    %488 = vrot.lane.b32.xlu0 %v484, 64
    %v489 = vpop.permute.xlu0 %488
    %490 = vrot.lane.b32.xlu0 %v485, 64
    %v491 = vpop.permute.xlu0 %490
    %vm494 = vcmask 130048
    %495 = vst.msk [vmem:[#allocation2] sm:$0xff] %vm494, %v489
    %496 = vst.msk [vmem:[#allocation2 + $0x8] sm:$0xff] %vm494, %v491
    %vm497 = vcmask 261248
    %498 = vst.msk [vmem:[#allocation2 + $0x70] sm:$0xff] %vm497, %v489
    %499 = vst.msk [vmem:[#allocation2 + $0x78] sm:$0xff] %vm497, %v491
    %v500 = vsel %vm160, %v489, 0
    %v502 = vsel %vm160, %v491, 0
    %504 = vmatprep.subr.mxu0 0.0
    %505 = vmatpush1.msra.mxu0 0.0
    %506 = vmatprep.subr.mxu0 0.0
    %507 = vmatpush1.msra.mxu0 0.0
    %508 = vmatprep.subr.mxu0 0.0
    %509 = vmatpush1.msra.mxu0 0.0
    %510 = vmatprep.subr.mxu0 0.0
    %511 = vmatpush1.msra.mxu0 0.0
    %512 = vmatprep.subr.mxu0 0.0
    %513 = vmatpush1.msra.mxu0 0.0
    %514 = vmatprep.subr.mxu0 0.0
    %515 = vmatpush1.msra.mxu0 0.0
    %516 = vmatprep.subr.mxu0 0.0
    %517 = vmatpush1.msra.mxu0 0.0
    %518 = vmatprep.subr.mxu0 0.0
    %519 = vmatpush1.msra.mxu0 0.0
    %520 = vmatprep.subr.mxu0 0.0
    %521 = vmatpush1.msra.mxu0 0.0
    %522 = vmatprep.subr.mxu0 0.0
    %523 = vmatpush1.msra.mxu0 0.0
    %524 = vmatprep.subr.mxu0 0.0
    %525 = vmatpush1.msra.mxu0 0.0
    %526 = vmatprep.subr.mxu0 0.0
    %527 = vmatpush1.msra.mxu0 0.0
    %528 = vmatprep.subr.mxu0 0.0
    %529 = vmatpush1.msra.mxu0 %v357
    %530 = vmatprep.subr.mxu0 0.0
    %531 = vmatpush1.msra.mxu0 %v356
    %532 = vmatprep.subr.mxu0 0.0
    %533 = vmatpush1.msra.mxu0 %v355
    %534 = vmatprep.subr.mxu0 0.0
    %535 = vmatpush1.msra.mxu0 %v354
    %536 = vmatprep.subr.mxu0 0.0
    %537 = vmatpush2.msra.mxu0 0.0
    %538 = vmatprep.subr.mxu0 0.0
    %539 = vmatpush2.msra.mxu0 0.0
    %540 = vmatprep.subr.mxu0 0.0
    %541 = vmatpush2.msra.mxu0 0.0
    %542 = vmatprep.subr.mxu0 0.0
    %543 = vmatpush2.msra.mxu0 0.0
    %544 = vmatprep.subr.mxu0 0.0
    %545 = vmatpush2.msra.mxu0 0.0
    %546 = vmatprep.subr.mxu0 0.0
    %547 = vmatpush2.msra.mxu0 0.0
    %548 = vmatprep.subr.mxu0 0.0
    %549 = vmatpush2.msra.mxu0 0.0
    %550 = vmatprep.subr.mxu0 0.0
    %551 = vmatpush2.msra.mxu0 0.0
    %552 = vmatprep.subr.mxu0 0.0
    %553 = vmatpush2.msra.mxu0 0.0
    %554 = vmatprep.subr.mxu0 0.0
    %555 = vmatpush2.msra.mxu0 0.0
    %556 = vmatprep.subr.mxu0 0.0
    %557 = vmatpush2.msra.mxu0 0.0
    %558 = vmatprep.subr.mxu0 0.0
    %559 = vmatpush2.msra.mxu0 0.0
    %560 = vmatprep.subr.mxu0 0.0
    %561 = vmatpush2.msra.mxu0 0.0
    %562 = vmatprep.subr.mxu0 0.0
    %563 = vmatpush2.msra.mxu0 0.0
    %564 = vmatprep.subr.mxu0 0.0
    %565 = vmatpush2.msra.mxu0 0.0
    %566 = vmatprep.subr.mxu0 0.0
    %567 = vmatpush2.msra.mxu0 0.0
    %568 = vmatprep.mubr.f32.mxu0 0.0
    %569 = vmatmul.mubr.f32.gmra.mxu0 %v500
    %v570 = vpop.f32.mrf.mxu0
    %v571 = vadd.f32 0.0, %v570
    %v572 = vpop.f32.mrf.mxu0
    %573 = vmatprep.mubr.f32.mxu0 0.0
    %574 = vmatmul.mubr.f32.gmra.mxu0 %v502
    %v575 = vpop.f32.mrf.mxu0
    %v576 = vadd.f32 0.0, %v575
    %v577 = vpop.f32.mrf.mxu0
    %578 = vdwg.mxu0
    %v579 = vadd.f32 %v286, %v571
    %v580 = vadd.f32 %v291, %v576
    %v581 = vxor.u32 %v579, 2147483648
    %v582 = vxor.u32 %v580, 2147483648
    %v583 = vmul.f32 %v581, 1.442695
    %v584 = vpow.pop %v583
    %v585 = vmul.f32 %v582, 1.442695
    %v586 = vpow.pop %v585
    %v587 = vadd.f32 %v584, 1.0
    %v588 = vadd.f32 %v586, 1.0
    %v589 = vrcp.pop %v587
    %v590 = vmul.f32 1.0, %v589
    %v591 = vrcp.pop %v588
    %v592 = vmul.f32 1.0, %v591
    %v593 = vtanh.pop %v579
    %v594 = vtanh.pop %v580
    %v595 = vmul.f32 %v590, %v472
    %v596 = vmul.f32 %v592, %v473
    %599 = vrot.lane.b32.xlu0 %v593, 32
    %v600 = vpop.permute.xlu0 %599
    %601 = vrot.lane.b32.xlu0 %v594, 32
    %v602 = vpop.permute.xlu0 %601
    %v605 = vmul.f32 %v590, %v600
    %v606 = vmul.f32 %v592, %v602
    %609 = vrot.lane.b32.xlu0 %v605, 32
    %v610 = vpop.permute.xlu0 %609
    %611 = vrot.lane.b32.xlu0 %v606, 32
    %v612 = vpop.permute.xlu0 %611
    %v615 = vadd.f32 %v595, %v610
    %v616 = vadd.f32 %v596, %v612
    %v617 = vtanh.pop %v615
    %v618 = vtanh.pop %v616
    %621 = vrot.lane.b32.xlu0 %v617, 32
    %v622 = vpop.permute.xlu0 %621
    %623 = vrot.lane.b32.xlu0 %v618, 32
    %v624 = vpop.permute.xlu0 %623
    %v627 = vmul.f32 %v590, %v622
    %v628 = vmul.f32 %v592, %v624
    %631 = vrot.lane.b32.xlu0 %v627, 64
    %v632 = vpop.permute.xlu0 %631
    %633 = vrot.lane.b32.xlu0 %v628, 64
    %v634 = vpop.permute.xlu0 %633
    %637 = vst.msk [vmem:[#allocation2 + $0x10] sm:$0xff] %vm494, %v632
    %638 = vst.msk [vmem:[#allocation2 + $0x18] sm:$0xff] %vm494, %v634
    %639 = vst.msk [vmem:[#allocation2 + $0x60] sm:$0xff] %vm497, %v632
    %640 = vst.msk [vmem:[#allocation2 + $0x68] sm:$0xff] %vm497, %v634
    %v641 = vsel %vm160, %v632, 0
    %v643 = vsel %vm160, %v634, 0
    %645 = vmatprep.subr.mxu0 0.0
    %646 = vmatpush1.msra.mxu0 0.0
    %647 = vmatprep.subr.mxu0 0.0
    %648 = vmatpush1.msra.mxu0 0.0
    %649 = vmatprep.subr.mxu0 0.0
    %650 = vmatpush1.msra.mxu0 0.0
    %651 = vmatprep.subr.mxu0 0.0
    %652 = vmatpush1.msra.mxu0 0.0
    %653 = vmatprep.subr.mxu0 0.0
    %654 = vmatpush1.msra.mxu0 0.0
    %655 = vmatprep.subr.mxu0 0.0
    %656 = vmatpush1.msra.mxu0 0.0
    %657 = vmatprep.subr.mxu0 0.0
    %658 = vmatpush1.msra.mxu0 0.0
    %659 = vmatprep.subr.mxu0 0.0
    %660 = vmatpush1.msra.mxu0 0.0
    %661 = vmatprep.subr.mxu0 0.0
    %662 = vmatpush1.msra.mxu0 0.0
    %663 = vmatprep.subr.mxu0 0.0
    %664 = vmatpush1.msra.mxu0 0.0
    %665 = vmatprep.subr.mxu0 0.0
    %666 = vmatpush1.msra.mxu0 0.0
    %667 = vmatprep.subr.mxu0 0.0
    %668 = vmatpush1.msra.mxu0 0.0
    %669 = vmatprep.subr.mxu0 0.0
    %670 = vmatpush1.msra.mxu0 %v357
    %671 = vmatprep.subr.mxu0 0.0
    %672 = vmatpush1.msra.mxu0 %v356
    %673 = vmatprep.subr.mxu0 0.0
    %674 = vmatpush1.msra.mxu0 %v355
    %675 = vmatprep.subr.mxu0 0.0
    %676 = vmatpush1.msra.mxu0 %v354
    %677 = vmatprep.subr.mxu0 0.0
    %678 = vmatpush2.msra.mxu0 0.0
    %679 = vmatprep.subr.mxu0 0.0
    %680 = vmatpush2.msra.mxu0 0.0
    %681 = vmatprep.subr.mxu0 0.0
    %682 = vmatpush2.msra.mxu0 0.0
    %683 = vmatprep.subr.mxu0 0.0
    %684 = vmatpush2.msra.mxu0 0.0
    %685 = vmatprep.subr.mxu0 0.0
    %686 = vmatpush2.msra.mxu0 0.0
    %687 = vmatprep.subr.mxu0 0.0
    %688 = vmatpush2.msra.mxu0 0.0
    %689 = vmatprep.subr.mxu0 0.0
    %690 = vmatpush2.msra.mxu0 0.0
    %691 = vmatprep.subr.mxu0 0.0
    %692 = vmatpush2.msra.mxu0 0.0
    %693 = vmatprep.subr.mxu0 0.0
    %694 = vmatpush2.msra.mxu0 0.0
    %695 = vmatprep.subr.mxu0 0.0
    %696 = vmatpush2.msra.mxu0 0.0
    %697 = vmatprep.subr.mxu0 0.0
    %698 = vmatpush2.msra.mxu0 0.0
    %699 = vmatprep.subr.mxu0 0.0
    %700 = vmatpush2.msra.mxu0 0.0
    %701 = vmatprep.subr.mxu0 0.0
    %702 = vmatpush2.msra.mxu0 0.0
    %703 = vmatprep.subr.mxu0 0.0
    %704 = vmatpush2.msra.mxu0 0.0
    %705 = vmatprep.subr.mxu0 0.0
    %706 = vmatpush2.msra.mxu0 0.0
    %707 = vmatprep.subr.mxu0 0.0
    %708 = vmatpush2.msra.mxu0 0.0
    %709 = vmatprep.mubr.f32.mxu0 0.0
    %710 = vmatmul.mubr.f32.gmra.mxu0 %v641
    %v711 = vpop.f32.mrf.mxu0
    %v712 = vadd.f32 0.0, %v711
    %v713 = vpop.f32.mrf.mxu0
    %714 = vmatprep.mubr.f32.mxu0 0.0
    %715 = vmatmul.mubr.f32.gmra.mxu0 %v643
    %v716 = vpop.f32.mrf.mxu0
    %v717 = vadd.f32 0.0, %v716
    %v718 = vpop.f32.mrf.mxu0
    %719 = vdwg.mxu0
    %v720 = vadd.f32 %v296, %v712
    %v721 = vadd.f32 %v301, %v717
    %v722 = vxor.u32 %v720, 2147483648
    %v723 = vxor.u32 %v721, 2147483648
    %v724 = vmul.f32 %v722, 1.442695
    %v725 = vpow.pop %v724
    %v726 = vmul.f32 %v723, 1.442695
    %v727 = vpow.pop %v726
    %v728 = vadd.f32 %v725, 1.0
    %v729 = vadd.f32 %v727, 1.0
    %v730 = vrcp.pop %v728
    %v731 = vmul.f32 1.0, %v730
    %v732 = vrcp.pop %v729
    %v733 = vmul.f32 1.0, %v732
    %v734 = vtanh.pop %v720
    %v735 = vtanh.pop %v721
    %v736 = vmul.f32 %v731, %v615
    %v737 = vmul.f32 %v733, %v616
    %740 = vrot.lane.b32.xlu0 %v734, 32
    %v741 = vpop.permute.xlu0 %740
    %742 = vrot.lane.b32.xlu0 %v735, 32
    %v743 = vpop.permute.xlu0 %742
    %v746 = vmul.f32 %v731, %v741
    %v747 = vmul.f32 %v733, %v743
    %750 = vrot.lane.b32.xlu0 %v746, 32
    %v751 = vpop.permute.xlu0 %750
    %752 = vrot.lane.b32.xlu0 %v747, 32
    %v753 = vpop.permute.xlu0 %752
    %v756 = vadd.f32 %v736, %v751
    %v757 = vadd.f32 %v737, %v753
    %v758 = vtanh.pop %v756
    %v759 = vtanh.pop %v757
    %762 = vrot.lane.b32.xlu0 %v758, 32
    %v763 = vpop.permute.xlu0 %762
    %764 = vrot.lane.b32.xlu0 %v759, 32
    %v765 = vpop.permute.xlu0 %764
    %v768 = vmul.f32 %v731, %v763
    %v769 = vmul.f32 %v733, %v765
    %772 = vrot.lane.b32.xlu0 %v768, 64
    %v773 = vpop.permute.xlu0 %772
    %774 = vrot.lane.b32.xlu0 %v769, 64
    %v775 = vpop.permute.xlu0 %774
    %778 = vst.msk [vmem:[#allocation2 + $0x20] sm:$0xff] %vm494, %v773
    %779 = vst.msk [vmem:[#allocation2 + $0x28] sm:$0xff] %vm494, %v775
    %780 = vst.msk [vmem:[#allocation2 + $0x50] sm:$0xff] %vm497, %v773
    %781 = vst.msk [vmem:[#allocation2 + $0x58] sm:$0xff] %vm497, %v775
    %v782 = vsel %vm160, %v773, 0
    %v784 = vsel %vm160, %v775, 0
    %786 = vmatprep.subr.mxu0 0.0
    %787 = vmatpush1.msra.mxu0 0.0
    %788 = vmatprep.subr.mxu0 0.0
    %789 = vmatpush1.msra.mxu0 0.0
    %790 = vmatprep.subr.mxu0 0.0
    %791 = vmatpush1.msra.mxu0 0.0
    %792 = vmatprep.subr.mxu0 0.0
    %793 = vmatpush1.msra.mxu0 0.0
    %794 = vmatprep.subr.mxu0 0.0
    %795 = vmatpush1.msra.mxu0 0.0
    %796 = vmatprep.subr.mxu0 0.0
    %797 = vmatpush1.msra.mxu0 0.0
    %798 = vmatprep.subr.mxu0 0.0
    %799 = vmatpush1.msra.mxu0 0.0
    %800 = vmatprep.subr.mxu0 0.0
    %801 = vmatpush1.msra.mxu0 0.0
    %802 = vmatprep.subr.mxu0 0.0
    %803 = vmatpush1.msra.mxu0 0.0
    %804 = vmatprep.subr.mxu0 0.0
    %805 = vmatpush1.msra.mxu0 0.0
    %806 = vmatprep.subr.mxu0 0.0
    %807 = vmatpush1.msra.mxu0 0.0
    %808 = vmatprep.subr.mxu0 0.0
    %809 = vmatpush1.msra.mxu0 0.0
    %810 = vmatprep.subr.mxu0 0.0
    %811 = vmatpush1.msra.mxu0 %v357
    %812 = vmatprep.subr.mxu0 0.0
    %813 = vmatpush1.msra.mxu0 %v356
    %814 = vmatprep.subr.mxu0 0.0
    %815 = vmatpush1.msra.mxu0 %v355
    %816 = vmatprep.subr.mxu0 0.0
    %817 = vmatpush1.msra.mxu0 %v354
    %818 = vmatprep.subr.mxu0 0.0
    %819 = vmatpush2.msra.mxu0 0.0
    %820 = vmatprep.subr.mxu0 0.0
    %821 = vmatpush2.msra.mxu0 0.0
    %822 = vmatprep.subr.mxu0 0.0
    %823 = vmatpush2.msra.mxu0 0.0
    %824 = vmatprep.subr.mxu0 0.0
    %825 = vmatpush2.msra.mxu0 0.0
    %826 = vmatprep.subr.mxu0 0.0
    %827 = vmatpush2.msra.mxu0 0.0
    %828 = vmatprep.subr.mxu0 0.0
    %829 = vmatpush2.msra.mxu0 0.0
    %830 = vmatprep.subr.mxu0 0.0
    %831 = vmatpush2.msra.mxu0 0.0
    %832 = vmatprep.subr.mxu0 0.0
    %833 = vmatpush2.msra.mxu0 0.0
    %834 = vmatprep.subr.mxu0 0.0
    %835 = vmatpush2.msra.mxu0 0.0
    %836 = vmatprep.subr.mxu0 0.0
    %837 = vmatpush2.msra.mxu0 0.0
    %838 = vmatprep.subr.mxu0 0.0
    %839 = vmatpush2.msra.mxu0 0.0
    %840 = vmatprep.subr.mxu0 0.0
    %841 = vmatpush2.msra.mxu0 0.0
    %842 = vmatprep.subr.mxu0 0.0
    %843 = vmatpush2.msra.mxu0 0.0
    %844 = vmatprep.subr.mxu0 0.0
    %845 = vmatpush2.msra.mxu0 0.0
    %846 = vmatprep.subr.mxu0 0.0
    %847 = vmatpush2.msra.mxu0 0.0
    %848 = vmatprep.subr.mxu0 0.0
    %849 = vmatpush2.msra.mxu0 0.0
    %850 = vmatprep.mubr.f32.mxu0 0.0
    %851 = vmatmul.mubr.f32.gmra.mxu0 %v782
    %v852 = vpop.f32.mrf.mxu0
    %v853 = vadd.f32 0.0, %v852
    %v854 = vpop.f32.mrf.mxu0
    %855 = vmatprep.mubr.f32.mxu0 0.0
    %856 = vmatmul.mubr.f32.gmra.mxu0 %v784
    %v857 = vpop.f32.mrf.mxu0
    %v858 = vadd.f32 0.0, %v857
    %v859 = vpop.f32.mrf.mxu0
    %860 = vdwg.mxu0
    %v861 = vadd.f32 %v306, %v853
    %v862 = vadd.f32 %v311, %v858
    %v863 = vxor.u32 %v861, 2147483648
    %v864 = vxor.u32 %v862, 2147483648
    %v865 = vmul.f32 %v863, 1.442695
    %v866 = vpow.pop %v865
    %v867 = vmul.f32 %v864, 1.442695
    %v868 = vpow.pop %v867
    %v869 = vadd.f32 %v866, 1.0
    %v870 = vadd.f32 %v868, 1.0
    %v871 = vrcp.pop %v869
    %v872 = vmul.f32 1.0, %v871
    %v873 = vrcp.pop %v870
    %v874 = vmul.f32 1.0, %v873
    %v875 = vtanh.pop %v861
    %v876 = vtanh.pop %v862
    %v877 = vmul.f32 %v872, %v756
    %v878 = vmul.f32 %v874, %v757
    %881 = vrot.lane.b32.xlu0 %v875, 32
    %v882 = vpop.permute.xlu0 %881
    %883 = vrot.lane.b32.xlu0 %v876, 32
    %v884 = vpop.permute.xlu0 %883
    %v887 = vmul.f32 %v872, %v882
    %v888 = vmul.f32 %v874, %v884
    %891 = vrot.lane.b32.xlu0 %v887, 32
    %v892 = vpop.permute.xlu0 %891
    %893 = vrot.lane.b32.xlu0 %v888, 32
    %v894 = vpop.permute.xlu0 %893
    %v897 = vadd.f32 %v877, %v892
    %v898 = vadd.f32 %v878, %v894
    %v899 = vtanh.pop %v897
    %v900 = vtanh.pop %v898
    %903 = vrot.lane.b32.xlu0 %v899, 32
    %v904 = vpop.permute.xlu0 %903
    %905 = vrot.lane.b32.xlu0 %v900, 32
    %v906 = vpop.permute.xlu0 %905
    %v909 = vmul.f32 %v872, %v904
    %v910 = vmul.f32 %v874, %v906
    %913 = vrot.lane.b32.xlu0 %v909, 64
    %v914 = vpop.permute.xlu0 %913
    %915 = vrot.lane.b32.xlu0 %v910, 64
    %v916 = vpop.permute.xlu0 %915
    %919 = vst.msk [vmem:[#allocation2 + $0x30] sm:$0xff] %vm494, %v914
    %920 = vst.msk [vmem:[#allocation2 + $0x38] sm:$0xff] %vm494, %v916
    %921 = vst.msk [vmem:[#allocation2 + $0x40] sm:$0xff] %vm497, %v914
    %922 = vst.msk [vmem:[#allocation2 + $0x48] sm:$0xff] %vm497, %v916
    %v923 = vsel %vm160, %v914, 0
    %v925 = vsel %vm160, %v916, 0
    %927 = vmatprep.subr.mxu0 0.0
    %928 = vmatpush1.msra.mxu0 0.0
    %929 = vmatprep.subr.mxu0 0.0
    %930 = vmatpush1.msra.mxu0 0.0
    %931 = vmatprep.subr.mxu0 0.0
    %932 = vmatpush1.msra.mxu0 0.0
    %933 = vmatprep.subr.mxu0 0.0
    %934 = vmatpush1.msra.mxu0 0.0
    %935 = vmatprep.subr.mxu0 0.0
    %936 = vmatpush1.msra.mxu0 0.0
    %937 = vmatprep.subr.mxu0 0.0
    %938 = vmatpush1.msra.mxu0 0.0
    %939 = vmatprep.subr.mxu0 0.0
    %940 = vmatpush1.msra.mxu0 0.0
    %941 = vmatprep.subr.mxu0 0.0
    %942 = vmatpush1.msra.mxu0 0.0
    %943 = vmatprep.subr.mxu0 0.0
    %944 = vmatpush1.msra.mxu0 0.0
    %945 = vmatprep.subr.mxu0 0.0
    %946 = vmatpush1.msra.mxu0 0.0
    %947 = vmatprep.subr.mxu0 0.0
    %948 = vmatpush1.msra.mxu0 0.0
    %949 = vmatprep.subr.mxu0 0.0
    %950 = vmatpush1.msra.mxu0 0.0
    %951 = vmatprep.subr.mxu0 0.0
    %952 = vmatpush1.msra.mxu0 %v357
    %953 = vmatprep.subr.mxu0 0.0
    %954 = vmatpush1.msra.mxu0 %v356
    %955 = vmatprep.subr.mxu0 0.0
    %956 = vmatpush1.msra.mxu0 %v355
    %957 = vmatprep.subr.mxu0 0.0
    %958 = vmatpush1.msra.mxu0 %v354
    %959 = vmatprep.subr.mxu0 0.0
    %960 = vmatpush2.msra.mxu0 0.0
    %961 = vmatprep.subr.mxu0 0.0
    %962 = vmatpush2.msra.mxu0 0.0
    %963 = vmatprep.subr.mxu0 0.0
    %964 = vmatpush2.msra.mxu0 0.0
    %965 = vmatprep.subr.mxu0 0.0
    %966 = vmatpush2.msra.mxu0 0.0
    %967 = vmatprep.subr.mxu0 0.0
    %968 = vmatpush2.msra.mxu0 0.0
    %969 = vmatprep.subr.mxu0 0.0
    %970 = vmatpush2.msra.mxu0 0.0
    %971 = vmatprep.subr.mxu0 0.0
    %972 = vmatpush2.msra.mxu0 0.0
    %973 = vmatprep.subr.mxu0 0.0
    %974 = vmatpush2.msra.mxu0 0.0
    %975 = vmatprep.subr.mxu0 0.0
    %976 = vmatpush2.msra.mxu0 0.0
    %977 = vmatprep.subr.mxu0 0.0
    %978 = vmatpush2.msra.mxu0 0.0
    %979 = vmatprep.subr.mxu0 0.0
    %980 = vmatpush2.msra.mxu0 0.0
    %981 = vmatprep.subr.mxu0 0.0
    %982 = vmatpush2.msra.mxu0 0.0
    %983 = vmatprep.subr.mxu0 0.0
    %984 = vmatpush2.msra.mxu0 0.0
    %985 = vmatprep.subr.mxu0 0.0
    %986 = vmatpush2.msra.mxu0 0.0
    %987 = vmatprep.subr.mxu0 0.0
    %988 = vmatpush2.msra.mxu0 0.0
    %989 = vmatprep.subr.mxu0 0.0
    %990 = vmatpush2.msra.mxu0 0.0
    %991 = vmatprep.mubr.f32.mxu0 0.0
    %992 = vmatmul.mubr.f32.gmra.mxu0 %v923
    %v993 = vpop.f32.mrf.mxu0
    %v994 = vadd.f32 0.0, %v993
    %v995 = vpop.f32.mrf.mxu0
    %996 = vmatprep.mubr.f32.mxu0 0.0
    %997 = vmatmul.mubr.f32.gmra.mxu0 %v925
    %v998 = vpop.f32.mrf.mxu0
    %v999 = vadd.f32 0.0, %v998
    %v1000 = vpop.f32.mrf.mxu0
    %1001 = vdwg.mxu0
    %v1002 = vadd.f32 %v316, %v994
    %v1003 = vadd.f32 %v321, %v999
    %v1004 = vxor.u32 %v1002, 2147483648
    %v1005 = vxor.u32 %v1003, 2147483648
    %v1006 = vmul.f32 %v1004, 1.442695
    %v1007 = vpow.pop %v1006
    %v1008 = vmul.f32 %v1005, 1.442695
    %v1009 = vpow.pop %v1008
    %v1010 = vadd.f32 %v1007, 1.0
    %v1011 = vadd.f32 %v1009, 1.0
    %v1012 = vrcp.pop %v1010
    %v1013 = vmul.f32 1.0, %v1012
    %v1014 = vrcp.pop %v1011
    %v1015 = vmul.f32 1.0, %v1014
    %v1016 = vtanh.pop %v1002
    %v1017 = vtanh.pop %v1003
    %v1018 = vmul.f32 %v1013, %v897
    %v1019 = vmul.f32 %v1015, %v898
    %1022 = vrot.lane.b32.xlu0 %v1016, 32
    %v1023 = vpop.permute.xlu0 %1022
    %1024 = vrot.lane.b32.xlu0 %v1017, 32
    %v1025 = vpop.permute.xlu0 %1024
    %v1028 = vmul.f32 %v1013, %v1023
    %v1029 = vmul.f32 %v1015, %v1025
    %1032 = vrot.lane.b32.xlu0 %v1028, 32
    %v1033 = vpop.permute.xlu0 %1032
    %1034 = vrot.lane.b32.xlu0 %v1029, 32
    %v1035 = vpop.permute.xlu0 %1034
    %v1038 = vadd.f32 %v1018, %v1033
    %v1039 = vadd.f32 %v1019, %v1035
    %v1040 = vtanh.pop %v1038
    %v1041 = vtanh.pop %v1039
    %1044 = vrot.lane.b32.xlu0 %v1040, 32
    %v1045 = vpop.permute.xlu0 %1044
    %1046 = vrot.lane.b32.xlu0 %v1041, 32
    %v1047 = vpop.permute.xlu0 %1046
    %v1050 = vmul.f32 %v1013, %v1045
    %v1051 = vmul.f32 %v1015, %v1047
    %1054 = vrot.lane.b32.xlu0 %v1050, 64
    %v1055 = vpop.permute.xlu0 %1054
    %1056 = vrot.lane.b32.xlu0 %v1051, 64
    %v1057 = vpop.permute.xlu0 %1056
    %1060 = vst.msk [vmem:[#allocation2 + $0x40] sm:$0xff] %vm494, %v1055
    %1061 = vst.msk [vmem:[#allocation2 + $0x48] sm:$0xff] %vm494, %v1057
    %1062 = vst.msk [vmem:[#allocation2 + $0x30] sm:$0xff] %vm497, %v1055
    %1063 = vst.msk [vmem:[#allocation2 + $0x38] sm:$0xff] %vm497, %v1057
    %v1064 = vsel %vm160, %v1055, 0
    %v1066 = vsel %vm160, %v1057, 0
    %1068 = vmatprep.subr.mxu0 0.0
    %1069 = vmatpush1.msra.mxu0 0.0
    %1070 = vmatprep.subr.mxu0 0.0
    %1071 = vmatpush1.msra.mxu0 0.0
    %1072 = vmatprep.subr.mxu0 0.0
    %1073 = vmatpush1.msra.mxu0 0.0
    %1074 = vmatprep.subr.mxu0 0.0
    %1075 = vmatpush1.msra.mxu0 0.0
    %1076 = vmatprep.subr.mxu0 0.0
    %1077 = vmatpush1.msra.mxu0 0.0
    %1078 = vmatprep.subr.mxu0 0.0
    %1079 = vmatpush1.msra.mxu0 0.0
    %1080 = vmatprep.subr.mxu0 0.0
    %1081 = vmatpush1.msra.mxu0 0.0
    %1082 = vmatprep.subr.mxu0 0.0
    %1083 = vmatpush1.msra.mxu0 0.0
    %1084 = vmatprep.subr.mxu0 0.0
    %1085 = vmatpush1.msra.mxu0 0.0
    %1086 = vmatprep.subr.mxu0 0.0
    %1087 = vmatpush1.msra.mxu0 0.0
    %1088 = vmatprep.subr.mxu0 0.0
    %1089 = vmatpush1.msra.mxu0 0.0
    %1090 = vmatprep.subr.mxu0 0.0
    %1091 = vmatpush1.msra.mxu0 0.0
    %1092 = vmatprep.subr.mxu0 0.0
    %1093 = vmatpush1.msra.mxu0 %v357
    %1094 = vmatprep.subr.mxu0 0.0
    %1095 = vmatpush1.msra.mxu0 %v356
    %1096 = vmatprep.subr.mxu0 0.0
    %1097 = vmatpush1.msra.mxu0 %v355
    %1098 = vmatprep.subr.mxu0 0.0
    %1099 = vmatpush1.msra.mxu0 %v354
    %1100 = vmatprep.subr.mxu0 0.0
    %1101 = vmatpush2.msra.mxu0 0.0
    %1102 = vmatprep.subr.mxu0 0.0
    %1103 = vmatpush2.msra.mxu0 0.0
    %1104 = vmatprep.subr.mxu0 0.0
    %1105 = vmatpush2.msra.mxu0 0.0
    %1106 = vmatprep.subr.mxu0 0.0
    %1107 = vmatpush2.msra.mxu0 0.0
    %1108 = vmatprep.subr.mxu0 0.0
    %1109 = vmatpush2.msra.mxu0 0.0
    %1110 = vmatprep.subr.mxu0 0.0
    %1111 = vmatpush2.msra.mxu0 0.0
    %1112 = vmatprep.subr.mxu0 0.0
    %1113 = vmatpush2.msra.mxu0 0.0
    %1114 = vmatprep.subr.mxu0 0.0
    %1115 = vmatpush2.msra.mxu0 0.0
    %1116 = vmatprep.subr.mxu0 0.0
    %1117 = vmatpush2.msra.mxu0 0.0
    %1118 = vmatprep.subr.mxu0 0.0
    %1119 = vmatpush2.msra.mxu0 0.0
    %1120 = vmatprep.subr.mxu0 0.0
    %1121 = vmatpush2.msra.mxu0 0.0
    %1122 = vmatprep.subr.mxu0 0.0
    %1123 = vmatpush2.msra.mxu0 0.0
    %1124 = vmatprep.subr.mxu0 0.0
    %1125 = vmatpush2.msra.mxu0 0.0
    %1126 = vmatprep.subr.mxu0 0.0
    %1127 = vmatpush2.msra.mxu0 0.0
    %1128 = vmatprep.subr.mxu0 0.0
    %1129 = vmatpush2.msra.mxu0 0.0
    %1130 = vmatprep.subr.mxu0 0.0
    %1131 = vmatpush2.msra.mxu0 0.0
    %1132 = vmatprep.mubr.f32.mxu0 0.0
    %1133 = vmatmul.mubr.f32.gmra.mxu0 %v1064
    %v1134 = vpop.f32.mrf.mxu0
    %v1135 = vadd.f32 0.0, %v1134
    %v1136 = vpop.f32.mrf.mxu0
    %1137 = vmatprep.mubr.f32.mxu0 0.0
    %1138 = vmatmul.mubr.f32.gmra.mxu0 %v1066
    %v1139 = vpop.f32.mrf.mxu0
    %v1140 = vadd.f32 0.0, %v1139
    %v1141 = vpop.f32.mrf.mxu0
    %1142 = vdwg.mxu0
    %v1143 = vadd.f32 %v326, %v1135
    %v1144 = vadd.f32 %v331, %v1140
    %v1145 = vxor.u32 %v1143, 2147483648
    %v1146 = vxor.u32 %v1144, 2147483648
    %v1147 = vmul.f32 %v1145, 1.442695
    %v1148 = vpow.pop %v1147
    %v1149 = vmul.f32 %v1146, 1.442695
    %v1150 = vpow.pop %v1149
    %v1151 = vadd.f32 %v1148, 1.0
    %v1152 = vadd.f32 %v1150, 1.0
    %v1153 = vrcp.pop %v1151
    %v1154 = vmul.f32 1.0, %v1153
    %v1155 = vrcp.pop %v1152
    %v1156 = vmul.f32 1.0, %v1155
    %v1157 = vtanh.pop %v1143
    %v1158 = vtanh.pop %v1144
    %v1159 = vmul.f32 %v1154, %v1038
    %v1160 = vmul.f32 %v1156, %v1039
    %1163 = vrot.lane.b32.xlu0 %v1157, 32
    %v1164 = vpop.permute.xlu0 %1163
    %1165 = vrot.lane.b32.xlu0 %v1158, 32
    %v1166 = vpop.permute.xlu0 %1165
    %v1169 = vmul.f32 %v1154, %v1164
    %v1170 = vmul.f32 %v1156, %v1166
    %1173 = vrot.lane.b32.xlu0 %v1169, 32
    %v1174 = vpop.permute.xlu0 %1173
    %1175 = vrot.lane.b32.xlu0 %v1170, 32
    %v1176 = vpop.permute.xlu0 %1175
    %v1179 = vadd.f32 %v1159, %v1174
    %v1180 = vadd.f32 %v1160, %v1176
    %v1181 = vtanh.pop %v1179
    %v1182 = vtanh.pop %v1180
    %1185 = vrot.lane.b32.xlu0 %v1181, 32
    %v1186 = vpop.permute.xlu0 %1185
    %1187 = vrot.lane.b32.xlu0 %v1182, 32
    %v1188 = vpop.permute.xlu0 %1187
    %v1191 = vmul.f32 %v1154, %v1186
    %v1192 = vmul.f32 %v1156, %v1188
    %1195 = vrot.lane.b32.xlu0 %v1191, 64
    %v1196 = vpop.permute.xlu0 %1195
    %1197 = vrot.lane.b32.xlu0 %v1192, 64
    %v1198 = vpop.permute.xlu0 %1197
    %1201 = vst.msk [vmem:[#allocation2 + $0x50] sm:$0xff] %vm494, %v1196
    %1202 = vst.msk [vmem:[#allocation2 + $0x58] sm:$0xff] %vm494, %v1198
    %1203 = vst.msk [vmem:[#allocation2 + $0x20] sm:$0xff] %vm497, %v1196
    %1204 = vst.msk [vmem:[#allocation2 + $0x28] sm:$0xff] %vm497, %v1198
    %v1205 = vsel %vm160, %v1196, 0
    %v1207 = vsel %vm160, %v1198, 0
    %1209 = vmatprep.subr.mxu0 0.0
    %1210 = vmatpush1.msra.mxu0 0.0
    %1211 = vmatprep.subr.mxu0 0.0
    %1212 = vmatpush1.msra.mxu0 0.0
    %1213 = vmatprep.subr.mxu0 0.0
    %1214 = vmatpush1.msra.mxu0 0.0
    %1215 = vmatprep.subr.mxu0 0.0
    %1216 = vmatpush1.msra.mxu0 0.0
    %1217 = vmatprep.subr.mxu0 0.0
    %1218 = vmatpush1.msra.mxu0 0.0
    %1219 = vmatprep.subr.mxu0 0.0
    %1220 = vmatpush1.msra.mxu0 0.0
    %1221 = vmatprep.subr.mxu0 0.0
    %1222 = vmatpush1.msra.mxu0 0.0
    %1223 = vmatprep.subr.mxu0 0.0
    %1224 = vmatpush1.msra.mxu0 0.0
    %1225 = vmatprep.subr.mxu0 0.0
    %1226 = vmatpush1.msra.mxu0 0.0
    %1227 = vmatprep.subr.mxu0 0.0
    %1228 = vmatpush1.msra.mxu0 0.0
    %1229 = vmatprep.subr.mxu0 0.0
    %1230 = vmatpush1.msra.mxu0 0.0
    %1231 = vmatprep.subr.mxu0 0.0
    %1232 = vmatpush1.msra.mxu0 0.0
    %1233 = vmatprep.subr.mxu0 0.0
    %1234 = vmatpush1.msra.mxu0 %v357
    %1235 = vmatprep.subr.mxu0 0.0
    %1236 = vmatpush1.msra.mxu0 %v356
    %1237 = vmatprep.subr.mxu0 0.0
    %1238 = vmatpush1.msra.mxu0 %v355
    %1239 = vmatprep.subr.mxu0 0.0
    %1240 = vmatpush1.msra.mxu0 %v354
    %1241 = vmatprep.subr.mxu0 0.0
    %1242 = vmatpush2.msra.mxu0 0.0
    %1243 = vmatprep.subr.mxu0 0.0
    %1244 = vmatpush2.msra.mxu0 0.0
    %1245 = vmatprep.subr.mxu0 0.0
    %1246 = vmatpush2.msra.mxu0 0.0
    %1247 = vmatprep.subr.mxu0 0.0
    %1248 = vmatpush2.msra.mxu0 0.0
    %1249 = vmatprep.subr.mxu0 0.0
    %1250 = vmatpush2.msra.mxu0 0.0
    %1251 = vmatprep.subr.mxu0 0.0
    %1252 = vmatpush2.msra.mxu0 0.0
    %1253 = vmatprep.subr.mxu0 0.0
    %1254 = vmatpush2.msra.mxu0 0.0
    %1255 = vmatprep.subr.mxu0 0.0
    %1256 = vmatpush2.msra.mxu0 0.0
    %1257 = vmatprep.subr.mxu0 0.0
    %1258 = vmatpush2.msra.mxu0 0.0
    %1259 = vmatprep.subr.mxu0 0.0
    %1260 = vmatpush2.msra.mxu0 0.0
    %1261 = vmatprep.subr.mxu0 0.0
    %1262 = vmatpush2.msra.mxu0 0.0
    %1263 = vmatprep.subr.mxu0 0.0
    %1264 = vmatpush2.msra.mxu0 0.0
    %1265 = vmatprep.subr.mxu0 0.0
    %1266 = vmatpush2.msra.mxu0 0.0
    %1267 = vmatprep.subr.mxu0 0.0
    %1268 = vmatpush2.msra.mxu0 0.0
    %1269 = vmatprep.subr.mxu0 0.0
    %1270 = vmatpush2.msra.mxu0 0.0
    %1271 = vmatprep.subr.mxu0 0.0
    %1272 = vmatpush2.msra.mxu0 0.0
    %1273 = vmatprep.mubr.f32.mxu0 0.0
    %1274 = vmatmul.mubr.f32.gmra.mxu0 %v1205
    %v1275 = vpop.f32.mrf.mxu0
    %v1276 = vadd.f32 0.0, %v1275
    %v1277 = vpop.f32.mrf.mxu0
    %1278 = vmatprep.mubr.f32.mxu0 0.0
    %1279 = vmatmul.mubr.f32.gmra.mxu0 %v1207
    %v1280 = vpop.f32.mrf.mxu0
    %v1281 = vadd.f32 0.0, %v1280
    %v1282 = vpop.f32.mrf.mxu0
    %1283 = vdwg.mxu0
    %v1284 = vadd.f32 %v336, %v1276
    %v1285 = vadd.f32 %v341, %v1281
    %v1286 = vxor.u32 %v1284, 2147483648
    %v1287 = vxor.u32 %v1285, 2147483648
    %v1288 = vmul.f32 %v1286, 1.442695
    %v1289 = vpow.pop %v1288
    %v1290 = vmul.f32 %v1287, 1.442695
    %v1291 = vpow.pop %v1290
    %v1292 = vadd.f32 %v1289, 1.0
    %v1293 = vadd.f32 %v1291, 1.0
    %v1294 = vrcp.pop %v1292
    %v1295 = vmul.f32 1.0, %v1294
    %v1296 = vrcp.pop %v1293
    %v1297 = vmul.f32 1.0, %v1296
    %v1298 = vtanh.pop %v1284
    %v1299 = vtanh.pop %v1285
    %v1300 = vmul.f32 %v1295, %v1179
    %v1301 = vmul.f32 %v1297, %v1180
    %1304 = vrot.lane.b32.xlu0 %v1298, 32
    %v1305 = vpop.permute.xlu0 %1304
    %1306 = vrot.lane.b32.xlu0 %v1299, 32
    %v1307 = vpop.permute.xlu0 %1306
    %v1310 = vmul.f32 %v1295, %v1305
    %v1311 = vmul.f32 %v1297, %v1307
    %1314 = vrot.lane.b32.xlu0 %v1310, 32
    %v1315 = vpop.permute.xlu0 %1314
    %1316 = vrot.lane.b32.xlu0 %v1311, 32
    %v1317 = vpop.permute.xlu0 %1316
    %v1320 = vadd.f32 %v1300, %v1315
    %v1321 = vadd.f32 %v1301, %v1317
    %v1322 = vtanh.pop %v1320
    %v1323 = vtanh.pop %v1321
    %1326 = vrot.lane.b32.xlu0 %v1322, 32
    %v1327 = vpop.permute.xlu0 %1326
    %1328 = vrot.lane.b32.xlu0 %v1323, 32
    %v1329 = vpop.permute.xlu0 %1328
    %v1332 = vmul.f32 %v1295, %v1327
    %v1333 = vmul.f32 %v1297, %v1329
    %1336 = vrot.lane.b32.xlu0 %v1332, 64
    %v1337 = vpop.permute.xlu0 %1336
    %1338 = vrot.lane.b32.xlu0 %v1333, 64
    %v1339 = vpop.permute.xlu0 %1338
    %1342 = vst.msk [vmem:[#allocation2 + $0x60] sm:$0xff] %vm494, %v1337
    %1343 = vst.msk [vmem:[#allocation2 + $0x68] sm:$0xff] %vm494, %v1339
    %1344 = vst.msk [vmem:[#allocation2 + $0x10] sm:$0xff] %vm497, %v1337
    %1345 = vst.msk [vmem:[#allocation2 + $0x18] sm:$0xff] %vm497, %v1339
    %v1346 = vsel %vm160, %v1337, 0
    %v1348 = vsel %vm160, %v1339, 0
    %1350 = vmatprep.subr.mxu0 0.0
    %1351 = vmatpush1.msra.mxu0 0.0
    %1352 = vmatprep.subr.mxu0 0.0
    %1353 = vmatpush1.msra.mxu0 0.0
    %1354 = vmatprep.subr.mxu0 0.0
    %1355 = vmatpush1.msra.mxu0 0.0
    %1356 = vmatprep.subr.mxu0 0.0
    %1357 = vmatpush1.msra.mxu0 0.0
    %1358 = vmatprep.subr.mxu0 0.0
    %1359 = vmatpush1.msra.mxu0 0.0
    %1360 = vmatprep.subr.mxu0 0.0
    %1361 = vmatpush1.msra.mxu0 0.0
    %1362 = vmatprep.subr.mxu0 0.0
    %1363 = vmatpush1.msra.mxu0 0.0
    %1364 = vmatprep.subr.mxu0 0.0
    %1365 = vmatpush1.msra.mxu0 0.0
    %1366 = vmatprep.subr.mxu0 0.0
    %1367 = vmatpush1.msra.mxu0 0.0
    %1368 = vmatprep.subr.mxu0 0.0
    %1369 = vmatpush1.msra.mxu0 0.0
    %1370 = vmatprep.subr.mxu0 0.0
    %1371 = vmatpush1.msra.mxu0 0.0
    %1372 = vmatprep.subr.mxu0 0.0
    %1373 = vmatpush1.msra.mxu0 0.0
    %1374 = vmatprep.subr.mxu0 0.0
    %1375 = vmatpush1.msra.mxu0 %v357
    %1376 = vmatprep.subr.mxu0 0.0
    %1377 = vmatpush1.msra.mxu0 %v356
    %1378 = vmatprep.subr.mxu0 0.0
    %1379 = vmatpush1.msra.mxu0 %v355
    %1380 = vmatprep.subr.mxu0 0.0
    %1381 = vmatpush1.msra.mxu0 %v354
    %1382 = vmatprep.subr.mxu0 0.0
    %1383 = vmatpush2.msra.mxu0 0.0
    %1384 = vmatprep.subr.mxu0 0.0
    %1385 = vmatpush2.msra.mxu0 0.0
    %1386 = vmatprep.subr.mxu0 0.0
    %1387 = vmatpush2.msra.mxu0 0.0
    %1388 = vmatprep.subr.mxu0 0.0
    %1389 = vmatpush2.msra.mxu0 0.0
    %1390 = vmatprep.subr.mxu0 0.0
    %1391 = vmatpush2.msra.mxu0 0.0
    %1392 = vmatprep.subr.mxu0 0.0
    %1393 = vmatpush2.msra.mxu0 0.0
    %1394 = vmatprep.subr.mxu0 0.0
    %1395 = vmatpush2.msra.mxu0 0.0
    %1396 = vmatprep.subr.mxu0 0.0
    %1397 = vmatpush2.msra.mxu0 0.0
    %1398 = vmatprep.subr.mxu0 0.0
    %1399 = vmatpush2.msra.mxu0 0.0
    %1400 = vmatprep.subr.mxu0 0.0
    %1401 = vmatpush2.msra.mxu0 0.0
    %1402 = vmatprep.subr.mxu0 0.0
    %1403 = vmatpush2.msra.mxu0 0.0
    %1404 = vmatprep.subr.mxu0 0.0
    %1405 = vmatpush2.msra.mxu0 0.0
    %1406 = vmatprep.subr.mxu0 0.0
    %1407 = vmatpush2.msra.mxu0 0.0
    %1408 = vmatprep.subr.mxu0 0.0
    %1409 = vmatpush2.msra.mxu0 0.0
    %1410 = vmatprep.subr.mxu0 0.0
    %1411 = vmatpush2.msra.mxu0 0.0
    %1412 = vmatprep.subr.mxu0 0.0
    %1413 = vmatpush2.msra.mxu0 0.0
    %1414 = vmatprep.mubr.f32.mxu0 0.0
    %1415 = vmatmul.mubr.f32.gmra.mxu0 %v1346
    %v1416 = vpop.f32.mrf.mxu0
    %v1417 = vadd.f32 0.0, %v1416
    %v1418 = vpop.f32.mrf.mxu0
    %1419 = vmatprep.mubr.f32.mxu0 0.0
    %1420 = vmatmul.mubr.f32.gmra.mxu0 %v1348
    %v1421 = vpop.f32.mrf.mxu0
    %v1422 = vadd.f32 0.0, %v1421
    %v1423 = vpop.f32.mrf.mxu0
    %1424 = vdwg.mxu0
    %v1425 = vadd.f32 %v346, %v1417
    %v1426 = vadd.f32 %v351, %v1422
    %v1427 = vxor.u32 %v1425, 2147483648
    %v1428 = vxor.u32 %v1426, 2147483648
    %v1429 = vmul.f32 %v1427, 1.442695
    %v1430 = vpow.pop %v1429
    %v1431 = vmul.f32 %v1428, 1.442695
    %v1432 = vpow.pop %v1431
    %v1433 = vadd.f32 %v1430, 1.0
    %v1434 = vadd.f32 %v1432, 1.0
    %v1435 = vrcp.pop %v1433
    %v1436 = vmul.f32 1.0, %v1435
    %v1437 = vrcp.pop %v1434
    %v1438 = vmul.f32 1.0, %v1437
    %v1439 = vtanh.pop %v1425
    %v1440 = vtanh.pop %v1426
    %v1441 = vmul.f32 %v1436, %v1320
    %v1442 = vmul.f32 %v1438, %v1321
    %1445 = vrot.lane.b32.xlu0 %v1439, 32
    %v1446 = vpop.permute.xlu0 %1445
    %1447 = vrot.lane.b32.xlu0 %v1440, 32
    %v1448 = vpop.permute.xlu0 %1447
    %v1451 = vmul.f32 %v1436, %v1446
    %v1452 = vmul.f32 %v1438, %v1448
    %1455 = vrot.lane.b32.xlu0 %v1451, 32
    %v1456 = vpop.permute.xlu0 %1455
    %1457 = vrot.lane.b32.xlu0 %v1452, 32
    %v1458 = vpop.permute.xlu0 %1457
    %v1461 = vadd.f32 %v1441, %v1456
    %v1462 = vadd.f32 %v1442, %v1458
    %v1463 = vtanh.pop %v1461
    %v1464 = vtanh.pop %v1462
    %1467 = vrot.lane.b32.xlu0 %v1463, 32
    %v1468 = vpop.permute.xlu0 %1467
    %1469 = vrot.lane.b32.xlu0 %v1464, 32
    %v1470 = vpop.permute.xlu0 %1469
    %v1473 = vmul.f32 %v1436, %v1468
    %v1474 = vmul.f32 %v1438, %v1470
    %1477 = vrot.lane.b32.xlu0 %v1473, 64
    %v1478 = vpop.permute.xlu0 %1477
    %1479 = vrot.lane.b32.xlu0 %v1474, 64
    %v1480 = vpop.permute.xlu0 %1479
    %1483 = vst.msk [vmem:[#allocation2 + $0x70] sm:$0xff] %vm494, %v1478
    %1484 = vst.msk [vmem:[#allocation2 + $0x78] sm:$0xff] %vm494, %v1480
    %1485 = vst.msk [vmem:[#allocation2] sm:$0xff] %vm497, %v1478
    %1486 = vst.msk [vmem:[#allocation2 + $0x8] sm:$0xff] %vm497, %v1480
    %v1487 = vld [vmem:[#allocation2] sm:$0xff]
    %v1488 = vld [vmem:[#allocation2 + $0x8] sm:$0xff]
    %v1489 = vld [vmem:[#allocation2 + $0x10] sm:$0xff]
    %v1490 = vld [vmem:[#allocation2 + $0x18] sm:$0xff]
    %v1491 = vld [vmem:[#allocation2 + $0x20] sm:$0xff]
    %v1492 = vld [vmem:[#allocation2 + $0x28] sm:$0xff]
    %v1493 = vld [vmem:[#allocation2 + $0x30] sm:$0xff]
    %v1494 = vld [vmem:[#allocation2 + $0x38] sm:$0xff]
    %v1495 = vld [vmem:[#allocation2 + $0x40] sm:$0xff]
    %v1496 = vld [vmem:[#allocation2 + $0x48] sm:$0xff]
    %v1497 = vld [vmem:[#allocation2 + $0x50] sm:$0xff]
    %v1498 = vld [vmem:[#allocation2 + $0x58] sm:$0xff]
    %v1499 = vld [vmem:[#allocation2 + $0x60] sm:$0xff]
    %v1500 = vld [vmem:[#allocation2 + $0x68] sm:$0xff]
    %v1501 = vld [vmem:[#allocation2 + $0x70] sm:$0xff]
    %v1502 = vld [vmem:[#allocation2 + $0x78] sm:$0xff]
    %v1503 = vld [vmem:[%s17] sm:$0xff]
    %v1504 = vld [vmem:[%s17 + $0x8] sm:$0xff]
    %v1505 = vld [vmem:[%s17 + $0x10] sm:$0xff]
    %v1506 = vld [vmem:[%s17 + $0x18] sm:$0xff]
    %v1507 = vld [vmem:[%s19] sm:$0x1]
    %v1509 = vlaneseq
    %v1510 = vshrl.u32 %v1509, 7
    %v1511 = vsub.s32 0, %v1510
    %v1512 = vrot.slane %v1507, %v1511
    %v1515 = vsel %vm160, %v1487, 0
    %v1518 = vsel %vm160, %v1488, 0
    %v1521 = vsel %vm160, %v1489, 0
    %v1524 = vsel %vm160, %v1490, 0
    %v1527 = vsel %vm160, %v1491, 0
    %v1530 = vsel %vm160, %v1492, 0
    %v1533 = vsel %vm160, %v1493, 0
    %v1536 = vsel %vm160, %v1494, 0
    %v1539 = vsel %vm160, %v1495, 0
    %v1542 = vsel %vm160, %v1496, 0
    %v1545 = vsel %vm160, %v1497, 0
    %v1548 = vsel %vm160, %v1498, 0
    %v1551 = vsel %vm160, %v1499, 0
    %v1554 = vsel %vm160, %v1500, 0
    %v1557 = vsel %vm160, %v1501, 0
    %v1560 = vsel %vm160, %v1502, 0
    %1562 = vmatprep.subr.mxu0 0.0
    %1563 = vmatpush1.msra.mxu0 0.0
    %1564 = vmatprep.subr.mxu0 0.0
    %1565 = vmatpush1.msra.mxu0 0.0
    %1566 = vmatprep.subr.mxu0 0.0
    %1567 = vmatpush1.msra.mxu0 0.0
    %1568 = vmatprep.subr.mxu0 0.0
    %1569 = vmatpush1.msra.mxu0 0.0
    %1570 = vmatprep.subr.mxu0 0.0
    %1571 = vmatpush1.msra.mxu0 0.0
    %1572 = vmatprep.subr.mxu0 0.0
    %1573 = vmatpush1.msra.mxu0 0.0
    %1574 = vmatprep.subr.mxu0 0.0
    %1575 = vmatpush1.msra.mxu0 0.0
    %1576 = vmatprep.subr.mxu0 0.0
    %1577 = vmatpush1.msra.mxu0 0.0
    %1578 = vmatprep.subr.mxu0 0.0
    %1579 = vmatpush1.msra.mxu0 0.0
    %1580 = vmatprep.subr.mxu0 0.0
    %1581 = vmatpush1.msra.mxu0 0.0
    %1582 = vmatprep.subr.mxu0 0.0
    %1583 = vmatpush1.msra.mxu0 0.0
    %1584 = vmatprep.subr.mxu0 0.0
    %1585 = vmatpush1.msra.mxu0 0.0
    %1586 = vmatprep.subr.mxu0 0.0
    %1587 = vmatpush1.msra.mxu0 %v1506
    %1588 = vmatprep.subr.mxu0 0.0
    %1589 = vmatpush1.msra.mxu0 %v1505
    %1590 = vmatprep.subr.mxu0 0.0
    %1591 = vmatpush1.msra.mxu0 %v1504
    %1592 = vmatprep.subr.mxu0 0.0
    %1593 = vmatpush1.msra.mxu0 %v1503
    %1594 = vmatprep.subr.mxu0 0.0
    %1595 = vmatpush2.msra.mxu0 0.0
    %1596 = vmatprep.subr.mxu0 0.0
    %1597 = vmatpush2.msra.mxu0 0.0
    %1598 = vmatprep.subr.mxu0 0.0
    %1599 = vmatpush2.msra.mxu0 0.0
    %1600 = vmatprep.subr.mxu0 0.0
    %1601 = vmatpush2.msra.mxu0 0.0
    %1602 = vmatprep.subr.mxu0 0.0
    %1603 = vmatpush2.msra.mxu0 0.0
    %1604 = vmatprep.subr.mxu0 0.0
    %1605 = vmatpush2.msra.mxu0 0.0
    %1606 = vmatprep.subr.mxu0 0.0
    %1607 = vmatpush2.msra.mxu0 0.0
    %1608 = vmatprep.subr.mxu0 0.0
    %1609 = vmatpush2.msra.mxu0 0.0
    %1610 = vmatprep.subr.mxu0 0.0
    %1611 = vmatpush2.msra.mxu0 0.0
    %1612 = vmatprep.subr.mxu0 0.0
    %1613 = vmatpush2.msra.mxu0 0.0
    %1614 = vmatprep.subr.mxu0 0.0
    %1615 = vmatpush2.msra.mxu0 0.0
    %1616 = vmatprep.subr.mxu0 0.0
    %1617 = vmatpush2.msra.mxu0 0.0
    %1618 = vmatprep.subr.mxu0 0.0
    %1619 = vmatpush2.msra.mxu0 0.0
    %1620 = vmatprep.subr.mxu0 0.0
    %1621 = vmatpush2.msra.mxu0 0.0
    %1622 = vmatprep.subr.mxu0 0.0
    %1623 = vmatpush2.msra.mxu0 0.0
    %1624 = vmatprep.subr.mxu0 0.0
    %1625 = vmatpush2.msra.mxu0 0.0
    %1626 = vmatprep.mubr.f32.mxu0 0.0
    %1627 = vmatmul.mubr.f32.gmra.mxu0 %v1515
    %v1628 = vpop.f32.mrf.mxu0
    %v1629 = vadd.f32 %v1512, %v1628
    %v1630 = vpop.f32.mrf.mxu0
    %1631 = vmatprep.mubr.f32.mxu0 0.0
    %1632 = vmatmul.mubr.f32.gmra.mxu0 %v1518
    %v1633 = vpop.f32.mrf.mxu0
    %v1634 = vadd.f32 %v1512, %v1633
    %v1635 = vpop.f32.mrf.mxu0
    %1636 = vmatprep.mubr.f32.mxu0 0.0
    %1637 = vmatmul.mubr.f32.gmra.mxu0 %v1521
    %v1638 = vpop.f32.mrf.mxu0
    %v1639 = vadd.f32 %v1512, %v1638
    %v1640 = vpop.f32.mrf.mxu0
    %1641 = vmatprep.mubr.f32.mxu0 0.0
    %1642 = vmatmul.mubr.f32.gmra.mxu0 %v1524
    %v1643 = vpop.f32.mrf.mxu0
    %v1644 = vadd.f32 %v1512, %v1643
    %v1645 = vpop.f32.mrf.mxu0
    %1646 = vmatprep.mubr.f32.mxu0 0.0
    %1647 = vmatmul.mubr.f32.gmra.mxu0 %v1527
    %v1648 = vpop.f32.mrf.mxu0
    %v1649 = vadd.f32 %v1512, %v1648
    %v1650 = vpop.f32.mrf.mxu0
    %1651 = vmatprep.mubr.f32.mxu0 0.0
    %1652 = vmatmul.mubr.f32.gmra.mxu0 %v1530
    %v1653 = vpop.f32.mrf.mxu0
    %v1654 = vadd.f32 %v1512, %v1653
    %v1655 = vpop.f32.mrf.mxu0
    %1656 = vmatprep.mubr.f32.mxu0 0.0
    %1657 = vmatmul.mubr.f32.gmra.mxu0 %v1533
    %v1658 = vpop.f32.mrf.mxu0
    %v1659 = vadd.f32 %v1512, %v1658
    %v1660 = vpop.f32.mrf.mxu0
    %1661 = vmatprep.mubr.f32.mxu0 0.0
    %1662 = vmatmul.mubr.f32.gmra.mxu0 %v1536
    %v1663 = vpop.f32.mrf.mxu0
    %v1664 = vadd.f32 %v1512, %v1663
    %v1665 = vpop.f32.mrf.mxu0
    %1666 = vmatprep.mubr.f32.mxu0 0.0
    %1667 = vmatmul.mubr.f32.gmra.mxu0 %v1539
    %v1668 = vpop.f32.mrf.mxu0
    %v1669 = vadd.f32 %v1512, %v1668
    %v1670 = vpop.f32.mrf.mxu0
    %1671 = vmatprep.mubr.f32.mxu0 0.0
    %1672 = vmatmul.mubr.f32.gmra.mxu0 %v1542
    %v1673 = vpop.f32.mrf.mxu0
    %v1674 = vadd.f32 %v1512, %v1673
    %v1675 = vpop.f32.mrf.mxu0
    %1676 = vmatprep.mubr.f32.mxu0 0.0
    %1677 = vmatmul.mubr.f32.gmra.mxu0 %v1545
    %v1678 = vpop.f32.mrf.mxu0
    %v1679 = vadd.f32 %v1512, %v1678
    %v1680 = vpop.f32.mrf.mxu0
    %1681 = vmatprep.mubr.f32.mxu0 0.0
    %1682 = vmatmul.mubr.f32.gmra.mxu0 %v1548
    %v1683 = vpop.f32.mrf.mxu0
    %v1684 = vadd.f32 %v1512, %v1683
    %v1685 = vpop.f32.mrf.mxu0
    %1686 = vmatprep.mubr.f32.mxu0 0.0
    %1687 = vmatmul.mubr.f32.gmra.mxu0 %v1551
    %v1688 = vpop.f32.mrf.mxu0
    %v1689 = vadd.f32 %v1512, %v1688
    %v1690 = vpop.f32.mrf.mxu0
    %1691 = vmatprep.mubr.f32.mxu0 0.0
    %1692 = vmatmul.mubr.f32.gmra.mxu0 %v1554
    %v1693 = vpop.f32.mrf.mxu0
    %v1694 = vadd.f32 %v1512, %v1693
    %v1695 = vpop.f32.mrf.mxu0
    %1696 = vmatprep.mubr.f32.mxu0 0.0
    %1697 = vmatmul.mubr.f32.gmra.mxu0 %v1557
    %v1698 = vpop.f32.mrf.mxu0
    %v1699 = vadd.f32 %v1512, %v1698
    %v1700 = vpop.f32.mrf.mxu0
    %1701 = vmatprep.mubr.f32.mxu0 0.0
    %1702 = vmatmul.mubr.f32.gmra.mxu0 %v1560
    %v1703 = vpop.f32.mrf.mxu0
    %v1704 = vadd.f32 %v1512, %v1703
    %v1705 = vpop.f32.mrf.mxu0
    %1706 = vdwg.mxu0
    %v1707 = vld [vmem:[%s21] sm:$0xff]
    %v1708 = vld [vmem:[%s21 + $0x8] sm:$0xff]
    %v1709 = vld [vmem:[%s21 + $0x10] sm:$0xff]
    %v1710 = vld [vmem:[%s21 + $0x18] sm:$0xff]
    %s1711 = scalar_lea.vmem %s21, 32
    %v1712 = vld [vmem:[%s1711] sm:$0xff]
    %v1713 = vld [vmem:[%s1711 + $0x8] sm:$0xff]
    %v1714 = vld [vmem:[%s1711 + $0x10] sm:$0xff]
    %v1715 = vld [vmem:[%s1711 + $0x18] sm:$0xff]
    %s1716 = scalar_lea.vmem %s21, 64
    %v1717 = vld [vmem:[%s1716] sm:$0xff]
    %v1718 = vld [vmem:[%s1716 + $0x8] sm:$0xff]
    %v1719 = vld [vmem:[%s1716 + $0x10] sm:$0xff]
    %v1720 = vld [vmem:[%s1716 + $0x18] sm:$0xff]
    %s1721 = scalar_lea.vmem %s21, 96
    %v1722 = vld [vmem:[%s1721] sm:$0xff]
    %v1723 = vld [vmem:[%s1721 + $0x8] sm:$0xff]
    %v1724 = vld [vmem:[%s1721 + $0x10] sm:$0xff]
    %v1725 = vld [vmem:[%s1721 + $0x18] sm:$0xff]
    %s1726 = scalar_lea.vmem %s21, 128
    %v1727 = vld [vmem:[%s1726] sm:$0xff]
    %v1728 = vld [vmem:[%s1726 + $0x8] sm:$0xff]
    %v1729 = vld [vmem:[%s1726 + $0x10] sm:$0xff]
    %v1730 = vld [vmem:[%s1726 + $0x18] sm:$0xff]
    %s1731 = scalar_lea.vmem %s21, 160
    %v1732 = vld [vmem:[%s1731] sm:$0xff]
    %v1733 = vld [vmem:[%s1731 + $0x8] sm:$0xff]
    %v1734 = vld [vmem:[%s1731 + $0x10] sm:$0xff]
    %v1735 = vld [vmem:[%s1731 + $0x18] sm:$0xff]
    %s1736 = scalar_lea.vmem %s21, 192
    %v1737 = vld [vmem:[%s1736] sm:$0xff]
    %v1738 = vld [vmem:[%s1736 + $0x8] sm:$0xff]
    %v1739 = vld [vmem:[%s1736 + $0x10] sm:$0xff]
    %v1740 = vld [vmem:[%s1736 + $0x18] sm:$0xff]
    %s1741 = scalar_lea.vmem %s21, 224
    %v1742 = vld [vmem:[%s1741] sm:$0xff]
    %v1743 = vld [vmem:[%s1741 + $0x8] sm:$0xff]
    %v1744 = vld [vmem:[%s1741 + $0x10] sm:$0xff]
    %v1745 = vld [vmem:[%s1741 + $0x18] sm:$0xff]
    %1762 = vrot.lane.b32.xlu0 %v1629, 96
    %v1763 = vpop.permute.xlu0 %1762
    %1764 = vrot.lane.b32.xlu0 %v1634, 96
    %v1765 = vpop.permute.xlu0 %1764
    %1766 = vrot.lane.b32.xlu0 %v1639, 96
    %v1767 = vpop.permute.xlu0 %1766
    %1768 = vrot.lane.b32.xlu0 %v1644, 96
    %v1769 = vpop.permute.xlu0 %1768
    %1770 = vrot.lane.b32.xlu0 %v1649, 96
    %v1771 = vpop.permute.xlu0 %1770
    %1772 = vrot.lane.b32.xlu0 %v1654, 96
    %v1773 = vpop.permute.xlu0 %1772
    %1774 = vrot.lane.b32.xlu0 %v1659, 96
    %v1775 = vpop.permute.xlu0 %1774
    %1776 = vrot.lane.b32.xlu0 %v1664, 96
    %v1777 = vpop.permute.xlu0 %1776
    %1778 = vrot.lane.b32.xlu0 %v1669, 96
    %v1779 = vpop.permute.xlu0 %1778
    %1780 = vrot.lane.b32.xlu0 %v1674, 96
    %v1781 = vpop.permute.xlu0 %1780
    %1782 = vrot.lane.b32.xlu0 %v1679, 96
    %v1783 = vpop.permute.xlu0 %1782
    %1784 = vrot.lane.b32.xlu0 %v1684, 96
    %v1785 = vpop.permute.xlu0 %1784
    %1786 = vrot.lane.b32.xlu0 %v1689, 96
    %v1787 = vpop.permute.xlu0 %1786
    %1788 = vrot.lane.b32.xlu0 %v1694, 96
    %v1789 = vpop.permute.xlu0 %1788
    %1790 = vrot.lane.b32.xlu0 %v1699, 96
    %v1791 = vpop.permute.xlu0 %1790
    %1792 = vrot.lane.b32.xlu0 %v1704, 96
    %v1793 = vpop.permute.xlu0 %1792
    %v1810 = vmul.f32 %v1629, %v1763
    %v1811 = vmul.f32 %v1634, %v1765
    %v1812 = vmul.f32 %v1639, %v1767
    %v1813 = vmul.f32 %v1644, %v1769
    %v1814 = vmul.f32 %v1649, %v1771
    %v1815 = vmul.f32 %v1654, %v1773
    %v1816 = vmul.f32 %v1659, %v1775
    %v1817 = vmul.f32 %v1664, %v1777
    %v1818 = vmul.f32 %v1669, %v1779
    %v1819 = vmul.f32 %v1674, %v1781
    %v1820 = vmul.f32 %v1679, %v1783
    %v1821 = vmul.f32 %v1684, %v1785
    %v1822 = vmul.f32 %v1689, %v1787
    %v1823 = vmul.f32 %v1694, %v1789
    %v1824 = vmul.f32 %v1699, %v1791
    %v1825 = vmul.f32 %v1704, %v1793
    %v1826 = vmul.f32 %v1629, %v1767
    %v1827 = vmul.f32 %v1634, %v1769
    %v1828 = vmul.f32 %v1639, %v1771
    %v1829 = vmul.f32 %v1644, %v1773
    %v1830 = vmul.f32 %v1649, %v1775
    %v1831 = vmul.f32 %v1654, %v1777
    %v1832 = vmul.f32 %v1659, %v1779
    %v1833 = vmul.f32 %v1664, %v1781
    %v1834 = vmul.f32 %v1669, %v1783
    %v1835 = vmul.f32 %v1674, %v1785
    %v1836 = vmul.f32 %v1679, %v1787
    %v1837 = vmul.f32 %v1684, %v1789
    %v1838 = vmul.f32 %v1689, %v1791
    %v1839 = vmul.f32 %v1694, %v1793
    %v1840 = vmul.f32 %v1699, %v1763
    %v1841 = vmul.f32 %v1704, %v1765
    %v1843 = vsel %vm160, %v1826, 0
    %v1846 = vsel %vm160, %v1827, 0
    %v1849 = vsel %vm160, %v1828, 0
    %v1852 = vsel %vm160, %v1829, 0
    %v1855 = vsel %vm160, %v1830, 0
    %v1858 = vsel %vm160, %v1831, 0
    %v1861 = vsel %vm160, %v1832, 0
    %v1864 = vsel %vm160, %v1833, 0
    %v1867 = vsel %vm160, %v1834, 0
    %v1870 = vsel %vm160, %v1835, 0
    %v1873 = vsel %vm160, %v1836, 0
    %v1876 = vsel %vm160, %v1837, 0
    %v1879 = vsel %vm160, %v1838, 0
    %v1882 = vsel %vm160, %v1839, 0
    %v1885 = vsel %vm160, %v1840, 0
    %v1888 = vsel %vm160, %v1841, 0
    %1890 = vmatprep.subr.mxu0 0.0
    %1891 = vmatpush1.msra.mxu0 0.0
    %1892 = vmatprep.subr.mxu0 0.0
    %1893 = vmatpush1.msra.mxu0 0.0
    %1894 = vmatprep.subr.mxu0 0.0
    %1895 = vmatpush1.msra.mxu0 0.0
    %1896 = vmatprep.subr.mxu0 0.0
    %1897 = vmatpush1.msra.mxu0 0.0
    %1898 = vmatprep.subr.mxu0 0.0
    %1899 = vmatpush1.msra.mxu0 0.0
    %1900 = vmatprep.subr.mxu0 0.0
    %1901 = vmatpush1.msra.mxu0 0.0
    %1902 = vmatprep.subr.mxu0 0.0
    %1903 = vmatpush1.msra.mxu0 0.0
    %1904 = vmatprep.subr.mxu0 0.0
    %1905 = vmatpush1.msra.mxu0 0.0
    %1906 = vmatprep.subr.mxu0 0.0
    %1907 = vmatpush1.msra.mxu0 0.0
    %1908 = vmatprep.subr.mxu0 0.0
    %1909 = vmatpush1.msra.mxu0 0.0
    %1910 = vmatprep.subr.mxu0 0.0
    %1911 = vmatpush1.msra.mxu0 0.0
    %1912 = vmatprep.subr.mxu0 0.0
    %1913 = vmatpush1.msra.mxu0 0.0
    %1914 = vmatprep.subr.mxu0 0.0
    %1915 = vmatpush1.msra.mxu0 %v1715
    %1916 = vmatprep.subr.mxu0 0.0
    %1917 = vmatpush1.msra.mxu0 %v1714
    %1918 = vmatprep.subr.mxu0 0.0
    %1919 = vmatpush1.msra.mxu0 %v1713
    %1920 = vmatprep.subr.mxu0 0.0
    %1921 = vmatpush1.msra.mxu0 %v1712
    %1922 = vmatprep.subr.mxu0 0.0
    %1923 = vmatpush2.msra.mxu0 0.0
    %1924 = vmatprep.subr.mxu0 0.0
    %1925 = vmatpush2.msra.mxu0 0.0
    %1926 = vmatprep.subr.mxu0 0.0
    %1927 = vmatpush2.msra.mxu0 0.0
    %1928 = vmatprep.subr.mxu0 0.0
    %1929 = vmatpush2.msra.mxu0 0.0
    %1930 = vmatprep.subr.mxu0 0.0
    %1931 = vmatpush2.msra.mxu0 0.0
    %1932 = vmatprep.subr.mxu0 0.0
    %1933 = vmatpush2.msra.mxu0 0.0
    %1934 = vmatprep.subr.mxu0 0.0
    %1935 = vmatpush2.msra.mxu0 0.0
    %1936 = vmatprep.subr.mxu0 0.0
    %1937 = vmatpush2.msra.mxu0 0.0
    %1938 = vmatprep.subr.mxu0 0.0
    %1939 = vmatpush2.msra.mxu0 0.0
    %1940 = vmatprep.subr.mxu0 0.0
    %1941 = vmatpush2.msra.mxu0 0.0
    %1942 = vmatprep.subr.mxu0 0.0
    %1943 = vmatpush2.msra.mxu0 0.0
    %1944 = vmatprep.subr.mxu0 0.0
    %1945 = vmatpush2.msra.mxu0 0.0
    %1946 = vmatprep.subr.mxu0 0.0
    %1947 = vmatpush2.msra.mxu0 0.0
    %1948 = vmatprep.subr.mxu0 0.0
    %1949 = vmatpush2.msra.mxu0 0.0
    %1950 = vmatprep.subr.mxu0 0.0
    %1951 = vmatpush2.msra.mxu0 0.0
    %1952 = vmatprep.subr.mxu0 0.0
    %1953 = vmatpush2.msra.mxu0 0.0
    %1954 = vmatprep.mubr.f32.mxu0 0.0
    %1955 = vmatmul.mubr.f32.gmra.mxu0 %v1843
    %v1956 = vpop.f32.mrf.mxu0
    %v1957 = vadd.f32 0.0, %v1956
    %v1958 = vpop.f32.mrf.mxu0
    %1959 = vmatprep.mubr.f32.mxu0 0.0
    %1960 = vmatmul.mubr.f32.gmra.mxu0 %v1846
    %v1961 = vpop.f32.mrf.mxu0
    %v1962 = vadd.f32 0.0, %v1961
    %v1963 = vpop.f32.mrf.mxu0
    %1964 = vmatprep.mubr.f32.mxu0 0.0
    %1965 = vmatmul.mubr.f32.gmra.mxu0 %v1849
    %v1966 = vpop.f32.mrf.mxu0
    %v1967 = vadd.f32 0.0, %v1966
    %v1968 = vpop.f32.mrf.mxu0
    %1969 = vmatprep.mubr.f32.mxu0 0.0
    %1970 = vmatmul.mubr.f32.gmra.mxu0 %v1852
    %v1971 = vpop.f32.mrf.mxu0
    %v1972 = vadd.f32 0.0, %v1971
    %v1973 = vpop.f32.mrf.mxu0
    %1974 = vmatprep.mubr.f32.mxu0 0.0
    %1975 = vmatmul.mubr.f32.gmra.mxu0 %v1855
    %v1976 = vpop.f32.mrf.mxu0
    %v1977 = vadd.f32 0.0, %v1976
    %v1978 = vpop.f32.mrf.mxu0
    %1979 = vmatprep.mubr.f32.mxu0 0.0
    %1980 = vmatmul.mubr.f32.gmra.mxu0 %v1858
    %v1981 = vpop.f32.mrf.mxu0
    %v1982 = vadd.f32 0.0, %v1981
    %v1983 = vpop.f32.mrf.mxu0
    %1984 = vmatprep.mubr.f32.mxu0 0.0
    %1985 = vmatmul.mubr.f32.gmra.mxu0 %v1861
    %v1986 = vpop.f32.mrf.mxu0
    %v1987 = vadd.f32 0.0, %v1986
    %v1988 = vpop.f32.mrf.mxu0
    %1989 = vmatprep.mubr.f32.mxu0 0.0
    %1990 = vmatmul.mubr.f32.gmra.mxu0 %v1864
    %v1991 = vpop.f32.mrf.mxu0
    %v1992 = vadd.f32 0.0, %v1991
    %v1993 = vpop.f32.mrf.mxu0
    %1994 = vmatprep.mubr.f32.mxu0 0.0
    %1995 = vmatmul.mubr.f32.gmra.mxu0 %v1867
    %v1996 = vpop.f32.mrf.mxu0
    %v1997 = vadd.f32 0.0, %v1996
    %v1998 = vpop.f32.mrf.mxu0
    %1999 = vmatprep.mubr.f32.mxu0 0.0
    %2000 = vmatmul.mubr.f32.gmra.mxu0 %v1870
    %v2001 = vpop.f32.mrf.mxu0
    %v2002 = vadd.f32 0.0, %v2001
    %v2003 = vpop.f32.mrf.mxu0
    %2004 = vmatprep.mubr.f32.mxu0 0.0
    %2005 = vmatmul.mubr.f32.gmra.mxu0 %v1873
    %v2006 = vpop.f32.mrf.mxu0
    %v2007 = vadd.f32 0.0, %v2006
    %v2008 = vpop.f32.mrf.mxu0
    %2009 = vmatprep.mubr.f32.mxu0 0.0
    %2010 = vmatmul.mubr.f32.gmra.mxu0 %v1876
    %v2011 = vpop.f32.mrf.mxu0
    %v2012 = vadd.f32 0.0, %v2011
    %v2013 = vpop.f32.mrf.mxu0
    %2014 = vmatprep.mubr.f32.mxu0 0.0
    %2015 = vmatmul.mubr.f32.gmra.mxu0 %v1879
    %v2016 = vpop.f32.mrf.mxu0
    %v2017 = vadd.f32 0.0, %v2016
    %v2018 = vpop.f32.mrf.mxu0
    %2019 = vmatprep.mubr.f32.mxu0 0.0
    %2020 = vmatmul.mubr.f32.gmra.mxu0 %v1882
    %v2021 = vpop.f32.mrf.mxu0
    %v2022 = vadd.f32 0.0, %v2021
    %v2023 = vpop.f32.mrf.mxu0
    %2024 = vmatprep.mubr.f32.mxu0 0.0
    %2025 = vmatmul.mubr.f32.gmra.mxu0 %v1885
    %v2026 = vpop.f32.mrf.mxu0
    %v2027 = vadd.f32 0.0, %v2026
    %v2028 = vpop.f32.mrf.mxu0
    %2029 = vmatprep.mubr.f32.mxu0 0.0
    %2030 = vmatmul.mubr.f32.gmra.mxu0 %v1888
    %v2031 = vpop.f32.mrf.mxu0
    %v2032 = vadd.f32 0.0, %v2031
    %v2033 = vpop.f32.mrf.mxu0
    %2034 = vdwg.mxu0
    %v2036 = vsel %vm160, %v1810, 0
    %v2039 = vsel %vm160, %v1811, 0
    %v2042 = vsel %vm160, %v1812, 0
    %v2045 = vsel %vm160, %v1813, 0
    %v2048 = vsel %vm160, %v1814, 0
    %v2051 = vsel %vm160, %v1815, 0
    %v2054 = vsel %vm160, %v1816, 0
    %v2057 = vsel %vm160, %v1817, 0
    %v2060 = vsel %vm160, %v1818, 0
    %v2063 = vsel %vm160, %v1819, 0
    %v2066 = vsel %vm160, %v1820, 0
    %v2069 = vsel %vm160, %v1821, 0
    %v2072 = vsel %vm160, %v1822, 0
    %v2075 = vsel %vm160, %v1823, 0
    %v2078 = vsel %vm160, %v1824, 0
    %v2081 = vsel %vm160, %v1825, 0
    %2083 = vmatprep.subr.mxu0 0.0
    %2084 = vmatpush1.msra.mxu0 0.0
    %2085 = vmatprep.subr.mxu0 0.0
    %2086 = vmatpush1.msra.mxu0 0.0
    %2087 = vmatprep.subr.mxu0 0.0
    %2088 = vmatpush1.msra.mxu0 0.0
    %2089 = vmatprep.subr.mxu0 0.0
    %2090 = vmatpush1.msra.mxu0 0.0
    %2091 = vmatprep.subr.mxu0 0.0
    %2092 = vmatpush1.msra.mxu0 0.0
    %2093 = vmatprep.subr.mxu0 0.0
    %2094 = vmatpush1.msra.mxu0 0.0
    %2095 = vmatprep.subr.mxu0 0.0
    %2096 = vmatpush1.msra.mxu0 0.0
    %2097 = vmatprep.subr.mxu0 0.0
    %2098 = vmatpush1.msra.mxu0 0.0
    %2099 = vmatprep.subr.mxu0 0.0
    %2100 = vmatpush1.msra.mxu0 0.0
    %2101 = vmatprep.subr.mxu0 0.0
    %2102 = vmatpush1.msra.mxu0 0.0
    %2103 = vmatprep.subr.mxu0 0.0
    %2104 = vmatpush1.msra.mxu0 0.0
    %2105 = vmatprep.subr.mxu0 0.0
    %2106 = vmatpush1.msra.mxu0 0.0
    %2107 = vmatprep.subr.mxu0 0.0
    %2108 = vmatpush1.msra.mxu0 %v1710
    %2109 = vmatprep.subr.mxu0 0.0
    %2110 = vmatpush1.msra.mxu0 %v1709
    %2111 = vmatprep.subr.mxu0 0.0
    %2112 = vmatpush1.msra.mxu0 %v1708
    %2113 = vmatprep.subr.mxu0 0.0
    %2114 = vmatpush1.msra.mxu0 %v1707
    %2115 = vmatprep.subr.mxu0 0.0
    %2116 = vmatpush2.msra.mxu0 0.0
    %2117 = vmatprep.subr.mxu0 0.0
    %2118 = vmatpush2.msra.mxu0 0.0
    %2119 = vmatprep.subr.mxu0 0.0
    %2120 = vmatpush2.msra.mxu0 0.0
    %2121 = vmatprep.subr.mxu0 0.0
    %2122 = vmatpush2.msra.mxu0 0.0
    %2123 = vmatprep.subr.mxu0 0.0
    %2124 = vmatpush2.msra.mxu0 0.0
    %2125 = vmatprep.subr.mxu0 0.0
    %2126 = vmatpush2.msra.mxu0 0.0
    %2127 = vmatprep.subr.mxu0 0.0
    %2128 = vmatpush2.msra.mxu0 0.0
    %2129 = vmatprep.subr.mxu0 0.0
    %2130 = vmatpush2.msra.mxu0 0.0
    %2131 = vmatprep.subr.mxu0 0.0
    %2132 = vmatpush2.msra.mxu0 0.0
    %2133 = vmatprep.subr.mxu0 0.0
    %2134 = vmatpush2.msra.mxu0 0.0
    %2135 = vmatprep.subr.mxu0 0.0
    %2136 = vmatpush2.msra.mxu0 0.0
    %2137 = vmatprep.subr.mxu0 0.0
    %2138 = vmatpush2.msra.mxu0 0.0
    %2139 = vmatprep.subr.mxu0 0.0
    %2140 = vmatpush2.msra.mxu0 0.0
    %2141 = vmatprep.subr.mxu0 0.0
    %2142 = vmatpush2.msra.mxu0 0.0
    %2143 = vmatprep.subr.mxu0 0.0
    %2144 = vmatpush2.msra.mxu0 0.0
    %2145 = vmatprep.subr.mxu0 0.0
    %2146 = vmatpush2.msra.mxu0 0.0
    %2147 = vmatprep.mubr.f32.mxu0 0.0
    %2148 = vmatmul.mubr.f32.gmra.mxu0 %v2036
    %v2149 = vpop.f32.mrf.mxu0
    %v2150 = vadd.f32 %v1957, %v2149
    %v2151 = vpop.f32.mrf.mxu0
    %2152 = vmatprep.mubr.f32.mxu0 0.0
    %2153 = vmatmul.mubr.f32.gmra.mxu0 %v2039
    %v2154 = vpop.f32.mrf.mxu0
    %v2155 = vadd.f32 %v1962, %v2154
    %v2156 = vpop.f32.mrf.mxu0
    %2157 = vmatprep.mubr.f32.mxu0 0.0
    %2158 = vmatmul.mubr.f32.gmra.mxu0 %v2042
    %v2159 = vpop.f32.mrf.mxu0
    %v2160 = vadd.f32 %v1967, %v2159
    %v2161 = vpop.f32.mrf.mxu0
    %2162 = vmatprep.mubr.f32.mxu0 0.0
    %2163 = vmatmul.mubr.f32.gmra.mxu0 %v2045
    %v2164 = vpop.f32.mrf.mxu0
    %v2165 = vadd.f32 %v1972, %v2164
    %v2166 = vpop.f32.mrf.mxu0
    %2167 = vmatprep.mubr.f32.mxu0 0.0
    %2168 = vmatmul.mubr.f32.gmra.mxu0 %v2048
    %v2169 = vpop.f32.mrf.mxu0
    %v2170 = vadd.f32 %v1977, %v2169
    %v2171 = vpop.f32.mrf.mxu0
    %2172 = vmatprep.mubr.f32.mxu0 0.0
    %2173 = vmatmul.mubr.f32.gmra.mxu0 %v2051
    %v2174 = vpop.f32.mrf.mxu0
    %v2175 = vadd.f32 %v1982, %v2174
    %v2176 = vpop.f32.mrf.mxu0
    %2177 = vmatprep.mubr.f32.mxu0 0.0
    %2178 = vmatmul.mubr.f32.gmra.mxu0 %v2054
    %v2179 = vpop.f32.mrf.mxu0
    %v2180 = vadd.f32 %v1987, %v2179
    %v2181 = vpop.f32.mrf.mxu0
    %2182 = vmatprep.mubr.f32.mxu0 0.0
    %2183 = vmatmul.mubr.f32.gmra.mxu0 %v2057
    %v2184 = vpop.f32.mrf.mxu0
    %v2185 = vadd.f32 %v1992, %v2184
    %v2186 = vpop.f32.mrf.mxu0
    %2187 = vmatprep.mubr.f32.mxu0 0.0
    %2188 = vmatmul.mubr.f32.gmra.mxu0 %v2060
    %v2189 = vpop.f32.mrf.mxu0
    %v2190 = vadd.f32 %v1997, %v2189
    %v2191 = vpop.f32.mrf.mxu0
    %2192 = vmatprep.mubr.f32.mxu0 0.0
    %2193 = vmatmul.mubr.f32.gmra.mxu0 %v2063
    %v2194 = vpop.f32.mrf.mxu0
    %v2195 = vadd.f32 %v2002, %v2194
    %v2196 = vpop.f32.mrf.mxu0
    %2197 = vmatprep.mubr.f32.mxu0 0.0
    %2198 = vmatmul.mubr.f32.gmra.mxu0 %v2066
    %v2199 = vpop.f32.mrf.mxu0
    %v2200 = vadd.f32 %v2007, %v2199
    %v2201 = vpop.f32.mrf.mxu0
    %2202 = vmatprep.mubr.f32.mxu0 0.0
    %2203 = vmatmul.mubr.f32.gmra.mxu0 %v2069
    %v2204 = vpop.f32.mrf.mxu0
    %v2205 = vadd.f32 %v2012, %v2204
    %v2206 = vpop.f32.mrf.mxu0
    %2207 = vmatprep.mubr.f32.mxu0 0.0
    %2208 = vmatmul.mubr.f32.gmra.mxu0 %v2072
    %v2209 = vpop.f32.mrf.mxu0
    %v2210 = vadd.f32 %v2017, %v2209
    %v2211 = vpop.f32.mrf.mxu0
    %2212 = vmatprep.mubr.f32.mxu0 0.0
    %2213 = vmatmul.mubr.f32.gmra.mxu0 %v2075
    %v2214 = vpop.f32.mrf.mxu0
    %v2215 = vadd.f32 %v2022, %v2214
    %v2216 = vpop.f32.mrf.mxu0
    %2217 = vmatprep.mubr.f32.mxu0 0.0
    %2218 = vmatmul.mubr.f32.gmra.mxu0 %v2078
    %v2219 = vpop.f32.mrf.mxu0
    %v2220 = vadd.f32 %v2027, %v2219
    %v2221 = vpop.f32.mrf.mxu0
    %2222 = vmatprep.mubr.f32.mxu0 0.0
    %2223 = vmatmul.mubr.f32.gmra.mxu0 %v2081
    %v2224 = vpop.f32.mrf.mxu0
    %v2225 = vadd.f32 %v2032, %v2224
    %v2226 = vpop.f32.mrf.mxu0
    %2227 = vdwg.mxu0
    %v2228 = vmul.f32 %v1629, %v1771
    %v2229 = vmul.f32 %v1634, %v1773
    %v2230 = vmul.f32 %v1639, %v1775
    %v2231 = vmul.f32 %v1644, %v1777
    %v2232 = vmul.f32 %v1649, %v1779
    %v2233 = vmul.f32 %v1654, %v1781
    %v2234 = vmul.f32 %v1659, %v1783
    %v2235 = vmul.f32 %v1664, %v1785
    %v2236 = vmul.f32 %v1669, %v1787
    %v2237 = vmul.f32 %v1674, %v1789
    %v2238 = vmul.f32 %v1679, %v1791
    %v2239 = vmul.f32 %v1684, %v1793
    %v2240 = vmul.f32 %v1689, %v1763
    %v2241 = vmul.f32 %v1694, %v1765
    %v2242 = vmul.f32 %v1699, %v1767
    %v2243 = vmul.f32 %v1704, %v1769
    %v2245 = vsel %vm160, %v2228, 0
    %v2248 = vsel %vm160, %v2229, 0
    %v2251 = vsel %vm160, %v2230, 0
    %v2254 = vsel %vm160, %v2231, 0
    %v2257 = vsel %vm160, %v2232, 0
    %v2260 = vsel %vm160, %v2233, 0
    %v2263 = vsel %vm160, %v2234, 0
    %v2266 = vsel %vm160, %v2235, 0
    %v2269 = vsel %vm160, %v2236, 0
    %v2272 = vsel %vm160, %v2237, 0
    %v2275 = vsel %vm160, %v2238, 0
    %v2278 = vsel %vm160, %v2239, 0
    %v2281 = vsel %vm160, %v2240, 0
    %v2284 = vsel %vm160, %v2241, 0
    %v2287 = vsel %vm160, %v2242, 0
    %v2290 = vsel %vm160, %v2243, 0
    %2292 = vmatprep.subr.mxu0 0.0
    %2293 = vmatpush1.msra.mxu0 0.0
    %2294 = vmatprep.subr.mxu0 0.0
    %2295 = vmatpush1.msra.mxu0 0.0
    %2296 = vmatprep.subr.mxu0 0.0
    %2297 = vmatpush1.msra.mxu0 0.0
    %2298 = vmatprep.subr.mxu0 0.0
    %2299 = vmatpush1.msra.mxu0 0.0
    %2300 = vmatprep.subr.mxu0 0.0
    %2301 = vmatpush1.msra.mxu0 0.0
    %2302 = vmatprep.subr.mxu0 0.0
    %2303 = vmatpush1.msra.mxu0 0.0
    %2304 = vmatprep.subr.mxu0 0.0
    %2305 = vmatpush1.msra.mxu0 0.0
    %2306 = vmatprep.subr.mxu0 0.0
    %2307 = vmatpush1.msra.mxu0 0.0
    %2308 = vmatprep.subr.mxu0 0.0
    %2309 = vmatpush1.msra.mxu0 0.0
    %2310 = vmatprep.subr.mxu0 0.0
    %2311 = vmatpush1.msra.mxu0 0.0
    %2312 = vmatprep.subr.mxu0 0.0
    %2313 = vmatpush1.msra.mxu0 0.0
    %2314 = vmatprep.subr.mxu0 0.0
    %2315 = vmatpush1.msra.mxu0 0.0
    %2316 = vmatprep.subr.mxu0 0.0
    %2317 = vmatpush1.msra.mxu0 %v1720
    %2318 = vmatprep.subr.mxu0 0.0
    %2319 = vmatpush1.msra.mxu0 %v1719
    %2320 = vmatprep.subr.mxu0 0.0
    %2321 = vmatpush1.msra.mxu0 %v1718
    %2322 = vmatprep.subr.mxu0 0.0
    %2323 = vmatpush1.msra.mxu0 %v1717
    %2324 = vmatprep.subr.mxu0 0.0
    %2325 = vmatpush2.msra.mxu0 0.0
    %2326 = vmatprep.subr.mxu0 0.0
    %2327 = vmatpush2.msra.mxu0 0.0
    %2328 = vmatprep.subr.mxu0 0.0
    %2329 = vmatpush2.msra.mxu0 0.0
    %2330 = vmatprep.subr.mxu0 0.0
    %2331 = vmatpush2.msra.mxu0 0.0
    %2332 = vmatprep.subr.mxu0 0.0
    %2333 = vmatpush2.msra.mxu0 0.0
    %2334 = vmatprep.subr.mxu0 0.0
    %2335 = vmatpush2.msra.mxu0 0.0
    %2336 = vmatprep.subr.mxu0 0.0
    %2337 = vmatpush2.msra.mxu0 0.0
    %2338 = vmatprep.subr.mxu0 0.0
    %2339 = vmatpush2.msra.mxu0 0.0
    %2340 = vmatprep.subr.mxu0 0.0
    %2341 = vmatpush2.msra.mxu0 0.0
    %2342 = vmatprep.subr.mxu0 0.0
    %2343 = vmatpush2.msra.mxu0 0.0
    %2344 = vmatprep.subr.mxu0 0.0
    %2345 = vmatpush2.msra.mxu0 0.0
    %2346 = vmatprep.subr.mxu0 0.0
    %2347 = vmatpush2.msra.mxu0 0.0
    %2348 = vmatprep.subr.mxu0 0.0
    %2349 = vmatpush2.msra.mxu0 0.0
    %2350 = vmatprep.subr.mxu0 0.0
    %2351 = vmatpush2.msra.mxu0 0.0
    %2352 = vmatprep.subr.mxu0 0.0
    %2353 = vmatpush2.msra.mxu0 0.0
    %2354 = vmatprep.subr.mxu0 0.0
    %2355 = vmatpush2.msra.mxu0 0.0
    %2356 = vmatprep.mubr.f32.mxu0 0.0
    %2357 = vmatmul.mubr.f32.gmra.mxu0 %v2245
    %v2358 = vpop.f32.mrf.mxu0
    %v2359 = vadd.f32 0.0, %v2358
    %v2360 = vpop.f32.mrf.mxu0
    %2361 = vmatprep.mubr.f32.mxu0 0.0
    %2362 = vmatmul.mubr.f32.gmra.mxu0 %v2248
    %v2363 = vpop.f32.mrf.mxu0
    %v2364 = vadd.f32 0.0, %v2363
    %v2365 = vpop.f32.mrf.mxu0
    %2366 = vmatprep.mubr.f32.mxu0 0.0
    %2367 = vmatmul.mubr.f32.gmra.mxu0 %v2251
    %v2368 = vpop.f32.mrf.mxu0
    %v2369 = vadd.f32 0.0, %v2368
    %v2370 = vpop.f32.mrf.mxu0
    %2371 = vmatprep.mubr.f32.mxu0 0.0
    %2372 = vmatmul.mubr.f32.gmra.mxu0 %v2254
    %v2373 = vpop.f32.mrf.mxu0
    %v2374 = vadd.f32 0.0, %v2373
    %v2375 = vpop.f32.mrf.mxu0
    %2376 = vmatprep.mubr.f32.mxu0 0.0
    %2377 = vmatmul.mubr.f32.gmra.mxu0 %v2257
    %v2378 = vpop.f32.mrf.mxu0
    %v2379 = vadd.f32 0.0, %v2378
    %v2380 = vpop.f32.mrf.mxu0
    %2381 = vmatprep.mubr.f32.mxu0 0.0
    %2382 = vmatmul.mubr.f32.gmra.mxu0 %v2260
    %v2383 = vpop.f32.mrf.mxu0
    %v2384 = vadd.f32 0.0, %v2383
    %v2385 = vpop.f32.mrf.mxu0
    %2386 = vmatprep.mubr.f32.mxu0 0.0
    %2387 = vmatmul.mubr.f32.gmra.mxu0 %v2263
    %v2388 = vpop.f32.mrf.mxu0
    %v2389 = vadd.f32 0.0, %v2388
    %v2390 = vpop.f32.mrf.mxu0
    %2391 = vmatprep.mubr.f32.mxu0 0.0
    %2392 = vmatmul.mubr.f32.gmra.mxu0 %v2266
    %v2393 = vpop.f32.mrf.mxu0
    %v2394 = vadd.f32 0.0, %v2393
    %v2395 = vpop.f32.mrf.mxu0
    %2396 = vmatprep.mubr.f32.mxu0 0.0
    %2397 = vmatmul.mubr.f32.gmra.mxu0 %v2269
    %v2398 = vpop.f32.mrf.mxu0
    %v2399 = vadd.f32 0.0, %v2398
    %v2400 = vpop.f32.mrf.mxu0
    %2401 = vmatprep.mubr.f32.mxu0 0.0
    %2402 = vmatmul.mubr.f32.gmra.mxu0 %v2272
    %v2403 = vpop.f32.mrf.mxu0
    %v2404 = vadd.f32 0.0, %v2403
    %v2405 = vpop.f32.mrf.mxu0
    %2406 = vmatprep.mubr.f32.mxu0 0.0
    %2407 = vmatmul.mubr.f32.gmra.mxu0 %v2275
    %v2408 = vpop.f32.mrf.mxu0
    %v2409 = vadd.f32 0.0, %v2408
    %v2410 = vpop.f32.mrf.mxu0
    %2411 = vmatprep.mubr.f32.mxu0 0.0
    %2412 = vmatmul.mubr.f32.gmra.mxu0 %v2278
    %v2413 = vpop.f32.mrf.mxu0
    %v2414 = vadd.f32 0.0, %v2413
    %v2415 = vpop.f32.mrf.mxu0
    %2416 = vmatprep.mubr.f32.mxu0 0.0
    %2417 = vmatmul.mubr.f32.gmra.mxu0 %v2281
    %v2418 = vpop.f32.mrf.mxu0
    %v2419 = vadd.f32 0.0, %v2418
    %v2420 = vpop.f32.mrf.mxu0
    %2421 = vmatprep.mubr.f32.mxu0 0.0
    %2422 = vmatmul.mubr.f32.gmra.mxu0 %v2284
    %v2423 = vpop.f32.mrf.mxu0
    %v2424 = vadd.f32 0.0, %v2423
    %v2425 = vpop.f32.mrf.mxu0
    %2426 = vmatprep.mubr.f32.mxu0 0.0
    %2427 = vmatmul.mubr.f32.gmra.mxu0 %v2287
    %v2428 = vpop.f32.mrf.mxu0
    %v2429 = vadd.f32 0.0, %v2428
    %v2430 = vpop.f32.mrf.mxu0
    %2431 = vmatprep.mubr.f32.mxu0 0.0
    %2432 = vmatmul.mubr.f32.gmra.mxu0 %v2290
    %v2433 = vpop.f32.mrf.mxu0
    %v2434 = vadd.f32 0.0, %v2433
    %v2435 = vpop.f32.mrf.mxu0
    %2436 = vdwg.mxu0
    %v2437 = vadd.f32 %v2150, %v2359
    %v2438 = vadd.f32 %v2155, %v2364
    %v2439 = vadd.f32 %v2160, %v2369
    %v2440 = vadd.f32 %v2165, %v2374
    %v2441 = vadd.f32 %v2170, %v2379
    %v2442 = vadd.f32 %v2175, %v2384
    %v2443 = vadd.f32 %v2180, %v2389
    %v2444 = vadd.f32 %v2185, %v2394
    %v2445 = vadd.f32 %v2190, %v2399
    %v2446 = vadd.f32 %v2195, %v2404
    %v2447 = vadd.f32 %v2200, %v2409
    %v2448 = vadd.f32 %v2205, %v2414
    %v2449 = vadd.f32 %v2210, %v2419
    %v2450 = vadd.f32 %v2215, %v2424
    %v2451 = vadd.f32 %v2220, %v2429
    %v2452 = vadd.f32 %v2225, %v2434
    %v2453 = vmul.f32 %v1629, %v1775
    %v2454 = vmul.f32 %v1634, %v1777
    %v2455 = vmul.f32 %v1639, %v1779
    %v2456 = vmul.f32 %v1644, %v1781
    %v2457 = vmul.f32 %v1649, %v1783
    %v2458 = vmul.f32 %v1654, %v1785
    %v2459 = vmul.f32 %v1659, %v1787
    %v2460 = vmul.f32 %v1664, %v1789
    %v2461 = vmul.f32 %v1669, %v1791
    %v2462 = vmul.f32 %v1674, %v1793
    %v2463 = vmul.f32 %v1679, %v1763
    %v2464 = vmul.f32 %v1684, %v1765
    %v2465 = vmul.f32 %v1689, %v1767
    %v2466 = vmul.f32 %v1694, %v1769
    %v2467 = vmul.f32 %v1699, %v1771
    %v2468 = vmul.f32 %v1704, %v1773
    %v2470 = vsel %vm160, %v2453, 0
    %v2473 = vsel %vm160, %v2454, 0
    %v2476 = vsel %vm160, %v2455, 0
    %v2479 = vsel %vm160, %v2456, 0
    %v2482 = vsel %vm160, %v2457, 0
    %v2485 = vsel %vm160, %v2458, 0
    %v2488 = vsel %vm160, %v2459, 0
    %v2491 = vsel %vm160, %v2460, 0
    %v2494 = vsel %vm160, %v2461, 0
    %v2497 = vsel %vm160, %v2462, 0
    %v2500 = vsel %vm160, %v2463, 0
    %v2503 = vsel %vm160, %v2464, 0
    %v2506 = vsel %vm160, %v2465, 0
    %v2509 = vsel %vm160, %v2466, 0
    %v2512 = vsel %vm160, %v2467, 0
    %v2515 = vsel %vm160, %v2468, 0
    %2517 = vmatprep.subr.mxu0 0.0
    %2518 = vmatpush1.msra.mxu0 0.0
    %2519 = vmatprep.subr.mxu0 0.0
    %2520 = vmatpush1.msra.mxu0 0.0
    %2521 = vmatprep.subr.mxu0 0.0
    %2522 = vmatpush1.msra.mxu0 0.0
    %2523 = vmatprep.subr.mxu0 0.0
    %2524 = vmatpush1.msra.mxu0 0.0
    %2525 = vmatprep.subr.mxu0 0.0
    %2526 = vmatpush1.msra.mxu0 0.0
    %2527 = vmatprep.subr.mxu0 0.0
    %2528 = vmatpush1.msra.mxu0 0.0
    %2529 = vmatprep.subr.mxu0 0.0
    %2530 = vmatpush1.msra.mxu0 0.0
    %2531 = vmatprep.subr.mxu0 0.0
    %2532 = vmatpush1.msra.mxu0 0.0
    %2533 = vmatprep.subr.mxu0 0.0
    %2534 = vmatpush1.msra.mxu0 0.0
    %2535 = vmatprep.subr.mxu0 0.0
    %2536 = vmatpush1.msra.mxu0 0.0
    %2537 = vmatprep.subr.mxu0 0.0
    %2538 = vmatpush1.msra.mxu0 0.0
    %2539 = vmatprep.subr.mxu0 0.0
    %2540 = vmatpush1.msra.mxu0 0.0
    %2541 = vmatprep.subr.mxu0 0.0
    %2542 = vmatpush1.msra.mxu0 %v1725
    %2543 = vmatprep.subr.mxu0 0.0
    %2544 = vmatpush1.msra.mxu0 %v1724
    %2545 = vmatprep.subr.mxu0 0.0
    %2546 = vmatpush1.msra.mxu0 %v1723
    %2547 = vmatprep.subr.mxu0 0.0
    %2548 = vmatpush1.msra.mxu0 %v1722
    %2549 = vmatprep.subr.mxu0 0.0
    %2550 = vmatpush2.msra.mxu0 0.0
    %2551 = vmatprep.subr.mxu0 0.0
    %2552 = vmatpush2.msra.mxu0 0.0
    %2553 = vmatprep.subr.mxu0 0.0
    %2554 = vmatpush2.msra.mxu0 0.0
    %2555 = vmatprep.subr.mxu0 0.0
    %2556 = vmatpush2.msra.mxu0 0.0
    %2557 = vmatprep.subr.mxu0 0.0
    %2558 = vmatpush2.msra.mxu0 0.0
    %2559 = vmatprep.subr.mxu0 0.0
    %2560 = vmatpush2.msra.mxu0 0.0
    %2561 = vmatprep.subr.mxu0 0.0
    %2562 = vmatpush2.msra.mxu0 0.0
    %2563 = vmatprep.subr.mxu0 0.0
    %2564 = vmatpush2.msra.mxu0 0.0
    %2565 = vmatprep.subr.mxu0 0.0
    %2566 = vmatpush2.msra.mxu0 0.0
    %2567 = vmatprep.subr.mxu0 0.0
    %2568 = vmatpush2.msra.mxu0 0.0
    %2569 = vmatprep.subr.mxu0 0.0
    %2570 = vmatpush2.msra.mxu0 0.0
    %2571 = vmatprep.subr.mxu0 0.0
    %2572 = vmatpush2.msra.mxu0 0.0
    %2573 = vmatprep.subr.mxu0 0.0
    %2574 = vmatpush2.msra.mxu0 0.0
    %2575 = vmatprep.subr.mxu0 0.0
    %2576 = vmatpush2.msra.mxu0 0.0
    %2577 = vmatprep.subr.mxu0 0.0
    %2578 = vmatpush2.msra.mxu0 0.0
    %2579 = vmatprep.subr.mxu0 0.0
    %2580 = vmatpush2.msra.mxu0 0.0
    %2581 = vmatprep.mubr.f32.mxu0 0.0
    %2582 = vmatmul.mubr.f32.gmra.mxu0 %v2470
    %v2583 = vpop.f32.mrf.mxu0
    %v2584 = vadd.f32 0.0, %v2583
    %v2585 = vpop.f32.mrf.mxu0
    %2586 = vmatprep.mubr.f32.mxu0 0.0
    %2587 = vmatmul.mubr.f32.gmra.mxu0 %v2473
    %v2588 = vpop.f32.mrf.mxu0
    %v2589 = vadd.f32 0.0, %v2588
    %v2590 = vpop.f32.mrf.mxu0
    %2591 = vmatprep.mubr.f32.mxu0 0.0
    %2592 = vmatmul.mubr.f32.gmra.mxu0 %v2476
    %v2593 = vpop.f32.mrf.mxu0
    %v2594 = vadd.f32 0.0, %v2593
    %v2595 = vpop.f32.mrf.mxu0
    %2596 = vmatprep.mubr.f32.mxu0 0.0
    %2597 = vmatmul.mubr.f32.gmra.mxu0 %v2479
    %v2598 = vpop.f32.mrf.mxu0
    %v2599 = vadd.f32 0.0, %v2598
    %v2600 = vpop.f32.mrf.mxu0
    %2601 = vmatprep.mubr.f32.mxu0 0.0
    %2602 = vmatmul.mubr.f32.gmra.mxu0 %v2482
    %v2603 = vpop.f32.mrf.mxu0
    %v2604 = vadd.f32 0.0, %v2603
    %v2605 = vpop.f32.mrf.mxu0
    %2606 = vmatprep.mubr.f32.mxu0 0.0
    %2607 = vmatmul.mubr.f32.gmra.mxu0 %v2485
    %v2608 = vpop.f32.mrf.mxu0
    %v2609 = vadd.f32 0.0, %v2608
    %v2610 = vpop.f32.mrf.mxu0
    %2611 = vmatprep.mubr.f32.mxu0 0.0
    %2612 = vmatmul.mubr.f32.gmra.mxu0 %v2488
    %v2613 = vpop.f32.mrf.mxu0
    %v2614 = vadd.f32 0.0, %v2613
    %v2615 = vpop.f32.mrf.mxu0
    %2616 = vmatprep.mubr.f32.mxu0 0.0
    %2617 = vmatmul.mubr.f32.gmra.mxu0 %v2491
    %v2618 = vpop.f32.mrf.mxu0
    %v2619 = vadd.f32 0.0, %v2618
    %v2620 = vpop.f32.mrf.mxu0
    %2621 = vmatprep.mubr.f32.mxu0 0.0
    %2622 = vmatmul.mubr.f32.gmra.mxu0 %v2494
    %v2623 = vpop.f32.mrf.mxu0
    %v2624 = vadd.f32 0.0, %v2623
    %v2625 = vpop.f32.mrf.mxu0
    %2626 = vmatprep.mubr.f32.mxu0 0.0
    %2627 = vmatmul.mubr.f32.gmra.mxu0 %v2497
    %v2628 = vpop.f32.mrf.mxu0
    %v2629 = vadd.f32 0.0, %v2628
    %v2630 = vpop.f32.mrf.mxu0
    %2631 = vmatprep.mubr.f32.mxu0 0.0
    %2632 = vmatmul.mubr.f32.gmra.mxu0 %v2500
    %v2633 = vpop.f32.mrf.mxu0
    %v2634 = vadd.f32 0.0, %v2633
    %v2635 = vpop.f32.mrf.mxu0
    %2636 = vmatprep.mubr.f32.mxu0 0.0
    %2637 = vmatmul.mubr.f32.gmra.mxu0 %v2503
    %v2638 = vpop.f32.mrf.mxu0
    %v2639 = vadd.f32 0.0, %v2638
    %v2640 = vpop.f32.mrf.mxu0
    %2641 = vmatprep.mubr.f32.mxu0 0.0
    %2642 = vmatmul.mubr.f32.gmra.mxu0 %v2506
    %v2643 = vpop.f32.mrf.mxu0
    %v2644 = vadd.f32 0.0, %v2643
    %v2645 = vpop.f32.mrf.mxu0
    %2646 = vmatprep.mubr.f32.mxu0 0.0
    %2647 = vmatmul.mubr.f32.gmra.mxu0 %v2509
    %v2648 = vpop.f32.mrf.mxu0
    %v2649 = vadd.f32 0.0, %v2648
    %v2650 = vpop.f32.mrf.mxu0
    %2651 = vmatprep.mubr.f32.mxu0 0.0
    %2652 = vmatmul.mubr.f32.gmra.mxu0 %v2512
    %v2653 = vpop.f32.mrf.mxu0
    %v2654 = vadd.f32 0.0, %v2653
    %v2655 = vpop.f32.mrf.mxu0
    %2656 = vmatprep.mubr.f32.mxu0 0.0
    %2657 = vmatmul.mubr.f32.gmra.mxu0 %v2515
    %v2658 = vpop.f32.mrf.mxu0
    %v2659 = vadd.f32 0.0, %v2658
    %v2660 = vpop.f32.mrf.mxu0
    %2661 = vdwg.mxu0
    %v2662 = vadd.f32 %v2437, %v2584
    %v2663 = vadd.f32 %v2438, %v2589
    %v2664 = vadd.f32 %v2439, %v2594
    %v2665 = vadd.f32 %v2440, %v2599
    %v2666 = vadd.f32 %v2441, %v2604
    %v2667 = vadd.f32 %v2442, %v2609
    %v2668 = vadd.f32 %v2443, %v2614
    %v2669 = vadd.f32 %v2444, %v2619
    %v2670 = vadd.f32 %v2445, %v2624
    %v2671 = vadd.f32 %v2446, %v2629
    %v2672 = vadd.f32 %v2447, %v2634
    %v2673 = vadd.f32 %v2448, %v2639
    %v2674 = vadd.f32 %v2449, %v2644
    %v2675 = vadd.f32 %v2450, %v2649
    %v2676 = vadd.f32 %v2451, %v2654
    %v2677 = vadd.f32 %v2452, %v2659
    %v2678 = vmul.f32 %v1629, %v1779
    %v2679 = vmul.f32 %v1634, %v1781
    %v2680 = vmul.f32 %v1639, %v1783
    %v2681 = vmul.f32 %v1644, %v1785
    %v2682 = vmul.f32 %v1649, %v1787
    %v2683 = vmul.f32 %v1654, %v1789
    %v2684 = vmul.f32 %v1659, %v1791
    %v2685 = vmul.f32 %v1664, %v1793
    %v2686 = vmul.f32 %v1669, %v1763
    %v2687 = vmul.f32 %v1674, %v1765
    %v2688 = vmul.f32 %v1679, %v1767
    %v2689 = vmul.f32 %v1684, %v1769
    %v2690 = vmul.f32 %v1689, %v1771
    %v2691 = vmul.f32 %v1694, %v1773
    %v2692 = vmul.f32 %v1699, %v1775
    %v2693 = vmul.f32 %v1704, %v1777
    %v2695 = vsel %vm160, %v2678, 0
    %v2698 = vsel %vm160, %v2679, 0
    %v2701 = vsel %vm160, %v2680, 0
    %v2704 = vsel %vm160, %v2681, 0
    %v2707 = vsel %vm160, %v2682, 0
    %v2710 = vsel %vm160, %v2683, 0
    %v2713 = vsel %vm160, %v2684, 0
    %v2716 = vsel %vm160, %v2685, 0
    %v2719 = vsel %vm160, %v2686, 0
    %v2722 = vsel %vm160, %v2687, 0
    %v2725 = vsel %vm160, %v2688, 0
    %v2728 = vsel %vm160, %v2689, 0
    %v2731 = vsel %vm160, %v2690, 0
    %v2734 = vsel %vm160, %v2691, 0
    %v2737 = vsel %vm160, %v2692, 0
    %v2740 = vsel %vm160, %v2693, 0
    %2742 = vmatprep.subr.mxu0 0.0
    %2743 = vmatpush1.msra.mxu0 0.0
    %2744 = vmatprep.subr.mxu0 0.0
    %2745 = vmatpush1.msra.mxu0 0.0
    %2746 = vmatprep.subr.mxu0 0.0
    %2747 = vmatpush1.msra.mxu0 0.0
    %2748 = vmatprep.subr.mxu0 0.0
    %2749 = vmatpush1.msra.mxu0 0.0
    %2750 = vmatprep.subr.mxu0 0.0
    %2751 = vmatpush1.msra.mxu0 0.0
    %2752 = vmatprep.subr.mxu0 0.0
    %2753 = vmatpush1.msra.mxu0 0.0
    %2754 = vmatprep.subr.mxu0 0.0
    %2755 = vmatpush1.msra.mxu0 0.0
    %2756 = vmatprep.subr.mxu0 0.0
    %2757 = vmatpush1.msra.mxu0 0.0
    %2758 = vmatprep.subr.mxu0 0.0
    %2759 = vmatpush1.msra.mxu0 0.0
    %2760 = vmatprep.subr.mxu0 0.0
    %2761 = vmatpush1.msra.mxu0 0.0
    %2762 = vmatprep.subr.mxu0 0.0
    %2763 = vmatpush1.msra.mxu0 0.0
    %2764 = vmatprep.subr.mxu0 0.0
    %2765 = vmatpush1.msra.mxu0 0.0
    %2766 = vmatprep.subr.mxu0 0.0
    %2767 = vmatpush1.msra.mxu0 %v1730
    %2768 = vmatprep.subr.mxu0 0.0
    %2769 = vmatpush1.msra.mxu0 %v1729
    %2770 = vmatprep.subr.mxu0 0.0
    %2771 = vmatpush1.msra.mxu0 %v1728
    %2772 = vmatprep.subr.mxu0 0.0
    %2773 = vmatpush1.msra.mxu0 %v1727
    %2774 = vmatprep.subr.mxu0 0.0
    %2775 = vmatpush2.msra.mxu0 0.0
    %2776 = vmatprep.subr.mxu0 0.0
    %2777 = vmatpush2.msra.mxu0 0.0
    %2778 = vmatprep.subr.mxu0 0.0
    %2779 = vmatpush2.msra.mxu0 0.0
    %2780 = vmatprep.subr.mxu0 0.0
    %2781 = vmatpush2.msra.mxu0 0.0
    %2782 = vmatprep.subr.mxu0 0.0
    %2783 = vmatpush2.msra.mxu0 0.0
    %2784 = vmatprep.subr.mxu0 0.0
    %2785 = vmatpush2.msra.mxu0 0.0
    %2786 = vmatprep.subr.mxu0 0.0
    %2787 = vmatpush2.msra.mxu0 0.0
    %2788 = vmatprep.subr.mxu0 0.0
    %2789 = vmatpush2.msra.mxu0 0.0
    %2790 = vmatprep.subr.mxu0 0.0
    %2791 = vmatpush2.msra.mxu0 0.0
    %2792 = vmatprep.subr.mxu0 0.0
    %2793 = vmatpush2.msra.mxu0 0.0
    %2794 = vmatprep.subr.mxu0 0.0
    %2795 = vmatpush2.msra.mxu0 0.0
    %2796 = vmatprep.subr.mxu0 0.0
    %2797 = vmatpush2.msra.mxu0 0.0
    %2798 = vmatprep.subr.mxu0 0.0
    %2799 = vmatpush2.msra.mxu0 0.0
    %2800 = vmatprep.subr.mxu0 0.0
    %2801 = vmatpush2.msra.mxu0 0.0
    %2802 = vmatprep.subr.mxu0 0.0
    %2803 = vmatpush2.msra.mxu0 0.0
    %2804 = vmatprep.subr.mxu0 0.0
    %2805 = vmatpush2.msra.mxu0 0.0
    %2806 = vmatprep.mubr.f32.mxu0 0.0
    %2807 = vmatmul.mubr.f32.gmra.mxu0 %v2695
    %v2808 = vpop.f32.mrf.mxu0
    %v2809 = vadd.f32 0.0, %v2808
    %v2810 = vpop.f32.mrf.mxu0
    %2811 = vmatprep.mubr.f32.mxu0 0.0
    %2812 = vmatmul.mubr.f32.gmra.mxu0 %v2698
    %v2813 = vpop.f32.mrf.mxu0
    %v2814 = vadd.f32 0.0, %v2813
    %v2815 = vpop.f32.mrf.mxu0
    %2816 = vmatprep.mubr.f32.mxu0 0.0
    %2817 = vmatmul.mubr.f32.gmra.mxu0 %v2701
    %v2818 = vpop.f32.mrf.mxu0
    %v2819 = vadd.f32 0.0, %v2818
    %v2820 = vpop.f32.mrf.mxu0
    %2821 = vmatprep.mubr.f32.mxu0 0.0
    %2822 = vmatmul.mubr.f32.gmra.mxu0 %v2704
    %v2823 = vpop.f32.mrf.mxu0
    %v2824 = vadd.f32 0.0, %v2823
    %v2825 = vpop.f32.mrf.mxu0
    %2826 = vmatprep.mubr.f32.mxu0 0.0
    %2827 = vmatmul.mubr.f32.gmra.mxu0 %v2707
    %v2828 = vpop.f32.mrf.mxu0
    %v2829 = vadd.f32 0.0, %v2828
    %v2830 = vpop.f32.mrf.mxu0
    %2831 = vmatprep.mubr.f32.mxu0 0.0
    %2832 = vmatmul.mubr.f32.gmra.mxu0 %v2710
    %v2833 = vpop.f32.mrf.mxu0
    %v2834 = vadd.f32 0.0, %v2833
    %v2835 = vpop.f32.mrf.mxu0
    %2836 = vmatprep.mubr.f32.mxu0 0.0
    %2837 = vmatmul.mubr.f32.gmra.mxu0 %v2713
    %v2838 = vpop.f32.mrf.mxu0
    %v2839 = vadd.f32 0.0, %v2838
    %v2840 = vpop.f32.mrf.mxu0
    %2841 = vmatprep.mubr.f32.mxu0 0.0
    %2842 = vmatmul.mubr.f32.gmra.mxu0 %v2716
    %v2843 = vpop.f32.mrf.mxu0
    %v2844 = vadd.f32 0.0, %v2843
    %v2845 = vpop.f32.mrf.mxu0
    %2846 = vmatprep.mubr.f32.mxu0 0.0
    %2847 = vmatmul.mubr.f32.gmra.mxu0 %v2719
    %v2848 = vpop.f32.mrf.mxu0
    %v2849 = vadd.f32 0.0, %v2848
    %v2850 = vpop.f32.mrf.mxu0
    %2851 = vmatprep.mubr.f32.mxu0 0.0
    %2852 = vmatmul.mubr.f32.gmra.mxu0 %v2722
    %v2853 = vpop.f32.mrf.mxu0
    %v2854 = vadd.f32 0.0, %v2853
    %v2855 = vpop.f32.mrf.mxu0
    %2856 = vmatprep.mubr.f32.mxu0 0.0
    %2857 = vmatmul.mubr.f32.gmra.mxu0 %v2725
    %v2858 = vpop.f32.mrf.mxu0
    %v2859 = vadd.f32 0.0, %v2858
    %v2860 = vpop.f32.mrf.mxu0
    %2861 = vmatprep.mubr.f32.mxu0 0.0
    %2862 = vmatmul.mubr.f32.gmra.mxu0 %v2728
    %v2863 = vpop.f32.mrf.mxu0
    %v2864 = vadd.f32 0.0, %v2863
    %v2865 = vpop.f32.mrf.mxu0
    %2866 = vmatprep.mubr.f32.mxu0 0.0
    %2867 = vmatmul.mubr.f32.gmra.mxu0 %v2731
    %v2868 = vpop.f32.mrf.mxu0
    %v2869 = vadd.f32 0.0, %v2868
    %v2870 = vpop.f32.mrf.mxu0
    %2871 = vmatprep.mubr.f32.mxu0 0.0
    %2872 = vmatmul.mubr.f32.gmra.mxu0 %v2734
    %v2873 = vpop.f32.mrf.mxu0
    %v2874 = vadd.f32 0.0, %v2873
    %v2875 = vpop.f32.mrf.mxu0
    %2876 = vmatprep.mubr.f32.mxu0 0.0
    %2877 = vmatmul.mubr.f32.gmra.mxu0 %v2737
    %v2878 = vpop.f32.mrf.mxu0
    %v2879 = vadd.f32 0.0, %v2878
    %v2880 = vpop.f32.mrf.mxu0
    %2881 = vmatprep.mubr.f32.mxu0 0.0
    %2882 = vmatmul.mubr.f32.gmra.mxu0 %v2740
    %v2883 = vpop.f32.mrf.mxu0
    %v2884 = vadd.f32 0.0, %v2883
    %v2885 = vpop.f32.mrf.mxu0
    %2886 = vdwg.mxu0
    %v2887 = vadd.f32 %v2662, %v2809
    %v2888 = vadd.f32 %v2663, %v2814
    %v2889 = vadd.f32 %v2664, %v2819
    %v2890 = vadd.f32 %v2665, %v2824
    %v2891 = vadd.f32 %v2666, %v2829
    %v2892 = vadd.f32 %v2667, %v2834
    %v2893 = vadd.f32 %v2668, %v2839
    %v2894 = vadd.f32 %v2669, %v2844
    %v2895 = vadd.f32 %v2670, %v2849
    %v2896 = vadd.f32 %v2671, %v2854
    %v2897 = vadd.f32 %v2672, %v2859
    %v2898 = vadd.f32 %v2673, %v2864
    %v2899 = vadd.f32 %v2674, %v2869
    %v2900 = vadd.f32 %v2675, %v2874
    %v2901 = vadd.f32 %v2676, %v2879
    %v2902 = vadd.f32 %v2677, %v2884
    %v2903 = vmul.f32 %v1629, %v1783
    %v2904 = vmul.f32 %v1634, %v1785
    %v2905 = vmul.f32 %v1639, %v1787
    %v2906 = vmul.f32 %v1644, %v1789
    %v2907 = vmul.f32 %v1649, %v1791
    %v2908 = vmul.f32 %v1654, %v1793
    %v2909 = vmul.f32 %v1659, %v1763
    %v2910 = vmul.f32 %v1664, %v1765
    %v2911 = vmul.f32 %v1669, %v1767
    %v2912 = vmul.f32 %v1674, %v1769
    %v2913 = vmul.f32 %v1679, %v1771
    %v2914 = vmul.f32 %v1684, %v1773
    %v2915 = vmul.f32 %v1689, %v1775
    %v2916 = vmul.f32 %v1694, %v1777
    %v2917 = vmul.f32 %v1699, %v1779
    %v2918 = vmul.f32 %v1704, %v1781
    %v2920 = vsel %vm160, %v2903, 0
    %v2923 = vsel %vm160, %v2904, 0
    %v2926 = vsel %vm160, %v2905, 0
    %v2929 = vsel %vm160, %v2906, 0
    %v2932 = vsel %vm160, %v2907, 0
    %v2935 = vsel %vm160, %v2908, 0
    %v2938 = vsel %vm160, %v2909, 0
    %v2941 = vsel %vm160, %v2910, 0
    %v2944 = vsel %vm160, %v2911, 0
    %v2947 = vsel %vm160, %v2912, 0
    %v2950 = vsel %vm160, %v2913, 0
    %v2953 = vsel %vm160, %v2914, 0
    %v2956 = vsel %vm160, %v2915, 0
    %v2959 = vsel %vm160, %v2916, 0
    %v2962 = vsel %vm160, %v2917, 0
    %v2965 = vsel %vm160, %v2918, 0
    %2967 = vmatprep.subr.mxu0 0.0
    %2968 = vmatpush1.msra.mxu0 0.0
    %2969 = vmatprep.subr.mxu0 0.0
    %2970 = vmatpush1.msra.mxu0 0.0
    %2971 = vmatprep.subr.mxu0 0.0
    %2972 = vmatpush1.msra.mxu0 0.0
    %2973 = vmatprep.subr.mxu0 0.0
    %2974 = vmatpush1.msra.mxu0 0.0
    %2975 = vmatprep.subr.mxu0 0.0
    %2976 = vmatpush1.msra.mxu0 0.0
    %2977 = vmatprep.subr.mxu0 0.0
    %2978 = vmatpush1.msra.mxu0 0.0
    %2979 = vmatprep.subr.mxu0 0.0
    %2980 = vmatpush1.msra.mxu0 0.0
    %2981 = vmatprep.subr.mxu0 0.0
    %2982 = vmatpush1.msra.mxu0 0.0
    %2983 = vmatprep.subr.mxu0 0.0
    %2984 = vmatpush1.msra.mxu0 0.0
    %2985 = vmatprep.subr.mxu0 0.0
    %2986 = vmatpush1.msra.mxu0 0.0
    %2987 = vmatprep.subr.mxu0 0.0
    %2988 = vmatpush1.msra.mxu0 0.0
    %2989 = vmatprep.subr.mxu0 0.0
    %2990 = vmatpush1.msra.mxu0 0.0
    %2991 = vmatprep.subr.mxu0 0.0
    %2992 = vmatpush1.msra.mxu0 %v1735
    %2993 = vmatprep.subr.mxu0 0.0
    %2994 = vmatpush1.msra.mxu0 %v1734
    %2995 = vmatprep.subr.mxu0 0.0
    %2996 = vmatpush1.msra.mxu0 %v1733
    %2997 = vmatprep.subr.mxu0 0.0
    %2998 = vmatpush1.msra.mxu0 %v1732
    %2999 = vmatprep.subr.mxu0 0.0
    %3000 = vmatpush2.msra.mxu0 0.0
    %3001 = vmatprep.subr.mxu0 0.0
    %3002 = vmatpush2.msra.mxu0 0.0
    %3003 = vmatprep.subr.mxu0 0.0
    %3004 = vmatpush2.msra.mxu0 0.0
    %3005 = vmatprep.subr.mxu0 0.0
    %3006 = vmatpush2.msra.mxu0 0.0
    %3007 = vmatprep.subr.mxu0 0.0
    %3008 = vmatpush2.msra.mxu0 0.0
    %3009 = vmatprep.subr.mxu0 0.0
    %3010 = vmatpush2.msra.mxu0 0.0
    %3011 = vmatprep.subr.mxu0 0.0
    %3012 = vmatpush2.msra.mxu0 0.0
    %3013 = vmatprep.subr.mxu0 0.0
    %3014 = vmatpush2.msra.mxu0 0.0
    %3015 = vmatprep.subr.mxu0 0.0
    %3016 = vmatpush2.msra.mxu0 0.0
    %3017 = vmatprep.subr.mxu0 0.0
    %3018 = vmatpush2.msra.mxu0 0.0
    %3019 = vmatprep.subr.mxu0 0.0
    %3020 = vmatpush2.msra.mxu0 0.0
    %3021 = vmatprep.subr.mxu0 0.0
    %3022 = vmatpush2.msra.mxu0 0.0
    %3023 = vmatprep.subr.mxu0 0.0
    %3024 = vmatpush2.msra.mxu0 0.0
    %3025 = vmatprep.subr.mxu0 0.0
    %3026 = vmatpush2.msra.mxu0 0.0
    %3027 = vmatprep.subr.mxu0 0.0
    %3028 = vmatpush2.msra.mxu0 0.0
    %3029 = vmatprep.subr.mxu0 0.0
    %3030 = vmatpush2.msra.mxu0 0.0
    %3031 = vmatprep.mubr.f32.mxu0 0.0
    %3032 = vmatmul.mubr.f32.gmra.mxu0 %v2920
    %v3033 = vpop.f32.mrf.mxu0
    %v3034 = vadd.f32 0.0, %v3033
    %v3035 = vpop.f32.mrf.mxu0
    %3036 = vmatprep.mubr.f32.mxu0 0.0
    %3037 = vmatmul.mubr.f32.gmra.mxu0 %v2923
    %v3038 = vpop.f32.mrf.mxu0
    %v3039 = vadd.f32 0.0, %v3038
    %v3040 = vpop.f32.mrf.mxu0
    %3041 = vmatprep.mubr.f32.mxu0 0.0
    %3042 = vmatmul.mubr.f32.gmra.mxu0 %v2926
    %v3043 = vpop.f32.mrf.mxu0
    %v3044 = vadd.f32 0.0, %v3043
    %v3045 = vpop.f32.mrf.mxu0
    %3046 = vmatprep.mubr.f32.mxu0 0.0
    %3047 = vmatmul.mubr.f32.gmra.mxu0 %v2929
    %v3048 = vpop.f32.mrf.mxu0
    %v3049 = vadd.f32 0.0, %v3048
    %v3050 = vpop.f32.mrf.mxu0
    %3051 = vmatprep.mubr.f32.mxu0 0.0
    %3052 = vmatmul.mubr.f32.gmra.mxu0 %v2932
    %v3053 = vpop.f32.mrf.mxu0
    %v3054 = vadd.f32 0.0, %v3053
    %v3055 = vpop.f32.mrf.mxu0
    %3056 = vmatprep.mubr.f32.mxu0 0.0
    %3057 = vmatmul.mubr.f32.gmra.mxu0 %v2935
    %v3058 = vpop.f32.mrf.mxu0
    %v3059 = vadd.f32 0.0, %v3058
    %v3060 = vpop.f32.mrf.mxu0
    %3061 = vmatprep.mubr.f32.mxu0 0.0
    %3062 = vmatmul.mubr.f32.gmra.mxu0 %v2938
    %v3063 = vpop.f32.mrf.mxu0
    %v3064 = vadd.f32 0.0, %v3063
    %v3065 = vpop.f32.mrf.mxu0
    %3066 = vmatprep.mubr.f32.mxu0 0.0
    %3067 = vmatmul.mubr.f32.gmra.mxu0 %v2941
    %v3068 = vpop.f32.mrf.mxu0
    %v3069 = vadd.f32 0.0, %v3068
    %v3070 = vpop.f32.mrf.mxu0
    %3071 = vmatprep.mubr.f32.mxu0 0.0
    %3072 = vmatmul.mubr.f32.gmra.mxu0 %v2944
    %v3073 = vpop.f32.mrf.mxu0
    %v3074 = vadd.f32 0.0, %v3073
    %v3075 = vpop.f32.mrf.mxu0
    %3076 = vmatprep.mubr.f32.mxu0 0.0
    %3077 = vmatmul.mubr.f32.gmra.mxu0 %v2947
    %v3078 = vpop.f32.mrf.mxu0
    %v3079 = vadd.f32 0.0, %v3078
    %v3080 = vpop.f32.mrf.mxu0
    %3081 = vmatprep.mubr.f32.mxu0 0.0
    %3082 = vmatmul.mubr.f32.gmra.mxu0 %v2950
    %v3083 = vpop.f32.mrf.mxu0
    %v3084 = vadd.f32 0.0, %v3083
    %v3085 = vpop.f32.mrf.mxu0
    %3086 = vmatprep.mubr.f32.mxu0 0.0
    %3087 = vmatmul.mubr.f32.gmra.mxu0 %v2953
    %v3088 = vpop.f32.mrf.mxu0
    %v3089 = vadd.f32 0.0, %v3088
    %v3090 = vpop.f32.mrf.mxu0
    %3091 = vmatprep.mubr.f32.mxu0 0.0
    %3092 = vmatmul.mubr.f32.gmra.mxu0 %v2956
    %v3093 = vpop.f32.mrf.mxu0
    %v3094 = vadd.f32 0.0, %v3093
    %v3095 = vpop.f32.mrf.mxu0
    %3096 = vmatprep.mubr.f32.mxu0 0.0
    %3097 = vmatmul.mubr.f32.gmra.mxu0 %v2959
    %v3098 = vpop.f32.mrf.mxu0
    %v3099 = vadd.f32 0.0, %v3098
    %v3100 = vpop.f32.mrf.mxu0
    %3101 = vmatprep.mubr.f32.mxu0 0.0
    %3102 = vmatmul.mubr.f32.gmra.mxu0 %v2962
    %v3103 = vpop.f32.mrf.mxu0
    %v3104 = vadd.f32 0.0, %v3103
    %v3105 = vpop.f32.mrf.mxu0
    %3106 = vmatprep.mubr.f32.mxu0 0.0
    %3107 = vmatmul.mubr.f32.gmra.mxu0 %v2965
    %v3108 = vpop.f32.mrf.mxu0
    %v3109 = vadd.f32 0.0, %v3108
    %v3110 = vpop.f32.mrf.mxu0
    %3111 = vdwg.mxu0
    %v3112 = vadd.f32 %v2887, %v3034
    %v3113 = vadd.f32 %v2888, %v3039
    %v3114 = vadd.f32 %v2889, %v3044
    %v3115 = vadd.f32 %v2890, %v3049
    %v3116 = vadd.f32 %v2891, %v3054
    %v3117 = vadd.f32 %v2892, %v3059
    %v3118 = vadd.f32 %v2893, %v3064
    %v3119 = vadd.f32 %v2894, %v3069
    %v3120 = vadd.f32 %v2895, %v3074
    %v3121 = vadd.f32 %v2896, %v3079
    %v3122 = vadd.f32 %v2897, %v3084
    %v3123 = vadd.f32 %v2898, %v3089
    %v3124 = vadd.f32 %v2899, %v3094
    %v3125 = vadd.f32 %v2900, %v3099
    %v3126 = vadd.f32 %v2901, %v3104
    %v3127 = vadd.f32 %v2902, %v3109
    %v3128 = vmul.f32 %v1629, %v1787
    %v3129 = vmul.f32 %v1634, %v1789
    %v3130 = vmul.f32 %v1639, %v1791
    %v3131 = vmul.f32 %v1644, %v1793
    %v3132 = vmul.f32 %v1649, %v1763
    %v3133 = vmul.f32 %v1654, %v1765
    %v3134 = vmul.f32 %v1659, %v1767
    %v3135 = vmul.f32 %v1664, %v1769
    %v3136 = vmul.f32 %v1669, %v1771
    %v3137 = vmul.f32 %v1674, %v1773
    %v3138 = vmul.f32 %v1679, %v1775
    %v3139 = vmul.f32 %v1684, %v1777
    %v3140 = vmul.f32 %v1689, %v1779
    %v3141 = vmul.f32 %v1694, %v1781
    %v3142 = vmul.f32 %v1699, %v1783
    %v3143 = vmul.f32 %v1704, %v1785
    %v3145 = vsel %vm160, %v3128, 0
    %v3148 = vsel %vm160, %v3129, 0
    %v3151 = vsel %vm160, %v3130, 0
    %v3154 = vsel %vm160, %v3131, 0
    %v3157 = vsel %vm160, %v3132, 0
    %v3160 = vsel %vm160, %v3133, 0
    %v3163 = vsel %vm160, %v3134, 0
    %v3166 = vsel %vm160, %v3135, 0
    %v3169 = vsel %vm160, %v3136, 0
    %v3172 = vsel %vm160, %v3137, 0
    %v3175 = vsel %vm160, %v3138, 0
    %v3178 = vsel %vm160, %v3139, 0
    %v3181 = vsel %vm160, %v3140, 0
    %v3184 = vsel %vm160, %v3141, 0
    %v3187 = vsel %vm160, %v3142, 0
    %v3190 = vsel %vm160, %v3143, 0
    %3192 = vmatprep.subr.mxu0 0.0
    %3193 = vmatpush1.msra.mxu0 0.0
    %3194 = vmatprep.subr.mxu0 0.0
    %3195 = vmatpush1.msra.mxu0 0.0
    %3196 = vmatprep.subr.mxu0 0.0
    %3197 = vmatpush1.msra.mxu0 0.0
    %3198 = vmatprep.subr.mxu0 0.0
    %3199 = vmatpush1.msra.mxu0 0.0
    %3200 = vmatprep.subr.mxu0 0.0
    %3201 = vmatpush1.msra.mxu0 0.0
    %3202 = vmatprep.subr.mxu0 0.0
    %3203 = vmatpush1.msra.mxu0 0.0
    %3204 = vmatprep.subr.mxu0 0.0
    %3205 = vmatpush1.msra.mxu0 0.0
    %3206 = vmatprep.subr.mxu0 0.0
    %3207 = vmatpush1.msra.mxu0 0.0
    %3208 = vmatprep.subr.mxu0 0.0
    %3209 = vmatpush1.msra.mxu0 0.0
    %3210 = vmatprep.subr.mxu0 0.0
    %3211 = vmatpush1.msra.mxu0 0.0
    %3212 = vmatprep.subr.mxu0 0.0
    %3213 = vmatpush1.msra.mxu0 0.0
    %3214 = vmatprep.subr.mxu0 0.0
    %3215 = vmatpush1.msra.mxu0 0.0
    %3216 = vmatprep.subr.mxu0 0.0
    %3217 = vmatpush1.msra.mxu0 %v1740
    %3218 = vmatprep.subr.mxu0 0.0
    %3219 = vmatpush1.msra.mxu0 %v1739
    %3220 = vmatprep.subr.mxu0 0.0
    %3221 = vmatpush1.msra.mxu0 %v1738
    %3222 = vmatprep.subr.mxu0 0.0
    %3223 = vmatpush1.msra.mxu0 %v1737
    %3224 = vmatprep.subr.mxu0 0.0
    %3225 = vmatpush2.msra.mxu0 0.0
    %3226 = vmatprep.subr.mxu0 0.0
    %3227 = vmatpush2.msra.mxu0 0.0
    %3228 = vmatprep.subr.mxu0 0.0
    %3229 = vmatpush2.msra.mxu0 0.0
    %3230 = vmatprep.subr.mxu0 0.0
    %3231 = vmatpush2.msra.mxu0 0.0
    %3232 = vmatprep.subr.mxu0 0.0
    %3233 = vmatpush2.msra.mxu0 0.0
    %3234 = vmatprep.subr.mxu0 0.0
    %3235 = vmatpush2.msra.mxu0 0.0
    %3236 = vmatprep.subr.mxu0 0.0
    %3237 = vmatpush2.msra.mxu0 0.0
    %3238 = vmatprep.subr.mxu0 0.0
    %3239 = vmatpush2.msra.mxu0 0.0
    %3240 = vmatprep.subr.mxu0 0.0
    %3241 = vmatpush2.msra.mxu0 0.0
    %3242 = vmatprep.subr.mxu0 0.0
    %3243 = vmatpush2.msra.mxu0 0.0
    %3244 = vmatprep.subr.mxu0 0.0
    %3245 = vmatpush2.msra.mxu0 0.0
    %3246 = vmatprep.subr.mxu0 0.0
    %3247 = vmatpush2.msra.mxu0 0.0
    %3248 = vmatprep.subr.mxu0 0.0
    %3249 = vmatpush2.msra.mxu0 0.0
    %3250 = vmatprep.subr.mxu0 0.0
    %3251 = vmatpush2.msra.mxu0 0.0
    %3252 = vmatprep.subr.mxu0 0.0
    %3253 = vmatpush2.msra.mxu0 0.0
    %3254 = vmatprep.subr.mxu0 0.0
    %3255 = vmatpush2.msra.mxu0 0.0
    %3256 = vmatprep.mubr.f32.mxu0 0.0
    %3257 = vmatmul.mubr.f32.gmra.mxu0 %v3145
    %v3258 = vpop.f32.mrf.mxu0
    %v3259 = vadd.f32 0.0, %v3258
    %v3260 = vpop.f32.mrf.mxu0
    %3261 = vmatprep.mubr.f32.mxu0 0.0
    %3262 = vmatmul.mubr.f32.gmra.mxu0 %v3148
    %v3263 = vpop.f32.mrf.mxu0
    %v3264 = vadd.f32 0.0, %v3263
    %v3265 = vpop.f32.mrf.mxu0
    %3266 = vmatprep.mubr.f32.mxu0 0.0
    %3267 = vmatmul.mubr.f32.gmra.mxu0 %v3151
    %v3268 = vpop.f32.mrf.mxu0
    %v3269 = vadd.f32 0.0, %v3268
    %v3270 = vpop.f32.mrf.mxu0
    %3271 = vmatprep.mubr.f32.mxu0 0.0
    %3272 = vmatmul.mubr.f32.gmra.mxu0 %v3154
    %v3273 = vpop.f32.mrf.mxu0
    %v3274 = vadd.f32 0.0, %v3273
    %v3275 = vpop.f32.mrf.mxu0
    %3276 = vmatprep.mubr.f32.mxu0 0.0
    %3277 = vmatmul.mubr.f32.gmra.mxu0 %v3157
    %v3278 = vpop.f32.mrf.mxu0
    %v3279 = vadd.f32 0.0, %v3278
    %v3280 = vpop.f32.mrf.mxu0
    %3281 = vmatprep.mubr.f32.mxu0 0.0
    %3282 = vmatmul.mubr.f32.gmra.mxu0 %v3160
    %v3283 = vpop.f32.mrf.mxu0
    %v3284 = vadd.f32 0.0, %v3283
    %v3285 = vpop.f32.mrf.mxu0
    %3286 = vmatprep.mubr.f32.mxu0 0.0
    %3287 = vmatmul.mubr.f32.gmra.mxu0 %v3163
    %v3288 = vpop.f32.mrf.mxu0
    %v3289 = vadd.f32 0.0, %v3288
    %v3290 = vpop.f32.mrf.mxu0
    %3291 = vmatprep.mubr.f32.mxu0 0.0
    %3292 = vmatmul.mubr.f32.gmra.mxu0 %v3166
    %v3293 = vpop.f32.mrf.mxu0
    %v3294 = vadd.f32 0.0, %v3293
    %v3295 = vpop.f32.mrf.mxu0
    %3296 = vmatprep.mubr.f32.mxu0 0.0
    %3297 = vmatmul.mubr.f32.gmra.mxu0 %v3169
    %v3298 = vpop.f32.mrf.mxu0
    %v3299 = vadd.f32 0.0, %v3298
    %v3300 = vpop.f32.mrf.mxu0
    %3301 = vmatprep.mubr.f32.mxu0 0.0
    %3302 = vmatmul.mubr.f32.gmra.mxu0 %v3172
    %v3303 = vpop.f32.mrf.mxu0
    %v3304 = vadd.f32 0.0, %v3303
    %v3305 = vpop.f32.mrf.mxu0
    %3306 = vmatprep.mubr.f32.mxu0 0.0
    %3307 = vmatmul.mubr.f32.gmra.mxu0 %v3175
    %v3308 = vpop.f32.mrf.mxu0
    %v3309 = vadd.f32 0.0, %v3308
    %v3310 = vpop.f32.mrf.mxu0
    %3311 = vmatprep.mubr.f32.mxu0 0.0
    %3312 = vmatmul.mubr.f32.gmra.mxu0 %v3178
    %v3313 = vpop.f32.mrf.mxu0
    %v3314 = vadd.f32 0.0, %v3313
    %v3315 = vpop.f32.mrf.mxu0
    %3316 = vmatprep.mubr.f32.mxu0 0.0
    %3317 = vmatmul.mubr.f32.gmra.mxu0 %v3181
    %v3318 = vpop.f32.mrf.mxu0
    %v3319 = vadd.f32 0.0, %v3318
    %v3320 = vpop.f32.mrf.mxu0
    %3321 = vmatprep.mubr.f32.mxu0 0.0
    %3322 = vmatmul.mubr.f32.gmra.mxu0 %v3184
    %v3323 = vpop.f32.mrf.mxu0
    %v3324 = vadd.f32 0.0, %v3323
    %v3325 = vpop.f32.mrf.mxu0
    %3326 = vmatprep.mubr.f32.mxu0 0.0
    %3327 = vmatmul.mubr.f32.gmra.mxu0 %v3187
    %v3328 = vpop.f32.mrf.mxu0
    %v3329 = vadd.f32 0.0, %v3328
    %v3330 = vpop.f32.mrf.mxu0
    %3331 = vmatprep.mubr.f32.mxu0 0.0
    %3332 = vmatmul.mubr.f32.gmra.mxu0 %v3190
    %v3333 = vpop.f32.mrf.mxu0
    %v3334 = vadd.f32 0.0, %v3333
    %v3335 = vpop.f32.mrf.mxu0
    %3336 = vdwg.mxu0
    %v3337 = vadd.f32 %v3112, %v3259
    %v3338 = vadd.f32 %v3113, %v3264
    %v3339 = vadd.f32 %v3114, %v3269
    %v3340 = vadd.f32 %v3115, %v3274
    %v3341 = vadd.f32 %v3116, %v3279
    %v3342 = vadd.f32 %v3117, %v3284
    %v3343 = vadd.f32 %v3118, %v3289
    %v3344 = vadd.f32 %v3119, %v3294
    %v3345 = vadd.f32 %v3120, %v3299
    %v3346 = vadd.f32 %v3121, %v3304
    %v3347 = vadd.f32 %v3122, %v3309
    %v3348 = vadd.f32 %v3123, %v3314
    %v3349 = vadd.f32 %v3124, %v3319
    %v3350 = vadd.f32 %v3125, %v3324
    %v3351 = vadd.f32 %v3126, %v3329
    %v3352 = vadd.f32 %v3127, %v3334
    %v3353 = vmul.f32 %v1629, %v1791
    %v3354 = vmul.f32 %v1634, %v1793
    %v3355 = vmul.f32 %v1639, %v1763
    %v3356 = vmul.f32 %v1644, %v1765
    %v3357 = vmul.f32 %v1649, %v1767
    %v3358 = vmul.f32 %v1654, %v1769
    %v3359 = vmul.f32 %v1659, %v1771
    %v3360 = vmul.f32 %v1664, %v1773
    %v3361 = vmul.f32 %v1669, %v1775
    %v3362 = vmul.f32 %v1674, %v1777
    %v3363 = vmul.f32 %v1679, %v1779
    %v3364 = vmul.f32 %v1684, %v1781
    %v3365 = vmul.f32 %v1689, %v1783
    %v3366 = vmul.f32 %v1694, %v1785
    %v3367 = vmul.f32 %v1699, %v1787
    %v3368 = vmul.f32 %v1704, %v1789
    %v3370 = vsel %vm160, %v3353, 0
    %v3373 = vsel %vm160, %v3354, 0
    %v3376 = vsel %vm160, %v3355, 0
    %v3379 = vsel %vm160, %v3356, 0
    %v3382 = vsel %vm160, %v3357, 0
    %v3385 = vsel %vm160, %v3358, 0
    %v3388 = vsel %vm160, %v3359, 0
    %v3391 = vsel %vm160, %v3360, 0
    %v3394 = vsel %vm160, %v3361, 0
    %v3397 = vsel %vm160, %v3362, 0
    %v3400 = vsel %vm160, %v3363, 0
    %v3403 = vsel %vm160, %v3364, 0
    %v3406 = vsel %vm160, %v3365, 0
    %v3409 = vsel %vm160, %v3366, 0
    %v3412 = vsel %vm160, %v3367, 0
    %v3415 = vsel %vm160, %v3368, 0
    %3417 = vmatprep.subr.mxu0 0.0
    %3418 = vmatpush1.msra.mxu0 0.0
    %3419 = vmatprep.subr.mxu0 0.0
    %3420 = vmatpush1.msra.mxu0 0.0
    %3421 = vmatprep.subr.mxu0 0.0
    %3422 = vmatpush1.msra.mxu0 0.0
    %3423 = vmatprep.subr.mxu0 0.0
    %3424 = vmatpush1.msra.mxu0 0.0
    %3425 = vmatprep.subr.mxu0 0.0
    %3426 = vmatpush1.msra.mxu0 0.0
    %3427 = vmatprep.subr.mxu0 0.0
    %3428 = vmatpush1.msra.mxu0 0.0
    %3429 = vmatprep.subr.mxu0 0.0
    %3430 = vmatpush1.msra.mxu0 0.0
    %3431 = vmatprep.subr.mxu0 0.0
    %3432 = vmatpush1.msra.mxu0 0.0
    %3433 = vmatprep.subr.mxu0 0.0
    %3434 = vmatpush1.msra.mxu0 0.0
    %3435 = vmatprep.subr.mxu0 0.0
    %3436 = vmatpush1.msra.mxu0 0.0
    %3437 = vmatprep.subr.mxu0 0.0
    %3438 = vmatpush1.msra.mxu0 0.0
    %3439 = vmatprep.subr.mxu0 0.0
    %3440 = vmatpush1.msra.mxu0 0.0
    %3441 = vmatprep.subr.mxu0 0.0
    %3442 = vmatpush1.msra.mxu0 %v1745
    %3443 = vmatprep.subr.mxu0 0.0
    %3444 = vmatpush1.msra.mxu0 %v1744
    %3445 = vmatprep.subr.mxu0 0.0
    %3446 = vmatpush1.msra.mxu0 %v1743
    %3447 = vmatprep.subr.mxu0 0.0
    %3448 = vmatpush1.msra.mxu0 %v1742
    %3449 = vmatprep.subr.mxu0 0.0
    %3450 = vmatpush2.msra.mxu0 0.0
    %3451 = vmatprep.subr.mxu0 0.0
    %3452 = vmatpush2.msra.mxu0 0.0
    %3453 = vmatprep.subr.mxu0 0.0
    %3454 = vmatpush2.msra.mxu0 0.0
    %3455 = vmatprep.subr.mxu0 0.0
    %3456 = vmatpush2.msra.mxu0 0.0
    %3457 = vmatprep.subr.mxu0 0.0
    %3458 = vmatpush2.msra.mxu0 0.0
    %3459 = vmatprep.subr.mxu0 0.0
    %3460 = vmatpush2.msra.mxu0 0.0
    %3461 = vmatprep.subr.mxu0 0.0
    %3462 = vmatpush2.msra.mxu0 0.0
    %3463 = vmatprep.subr.mxu0 0.0
    %3464 = vmatpush2.msra.mxu0 0.0
    %3465 = vmatprep.subr.mxu0 0.0
    %3466 = vmatpush2.msra.mxu0 0.0
    %3467 = vmatprep.subr.mxu0 0.0
    %3468 = vmatpush2.msra.mxu0 0.0
    %3469 = vmatprep.subr.mxu0 0.0
    %3470 = vmatpush2.msra.mxu0 0.0
    %3471 = vmatprep.subr.mxu0 0.0
    %3472 = vmatpush2.msra.mxu0 0.0
    %3473 = vmatprep.subr.mxu0 0.0
    %3474 = vmatpush2.msra.mxu0 0.0
    %3475 = vmatprep.subr.mxu0 0.0
    %3476 = vmatpush2.msra.mxu0 0.0
    %3477 = vmatprep.subr.mxu0 0.0
    %3478 = vmatpush2.msra.mxu0 0.0
    %3479 = vmatprep.subr.mxu0 0.0
    %3480 = vmatpush2.msra.mxu0 0.0
    %3481 = vmatprep.mubr.f32.mxu0 0.0
    %3482 = vmatmul.mubr.f32.gmra.mxu0 %v3370
    %v3483 = vpop.f32.mrf.mxu0
    %v3484 = vadd.f32 0.0, %v3483
    %v3485 = vpop.f32.mrf.mxu0
    %3486 = vmatprep.mubr.f32.mxu0 0.0
    %3487 = vmatmul.mubr.f32.gmra.mxu0 %v3373
    %v3488 = vpop.f32.mrf.mxu0
    %v3489 = vadd.f32 0.0, %v3488
    %v3490 = vpop.f32.mrf.mxu0
    %3491 = vmatprep.mubr.f32.mxu0 0.0
    %3492 = vmatmul.mubr.f32.gmra.mxu0 %v3376
    %v3493 = vpop.f32.mrf.mxu0
    %v3494 = vadd.f32 0.0, %v3493
    %v3495 = vpop.f32.mrf.mxu0
    %3496 = vmatprep.mubr.f32.mxu0 0.0
    %3497 = vmatmul.mubr.f32.gmra.mxu0 %v3379
    %v3498 = vpop.f32.mrf.mxu0
    %v3499 = vadd.f32 0.0, %v3498
    %v3500 = vpop.f32.mrf.mxu0
    %3501 = vmatprep.mubr.f32.mxu0 0.0
    %3502 = vmatmul.mubr.f32.gmra.mxu0 %v3382
    %v3503 = vpop.f32.mrf.mxu0
    %v3504 = vadd.f32 0.0, %v3503
    %v3505 = vpop.f32.mrf.mxu0
    %3506 = vmatprep.mubr.f32.mxu0 0.0
    %3507 = vmatmul.mubr.f32.gmra.mxu0 %v3385
    %v3508 = vpop.f32.mrf.mxu0
    %v3509 = vadd.f32 0.0, %v3508
    %v3510 = vpop.f32.mrf.mxu0
    %3511 = vmatprep.mubr.f32.mxu0 0.0
    %3512 = vmatmul.mubr.f32.gmra.mxu0 %v3388
    %v3513 = vpop.f32.mrf.mxu0
    %v3514 = vadd.f32 0.0, %v3513
    %v3515 = vpop.f32.mrf.mxu0
    %3516 = vmatprep.mubr.f32.mxu0 0.0
    %3517 = vmatmul.mubr.f32.gmra.mxu0 %v3391
    %v3518 = vpop.f32.mrf.mxu0
    %v3519 = vadd.f32 0.0, %v3518
    %v3520 = vpop.f32.mrf.mxu0
    %3521 = vmatprep.mubr.f32.mxu0 0.0
    %3522 = vmatmul.mubr.f32.gmra.mxu0 %v3394
    %v3523 = vpop.f32.mrf.mxu0
    %v3524 = vadd.f32 0.0, %v3523
    %v3525 = vpop.f32.mrf.mxu0
    %3526 = vmatprep.mubr.f32.mxu0 0.0
    %3527 = vmatmul.mubr.f32.gmra.mxu0 %v3397
    %v3528 = vpop.f32.mrf.mxu0
    %v3529 = vadd.f32 0.0, %v3528
    %v3530 = vpop.f32.mrf.mxu0
    %3531 = vmatprep.mubr.f32.mxu0 0.0
    %3532 = vmatmul.mubr.f32.gmra.mxu0 %v3400
    %v3533 = vpop.f32.mrf.mxu0
    %v3534 = vadd.f32 0.0, %v3533
    %v3535 = vpop.f32.mrf.mxu0
    %3536 = vmatprep.mubr.f32.mxu0 0.0
    %3537 = vmatmul.mubr.f32.gmra.mxu0 %v3403
    %v3538 = vpop.f32.mrf.mxu0
    %v3539 = vadd.f32 0.0, %v3538
    %v3540 = vpop.f32.mrf.mxu0
    %3541 = vmatprep.mubr.f32.mxu0 0.0
    %3542 = vmatmul.mubr.f32.gmra.mxu0 %v3406
    %v3543 = vpop.f32.mrf.mxu0
    %v3544 = vadd.f32 0.0, %v3543
    %v3545 = vpop.f32.mrf.mxu0
    %3546 = vmatprep.mubr.f32.mxu0 0.0
    %3547 = vmatmul.mubr.f32.gmra.mxu0 %v3409
    %v3548 = vpop.f32.mrf.mxu0
    %v3549 = vadd.f32 0.0, %v3548
    %v3550 = vpop.f32.mrf.mxu0
    %3551 = vmatprep.mubr.f32.mxu0 0.0
    %3552 = vmatmul.mubr.f32.gmra.mxu0 %v3412
    %v3553 = vpop.f32.mrf.mxu0
    %v3554 = vadd.f32 0.0, %v3553
    %v3555 = vpop.f32.mrf.mxu0
    %3556 = vmatprep.mubr.f32.mxu0 0.0
    %3557 = vmatmul.mubr.f32.gmra.mxu0 %v3415
    %v3558 = vpop.f32.mrf.mxu0
    %v3559 = vadd.f32 0.0, %v3558
    %v3560 = vpop.f32.mrf.mxu0
    %3561 = vdwg.mxu0
    %v3562 = vadd.f32 %v3337, %v3484
    %v3563 = vadd.f32 %v3338, %v3489
    %v3564 = vadd.f32 %v3339, %v3494
    %v3565 = vadd.f32 %v3340, %v3499
    %v3566 = vadd.f32 %v3341, %v3504
    %v3567 = vadd.f32 %v3342, %v3509
    %v3568 = vadd.f32 %v3343, %v3514
    %v3569 = vadd.f32 %v3344, %v3519
    %v3570 = vadd.f32 %v3345, %v3524
    %v3571 = vadd.f32 %v3346, %v3529
    %v3572 = vadd.f32 %v3347, %v3534
    %v3573 = vadd.f32 %v3348, %v3539
    %v3574 = vadd.f32 %v3349, %v3544
    %v3575 = vadd.f32 %v3350, %v3549
    %v3576 = vadd.f32 %v3351, %v3554
    %v3577 = vadd.f32 %v3352, %v3559
    %v3578 = vld [vmem:[%s3] sm:$0xff]
    %v3579 = vld [vmem:[%s3 + $0x8] sm:$0xff]
    %v3580 = vld [vmem:[%s3 + $0x10] sm:$0xff]
    %v3581 = vld [vmem:[%s3 + $0x18] sm:$0xff]
    %v3582 = vld [vmem:[%s3 + $0x20] sm:$0xff]
    %v3583 = vld [vmem:[%s3 + $0x28] sm:$0xff]
    %v3584 = vld [vmem:[%s3 + $0x30] sm:$0xff]
    %v3585 = vld [vmem:[%s3 + $0x38] sm:$0xff]
    %v3586 = vld [vmem:[%s3 + $0x40] sm:$0xff]
    %v3587 = vld [vmem:[%s3 + $0x48] sm:$0xff]
    %v3588 = vld [vmem:[%s3 + $0x50] sm:$0xff]
    %v3589 = vld [vmem:[%s3 + $0x58] sm:$0xff]
    %v3590 = vld [vmem:[%s3 + $0x60] sm:$0xff]
    %v3591 = vld [vmem:[%s3 + $0x68] sm:$0xff]
    %v3592 = vld [vmem:[%s3 + $0x70] sm:$0xff]
    %v3593 = vld [vmem:[%s3 + $0x78] sm:$0xff]
    %vm3594 = vcmp.gt.f32.partialorder %v3578, 0.5
    %vm3595 = vcmp.gt.f32.partialorder %v3579, 0.5
    %vm3596 = vcmp.gt.f32.partialorder %v3580, 0.5
    %vm3597 = vcmp.gt.f32.partialorder %v3581, 0.5
    %vm3598 = vcmp.gt.f32.partialorder %v3582, 0.5
    %vm3599 = vcmp.gt.f32.partialorder %v3583, 0.5
    %vm3600 = vcmp.gt.f32.partialorder %v3584, 0.5
    %vm3601 = vcmp.gt.f32.partialorder %v3585, 0.5
    %vm3602 = vcmp.gt.f32.partialorder %v3586, 0.5
    %vm3603 = vcmp.gt.f32.partialorder %v3587, 0.5
    %vm3604 = vcmp.gt.f32.partialorder %v3588, 0.5
    %vm3605 = vcmp.gt.f32.partialorder %v3589, 0.5
    %vm3606 = vcmp.gt.f32.partialorder %v3590, 0.5
    %vm3607 = vcmp.gt.f32.partialorder %v3591, 0.5
    %vm3608 = vcmp.gt.f32.partialorder %v3592, 0.5
    %vm3609 = vcmp.gt.f32.partialorder %v3593, 0.5
    %v3610 = vsel %vm3594, %v3562, -1e+30
    %v3611 = vsel %vm3595, %v3563, -1e+30
    %v3612 = vsel %vm3596, %v3564, -1e+30
    %v3613 = vsel %vm3597, %v3565, -1e+30
    %v3614 = vsel %vm3598, %v3566, -1e+30
    %v3615 = vsel %vm3599, %v3567, -1e+30
    %v3616 = vsel %vm3600, %v3568, -1e+30
    %v3617 = vsel %vm3601, %v3569, -1e+30
    %v3618 = vsel %vm3602, %v3570, -1e+30
    %v3619 = vsel %vm3603, %v3571, -1e+30
    %v3620 = vsel %vm3604, %v3572, -1e+30
    %v3621 = vsel %vm3605, %v3573, -1e+30
    %v3622 = vsel %vm3606, %v3574, -1e+30
    %v3623 = vsel %vm3607, %v3575, -1e+30
    %v3624 = vsel %vm3608, %v3576, -1e+30
    %v3625 = vsel %vm3609, %v3577, -1e+30
    %v3626 = vsel %vm160, %v3610, -inf
    %3627 = vmax.xlane.f32.xlu0 %v3626
    %v3628 = vpop.xlane.xlu0 %3627
    %v3629 = vsel %vm160, %v3611, -inf
    %3630 = vmax.xlane.f32.xlu0 %v3629
    %v3631 = vpop.xlane.xlu0 %3630
    %v3632 = vsel %vm160, %v3612, -inf
    %3633 = vmax.xlane.f32.xlu0 %v3632
    %v3634 = vpop.xlane.xlu0 %3633
    %v3635 = vsel %vm160, %v3613, -inf
    %3636 = vmax.xlane.f32.xlu0 %v3635
    %v3637 = vpop.xlane.xlu0 %3636
    %v3638 = vsel %vm160, %v3614, -inf
    %3639 = vmax.xlane.f32.xlu0 %v3638
    %v3640 = vpop.xlane.xlu0 %3639
    %v3641 = vsel %vm160, %v3615, -inf
    %3642 = vmax.xlane.f32.xlu0 %v3641
    %v3643 = vpop.xlane.xlu0 %3642
    %v3644 = vsel %vm160, %v3616, -inf
    %3645 = vmax.xlane.f32.xlu0 %v3644
    %v3646 = vpop.xlane.xlu0 %3645
    %v3647 = vsel %vm160, %v3617, -inf
    %3648 = vmax.xlane.f32.xlu0 %v3647
    %v3649 = vpop.xlane.xlu0 %3648
    %v3650 = vsel %vm160, %v3618, -inf
    %3651 = vmax.xlane.f32.xlu0 %v3650
    %v3652 = vpop.xlane.xlu0 %3651
    %v3653 = vsel %vm160, %v3619, -inf
    %3654 = vmax.xlane.f32.xlu0 %v3653
    %v3655 = vpop.xlane.xlu0 %3654
    %v3656 = vsel %vm160, %v3620, -inf
    %3657 = vmax.xlane.f32.xlu0 %v3656
    %v3658 = vpop.xlane.xlu0 %3657
    %v3659 = vsel %vm160, %v3621, -inf
    %3660 = vmax.xlane.f32.xlu0 %v3659
    %v3661 = vpop.xlane.xlu0 %3660
    %v3662 = vsel %vm160, %v3622, -inf
    %3663 = vmax.xlane.f32.xlu0 %v3662
    %v3664 = vpop.xlane.xlu0 %3663
    %v3665 = vsel %vm160, %v3623, -inf
    %3666 = vmax.xlane.f32.xlu0 %v3665
    %v3667 = vpop.xlane.xlu0 %3666
    %v3668 = vsel %vm160, %v3624, -inf
    %3669 = vmax.xlane.f32.xlu0 %v3668
    %v3670 = vpop.xlane.xlu0 %3669
    %v3671 = vsel %vm160, %v3625, -inf
    %3672 = vmax.xlane.f32.xlu0 %v3671
    %v3673 = vpop.xlane.xlu0 %3672
    %v3674 = vsub.f32 %v3610, %v3628
    %v3675 = vsub.f32 %v3611, %v3631
    %v3676 = vsub.f32 %v3612, %v3634
    %v3677 = vsub.f32 %v3613, %v3637
    %v3678 = vsub.f32 %v3614, %v3640
    %v3679 = vsub.f32 %v3615, %v3643
    %v3680 = vsub.f32 %v3616, %v3646
    %v3681 = vsub.f32 %v3617, %v3649
    %v3682 = vsub.f32 %v3618, %v3652
    %v3683 = vsub.f32 %v3619, %v3655
    %v3684 = vsub.f32 %v3620, %v3658
    %v3685 = vsub.f32 %v3621, %v3661
    %v3686 = vsub.f32 %v3622, %v3664
    %v3687 = vsub.f32 %v3623, %v3667
    %v3688 = vsub.f32 %v3624, %v3670
    %v3689 = vsub.f32 %v3625, %v3673
    %v3690 = vmul.f32 %v3674, 1.442695
    %v3691 = vpow.pop %v3690
    %v3692 = vmul.f32 %v3675, 1.442695
    %v3693 = vpow.pop %v3692
    %v3694 = vmul.f32 %v3676, 1.442695
    %v3695 = vpow.pop %v3694
    %v3696 = vmul.f32 %v3677, 1.442695
    %v3697 = vpow.pop %v3696
    %v3698 = vmul.f32 %v3678, 1.442695
    %v3699 = vpow.pop %v3698
    %v3700 = vmul.f32 %v3679, 1.442695
    %v3701 = vpow.pop %v3700
    %v3702 = vmul.f32 %v3680, 1.442695
    %v3703 = vpow.pop %v3702
    %v3704 = vmul.f32 %v3681, 1.442695
    %v3705 = vpow.pop %v3704
    %v3706 = vmul.f32 %v3682, 1.442695
    %v3707 = vpow.pop %v3706
    %v3708 = vmul.f32 %v3683, 1.442695
    %v3709 = vpow.pop %v3708
    %v3710 = vmul.f32 %v3684, 1.442695
    %v3711 = vpow.pop %v3710
    %v3712 = vmul.f32 %v3685, 1.442695
    %v3713 = vpow.pop %v3712
    %v3714 = vmul.f32 %v3686, 1.442695
    %v3715 = vpow.pop %v3714
    %v3716 = vmul.f32 %v3687, 1.442695
    %v3717 = vpow.pop %v3716
    %v3718 = vmul.f32 %v3688, 1.442695
    %v3719 = vpow.pop %v3718
    %v3720 = vmul.f32 %v3689, 1.442695
    %v3721 = vpow.pop %v3720
    %v3722 = vld [vmem:[%s23] sm:$0xff]
    %v3723 = vld [vmem:[%s23 + $0x8] sm:$0xff]
    %v3724 = vld [vmem:[%s23 + $0x10] sm:$0xff]
    %v3725 = vld [vmem:[%s23 + $0x18] sm:$0xff]
    %v3727 = vsel %vm160, %v3691, 0
    %v3730 = vsel %vm160, %v3693, 0
    %v3733 = vsel %vm160, %v3695, 0
    %v3736 = vsel %vm160, %v3697, 0
    %v3739 = vsel %vm160, %v3699, 0
    %v3742 = vsel %vm160, %v3701, 0
    %v3745 = vsel %vm160, %v3703, 0
    %v3748 = vsel %vm160, %v3705, 0
    %v3751 = vsel %vm160, %v3707, 0
    %v3754 = vsel %vm160, %v3709, 0
    %v3757 = vsel %vm160, %v3711, 0
    %v3760 = vsel %vm160, %v3713, 0
    %v3763 = vsel %vm160, %v3715, 0
    %v3766 = vsel %vm160, %v3717, 0
    %v3769 = vsel %vm160, %v3719, 0
    %v3772 = vsel %vm160, %v3721, 0
    %3774 = vmatprep.subr.mxu0 0.0
    %3775 = vmatpush1.msra.mxu0 0.0
    %3776 = vmatprep.subr.mxu0 0.0
    %3777 = vmatpush1.msra.mxu0 0.0
    %3778 = vmatprep.subr.mxu0 0.0
    %3779 = vmatpush1.msra.mxu0 0.0
    %3780 = vmatprep.subr.mxu0 0.0
    %3781 = vmatpush1.msra.mxu0 0.0
    %3782 = vmatprep.subr.mxu0 0.0
    %3783 = vmatpush1.msra.mxu0 0.0
    %3784 = vmatprep.subr.mxu0 0.0
    %3785 = vmatpush1.msra.mxu0 0.0
    %3786 = vmatprep.subr.mxu0 0.0
    %3787 = vmatpush1.msra.mxu0 0.0
    %3788 = vmatprep.subr.mxu0 0.0
    %3789 = vmatpush1.msra.mxu0 0.0
    %3790 = vmatprep.subr.mxu0 0.0
    %3791 = vmatpush1.msra.mxu0 0.0
    %3792 = vmatprep.subr.mxu0 0.0
    %3793 = vmatpush1.msra.mxu0 0.0
    %3794 = vmatprep.subr.mxu0 0.0
    %3795 = vmatpush1.msra.mxu0 0.0
    %3796 = vmatprep.subr.mxu0 0.0
    %3797 = vmatpush1.msra.mxu0 0.0
    %3798 = vmatprep.subr.mxu0 0.0
    %3799 = vmatpush1.msra.mxu0 %v3725
    %3800 = vmatprep.subr.mxu0 0.0
    %3801 = vmatpush1.msra.mxu0 %v3724
    %3802 = vmatprep.subr.mxu0 0.0
    %3803 = vmatpush1.msra.mxu0 %v3723
    %3804 = vmatprep.subr.mxu0 0.0
    %3805 = vmatpush1.msra.mxu0 %v3722
    %3806 = vmatprep.subr.mxu0 0.0
    %3807 = vmatpush2.msra.mxu0 0.0
    %3808 = vmatprep.subr.mxu0 0.0
    %3809 = vmatpush2.msra.mxu0 0.0
    %3810 = vmatprep.subr.mxu0 0.0
    %3811 = vmatpush2.msra.mxu0 0.0
    %3812 = vmatprep.subr.mxu0 0.0
    %3813 = vmatpush2.msra.mxu0 0.0
    %3814 = vmatprep.subr.mxu0 0.0
    %3815 = vmatpush2.msra.mxu0 0.0
    %3816 = vmatprep.subr.mxu0 0.0
    %3817 = vmatpush2.msra.mxu0 0.0
    %3818 = vmatprep.subr.mxu0 0.0
    %3819 = vmatpush2.msra.mxu0 0.0
    %3820 = vmatprep.subr.mxu0 0.0
    %3821 = vmatpush2.msra.mxu0 0.0
    %3822 = vmatprep.subr.mxu0 0.0
    %3823 = vmatpush2.msra.mxu0 0.0
    %3824 = vmatprep.subr.mxu0 0.0
    %3825 = vmatpush2.msra.mxu0 0.0
    %3826 = vmatprep.subr.mxu0 0.0
    %3827 = vmatpush2.msra.mxu0 0.0
    %3828 = vmatprep.subr.mxu0 0.0
    %3829 = vmatpush2.msra.mxu0 0.0
    %3830 = vmatprep.subr.mxu0 0.0
    %3831 = vmatpush2.msra.mxu0 0.0
    %3832 = vmatprep.subr.mxu0 0.0
    %3833 = vmatpush2.msra.mxu0 0.0
    %3834 = vmatprep.subr.mxu0 0.0
    %3835 = vmatpush2.msra.mxu0 0.0
    %3836 = vmatprep.subr.mxu0 0.0
    %3837 = vmatpush2.msra.mxu0 0.0
    %3838 = vmatprep.mubr.f32.mxu0 0.0
    %3839 = vmatmul.mubr.f32.gmra.mxu0 %v3727
    %v3840 = vpop.f32.mrf.mxu0
    %v3841 = vadd.f32 0.0, %v3840
    %v3842 = vpop.f32.mrf.mxu0
    %3843 = vmatprep.mubr.f32.mxu0 0.0
    %3844 = vmatmul.mubr.f32.gmra.mxu0 %v3730
    %v3845 = vpop.f32.mrf.mxu0
    %v3846 = vadd.f32 0.0, %v3845
    %v3847 = vpop.f32.mrf.mxu0
    %3848 = vmatprep.mubr.f32.mxu0 0.0
    %3849 = vmatmul.mubr.f32.gmra.mxu0 %v3733
    %v3850 = vpop.f32.mrf.mxu0
    %v3851 = vadd.f32 0.0, %v3850
    %v3852 = vpop.f32.mrf.mxu0
    %3853 = vmatprep.mubr.f32.mxu0 0.0
    %3854 = vmatmul.mubr.f32.gmra.mxu0 %v3736
    %v3855 = vpop.f32.mrf.mxu0
    %v3856 = vadd.f32 0.0, %v3855
    %v3857 = vpop.f32.mrf.mxu0
    %3858 = vmatprep.mubr.f32.mxu0 0.0
    %3859 = vmatmul.mubr.f32.gmra.mxu0 %v3739
    %v3860 = vpop.f32.mrf.mxu0
    %v3861 = vadd.f32 0.0, %v3860
    %v3862 = vpop.f32.mrf.mxu0
    %3863 = vmatprep.mubr.f32.mxu0 0.0
    %3864 = vmatmul.mubr.f32.gmra.mxu0 %v3742
    %v3865 = vpop.f32.mrf.mxu0
    %v3866 = vadd.f32 0.0, %v3865
    %v3867 = vpop.f32.mrf.mxu0
    %3868 = vmatprep.mubr.f32.mxu0 0.0
    %3869 = vmatmul.mubr.f32.gmra.mxu0 %v3745
    %v3870 = vpop.f32.mrf.mxu0
    %v3871 = vadd.f32 0.0, %v3870
    %v3872 = vpop.f32.mrf.mxu0
    %3873 = vmatprep.mubr.f32.mxu0 0.0
    %3874 = vmatmul.mubr.f32.gmra.mxu0 %v3748
    %v3875 = vpop.f32.mrf.mxu0
    %v3876 = vadd.f32 0.0, %v3875
    %v3877 = vpop.f32.mrf.mxu0
    %3878 = vmatprep.mubr.f32.mxu0 0.0
    %3879 = vmatmul.mubr.f32.gmra.mxu0 %v3751
    %v3880 = vpop.f32.mrf.mxu0
    %v3881 = vadd.f32 0.0, %v3880
    %v3882 = vpop.f32.mrf.mxu0
    %3883 = vmatprep.mubr.f32.mxu0 0.0
    %3884 = vmatmul.mubr.f32.gmra.mxu0 %v3754
    %v3885 = vpop.f32.mrf.mxu0
    %v3886 = vadd.f32 0.0, %v3885
    %v3887 = vpop.f32.mrf.mxu0
    %3888 = vmatprep.mubr.f32.mxu0 0.0
    %3889 = vmatmul.mubr.f32.gmra.mxu0 %v3757
    %v3890 = vpop.f32.mrf.mxu0
    %v3891 = vadd.f32 0.0, %v3890
    %v3892 = vpop.f32.mrf.mxu0
    %3893 = vmatprep.mubr.f32.mxu0 0.0
    %3894 = vmatmul.mubr.f32.gmra.mxu0 %v3760
    %v3895 = vpop.f32.mrf.mxu0
    %v3896 = vadd.f32 0.0, %v3895
    %v3897 = vpop.f32.mrf.mxu0
    %3898 = vmatprep.mubr.f32.mxu0 0.0
    %3899 = vmatmul.mubr.f32.gmra.mxu0 %v3763
    %v3900 = vpop.f32.mrf.mxu0
    %v3901 = vadd.f32 0.0, %v3900
    %v3902 = vpop.f32.mrf.mxu0
    %3903 = vmatprep.mubr.f32.mxu0 0.0
    %3904 = vmatmul.mubr.f32.gmra.mxu0 %v3766
    %v3905 = vpop.f32.mrf.mxu0
    %v3906 = vadd.f32 0.0, %v3905
    %v3907 = vpop.f32.mrf.mxu0
    %3908 = vmatprep.mubr.f32.mxu0 0.0
    %3909 = vmatmul.mubr.f32.gmra.mxu0 %v3769
    %v3910 = vpop.f32.mrf.mxu0
    %v3911 = vadd.f32 0.0, %v3910
    %v3912 = vpop.f32.mrf.mxu0
    %3913 = vmatprep.mubr.f32.mxu0 0.0
    %3914 = vmatmul.mubr.f32.gmra.mxu0 %v3772
    %v3915 = vpop.f32.mrf.mxu0
    %v3916 = vadd.f32 0.0, %v3915
    %v3917 = vpop.f32.mrf.mxu0
    %3918 = vdwg.mxu0
    %v3920 = vsel %vm160, %v1707, 0
    %v3923 = vsel %vm160, %v1708, 0
    %v3926 = vsel %vm160, %v1709, 0
    %v3929 = vsel %vm160, %v1710, 0
    %3931 = vmatprep.subr.mxu0 0.0
    %3932 = vmatpush1.xpose.msra.mxu0 0.0
    %3933 = vmatprep.subr.mxu0 0.0
    %3934 = vmatpush1.xpose.msra.mxu0 0.0
    %3935 = vmatprep.subr.mxu0 0.0
    %3936 = vmatpush1.xpose.msra.mxu0 0.0
    %3937 = vmatprep.subr.mxu0 0.0
    %3938 = vmatpush1.xpose.msra.mxu0 0.0
    %3939 = vmatprep.subr.mxu0 0.0
    %3940 = vmatpush1.xpose.msra.mxu0 0.0
    %3941 = vmatprep.subr.mxu0 0.0
    %3942 = vmatpush1.xpose.msra.mxu0 0.0
    %3943 = vmatprep.subr.mxu0 0.0
    %3944 = vmatpush1.xpose.msra.mxu0 0.0
    %3945 = vmatprep.subr.mxu0 0.0
    %3946 = vmatpush1.xpose.msra.mxu0 0.0
    %3947 = vmatprep.subr.mxu0 0.0
    %3948 = vmatpush1.xpose.msra.mxu0 0.0
    %3949 = vmatprep.subr.mxu0 0.0
    %3950 = vmatpush1.xpose.msra.mxu0 0.0
    %3951 = vmatprep.subr.mxu0 0.0
    %3952 = vmatpush1.xpose.msra.mxu0 0.0
    %3953 = vmatprep.subr.mxu0 0.0
    %3954 = vmatpush1.xpose.msra.mxu0 0.0
    %3955 = vmatprep.subr.mxu0 0.0
    %3956 = vmatpush1.xpose.msra.mxu0 %v3929
    %3957 = vmatprep.subr.mxu0 0.0
    %3958 = vmatpush1.xpose.msra.mxu0 %v3926
    %3959 = vmatprep.subr.mxu0 0.0
    %3960 = vmatpush1.xpose.msra.mxu0 %v3923
    %3961 = vmatprep.subr.mxu0 0.0
    %3962 = vmatpush1.xpose.msra.mxu0 %v3920
    %3963 = vmatprep.subr.mxu0 0.0
    %3964 = vmatpush2.xpose.msra.mxu0 0.0
    %3965 = vmatprep.subr.mxu0 0.0
    %3966 = vmatpush2.xpose.msra.mxu0 0.0
    %3967 = vmatprep.subr.mxu0 0.0
    %3968 = vmatpush2.xpose.msra.mxu0 0.0
    %3969 = vmatprep.subr.mxu0 0.0
    %3970 = vmatpush2.xpose.msra.mxu0 0.0
    %3971 = vmatprep.subr.mxu0 0.0
    %3972 = vmatpush2.xpose.msra.mxu0 0.0
    %3973 = vmatprep.subr.mxu0 0.0
    %3974 = vmatpush2.xpose.msra.mxu0 0.0
    %3975 = vmatprep.subr.mxu0 0.0
    %3976 = vmatpush2.xpose.msra.mxu0 0.0
    %3977 = vmatprep.subr.mxu0 0.0
    %3978 = vmatpush2.xpose.msra.mxu0 0.0
    %3979 = vmatprep.subr.mxu0 0.0
    %3980 = vmatpush2.xpose.msra.mxu0 0.0
    %3981 = vmatprep.subr.mxu0 0.0
    %3982 = vmatpush2.xpose.msra.mxu0 0.0
    %3983 = vmatprep.subr.mxu0 0.0
    %3984 = vmatpush2.xpose.msra.mxu0 0.0
    %3985 = vmatprep.subr.mxu0 0.0
    %3986 = vmatpush2.xpose.msra.mxu0 0.0
    %3987 = vmatprep.subr.mxu0 0.0
    %3988 = vmatpush2.xpose.msra.mxu0 0.0
    %3989 = vmatprep.subr.mxu0 0.0
    %3990 = vmatpush2.xpose.msra.mxu0 0.0
    %3991 = vmatprep.subr.mxu0 0.0
    %3992 = vmatpush2.xpose.msra.mxu0 0.0
    %3993 = vmatprep.subr.mxu0 0.0
    %3994 = vmatpush2.xpose.msra.mxu0 0.0
    %3995 = vmatprep.mubr.f32.mxu0 0.0
    %3996 = vmatmul.mubr.f32.gmra.mxu0 %v3727
    %v3997 = vpop.f32.mrf.mxu0
    %v3998 = vadd.f32 0.0, %v3997
    %v3999 = vpop.f32.mrf.mxu0
    %4000 = vmatprep.mubr.f32.mxu0 0.0
    %4001 = vmatmul.mubr.f32.gmra.mxu0 %v3730
    %v4002 = vpop.f32.mrf.mxu0
    %v4003 = vadd.f32 0.0, %v4002
    %v4004 = vpop.f32.mrf.mxu0
    %4005 = vmatprep.mubr.f32.mxu0 0.0
    %4006 = vmatmul.mubr.f32.gmra.mxu0 %v3733
    %v4007 = vpop.f32.mrf.mxu0
    %v4008 = vadd.f32 0.0, %v4007
    %v4009 = vpop.f32.mrf.mxu0
    %4010 = vmatprep.mubr.f32.mxu0 0.0
    %4011 = vmatmul.mubr.f32.gmra.mxu0 %v3736
    %v4012 = vpop.f32.mrf.mxu0
    %v4013 = vadd.f32 0.0, %v4012
    %v4014 = vpop.f32.mrf.mxu0
    %4015 = vmatprep.mubr.f32.mxu0 0.0
    %4016 = vmatmul.mubr.f32.gmra.mxu0 %v3739
    %v4017 = vpop.f32.mrf.mxu0
    %v4018 = vadd.f32 0.0, %v4017
    %v4019 = vpop.f32.mrf.mxu0
    %4020 = vmatprep.mubr.f32.mxu0 0.0
    %4021 = vmatmul.mubr.f32.gmra.mxu0 %v3742
    %v4022 = vpop.f32.mrf.mxu0
    %v4023 = vadd.f32 0.0, %v4022
    %v4024 = vpop.f32.mrf.mxu0
    %4025 = vmatprep.mubr.f32.mxu0 0.0
    %4026 = vmatmul.mubr.f32.gmra.mxu0 %v3745
    %v4027 = vpop.f32.mrf.mxu0
    %v4028 = vadd.f32 0.0, %v4027
    %v4029 = vpop.f32.mrf.mxu0
    %4030 = vmatprep.mubr.f32.mxu0 0.0
    %4031 = vmatmul.mubr.f32.gmra.mxu0 %v3748
    %v4032 = vpop.f32.mrf.mxu0
    %v4033 = vadd.f32 0.0, %v4032
    %v4034 = vpop.f32.mrf.mxu0
    %4035 = vmatprep.mubr.f32.mxu0 0.0
    %4036 = vmatmul.mubr.f32.gmra.mxu0 %v3751
    %v4037 = vpop.f32.mrf.mxu0
    %v4038 = vadd.f32 0.0, %v4037
    %v4039 = vpop.f32.mrf.mxu0
    %4040 = vmatprep.mubr.f32.mxu0 0.0
    %4041 = vmatmul.mubr.f32.gmra.mxu0 %v3754
    %v4042 = vpop.f32.mrf.mxu0
    %v4043 = vadd.f32 0.0, %v4042
    %v4044 = vpop.f32.mrf.mxu0
    %4045 = vmatprep.mubr.f32.mxu0 0.0
    %4046 = vmatmul.mubr.f32.gmra.mxu0 %v3757
    %v4047 = vpop.f32.mrf.mxu0
    %v4048 = vadd.f32 0.0, %v4047
    %v4049 = vpop.f32.mrf.mxu0
    %4050 = vmatprep.mubr.f32.mxu0 0.0
    %4051 = vmatmul.mubr.f32.gmra.mxu0 %v3760
    %v4052 = vpop.f32.mrf.mxu0
    %v4053 = vadd.f32 0.0, %v4052
    %v4054 = vpop.f32.mrf.mxu0
    %4055 = vmatprep.mubr.f32.mxu0 0.0
    %4056 = vmatmul.mubr.f32.gmra.mxu0 %v3763
    %v4057 = vpop.f32.mrf.mxu0
    %v4058 = vadd.f32 0.0, %v4057
    %v4059 = vpop.f32.mrf.mxu0
    %4060 = vmatprep.mubr.f32.mxu0 0.0
    %4061 = vmatmul.mubr.f32.gmra.mxu0 %v3766
    %v4062 = vpop.f32.mrf.mxu0
    %v4063 = vadd.f32 0.0, %v4062
    %v4064 = vpop.f32.mrf.mxu0
    %4065 = vmatprep.mubr.f32.mxu0 0.0
    %4066 = vmatmul.mubr.f32.gmra.mxu0 %v3769
    %v4067 = vpop.f32.mrf.mxu0
    %v4068 = vadd.f32 0.0, %v4067
    %v4069 = vpop.f32.mrf.mxu0
    %4070 = vmatprep.mubr.f32.mxu0 0.0
    %4071 = vmatmul.mubr.f32.gmra.mxu0 %v3772
    %v4072 = vpop.f32.mrf.mxu0
    %v4073 = vadd.f32 0.0, %v4072
    %v4074 = vpop.f32.mrf.mxu0
    %4075 = vdwg.mxu0
    %4076 = vrot.lane.b32.xlu0 %v1629, 64
    %v4077 = vpop.permute.xlu0 %4076
    %4078 = vrot.lane.b32.xlu0 %v1634, 64
    %v4079 = vpop.permute.xlu0 %4078
    %4080 = vrot.lane.b32.xlu0 %v1639, 64
    %v4081 = vpop.permute.xlu0 %4080
    %4082 = vrot.lane.b32.xlu0 %v1644, 64
    %v4083 = vpop.permute.xlu0 %4082
    %4084 = vrot.lane.b32.xlu0 %v1649, 64
    %v4085 = vpop.permute.xlu0 %4084
    %4086 = vrot.lane.b32.xlu0 %v1654, 64
    %v4087 = vpop.permute.xlu0 %4086
    %4088 = vrot.lane.b32.xlu0 %v1659, 64
    %v4089 = vpop.permute.xlu0 %4088
    %4090 = vrot.lane.b32.xlu0 %v1664, 64
    %v4091 = vpop.permute.xlu0 %4090
    %4092 = vrot.lane.b32.xlu0 %v1669, 64
    %v4093 = vpop.permute.xlu0 %4092
    %4094 = vrot.lane.b32.xlu0 %v1674, 64
    %v4095 = vpop.permute.xlu0 %4094
    %4096 = vrot.lane.b32.xlu0 %v1679, 64
    %v4097 = vpop.permute.xlu0 %4096
    %4098 = vrot.lane.b32.xlu0 %v1684, 64
    %v4099 = vpop.permute.xlu0 %4098
    %4100 = vrot.lane.b32.xlu0 %v1689, 64
    %v4101 = vpop.permute.xlu0 %4100
    %4102 = vrot.lane.b32.xlu0 %v1694, 64
    %v4103 = vpop.permute.xlu0 %4102
    %4104 = vrot.lane.b32.xlu0 %v1699, 64
    %v4105 = vpop.permute.xlu0 %4104
    %4106 = vrot.lane.b32.xlu0 %v1704, 64
    %v4107 = vpop.permute.xlu0 %4106
    %v4124 = vmul.f32 %v3998, %v4077
    %v4125 = vmul.f32 %v4003, %v4079
    %v4126 = vmul.f32 %v4008, %v4081
    %v4127 = vmul.f32 %v4013, %v4083
    %v4128 = vmul.f32 %v4018, %v4085
    %v4129 = vmul.f32 %v4023, %v4087
    %v4130 = vmul.f32 %v4028, %v4089
    %v4131 = vmul.f32 %v4033, %v4091
    %v4132 = vmul.f32 %v4038, %v4093
    %v4133 = vmul.f32 %v4043, %v4095
    %v4134 = vmul.f32 %v4048, %v4097
    %v4135 = vmul.f32 %v4053, %v4099
    %v4136 = vmul.f32 %v4058, %v4101
    %v4137 = vmul.f32 %v4063, %v4103
    %v4138 = vmul.f32 %v4068, %v4105
    %v4139 = vmul.f32 %v4073, %v4107
    %v4140 = vadd.f32 %v4124, 0.0
    %v4141 = vadd.f32 %v4125, 0.0
    %v4142 = vadd.f32 %v4126, 0.0
    %v4143 = vadd.f32 %v4127, 0.0
    %v4144 = vadd.f32 %v4128, 0.0
    %v4145 = vadd.f32 %v4129, 0.0
    %v4146 = vadd.f32 %v4130, 0.0
    %v4147 = vadd.f32 %v4131, 0.0
    %v4148 = vadd.f32 %v4132, 0.0
    %v4149 = vadd.f32 %v4133, 0.0
    %v4150 = vadd.f32 %v4134, 0.0
    %v4151 = vadd.f32 %v4135, 0.0
    %v4152 = vadd.f32 %v4136, 0.0
    %v4153 = vadd.f32 %v4137, 0.0
    %v4154 = vadd.f32 %v4138, 0.0
    %v4155 = vadd.f32 %v4139, 0.0
    %v4157 = vsel %vm160, %v1712, 0
    %v4160 = vsel %vm160, %v1713, 0
    %v4163 = vsel %vm160, %v1714, 0
    %v4166 = vsel %vm160, %v1715, 0
    %4168 = vmatprep.subr.mxu0 0.0
    %4169 = vmatpush1.xpose.msra.mxu0 0.0
    %4170 = vmatprep.subr.mxu0 0.0
    %4171 = vmatpush1.xpose.msra.mxu0 0.0
    %4172 = vmatprep.subr.mxu0 0.0
    %4173 = vmatpush1.xpose.msra.mxu0 0.0
    %4174 = vmatprep.subr.mxu0 0.0
    %4175 = vmatpush1.xpose.msra.mxu0 0.0
    %4176 = vmatprep.subr.mxu0 0.0
    %4177 = vmatpush1.xpose.msra.mxu0 0.0
    %4178 = vmatprep.subr.mxu0 0.0
    %4179 = vmatpush1.xpose.msra.mxu0 0.0
    %4180 = vmatprep.subr.mxu0 0.0
    %4181 = vmatpush1.xpose.msra.mxu0 0.0
    %4182 = vmatprep.subr.mxu0 0.0
    %4183 = vmatpush1.xpose.msra.mxu0 0.0
    %4184 = vmatprep.subr.mxu0 0.0
    %4185 = vmatpush1.xpose.msra.mxu0 0.0
    %4186 = vmatprep.subr.mxu0 0.0
    %4187 = vmatpush1.xpose.msra.mxu0 0.0
    %4188 = vmatprep.subr.mxu0 0.0
    %4189 = vmatpush1.xpose.msra.mxu0 0.0
    %4190 = vmatprep.subr.mxu0 0.0
    %4191 = vmatpush1.xpose.msra.mxu0 0.0
    %4192 = vmatprep.subr.mxu0 0.0
    %4193 = vmatpush1.xpose.msra.mxu0 %v4166
    %4194 = vmatprep.subr.mxu0 0.0
    %4195 = vmatpush1.xpose.msra.mxu0 %v4163
    %4196 = vmatprep.subr.mxu0 0.0
    %4197 = vmatpush1.xpose.msra.mxu0 %v4160
    %4198 = vmatprep.subr.mxu0 0.0
    %4199 = vmatpush1.xpose.msra.mxu0 %v4157
    %4200 = vmatprep.subr.mxu0 0.0
    %4201 = vmatpush2.xpose.msra.mxu0 0.0
    %4202 = vmatprep.subr.mxu0 0.0
    %4203 = vmatpush2.xpose.msra.mxu0 0.0
    %4204 = vmatprep.subr.mxu0 0.0
    %4205 = vmatpush2.xpose.msra.mxu0 0.0
    %4206 = vmatprep.subr.mxu0 0.0
    %4207 = vmatpush2.xpose.msra.mxu0 0.0
    %4208 = vmatprep.subr.mxu0 0.0
    %4209 = vmatpush2.xpose.msra.mxu0 0.0
    %4210 = vmatprep.subr.mxu0 0.0
    %4211 = vmatpush2.xpose.msra.mxu0 0.0
    %4212 = vmatprep.subr.mxu0 0.0
    %4213 = vmatpush2.xpose.msra.mxu0 0.0
    %4214 = vmatprep.subr.mxu0 0.0
    %4215 = vmatpush2.xpose.msra.mxu0 0.0
    %4216 = vmatprep.subr.mxu0 0.0
    %4217 = vmatpush2.xpose.msra.mxu0 0.0
    %4218 = vmatprep.subr.mxu0 0.0
    %4219 = vmatpush2.xpose.msra.mxu0 0.0
    %4220 = vmatprep.subr.mxu0 0.0
    %4221 = vmatpush2.xpose.msra.mxu0 0.0
    %4222 = vmatprep.subr.mxu0 0.0
    %4223 = vmatpush2.xpose.msra.mxu0 0.0
    %4224 = vmatprep.subr.mxu0 0.0
    %4225 = vmatpush2.xpose.msra.mxu0 0.0
    %4226 = vmatprep.subr.mxu0 0.0
    %4227 = vmatpush2.xpose.msra.mxu0 0.0
    %4228 = vmatprep.subr.mxu0 0.0
    %4229 = vmatpush2.xpose.msra.mxu0 0.0
    %4230 = vmatprep.subr.mxu0 0.0
    %4231 = vmatpush2.xpose.msra.mxu0 0.0
    %4232 = vmatprep.mubr.f32.mxu0 0.0
    %4233 = vmatmul.mubr.f32.gmra.mxu0 %v3727
    %v4234 = vpop.f32.mrf.mxu0
    %v4235 = vadd.f32 0.0, %v4234
    %v4236 = vpop.f32.mrf.mxu0
    %4237 = vmatprep.mubr.f32.mxu0 0.0
    %4238 = vmatmul.mubr.f32.gmra.mxu0 %v3730
    %v4239 = vpop.f32.mrf.mxu0
    %v4240 = vadd.f32 0.0, %v4239
    %v4241 = vpop.f32.mrf.mxu0
    %4242 = vmatprep.mubr.f32.mxu0 0.0
    %4243 = vmatmul.mubr.f32.gmra.mxu0 %v3733
    %v4244 = vpop.f32.mrf.mxu0
    %v4245 = vadd.f32 0.0, %v4244
    %v4246 = vpop.f32.mrf.mxu0
    %4247 = vmatprep.mubr.f32.mxu0 0.0
    %4248 = vmatmul.mubr.f32.gmra.mxu0 %v3736
    %v4249 = vpop.f32.mrf.mxu0
    %v4250 = vadd.f32 0.0, %v4249
    %v4251 = vpop.f32.mrf.mxu0
    %4252 = vmatprep.mubr.f32.mxu0 0.0
    %4253 = vmatmul.mubr.f32.gmra.mxu0 %v3739
    %v4254 = vpop.f32.mrf.mxu0
    %v4255 = vadd.f32 0.0, %v4254
    %v4256 = vpop.f32.mrf.mxu0
    %4257 = vmatprep.mubr.f32.mxu0 0.0
    %4258 = vmatmul.mubr.f32.gmra.mxu0 %v3742
    %v4259 = vpop.f32.mrf.mxu0
    %v4260 = vadd.f32 0.0, %v4259
    %v4261 = vpop.f32.mrf.mxu0
    %4262 = vmatprep.mubr.f32.mxu0 0.0
    %4263 = vmatmul.mubr.f32.gmra.mxu0 %v3745
    %v4264 = vpop.f32.mrf.mxu0
    %v4265 = vadd.f32 0.0, %v4264
    %v4266 = vpop.f32.mrf.mxu0
    %4267 = vmatprep.mubr.f32.mxu0 0.0
    %4268 = vmatmul.mubr.f32.gmra.mxu0 %v3748
    %v4269 = vpop.f32.mrf.mxu0
    %v4270 = vadd.f32 0.0, %v4269
    %v4271 = vpop.f32.mrf.mxu0
    %4272 = vmatprep.mubr.f32.mxu0 0.0
    %4273 = vmatmul.mubr.f32.gmra.mxu0 %v3751
    %v4274 = vpop.f32.mrf.mxu0
    %v4275 = vadd.f32 0.0, %v4274
    %v4276 = vpop.f32.mrf.mxu0
    %4277 = vmatprep.mubr.f32.mxu0 0.0
    %4278 = vmatmul.mubr.f32.gmra.mxu0 %v3754
    %v4279 = vpop.f32.mrf.mxu0
    %v4280 = vadd.f32 0.0, %v4279
    %v4281 = vpop.f32.mrf.mxu0
    %4282 = vmatprep.mubr.f32.mxu0 0.0
    %4283 = vmatmul.mubr.f32.gmra.mxu0 %v3757
    %v4284 = vpop.f32.mrf.mxu0
    %v4285 = vadd.f32 0.0, %v4284
    %v4286 = vpop.f32.mrf.mxu0
    %4287 = vmatprep.mubr.f32.mxu0 0.0
    %4288 = vmatmul.mubr.f32.gmra.mxu0 %v3760
    %v4289 = vpop.f32.mrf.mxu0
    %v4290 = vadd.f32 0.0, %v4289
    %v4291 = vpop.f32.mrf.mxu0
    %4292 = vmatprep.mubr.f32.mxu0 0.0
    %4293 = vmatmul.mubr.f32.gmra.mxu0 %v3763
    %v4294 = vpop.f32.mrf.mxu0
    %v4295 = vadd.f32 0.0, %v4294
    %v4296 = vpop.f32.mrf.mxu0
    %4297 = vmatprep.mubr.f32.mxu0 0.0
    %4298 = vmatmul.mubr.f32.gmra.mxu0 %v3766
    %v4299 = vpop.f32.mrf.mxu0
    %v4300 = vadd.f32 0.0, %v4299
    %v4301 = vpop.f32.mrf.mxu0
    %4302 = vmatprep.mubr.f32.mxu0 0.0
    %4303 = vmatmul.mubr.f32.gmra.mxu0 %v3769
    %v4304 = vpop.f32.mrf.mxu0
    %v4305 = vadd.f32 0.0, %v4304
    %v4306 = vpop.f32.mrf.mxu0
    %4307 = vmatprep.mubr.f32.mxu0 0.0
    %4308 = vmatmul.mubr.f32.gmra.mxu0 %v3772
    %v4309 = vpop.f32.mrf.mxu0
    %v4310 = vadd.f32 0.0, %v4309
    %v4311 = vpop.f32.mrf.mxu0
    %4312 = vdwg.mxu0
    %v4313 = vmul.f32 %v4235, %v4081
    %v4314 = vmul.f32 %v4240, %v4083
    %v4315 = vmul.f32 %v4245, %v4085
    %v4316 = vmul.f32 %v4250, %v4087
    %v4317 = vmul.f32 %v4255, %v4089
    %v4318 = vmul.f32 %v4260, %v4091
    %v4319 = vmul.f32 %v4265, %v4093
    %v4320 = vmul.f32 %v4270, %v4095
    %v4321 = vmul.f32 %v4275, %v4097
    %v4322 = vmul.f32 %v4280, %v4099
    %v4323 = vmul.f32 %v4285, %v4101
    %v4324 = vmul.f32 %v4290, %v4103
    %v4325 = vmul.f32 %v4295, %v4105
    %v4326 = vmul.f32 %v4300, %v4107
    %v4327 = vmul.f32 %v4305, %v4077
    %v4328 = vmul.f32 %v4310, %v4079
    %v4329 = vadd.f32 %v4140, %v4313
    %v4330 = vadd.f32 %v4141, %v4314
    %v4331 = vadd.f32 %v4142, %v4315
    %v4332 = vadd.f32 %v4143, %v4316
    %v4333 = vadd.f32 %v4144, %v4317
    %v4334 = vadd.f32 %v4145, %v4318
    %v4335 = vadd.f32 %v4146, %v4319
    %v4336 = vadd.f32 %v4147, %v4320
    %v4337 = vadd.f32 %v4148, %v4321
    %v4338 = vadd.f32 %v4149, %v4322
    %v4339 = vadd.f32 %v4150, %v4323
    %v4340 = vadd.f32 %v4151, %v4324
    %v4341 = vadd.f32 %v4152, %v4325
    %v4342 = vadd.f32 %v4153, %v4326
    %v4343 = vadd.f32 %v4154, %v4327
    %v4344 = vadd.f32 %v4155, %v4328
    %v4346 = vsel %vm160, %v1717, 0
    %v4349 = vsel %vm160, %v1718, 0
    %v4352 = vsel %vm160, %v1719, 0
    %v4355 = vsel %vm160, %v1720, 0
    %4357 = vmatprep.subr.mxu0 0.0
    %4358 = vmatpush1.xpose.msra.mxu0 0.0
    %4359 = vmatprep.subr.mxu0 0.0
    %4360 = vmatpush1.xpose.msra.mxu0 0.0
    %4361 = vmatprep.subr.mxu0 0.0
    %4362 = vmatpush1.xpose.msra.mxu0 0.0
    %4363 = vmatprep.subr.mxu0 0.0
    %4364 = vmatpush1.xpose.msra.mxu0 0.0
    %4365 = vmatprep.subr.mxu0 0.0
    %4366 = vmatpush1.xpose.msra.mxu0 0.0
    %4367 = vmatprep.subr.mxu0 0.0
    %4368 = vmatpush1.xpose.msra.mxu0 0.0
    %4369 = vmatprep.subr.mxu0 0.0
    %4370 = vmatpush1.xpose.msra.mxu0 0.0
    %4371 = vmatprep.subr.mxu0 0.0
    %4372 = vmatpush1.xpose.msra.mxu0 0.0
    %4373 = vmatprep.subr.mxu0 0.0
    %4374 = vmatpush1.xpose.msra.mxu0 0.0
    %4375 = vmatprep.subr.mxu0 0.0
    %4376 = vmatpush1.xpose.msra.mxu0 0.0
    %4377 = vmatprep.subr.mxu0 0.0
    %4378 = vmatpush1.xpose.msra.mxu0 0.0
    %4379 = vmatprep.subr.mxu0 0.0
    %4380 = vmatpush1.xpose.msra.mxu0 0.0
    %4381 = vmatprep.subr.mxu0 0.0
    %4382 = vmatpush1.xpose.msra.mxu0 %v4355
    %4383 = vmatprep.subr.mxu0 0.0
    %4384 = vmatpush1.xpose.msra.mxu0 %v4352
    %4385 = vmatprep.subr.mxu0 0.0
    %4386 = vmatpush1.xpose.msra.mxu0 %v4349
    %4387 = vmatprep.subr.mxu0 0.0
    %4388 = vmatpush1.xpose.msra.mxu0 %v4346
    %4389 = vmatprep.subr.mxu0 0.0
    %4390 = vmatpush2.xpose.msra.mxu0 0.0
    %4391 = vmatprep.subr.mxu0 0.0
    %4392 = vmatpush2.xpose.msra.mxu0 0.0
    %4393 = vmatprep.subr.mxu0 0.0
    %4394 = vmatpush2.xpose.msra.mxu0 0.0
    %4395 = vmatprep.subr.mxu0 0.0
    %4396 = vmatpush2.xpose.msra.mxu0 0.0
    %4397 = vmatprep.subr.mxu0 0.0
    %4398 = vmatpush2.xpose.msra.mxu0 0.0
    %4399 = vmatprep.subr.mxu0 0.0
    %4400 = vmatpush2.xpose.msra.mxu0 0.0
    %4401 = vmatprep.subr.mxu0 0.0
    %4402 = vmatpush2.xpose.msra.mxu0 0.0
    %4403 = vmatprep.subr.mxu0 0.0
    %4404 = vmatpush2.xpose.msra.mxu0 0.0
    %4405 = vmatprep.subr.mxu0 0.0
    %4406 = vmatpush2.xpose.msra.mxu0 0.0
    %4407 = vmatprep.subr.mxu0 0.0
    %4408 = vmatpush2.xpose.msra.mxu0 0.0
    %4409 = vmatprep.subr.mxu0 0.0
    %4410 = vmatpush2.xpose.msra.mxu0 0.0
    %4411 = vmatprep.subr.mxu0 0.0
    %4412 = vmatpush2.xpose.msra.mxu0 0.0
    %4413 = vmatprep.subr.mxu0 0.0
    %4414 = vmatpush2.xpose.msra.mxu0 0.0
    %4415 = vmatprep.subr.mxu0 0.0
    %4416 = vmatpush2.xpose.msra.mxu0 0.0
    %4417 = vmatprep.subr.mxu0 0.0
    %4418 = vmatpush2.xpose.msra.mxu0 0.0
    %4419 = vmatprep.subr.mxu0 0.0
    %4420 = vmatpush2.xpose.msra.mxu0 0.0
    %4421 = vmatprep.mubr.f32.mxu0 0.0
    %4422 = vmatmul.mubr.f32.gmra.mxu0 %v3727
    %v4423 = vpop.f32.mrf.mxu0
    %v4424 = vadd.f32 0.0, %v4423
    %v4425 = vpop.f32.mrf.mxu0
    %4426 = vmatprep.mubr.f32.mxu0 0.0
    %4427 = vmatmul.mubr.f32.gmra.mxu0 %v3730
    %v4428 = vpop.f32.mrf.mxu0
    %v4429 = vadd.f32 0.0, %v4428
    %v4430 = vpop.f32.mrf.mxu0
    %4431 = vmatprep.mubr.f32.mxu0 0.0
    %4432 = vmatmul.mubr.f32.gmra.mxu0 %v3733
    %v4433 = vpop.f32.mrf.mxu0
    %v4434 = vadd.f32 0.0, %v4433
    %v4435 = vpop.f32.mrf.mxu0
    %4436 = vmatprep.mubr.f32.mxu0 0.0
    %4437 = vmatmul.mubr.f32.gmra.mxu0 %v3736
    %v4438 = vpop.f32.mrf.mxu0
    %v4439 = vadd.f32 0.0, %v4438
    %v4440 = vpop.f32.mrf.mxu0
    %4441 = vmatprep.mubr.f32.mxu0 0.0
    %4442 = vmatmul.mubr.f32.gmra.mxu0 %v3739
    %v4443 = vpop.f32.mrf.mxu0
    %v4444 = vadd.f32 0.0, %v4443
    %v4445 = vpop.f32.mrf.mxu0
    %4446 = vmatprep.mubr.f32.mxu0 0.0
    %4447 = vmatmul.mubr.f32.gmra.mxu0 %v3742
    %v4448 = vpop.f32.mrf.mxu0
    %v4449 = vadd.f32 0.0, %v4448
    %v4450 = vpop.f32.mrf.mxu0
    %4451 = vmatprep.mubr.f32.mxu0 0.0
    %4452 = vmatmul.mubr.f32.gmra.mxu0 %v3745
    %v4453 = vpop.f32.mrf.mxu0
    %v4454 = vadd.f32 0.0, %v4453
    %v4455 = vpop.f32.mrf.mxu0
    %4456 = vmatprep.mubr.f32.mxu0 0.0
    %4457 = vmatmul.mubr.f32.gmra.mxu0 %v3748
    %v4458 = vpop.f32.mrf.mxu0
    %v4459 = vadd.f32 0.0, %v4458
    %v4460 = vpop.f32.mrf.mxu0
    %4461 = vmatprep.mubr.f32.mxu0 0.0
    %4462 = vmatmul.mubr.f32.gmra.mxu0 %v3751
    %v4463 = vpop.f32.mrf.mxu0
    %v4464 = vadd.f32 0.0, %v4463
    %v4465 = vpop.f32.mrf.mxu0
    %4466 = vmatprep.mubr.f32.mxu0 0.0
    %4467 = vmatmul.mubr.f32.gmra.mxu0 %v3754
    %v4468 = vpop.f32.mrf.mxu0
    %v4469 = vadd.f32 0.0, %v4468
    %v4470 = vpop.f32.mrf.mxu0
    %4471 = vmatprep.mubr.f32.mxu0 0.0
    %4472 = vmatmul.mubr.f32.gmra.mxu0 %v3757
    %v4473 = vpop.f32.mrf.mxu0
    %v4474 = vadd.f32 0.0, %v4473
    %v4475 = vpop.f32.mrf.mxu0
    %4476 = vmatprep.mubr.f32.mxu0 0.0
    %4477 = vmatmul.mubr.f32.gmra.mxu0 %v3760
    %v4478 = vpop.f32.mrf.mxu0
    %v4479 = vadd.f32 0.0, %v4478
    %v4480 = vpop.f32.mrf.mxu0
    %4481 = vmatprep.mubr.f32.mxu0 0.0
    %4482 = vmatmul.mubr.f32.gmra.mxu0 %v3763
    %v4483 = vpop.f32.mrf.mxu0
    %v4484 = vadd.f32 0.0, %v4483
    %v4485 = vpop.f32.mrf.mxu0
    %4486 = vmatprep.mubr.f32.mxu0 0.0
    %4487 = vmatmul.mubr.f32.gmra.mxu0 %v3766
    %v4488 = vpop.f32.mrf.mxu0
    %v4489 = vadd.f32 0.0, %v4488
    %v4490 = vpop.f32.mrf.mxu0
    %4491 = vmatprep.mubr.f32.mxu0 0.0
    %4492 = vmatmul.mubr.f32.gmra.mxu0 %v3769
    %v4493 = vpop.f32.mrf.mxu0
    %v4494 = vadd.f32 0.0, %v4493
    %v4495 = vpop.f32.mrf.mxu0
    %4496 = vmatprep.mubr.f32.mxu0 0.0
    %4497 = vmatmul.mubr.f32.gmra.mxu0 %v3772
    %v4498 = vpop.f32.mrf.mxu0
    %v4499 = vadd.f32 0.0, %v4498
    %v4500 = vpop.f32.mrf.mxu0
    %4501 = vdwg.mxu0
    %v4502 = vmul.f32 %v4424, %v4085
    %v4503 = vmul.f32 %v4429, %v4087
    %v4504 = vmul.f32 %v4434, %v4089
    %v4505 = vmul.f32 %v4439, %v4091
    %v4506 = vmul.f32 %v4444, %v4093
    %v4507 = vmul.f32 %v4449, %v4095
    %v4508 = vmul.f32 %v4454, %v4097
    %v4509 = vmul.f32 %v4459, %v4099
    %v4510 = vmul.f32 %v4464, %v4101
    %v4511 = vmul.f32 %v4469, %v4103
    %v4512 = vmul.f32 %v4474, %v4105
    %v4513 = vmul.f32 %v4479, %v4107
    %v4514 = vmul.f32 %v4484, %v4077
    %v4515 = vmul.f32 %v4489, %v4079
    %v4516 = vmul.f32 %v4494, %v4081
    %v4517 = vmul.f32 %v4499, %v4083
    %v4518 = vadd.f32 %v4329, %v4502
    %v4519 = vadd.f32 %v4330, %v4503
    %v4520 = vadd.f32 %v4331, %v4504
    %v4521 = vadd.f32 %v4332, %v4505
    %v4522 = vadd.f32 %v4333, %v4506
    %v4523 = vadd.f32 %v4334, %v4507
    %v4524 = vadd.f32 %v4335, %v4508
    %v4525 = vadd.f32 %v4336, %v4509
    %v4526 = vadd.f32 %v4337, %v4510
    %v4527 = vadd.f32 %v4338, %v4511
    %v4528 = vadd.f32 %v4339, %v4512
    %v4529 = vadd.f32 %v4340, %v4513
    %v4530 = vadd.f32 %v4341, %v4514
    %v4531 = vadd.f32 %v4342, %v4515
    %v4532 = vadd.f32 %v4343, %v4516
    %v4533 = vadd.f32 %v4344, %v4517
    %v4535 = vsel %vm160, %v1722, 0
    %v4538 = vsel %vm160, %v1723, 0
    %v4541 = vsel %vm160, %v1724, 0
    %v4544 = vsel %vm160, %v1725, 0
    %4546 = vmatprep.subr.mxu0 0.0
    %4547 = vmatpush1.xpose.msra.mxu0 0.0
    %4548 = vmatprep.subr.mxu0 0.0
    %4549 = vmatpush1.xpose.msra.mxu0 0.0
    %4550 = vmatprep.subr.mxu0 0.0
    %4551 = vmatpush1.xpose.msra.mxu0 0.0
    %4552 = vmatprep.subr.mxu0 0.0
    %4553 = vmatpush1.xpose.msra.mxu0 0.0
    %4554 = vmatprep.subr.mxu0 0.0
    %4555 = vmatpush1.xpose.msra.mxu0 0.0
    %4556 = vmatprep.subr.mxu0 0.0
    %4557 = vmatpush1.xpose.msra.mxu0 0.0
    %4558 = vmatprep.subr.mxu0 0.0
    %4559 = vmatpush1.xpose.msra.mxu0 0.0
    %4560 = vmatprep.subr.mxu0 0.0
    %4561 = vmatpush1.xpose.msra.mxu0 0.0
    %4562 = vmatprep.subr.mxu0 0.0
    %4563 = vmatpush1.xpose.msra.mxu0 0.0
    %4564 = vmatprep.subr.mxu0 0.0
    %4565 = vmatpush1.xpose.msra.mxu0 0.0
    %4566 = vmatprep.subr.mxu0 0.0
    %4567 = vmatpush1.xpose.msra.mxu0 0.0
    %4568 = vmatprep.subr.mxu0 0.0
    %4569 = vmatpush1.xpose.msra.mxu0 0.0
    %4570 = vmatprep.subr.mxu0 0.0
    %4571 = vmatpush1.xpose.msra.mxu0 %v4544
    %4572 = vmatprep.subr.mxu0 0.0
    %4573 = vmatpush1.xpose.msra.mxu0 %v4541
    %4574 = vmatprep.subr.mxu0 0.0
    %4575 = vmatpush1.xpose.msra.mxu0 %v4538
    %4576 = vmatprep.subr.mxu0 0.0
    %4577 = vmatpush1.xpose.msra.mxu0 %v4535
    %4578 = vmatprep.subr.mxu0 0.0
    %4579 = vmatpush2.xpose.msra.mxu0 0.0
    %4580 = vmatprep.subr.mxu0 0.0
    %4581 = vmatpush2.xpose.msra.mxu0 0.0
    %4582 = vmatprep.subr.mxu0 0.0
    %4583 = vmatpush2.xpose.msra.mxu0 0.0
    %4584 = vmatprep.subr.mxu0 0.0
    %4585 = vmatpush2.xpose.msra.mxu0 0.0
    %4586 = vmatprep.subr.mxu0 0.0
    %4587 = vmatpush2.xpose.msra.mxu0 0.0
    %4588 = vmatprep.subr.mxu0 0.0
    %4589 = vmatpush2.xpose.msra.mxu0 0.0
    %4590 = vmatprep.subr.mxu0 0.0
    %4591 = vmatpush2.xpose.msra.mxu0 0.0
    %4592 = vmatprep.subr.mxu0 0.0
    %4593 = vmatpush2.xpose.msra.mxu0 0.0
    %4594 = vmatprep.subr.mxu0 0.0
    %4595 = vmatpush2.xpose.msra.mxu0 0.0
    %4596 = vmatprep.subr.mxu0 0.0
    %4597 = vmatpush2.xpose.msra.mxu0 0.0
    %4598 = vmatprep.subr.mxu0 0.0
    %4599 = vmatpush2.xpose.msra.mxu0 0.0
    %4600 = vmatprep.subr.mxu0 0.0
    %4601 = vmatpush2.xpose.msra.mxu0 0.0
    %4602 = vmatprep.subr.mxu0 0.0
    %4603 = vmatpush2.xpose.msra.mxu0 0.0
    %4604 = vmatprep.subr.mxu0 0.0
    %4605 = vmatpush2.xpose.msra.mxu0 0.0
    %4606 = vmatprep.subr.mxu0 0.0
    %4607 = vmatpush2.xpose.msra.mxu0 0.0
    %4608 = vmatprep.subr.mxu0 0.0
    %4609 = vmatpush2.xpose.msra.mxu0 0.0
    %4610 = vmatprep.mubr.f32.mxu0 0.0
    %4611 = vmatmul.mubr.f32.gmra.mxu0 %v3727
    %v4612 = vpop.f32.mrf.mxu0
    %v4613 = vadd.f32 0.0, %v4612
    %v4614 = vpop.f32.mrf.mxu0
    %4615 = vmatprep.mubr.f32.mxu0 0.0
    %4616 = vmatmul.mubr.f32.gmra.mxu0 %v3730
    %v4617 = vpop.f32.mrf.mxu0
    %v4618 = vadd.f32 0.0, %v4617
    %v4619 = vpop.f32.mrf.mxu0
    %4620 = vmatprep.mubr.f32.mxu0 0.0
    %4621 = vmatmul.mubr.f32.gmra.mxu0 %v3733
    %v4622 = vpop.f32.mrf.mxu0
    %v4623 = vadd.f32 0.0, %v4622
    %v4624 = vpop.f32.mrf.mxu0
    %4625 = vmatprep.mubr.f32.mxu0 0.0
    %4626 = vmatmul.mubr.f32.gmra.mxu0 %v3736
    %v4627 = vpop.f32.mrf.mxu0
    %v4628 = vadd.f32 0.0, %v4627
    %v4629 = vpop.f32.mrf.mxu0
    %4630 = vmatprep.mubr.f32.mxu0 0.0
    %4631 = vmatmul.mubr.f32.gmra.mxu0 %v3739
    %v4632 = vpop.f32.mrf.mxu0
    %v4633 = vadd.f32 0.0, %v4632
    %v4634 = vpop.f32.mrf.mxu0
    %4635 = vmatprep.mubr.f32.mxu0 0.0
    %4636 = vmatmul.mubr.f32.gmra.mxu0 %v3742
    %v4637 = vpop.f32.mrf.mxu0
    %v4638 = vadd.f32 0.0, %v4637
    %v4639 = vpop.f32.mrf.mxu0
    %4640 = vmatprep.mubr.f32.mxu0 0.0
    %4641 = vmatmul.mubr.f32.gmra.mxu0 %v3745
    %v4642 = vpop.f32.mrf.mxu0
    %v4643 = vadd.f32 0.0, %v4642
    %v4644 = vpop.f32.mrf.mxu0
    %4645 = vmatprep.mubr.f32.mxu0 0.0
    %4646 = vmatmul.mubr.f32.gmra.mxu0 %v3748
    %v4647 = vpop.f32.mrf.mxu0
    %v4648 = vadd.f32 0.0, %v4647
    %v4649 = vpop.f32.mrf.mxu0
    %4650 = vmatprep.mubr.f32.mxu0 0.0
    %4651 = vmatmul.mubr.f32.gmra.mxu0 %v3751
    %v4652 = vpop.f32.mrf.mxu0
    %v4653 = vadd.f32 0.0, %v4652
    %v4654 = vpop.f32.mrf.mxu0
    %4655 = vmatprep.mubr.f32.mxu0 0.0
    %4656 = vmatmul.mubr.f32.gmra.mxu0 %v3754
    %v4657 = vpop.f32.mrf.mxu0
    %v4658 = vadd.f32 0.0, %v4657
    %v4659 = vpop.f32.mrf.mxu0
    %4660 = vmatprep.mubr.f32.mxu0 0.0
    %4661 = vmatmul.mubr.f32.gmra.mxu0 %v3757
    %v4662 = vpop.f32.mrf.mxu0
    %v4663 = vadd.f32 0.0, %v4662
    %v4664 = vpop.f32.mrf.mxu0
    %4665 = vmatprep.mubr.f32.mxu0 0.0
    %4666 = vmatmul.mubr.f32.gmra.mxu0 %v3760
    %v4667 = vpop.f32.mrf.mxu0
    %v4668 = vadd.f32 0.0, %v4667
    %v4669 = vpop.f32.mrf.mxu0
    %4670 = vmatprep.mubr.f32.mxu0 0.0
    %4671 = vmatmul.mubr.f32.gmra.mxu0 %v3763
    %v4672 = vpop.f32.mrf.mxu0
    %v4673 = vadd.f32 0.0, %v4672
    %v4674 = vpop.f32.mrf.mxu0
    %4675 = vmatprep.mubr.f32.mxu0 0.0
    %4676 = vmatmul.mubr.f32.gmra.mxu0 %v3766
    %v4677 = vpop.f32.mrf.mxu0
    %v4678 = vadd.f32 0.0, %v4677
    %v4679 = vpop.f32.mrf.mxu0
    %4680 = vmatprep.mubr.f32.mxu0 0.0
    %4681 = vmatmul.mubr.f32.gmra.mxu0 %v3769
    %v4682 = vpop.f32.mrf.mxu0
    %v4683 = vadd.f32 0.0, %v4682
    %v4684 = vpop.f32.mrf.mxu0
    %4685 = vmatprep.mubr.f32.mxu0 0.0
    %4686 = vmatmul.mubr.f32.gmra.mxu0 %v3772
    %v4687 = vpop.f32.mrf.mxu0
    %v4688 = vadd.f32 0.0, %v4687
    %v4689 = vpop.f32.mrf.mxu0
    %4690 = vdwg.mxu0
    %v4691 = vmul.f32 %v4613, %v4089
    %v4692 = vmul.f32 %v4618, %v4091
    %v4693 = vmul.f32 %v4623, %v4093
    %v4694 = vmul.f32 %v4628, %v4095
    %v4695 = vmul.f32 %v4633, %v4097
    %v4696 = vmul.f32 %v4638, %v4099
    %v4697 = vmul.f32 %v4643, %v4101
    %v4698 = vmul.f32 %v4648, %v4103
    %v4699 = vmul.f32 %v4653, %v4105
    %v4700 = vmul.f32 %v4658, %v4107
    %v4701 = vmul.f32 %v4663, %v4077
    %v4702 = vmul.f32 %v4668, %v4079
    %v4703 = vmul.f32 %v4673, %v4081
    %v4704 = vmul.f32 %v4678, %v4083
    %v4705 = vmul.f32 %v4683, %v4085
    %v4706 = vmul.f32 %v4688, %v4087
    %v4707 = vadd.f32 %v4518, %v4691
    %v4708 = vadd.f32 %v4519, %v4692
    %v4709 = vadd.f32 %v4520, %v4693
    %v4710 = vadd.f32 %v4521, %v4694
    %v4711 = vadd.f32 %v4522, %v4695
    %v4712 = vadd.f32 %v4523, %v4696
    %v4713 = vadd.f32 %v4524, %v4697
    %v4714 = vadd.f32 %v4525, %v4698
    %v4715 = vadd.f32 %v4526, %v4699
    %v4716 = vadd.f32 %v4527, %v4700
    %v4717 = vadd.f32 %v4528, %v4701
    %v4718 = vadd.f32 %v4529, %v4702
    %v4719 = vadd.f32 %v4530, %v4703
    %v4720 = vadd.f32 %v4531, %v4704
    %v4721 = vadd.f32 %v4532, %v4705
    %v4722 = vadd.f32 %v4533, %v4706
    %v4724 = vsel %vm160, %v1727, 0
    %v4727 = vsel %vm160, %v1728, 0
    %v4730 = vsel %vm160, %v1729, 0
    %v4733 = vsel %vm160, %v1730, 0
    %4735 = vmatprep.subr.mxu0 0.0
    %4736 = vmatpush1.xpose.msra.mxu0 0.0
    %4737 = vmatprep.subr.mxu0 0.0
    %4738 = vmatpush1.xpose.msra.mxu0 0.0
    %4739 = vmatprep.subr.mxu0 0.0
    %4740 = vmatpush1.xpose.msra.mxu0 0.0
    %4741 = vmatprep.subr.mxu0 0.0
    %4742 = vmatpush1.xpose.msra.mxu0 0.0
    %4743 = vmatprep.subr.mxu0 0.0
    %4744 = vmatpush1.xpose.msra.mxu0 0.0
    %4745 = vmatprep.subr.mxu0 0.0
    %4746 = vmatpush1.xpose.msra.mxu0 0.0
    %4747 = vmatprep.subr.mxu0 0.0
    %4748 = vmatpush1.xpose.msra.mxu0 0.0
    %4749 = vmatprep.subr.mxu0 0.0
    %4750 = vmatpush1.xpose.msra.mxu0 0.0
    %4751 = vmatprep.subr.mxu0 0.0
    %4752 = vmatpush1.xpose.msra.mxu0 0.0
    %4753 = vmatprep.subr.mxu0 0.0
    %4754 = vmatpush1.xpose.msra.mxu0 0.0
    %4755 = vmatprep.subr.mxu0 0.0
    %4756 = vmatpush1.xpose.msra.mxu0 0.0
    %4757 = vmatprep.subr.mxu0 0.0
    %4758 = vmatpush1.xpose.msra.mxu0 0.0
    %4759 = vmatprep.subr.mxu0 0.0
    %4760 = vmatpush1.xpose.msra.mxu0 %v4733
    %4761 = vmatprep.subr.mxu0 0.0
    %4762 = vmatpush1.xpose.msra.mxu0 %v4730
    %4763 = vmatprep.subr.mxu0 0.0
    %4764 = vmatpush1.xpose.msra.mxu0 %v4727
    %4765 = vmatprep.subr.mxu0 0.0
    %4766 = vmatpush1.xpose.msra.mxu0 %v4724
    %4767 = vmatprep.subr.mxu0 0.0
    %4768 = vmatpush2.xpose.msra.mxu0 0.0
    %4769 = vmatprep.subr.mxu0 0.0
    %4770 = vmatpush2.xpose.msra.mxu0 0.0
    %4771 = vmatprep.subr.mxu0 0.0
    %4772 = vmatpush2.xpose.msra.mxu0 0.0
    %4773 = vmatprep.subr.mxu0 0.0
    %4774 = vmatpush2.xpose.msra.mxu0 0.0
    %4775 = vmatprep.subr.mxu0 0.0
    %4776 = vmatpush2.xpose.msra.mxu0 0.0
    %4777 = vmatprep.subr.mxu0 0.0
    %4778 = vmatpush2.xpose.msra.mxu0 0.0
    %4779 = vmatprep.subr.mxu0 0.0
    %4780 = vmatpush2.xpose.msra.mxu0 0.0
    %4781 = vmatprep.subr.mxu0 0.0
    %4782 = vmatpush2.xpose.msra.mxu0 0.0
    %4783 = vmatprep.subr.mxu0 0.0
    %4784 = vmatpush2.xpose.msra.mxu0 0.0
    %4785 = vmatprep.subr.mxu0 0.0
    %4786 = vmatpush2.xpose.msra.mxu0 0.0
    %4787 = vmatprep.subr.mxu0 0.0
    %4788 = vmatpush2.xpose.msra.mxu0 0.0
    %4789 = vmatprep.subr.mxu0 0.0
    %4790 = vmatpush2.xpose.msra.mxu0 0.0
    %4791 = vmatprep.subr.mxu0 0.0
    %4792 = vmatpush2.xpose.msra.mxu0 0.0
    %4793 = vmatprep.subr.mxu0 0.0
    %4794 = vmatpush2.xpose.msra.mxu0 0.0
    %4795 = vmatprep.subr.mxu0 0.0
    %4796 = vmatpush2.xpose.msra.mxu0 0.0
    %4797 = vmatprep.subr.mxu0 0.0
    %4798 = vmatpush2.xpose.msra.mxu0 0.0
    %4799 = vmatprep.mubr.f32.mxu0 0.0
    %4800 = vmatmul.mubr.f32.gmra.mxu0 %v3727
    %v4801 = vpop.f32.mrf.mxu0
    %v4802 = vadd.f32 0.0, %v4801
    %v4803 = vpop.f32.mrf.mxu0
    %4804 = vmatprep.mubr.f32.mxu0 0.0
    %4805 = vmatmul.mubr.f32.gmra.mxu0 %v3730
    %v4806 = vpop.f32.mrf.mxu0
    %v4807 = vadd.f32 0.0, %v4806
    %v4808 = vpop.f32.mrf.mxu0
    %4809 = vmatprep.mubr.f32.mxu0 0.0
    %4810 = vmatmul.mubr.f32.gmra.mxu0 %v3733
    %v4811 = vpop.f32.mrf.mxu0
    %v4812 = vadd.f32 0.0, %v4811
    %v4813 = vpop.f32.mrf.mxu0
    %4814 = vmatprep.mubr.f32.mxu0 0.0
    %4815 = vmatmul.mubr.f32.gmra.mxu0 %v3736
    %v4816 = vpop.f32.mrf.mxu0
    %v4817 = vadd.f32 0.0, %v4816
    %v4818 = vpop.f32.mrf.mxu0
    %4819 = vmatprep.mubr.f32.mxu0 0.0
    %4820 = vmatmul.mubr.f32.gmra.mxu0 %v3739
    %v4821 = vpop.f32.mrf.mxu0
    %v4822 = vadd.f32 0.0, %v4821
    %v4823 = vpop.f32.mrf.mxu0
    %4824 = vmatprep.mubr.f32.mxu0 0.0
    %4825 = vmatmul.mubr.f32.gmra.mxu0 %v3742
    %v4826 = vpop.f32.mrf.mxu0
    %v4827 = vadd.f32 0.0, %v4826
    %v4828 = vpop.f32.mrf.mxu0
    %4829 = vmatprep.mubr.f32.mxu0 0.0
    %4830 = vmatmul.mubr.f32.gmra.mxu0 %v3745
    %v4831 = vpop.f32.mrf.mxu0
    %v4832 = vadd.f32 0.0, %v4831
    %v4833 = vpop.f32.mrf.mxu0
    %4834 = vmatprep.mubr.f32.mxu0 0.0
    %4835 = vmatmul.mubr.f32.gmra.mxu0 %v3748
    %v4836 = vpop.f32.mrf.mxu0
    %v4837 = vadd.f32 0.0, %v4836
    %v4838 = vpop.f32.mrf.mxu0
    %4839 = vmatprep.mubr.f32.mxu0 0.0
    %4840 = vmatmul.mubr.f32.gmra.mxu0 %v3751
    %v4841 = vpop.f32.mrf.mxu0
    %v4842 = vadd.f32 0.0, %v4841
    %v4843 = vpop.f32.mrf.mxu0
    %4844 = vmatprep.mubr.f32.mxu0 0.0
    %4845 = vmatmul.mubr.f32.gmra.mxu0 %v3754
    %v4846 = vpop.f32.mrf.mxu0
    %v4847 = vadd.f32 0.0, %v4846
    %v4848 = vpop.f32.mrf.mxu0
    %4849 = vmatprep.mubr.f32.mxu0 0.0
    %4850 = vmatmul.mubr.f32.gmra.mxu0 %v3757
    %v4851 = vpop.f32.mrf.mxu0
    %v4852 = vadd.f32 0.0, %v4851
    %v4853 = vpop.f32.mrf.mxu0
    %4854 = vmatprep.mubr.f32.mxu0 0.0
    %4855 = vmatmul.mubr.f32.gmra.mxu0 %v3760
    %v4856 = vpop.f32.mrf.mxu0
    %v4857 = vadd.f32 0.0, %v4856
    %v4858 = vpop.f32.mrf.mxu0
    %4859 = vmatprep.mubr.f32.mxu0 0.0
    %4860 = vmatmul.mubr.f32.gmra.mxu0 %v3763
    %v4861 = vpop.f32.mrf.mxu0
    %v4862 = vadd.f32 0.0, %v4861
    %v4863 = vpop.f32.mrf.mxu0
    %4864 = vmatprep.mubr.f32.mxu0 0.0
    %4865 = vmatmul.mubr.f32.gmra.mxu0 %v3766
    %v4866 = vpop.f32.mrf.mxu0
    %v4867 = vadd.f32 0.0, %v4866
    %v4868 = vpop.f32.mrf.mxu0
    %4869 = vmatprep.mubr.f32.mxu0 0.0
    %4870 = vmatmul.mubr.f32.gmra.mxu0 %v3769
    %v4871 = vpop.f32.mrf.mxu0
    %v4872 = vadd.f32 0.0, %v4871
    %v4873 = vpop.f32.mrf.mxu0
    %4874 = vmatprep.mubr.f32.mxu0 0.0
    %4875 = vmatmul.mubr.f32.gmra.mxu0 %v3772
    %v4876 = vpop.f32.mrf.mxu0
    %v4877 = vadd.f32 0.0, %v4876
    %v4878 = vpop.f32.mrf.mxu0
    %4879 = vdwg.mxu0
    %v4880 = vmul.f32 %v4802, %v4093
    %v4881 = vmul.f32 %v4807, %v4095
    %v4882 = vmul.f32 %v4812, %v4097
    %v4883 = vmul.f32 %v4817, %v4099
    %v4884 = vmul.f32 %v4822, %v4101
    %v4885 = vmul.f32 %v4827, %v4103
    %v4886 = vmul.f32 %v4832, %v4105
    %v4887 = vmul.f32 %v4837, %v4107
    %v4888 = vmul.f32 %v4842, %v4077
    %v4889 = vmul.f32 %v4847, %v4079
    %v4890 = vmul.f32 %v4852, %v4081
    %v4891 = vmul.f32 %v4857, %v4083
    %v4892 = vmul.f32 %v4862, %v4085
    %v4893 = vmul.f32 %v4867, %v4087
    %v4894 = vmul.f32 %v4872, %v4089
    %v4895 = vmul.f32 %v4877, %v4091
    %v4896 = vadd.f32 %v4707, %v4880
    %v4897 = vadd.f32 %v4708, %v4881
    %v4898 = vadd.f32 %v4709, %v4882
    %v4899 = vadd.f32 %v4710, %v4883
    %v4900 = vadd.f32 %v4711, %v4884
    %v4901 = vadd.f32 %v4712, %v4885
    %v4902 = vadd.f32 %v4713, %v4886
    %v4903 = vadd.f32 %v4714, %v4887
    %v4904 = vadd.f32 %v4715, %v4888
    %v4905 = vadd.f32 %v4716, %v4889
    %v4906 = vadd.f32 %v4717, %v4890
    %v4907 = vadd.f32 %v4718, %v4891
    %v4908 = vadd.f32 %v4719, %v4892
    %v4909 = vadd.f32 %v4720, %v4893
    %v4910 = vadd.f32 %v4721, %v4894
    %v4911 = vadd.f32 %v4722, %v4895
    %v4913 = vsel %vm160, %v1732, 0
    %v4916 = vsel %vm160, %v1733, 0
    %v4919 = vsel %vm160, %v1734, 0
    %v4922 = vsel %vm160, %v1735, 0
    %4924 = vmatprep.subr.mxu0 0.0
    %4925 = vmatpush1.xpose.msra.mxu0 0.0
    %4926 = vmatprep.subr.mxu0 0.0
    %4927 = vmatpush1.xpose.msra.mxu0 0.0
    %4928 = vmatprep.subr.mxu0 0.0
    %4929 = vmatpush1.xpose.msra.mxu0 0.0
    %4930 = vmatprep.subr.mxu0 0.0
    %4931 = vmatpush1.xpose.msra.mxu0 0.0
    %4932 = vmatprep.subr.mxu0 0.0
    %4933 = vmatpush1.xpose.msra.mxu0 0.0
    %4934 = vmatprep.subr.mxu0 0.0
    %4935 = vmatpush1.xpose.msra.mxu0 0.0
    %4936 = vmatprep.subr.mxu0 0.0
    %4937 = vmatpush1.xpose.msra.mxu0 0.0
    %4938 = vmatprep.subr.mxu0 0.0
    %4939 = vmatpush1.xpose.msra.mxu0 0.0
    %4940 = vmatprep.subr.mxu0 0.0
    %4941 = vmatpush1.xpose.msra.mxu0 0.0
    %4942 = vmatprep.subr.mxu0 0.0
    %4943 = vmatpush1.xpose.msra.mxu0 0.0
    %4944 = vmatprep.subr.mxu0 0.0
    %4945 = vmatpush1.xpose.msra.mxu0 0.0
    %4946 = vmatprep.subr.mxu0 0.0
    %4947 = vmatpush1.xpose.msra.mxu0 0.0
    %4948 = vmatprep.subr.mxu0 0.0
    %4949 = vmatpush1.xpose.msra.mxu0 %v4922
    %4950 = vmatprep.subr.mxu0 0.0
    %4951 = vmatpush1.xpose.msra.mxu0 %v4919
    %4952 = vmatprep.subr.mxu0 0.0
    %4953 = vmatpush1.xpose.msra.mxu0 %v4916
    %4954 = vmatprep.subr.mxu0 0.0
    %4955 = vmatpush1.xpose.msra.mxu0 %v4913
    %4956 = vmatprep.subr.mxu0 0.0
    %4957 = vmatpush2.xpose.msra.mxu0 0.0
    %4958 = vmatprep.subr.mxu0 0.0
    %4959 = vmatpush2.xpose.msra.mxu0 0.0
    %4960 = vmatprep.subr.mxu0 0.0
    %4961 = vmatpush2.xpose.msra.mxu0 0.0
    %4962 = vmatprep.subr.mxu0 0.0
    %4963 = vmatpush2.xpose.msra.mxu0 0.0
    %4964 = vmatprep.subr.mxu0 0.0
    %4965 = vmatpush2.xpose.msra.mxu0 0.0
    %4966 = vmatprep.subr.mxu0 0.0
    %4967 = vmatpush2.xpose.msra.mxu0 0.0
    %4968 = vmatprep.subr.mxu0 0.0
    %4969 = vmatpush2.xpose.msra.mxu0 0.0
    %4970 = vmatprep.subr.mxu0 0.0
    %4971 = vmatpush2.xpose.msra.mxu0 0.0
    %4972 = vmatprep.subr.mxu0 0.0
    %4973 = vmatpush2.xpose.msra.mxu0 0.0
    %4974 = vmatprep.subr.mxu0 0.0
    %4975 = vmatpush2.xpose.msra.mxu0 0.0
    %4976 = vmatprep.subr.mxu0 0.0
    %4977 = vmatpush2.xpose.msra.mxu0 0.0
    %4978 = vmatprep.subr.mxu0 0.0
    %4979 = vmatpush2.xpose.msra.mxu0 0.0
    %4980 = vmatprep.subr.mxu0 0.0
    %4981 = vmatpush2.xpose.msra.mxu0 0.0
    %4982 = vmatprep.subr.mxu0 0.0
    %4983 = vmatpush2.xpose.msra.mxu0 0.0
    %4984 = vmatprep.subr.mxu0 0.0
    %4985 = vmatpush2.xpose.msra.mxu0 0.0
    %4986 = vmatprep.subr.mxu0 0.0
    %4987 = vmatpush2.xpose.msra.mxu0 0.0
    %4988 = vmatprep.mubr.f32.mxu0 0.0
    %4989 = vmatmul.mubr.f32.gmra.mxu0 %v3727
    %v4990 = vpop.f32.mrf.mxu0
    %v4991 = vadd.f32 0.0, %v4990
    %v4992 = vpop.f32.mrf.mxu0
    %4993 = vmatprep.mubr.f32.mxu0 0.0
    %4994 = vmatmul.mubr.f32.gmra.mxu0 %v3730
    %v4995 = vpop.f32.mrf.mxu0
    %v4996 = vadd.f32 0.0, %v4995
    %v4997 = vpop.f32.mrf.mxu0
    %4998 = vmatprep.mubr.f32.mxu0 0.0
    %4999 = vmatmul.mubr.f32.gmra.mxu0 %v3733
    %v5000 = vpop.f32.mrf.mxu0
    %v5001 = vadd.f32 0.0, %v5000
    %v5002 = vpop.f32.mrf.mxu0
    %5003 = vmatprep.mubr.f32.mxu0 0.0
    %5004 = vmatmul.mubr.f32.gmra.mxu0 %v3736
    %v5005 = vpop.f32.mrf.mxu0
    %v5006 = vadd.f32 0.0, %v5005
    %v5007 = vpop.f32.mrf.mxu0
    %5008 = vmatprep.mubr.f32.mxu0 0.0
    %5009 = vmatmul.mubr.f32.gmra.mxu0 %v3739
    %v5010 = vpop.f32.mrf.mxu0
    %v5011 = vadd.f32 0.0, %v5010
    %v5012 = vpop.f32.mrf.mxu0
    %5013 = vmatprep.mubr.f32.mxu0 0.0
    %5014 = vmatmul.mubr.f32.gmra.mxu0 %v3742
    %v5015 = vpop.f32.mrf.mxu0
    %v5016 = vadd.f32 0.0, %v5015
    %v5017 = vpop.f32.mrf.mxu0
    %5018 = vmatprep.mubr.f32.mxu0 0.0
    %5019 = vmatmul.mubr.f32.gmra.mxu0 %v3745
    %v5020 = vpop.f32.mrf.mxu0
    %v5021 = vadd.f32 0.0, %v5020
    %v5022 = vpop.f32.mrf.mxu0
    %5023 = vmatprep.mubr.f32.mxu0 0.0
    %5024 = vmatmul.mubr.f32.gmra.mxu0 %v3748
    %v5025 = vpop.f32.mrf.mxu0
    %v5026 = vadd.f32 0.0, %v5025
    %v5027 = vpop.f32.mrf.mxu0
    %5028 = vmatprep.mubr.f32.mxu0 0.0
    %5029 = vmatmul.mubr.f32.gmra.mxu0 %v3751
    %v5030 = vpop.f32.mrf.mxu0
    %v5031 = vadd.f32 0.0, %v5030
    %v5032 = vpop.f32.mrf.mxu0
    %5033 = vmatprep.mubr.f32.mxu0 0.0
    %5034 = vmatmul.mubr.f32.gmra.mxu0 %v3754
    %v5035 = vpop.f32.mrf.mxu0
    %v5036 = vadd.f32 0.0, %v5035
    %v5037 = vpop.f32.mrf.mxu0
    %5038 = vmatprep.mubr.f32.mxu0 0.0
    %5039 = vmatmul.mubr.f32.gmra.mxu0 %v3757
    %v5040 = vpop.f32.mrf.mxu0
    %v5041 = vadd.f32 0.0, %v5040
    %v5042 = vpop.f32.mrf.mxu0
    %5043 = vmatprep.mubr.f32.mxu0 0.0
    %5044 = vmatmul.mubr.f32.gmra.mxu0 %v3760
    %v5045 = vpop.f32.mrf.mxu0
    %v5046 = vadd.f32 0.0, %v5045
    %v5047 = vpop.f32.mrf.mxu0
    %5048 = vmatprep.mubr.f32.mxu0 0.0
    %5049 = vmatmul.mubr.f32.gmra.mxu0 %v3763
    %v5050 = vpop.f32.mrf.mxu0
    %v5051 = vadd.f32 0.0, %v5050
    %v5052 = vpop.f32.mrf.mxu0
    %5053 = vmatprep.mubr.f32.mxu0 0.0
    %5054 = vmatmul.mubr.f32.gmra.mxu0 %v3766
    %v5055 = vpop.f32.mrf.mxu0
    %v5056 = vadd.f32 0.0, %v5055
    %v5057 = vpop.f32.mrf.mxu0
    %5058 = vmatprep.mubr.f32.mxu0 0.0
    %5059 = vmatmul.mubr.f32.gmra.mxu0 %v3769
    %v5060 = vpop.f32.mrf.mxu0
    %v5061 = vadd.f32 0.0, %v5060
    %v5062 = vpop.f32.mrf.mxu0
    %5063 = vmatprep.mubr.f32.mxu0 0.0
    %5064 = vmatmul.mubr.f32.gmra.mxu0 %v3772
    %v5065 = vpop.f32.mrf.mxu0
    %v5066 = vadd.f32 0.0, %v5065
    %v5067 = vpop.f32.mrf.mxu0
    %5068 = vdwg.mxu0
    %v5069 = vmul.f32 %v4991, %v4097
    %v5070 = vmul.f32 %v4996, %v4099
    %v5071 = vmul.f32 %v5001, %v4101
    %v5072 = vmul.f32 %v5006, %v4103
    %v5073 = vmul.f32 %v5011, %v4105
    %v5074 = vmul.f32 %v5016, %v4107
    %v5075 = vmul.f32 %v5021, %v4077
    %v5076 = vmul.f32 %v5026, %v4079
    %v5077 = vmul.f32 %v5031, %v4081
    %v5078 = vmul.f32 %v5036, %v4083
    %v5079 = vmul.f32 %v5041, %v4085
    %v5080 = vmul.f32 %v5046, %v4087
    %v5081 = vmul.f32 %v5051, %v4089
    %v5082 = vmul.f32 %v5056, %v4091
    %v5083 = vmul.f32 %v5061, %v4093
    %v5084 = vmul.f32 %v5066, %v4095
    %v5085 = vadd.f32 %v4896, %v5069
    %v5086 = vadd.f32 %v4897, %v5070
    %v5087 = vadd.f32 %v4898, %v5071
    %v5088 = vadd.f32 %v4899, %v5072
    %v5089 = vadd.f32 %v4900, %v5073
    %v5090 = vadd.f32 %v4901, %v5074
    %v5091 = vadd.f32 %v4902, %v5075
    %v5092 = vadd.f32 %v4903, %v5076
    %v5093 = vadd.f32 %v4904, %v5077
    %v5094 = vadd.f32 %v4905, %v5078
    %v5095 = vadd.f32 %v4906, %v5079
    %v5096 = vadd.f32 %v4907, %v5080
    %v5097 = vadd.f32 %v4908, %v5081
    %v5098 = vadd.f32 %v4909, %v5082
    %v5099 = vadd.f32 %v4910, %v5083
    %v5100 = vadd.f32 %v4911, %v5084
    %v5102 = vsel %vm160, %v1737, 0
    %v5105 = vsel %vm160, %v1738, 0
    %v5108 = vsel %vm160, %v1739, 0
    %v5111 = vsel %vm160, %v1740, 0
    %5113 = vmatprep.subr.mxu0 0.0
    %5114 = vmatpush1.xpose.msra.mxu0 0.0
    %5115 = vmatprep.subr.mxu0 0.0
    %5116 = vmatpush1.xpose.msra.mxu0 0.0
    %5117 = vmatprep.subr.mxu0 0.0
    %5118 = vmatpush1.xpose.msra.mxu0 0.0
    %5119 = vmatprep.subr.mxu0 0.0
    %5120 = vmatpush1.xpose.msra.mxu0 0.0
    %5121 = vmatprep.subr.mxu0 0.0
    %5122 = vmatpush1.xpose.msra.mxu0 0.0
    %5123 = vmatprep.subr.mxu0 0.0
    %5124 = vmatpush1.xpose.msra.mxu0 0.0
    %5125 = vmatprep.subr.mxu0 0.0
    %5126 = vmatpush1.xpose.msra.mxu0 0.0
    %5127 = vmatprep.subr.mxu0 0.0
    %5128 = vmatpush1.xpose.msra.mxu0 0.0
    %5129 = vmatprep.subr.mxu0 0.0
    %5130 = vmatpush1.xpose.msra.mxu0 0.0
    %5131 = vmatprep.subr.mxu0 0.0
    %5132 = vmatpush1.xpose.msra.mxu0 0.0
    %5133 = vmatprep.subr.mxu0 0.0
    %5134 = vmatpush1.xpose.msra.mxu0 0.0
    %5135 = vmatprep.subr.mxu0 0.0
    %5136 = vmatpush1.xpose.msra.mxu0 0.0
    %5137 = vmatprep.subr.mxu0 0.0
    %5138 = vmatpush1.xpose.msra.mxu0 %v5111
    %5139 = vmatprep.subr.mxu0 0.0
    %5140 = vmatpush1.xpose.msra.mxu0 %v5108
    %5141 = vmatprep.subr.mxu0 0.0
    %5142 = vmatpush1.xpose.msra.mxu0 %v5105
    %5143 = vmatprep.subr.mxu0 0.0
    %5144 = vmatpush1.xpose.msra.mxu0 %v5102
    %5145 = vmatprep.subr.mxu0 0.0
    %5146 = vmatpush2.xpose.msra.mxu0 0.0
    %5147 = vmatprep.subr.mxu0 0.0
    %5148 = vmatpush2.xpose.msra.mxu0 0.0
    %5149 = vmatprep.subr.mxu0 0.0
    %5150 = vmatpush2.xpose.msra.mxu0 0.0
    %5151 = vmatprep.subr.mxu0 0.0
    %5152 = vmatpush2.xpose.msra.mxu0 0.0
    %5153 = vmatprep.subr.mxu0 0.0
    %5154 = vmatpush2.xpose.msra.mxu0 0.0
    %5155 = vmatprep.subr.mxu0 0.0
    %5156 = vmatpush2.xpose.msra.mxu0 0.0
    %5157 = vmatprep.subr.mxu0 0.0
    %5158 = vmatpush2.xpose.msra.mxu0 0.0
    %5159 = vmatprep.subr.mxu0 0.0
    %5160 = vmatpush2.xpose.msra.mxu0 0.0
    %5161 = vmatprep.subr.mxu0 0.0
    %5162 = vmatpush2.xpose.msra.mxu0 0.0
    %5163 = vmatprep.subr.mxu0 0.0
    %5164 = vmatpush2.xpose.msra.mxu0 0.0
    %5165 = vmatprep.subr.mxu0 0.0
    %5166 = vmatpush2.xpose.msra.mxu0 0.0
    %5167 = vmatprep.subr.mxu0 0.0
    %5168 = vmatpush2.xpose.msra.mxu0 0.0
    %5169 = vmatprep.subr.mxu0 0.0
    %5170 = vmatpush2.xpose.msra.mxu0 0.0
    %5171 = vmatprep.subr.mxu0 0.0
    %5172 = vmatpush2.xpose.msra.mxu0 0.0
    %5173 = vmatprep.subr.mxu0 0.0
    %5174 = vmatpush2.xpose.msra.mxu0 0.0
    %5175 = vmatprep.subr.mxu0 0.0
    %5176 = vmatpush2.xpose.msra.mxu0 0.0
    %5177 = vmatprep.mubr.f32.mxu0 0.0
    %5178 = vmatmul.mubr.f32.gmra.mxu0 %v3727
    %v5179 = vpop.f32.mrf.mxu0
    %v5180 = vadd.f32 0.0, %v5179
    %v5181 = vpop.f32.mrf.mxu0
    %5182 = vmatprep.mubr.f32.mxu0 0.0
    %5183 = vmatmul.mubr.f32.gmra.mxu0 %v3730
    %v5184 = vpop.f32.mrf.mxu0
    %v5185 = vadd.f32 0.0, %v5184
    %v5186 = vpop.f32.mrf.mxu0
    %5187 = vmatprep.mubr.f32.mxu0 0.0
    %5188 = vmatmul.mubr.f32.gmra.mxu0 %v3733
    %v5189 = vpop.f32.mrf.mxu0
    %v5190 = vadd.f32 0.0, %v5189
    %v5191 = vpop.f32.mrf.mxu0
    %5192 = vmatprep.mubr.f32.mxu0 0.0
    %5193 = vmatmul.mubr.f32.gmra.mxu0 %v3736
    %v5194 = vpop.f32.mrf.mxu0
    %v5195 = vadd.f32 0.0, %v5194
    %v5196 = vpop.f32.mrf.mxu0
    %5197 = vmatprep.mubr.f32.mxu0 0.0
    %5198 = vmatmul.mubr.f32.gmra.mxu0 %v3739
    %v5199 = vpop.f32.mrf.mxu0
    %v5200 = vadd.f32 0.0, %v5199
    %v5201 = vpop.f32.mrf.mxu0
    %5202 = vmatprep.mubr.f32.mxu0 0.0
    %5203 = vmatmul.mubr.f32.gmra.mxu0 %v3742
    %v5204 = vpop.f32.mrf.mxu0
    %v5205 = vadd.f32 0.0, %v5204
    %v5206 = vpop.f32.mrf.mxu0
    %5207 = vmatprep.mubr.f32.mxu0 0.0
    %5208 = vmatmul.mubr.f32.gmra.mxu0 %v3745
    %v5209 = vpop.f32.mrf.mxu0
    %v5210 = vadd.f32 0.0, %v5209
    %v5211 = vpop.f32.mrf.mxu0
    %5212 = vmatprep.mubr.f32.mxu0 0.0
    %5213 = vmatmul.mubr.f32.gmra.mxu0 %v3748
    %v5214 = vpop.f32.mrf.mxu0
    %v5215 = vadd.f32 0.0, %v5214
    %v5216 = vpop.f32.mrf.mxu0
    %5217 = vmatprep.mubr.f32.mxu0 0.0
    %5218 = vmatmul.mubr.f32.gmra.mxu0 %v3751
    %v5219 = vpop.f32.mrf.mxu0
    %v5220 = vadd.f32 0.0, %v5219
    %v5221 = vpop.f32.mrf.mxu0
    %5222 = vmatprep.mubr.f32.mxu0 0.0
    %5223 = vmatmul.mubr.f32.gmra.mxu0 %v3754
    %v5224 = vpop.f32.mrf.mxu0
    %v5225 = vadd.f32 0.0, %v5224
    %v5226 = vpop.f32.mrf.mxu0
    %5227 = vmatprep.mubr.f32.mxu0 0.0
    %5228 = vmatmul.mubr.f32.gmra.mxu0 %v3757
    %v5229 = vpop.f32.mrf.mxu0
    %v5230 = vadd.f32 0.0, %v5229
    %v5231 = vpop.f32.mrf.mxu0
    %5232 = vmatprep.mubr.f32.mxu0 0.0
    %5233 = vmatmul.mubr.f32.gmra.mxu0 %v3760
    %v5234 = vpop.f32.mrf.mxu0
    %v5235 = vadd.f32 0.0, %v5234
    %v5236 = vpop.f32.mrf.mxu0
    %5237 = vmatprep.mubr.f32.mxu0 0.0
    %5238 = vmatmul.mubr.f32.gmra.mxu0 %v3763
    %v5239 = vpop.f32.mrf.mxu0
    %v5240 = vadd.f32 0.0, %v5239
    %v5241 = vpop.f32.mrf.mxu0
    %5242 = vmatprep.mubr.f32.mxu0 0.0
    %5243 = vmatmul.mubr.f32.gmra.mxu0 %v3766
    %v5244 = vpop.f32.mrf.mxu0
    %v5245 = vadd.f32 0.0, %v5244
    %v5246 = vpop.f32.mrf.mxu0
    %5247 = vmatprep.mubr.f32.mxu0 0.0
    %5248 = vmatmul.mubr.f32.gmra.mxu0 %v3769
    %v5249 = vpop.f32.mrf.mxu0
    %v5250 = vadd.f32 0.0, %v5249
    %v5251 = vpop.f32.mrf.mxu0
    %5252 = vmatprep.mubr.f32.mxu0 0.0
    %5253 = vmatmul.mubr.f32.gmra.mxu0 %v3772
    %v5254 = vpop.f32.mrf.mxu0
    %v5255 = vadd.f32 0.0, %v5254
    %v5256 = vpop.f32.mrf.mxu0
    %5257 = vdwg.mxu0
    %v5258 = vmul.f32 %v5180, %v4101
    %v5259 = vmul.f32 %v5185, %v4103
    %v5260 = vmul.f32 %v5190, %v4105
    %v5261 = vmul.f32 %v5195, %v4107
    %v5262 = vmul.f32 %v5200, %v4077
    %v5263 = vmul.f32 %v5205, %v4079
    %v5264 = vmul.f32 %v5210, %v4081
    %v5265 = vmul.f32 %v5215, %v4083
    %v5266 = vmul.f32 %v5220, %v4085
    %v5267 = vmul.f32 %v5225, %v4087
    %v5268 = vmul.f32 %v5230, %v4089
    %v5269 = vmul.f32 %v5235, %v4091
    %v5270 = vmul.f32 %v5240, %v4093
    %v5271 = vmul.f32 %v5245, %v4095
    %v5272 = vmul.f32 %v5250, %v4097
    %v5273 = vmul.f32 %v5255, %v4099
    %v5274 = vadd.f32 %v5085, %v5258
    %v5275 = vadd.f32 %v5086, %v5259
    %v5276 = vadd.f32 %v5087, %v5260
    %v5277 = vadd.f32 %v5088, %v5261
    %v5278 = vadd.f32 %v5089, %v5262
    %v5279 = vadd.f32 %v5090, %v5263
    %v5280 = vadd.f32 %v5091, %v5264
    %v5281 = vadd.f32 %v5092, %v5265
    %v5282 = vadd.f32 %v5093, %v5266
    %v5283 = vadd.f32 %v5094, %v5267
    %v5284 = vadd.f32 %v5095, %v5268
    %v5285 = vadd.f32 %v5096, %v5269
    %v5286 = vadd.f32 %v5097, %v5270
    %v5287 = vadd.f32 %v5098, %v5271
    %v5288 = vadd.f32 %v5099, %v5272
    %v5289 = vadd.f32 %v5100, %v5273
    %v5291 = vsel %vm160, %v1742, 0
    %v5294 = vsel %vm160, %v1743, 0
    %v5297 = vsel %vm160, %v1744, 0
    %v5300 = vsel %vm160, %v1745, 0
    %5302 = vmatprep.subr.mxu0 0.0
    %5303 = vmatpush1.xpose.msra.mxu0 0.0
    %5304 = vmatprep.subr.mxu0 0.0
    %5305 = vmatpush1.xpose.msra.mxu0 0.0
    %5306 = vmatprep.subr.mxu0 0.0
    %5307 = vmatpush1.xpose.msra.mxu0 0.0
    %5308 = vmatprep.subr.mxu0 0.0
    %5309 = vmatpush1.xpose.msra.mxu0 0.0
    %5310 = vmatprep.subr.mxu0 0.0
    %5311 = vmatpush1.xpose.msra.mxu0 0.0
    %5312 = vmatprep.subr.mxu0 0.0
    %5313 = vmatpush1.xpose.msra.mxu0 0.0
    %5314 = vmatprep.subr.mxu0 0.0
    %5315 = vmatpush1.xpose.msra.mxu0 0.0
    %5316 = vmatprep.subr.mxu0 0.0
    %5317 = vmatpush1.xpose.msra.mxu0 0.0
    %5318 = vmatprep.subr.mxu0 0.0
    %5319 = vmatpush1.xpose.msra.mxu0 0.0
    %5320 = vmatprep.subr.mxu0 0.0
    %5321 = vmatpush1.xpose.msra.mxu0 0.0
    %5322 = vmatprep.subr.mxu0 0.0
    %5323 = vmatpush1.xpose.msra.mxu0 0.0
    %5324 = vmatprep.subr.mxu0 0.0
    %5325 = vmatpush1.xpose.msra.mxu0 0.0
    %5326 = vmatprep.subr.mxu0 0.0
    %5327 = vmatpush1.xpose.msra.mxu0 %v5300
    %5328 = vmatprep.subr.mxu0 0.0
    %5329 = vmatpush1.xpose.msra.mxu0 %v5297
    %5330 = vmatprep.subr.mxu0 0.0
    %5331 = vmatpush1.xpose.msra.mxu0 %v5294
    %5332 = vmatprep.subr.mxu0 0.0
    %5333 = vmatpush1.xpose.msra.mxu0 %v5291
    %5334 = vmatprep.subr.mxu0 0.0
    %5335 = vmatpush2.xpose.msra.mxu0 0.0
    %5336 = vmatprep.subr.mxu0 0.0
    %5337 = vmatpush2.xpose.msra.mxu0 0.0
    %5338 = vmatprep.subr.mxu0 0.0
    %5339 = vmatpush2.xpose.msra.mxu0 0.0
    %5340 = vmatprep.subr.mxu0 0.0
    %5341 = vmatpush2.xpose.msra.mxu0 0.0
    %5342 = vmatprep.subr.mxu0 0.0
    %5343 = vmatpush2.xpose.msra.mxu0 0.0
    %5344 = vmatprep.subr.mxu0 0.0
    %5345 = vmatpush2.xpose.msra.mxu0 0.0
    %5346 = vmatprep.subr.mxu0 0.0
    %5347 = vmatpush2.xpose.msra.mxu0 0.0
    %5348 = vmatprep.subr.mxu0 0.0
    %5349 = vmatpush2.xpose.msra.mxu0 0.0
    %5350 = vmatprep.subr.mxu0 0.0
    %5351 = vmatpush2.xpose.msra.mxu0 0.0
    %5352 = vmatprep.subr.mxu0 0.0
    %5353 = vmatpush2.xpose.msra.mxu0 0.0
    %5354 = vmatprep.subr.mxu0 0.0
    %5355 = vmatpush2.xpose.msra.mxu0 0.0
    %5356 = vmatprep.subr.mxu0 0.0
    %5357 = vmatpush2.xpose.msra.mxu0 0.0
    %5358 = vmatprep.subr.mxu0 0.0
    %5359 = vmatpush2.xpose.msra.mxu0 0.0
    %5360 = vmatprep.subr.mxu0 0.0
    %5361 = vmatpush2.xpose.msra.mxu0 0.0
    %5362 = vmatprep.subr.mxu0 0.0
    %5363 = vmatpush2.xpose.msra.mxu0 0.0
    %5364 = vmatprep.subr.mxu0 0.0
    %5365 = vmatpush2.xpose.msra.mxu0 0.0
    %5366 = vmatprep.mubr.f32.mxu0 0.0
    %5367 = vmatmul.mubr.f32.gmra.mxu0 %v3727
    %v5368 = vpop.f32.mrf.mxu0
    %v5369 = vadd.f32 0.0, %v5368
    %v5370 = vpop.f32.mrf.mxu0
    %5371 = vmatprep.mubr.f32.mxu0 0.0
    %5372 = vmatmul.mubr.f32.gmra.mxu0 %v3730
    %v5373 = vpop.f32.mrf.mxu0
    %v5374 = vadd.f32 0.0, %v5373
    %v5375 = vpop.f32.mrf.mxu0
    %5376 = vmatprep.mubr.f32.mxu0 0.0
    %5377 = vmatmul.mubr.f32.gmra.mxu0 %v3733
    %v5378 = vpop.f32.mrf.mxu0
    %v5379 = vadd.f32 0.0, %v5378
    %v5380 = vpop.f32.mrf.mxu0
    %5381 = vmatprep.mubr.f32.mxu0 0.0
    %5382 = vmatmul.mubr.f32.gmra.mxu0 %v3736
    %v5383 = vpop.f32.mrf.mxu0
    %v5384 = vadd.f32 0.0, %v5383
    %v5385 = vpop.f32.mrf.mxu0
    %5386 = vmatprep.mubr.f32.mxu0 0.0
    %5387 = vmatmul.mubr.f32.gmra.mxu0 %v3739
    %v5388 = vpop.f32.mrf.mxu0
    %v5389 = vadd.f32 0.0, %v5388
    %v5390 = vpop.f32.mrf.mxu0
    %5391 = vmatprep.mubr.f32.mxu0 0.0
    %5392 = vmatmul.mubr.f32.gmra.mxu0 %v3742
    %v5393 = vpop.f32.mrf.mxu0
    %v5394 = vadd.f32 0.0, %v5393
    %v5395 = vpop.f32.mrf.mxu0
    %5396 = vmatprep.mubr.f32.mxu0 0.0
    %5397 = vmatmul.mubr.f32.gmra.mxu0 %v3745
    %v5398 = vpop.f32.mrf.mxu0
    %v5399 = vadd.f32 0.0, %v5398
    %v5400 = vpop.f32.mrf.mxu0
    %5401 = vmatprep.mubr.f32.mxu0 0.0
    %5402 = vmatmul.mubr.f32.gmra.mxu0 %v3748
    %v5403 = vpop.f32.mrf.mxu0
    %v5404 = vadd.f32 0.0, %v5403
    %v5405 = vpop.f32.mrf.mxu0
    %5406 = vmatprep.mubr.f32.mxu0 0.0
    %5407 = vmatmul.mubr.f32.gmra.mxu0 %v3751
    %v5408 = vpop.f32.mrf.mxu0
    %v5409 = vadd.f32 0.0, %v5408
    %v5410 = vpop.f32.mrf.mxu0
    %5411 = vmatprep.mubr.f32.mxu0 0.0
    %5412 = vmatmul.mubr.f32.gmra.mxu0 %v3754
    %v5413 = vpop.f32.mrf.mxu0
    %v5414 = vadd.f32 0.0, %v5413
    %v5415 = vpop.f32.mrf.mxu0
    %5416 = vmatprep.mubr.f32.mxu0 0.0
    %5417 = vmatmul.mubr.f32.gmra.mxu0 %v3757
    %v5418 = vpop.f32.mrf.mxu0
    %v5419 = vadd.f32 0.0, %v5418
    %v5420 = vpop.f32.mrf.mxu0
    %5421 = vmatprep.mubr.f32.mxu0 0.0
    %5422 = vmatmul.mubr.f32.gmra.mxu0 %v3760
    %v5423 = vpop.f32.mrf.mxu0
    %v5424 = vadd.f32 0.0, %v5423
    %v5425 = vpop.f32.mrf.mxu0
    %5426 = vmatprep.mubr.f32.mxu0 0.0
    %5427 = vmatmul.mubr.f32.gmra.mxu0 %v3763
    %v5428 = vpop.f32.mrf.mxu0
    %v5429 = vadd.f32 0.0, %v5428
    %v5430 = vpop.f32.mrf.mxu0
    %5431 = vmatprep.mubr.f32.mxu0 0.0
    %5432 = vmatmul.mubr.f32.gmra.mxu0 %v3766
    %v5433 = vpop.f32.mrf.mxu0
    %v5434 = vadd.f32 0.0, %v5433
    %v5435 = vpop.f32.mrf.mxu0
    %5436 = vmatprep.mubr.f32.mxu0 0.0
    %5437 = vmatmul.mubr.f32.gmra.mxu0 %v3769
    %v5438 = vpop.f32.mrf.mxu0
    %v5439 = vadd.f32 0.0, %v5438
    %v5440 = vpop.f32.mrf.mxu0
    %5441 = vmatprep.mubr.f32.mxu0 0.0
    %5442 = vmatmul.mubr.f32.gmra.mxu0 %v3772
    %v5443 = vpop.f32.mrf.mxu0
    %v5444 = vadd.f32 0.0, %v5443
    %v5445 = vpop.f32.mrf.mxu0
    %5446 = vdwg.mxu0
    %v5447 = vmul.f32 %v5369, %v4105
    %v5448 = vmul.f32 %v5374, %v4107
    %v5449 = vmul.f32 %v5379, %v4077
    %v5450 = vmul.f32 %v5384, %v4079
    %v5451 = vmul.f32 %v5389, %v4081
    %v5452 = vmul.f32 %v5394, %v4083
    %v5453 = vmul.f32 %v5399, %v4085
    %v5454 = vmul.f32 %v5404, %v4087
    %v5455 = vmul.f32 %v5409, %v4089
    %v5456 = vmul.f32 %v5414, %v4091
    %v5457 = vmul.f32 %v5419, %v4093
    %v5458 = vmul.f32 %v5424, %v4095
    %v5459 = vmul.f32 %v5429, %v4097
    %v5460 = vmul.f32 %v5434, %v4099
    %v5461 = vmul.f32 %v5439, %v4101
    %v5462 = vmul.f32 %v5444, %v4103
    %v5463 = vadd.f32 %v5274, %v5447
    %v5464 = vadd.f32 %v5275, %v5448
    %v5465 = vadd.f32 %v5276, %v5449
    %v5466 = vadd.f32 %v5277, %v5450
    %v5467 = vadd.f32 %v5278, %v5451
    %v5468 = vadd.f32 %v5279, %v5452
    %v5469 = vadd.f32 %v5280, %v5453
    %v5470 = vadd.f32 %v5281, %v5454
    %v5471 = vadd.f32 %v5282, %v5455
    %v5472 = vadd.f32 %v5283, %v5456
    %v5473 = vadd.f32 %v5284, %v5457
    %v5474 = vadd.f32 %v5285, %v5458
    %v5475 = vadd.f32 %v5286, %v5459
    %v5476 = vadd.f32 %v5287, %v5460
    %v5477 = vadd.f32 %v5288, %v5461
    %v5478 = vadd.f32 %v5289, %v5462
    %v5479 = vrcp.pop %v3841
    %v5480 = vrcp.pop %v3846
    %v5481 = vrcp.pop %v3851
    %v5482 = vrcp.pop %v3856
    %v5483 = vrcp.pop %v3861
    %v5484 = vrcp.pop %v3866
    %v5485 = vrcp.pop %v3871
    %v5486 = vrcp.pop %v3876
    %v5487 = vrcp.pop %v3881
    %v5488 = vrcp.pop %v3886
    %v5489 = vrcp.pop %v3891
    %v5490 = vrcp.pop %v3896
    %v5491 = vrcp.pop %v3901
    %v5492 = vrcp.pop %v3906
    %v5493 = vrcp.pop %v3911
    %v5494 = vrcp.pop %v3916
    %v5495 = vld [vmem:[%s25] sm:$0xf]
    %vm5496 = vcmask 31744
    %v5498 = vsel %vm5496, %v5479, 0
    %v5501 = vsel %vm5496, %v5480, 0
    %v5504 = vsel %vm5496, %v5481, 0
    %v5507 = vsel %vm5496, %v5482, 0
    %v5510 = vsel %vm5496, %v5483, 0
    %v5513 = vsel %vm5496, %v5484, 0
    %v5516 = vsel %vm5496, %v5485, 0
    %v5519 = vsel %vm5496, %v5486, 0
    %v5522 = vsel %vm5496, %v5487, 0
    %v5525 = vsel %vm5496, %v5488, 0
    %v5528 = vsel %vm5496, %v5489, 0
    %v5531 = vsel %vm5496, %v5490, 0
    %v5534 = vsel %vm5496, %v5491, 0
    %v5537 = vsel %vm5496, %v5492, 0
    %v5540 = vsel %vm5496, %v5493, 0
    %v5543 = vsel %vm5496, %v5494, 0
    %vm5545 = vcmask 1043456
    %v5547 = vsel %vm5545, %v5495, 0
    %5549 = vmatprep.subr.mxu0 0.0
    %5550 = vmatpush1.msra.mxu0 0.0
    %5551 = vmatprep.subr.mxu0 0.0
    %5552 = vmatpush1.msra.mxu0 0.0
    %5553 = vmatprep.subr.mxu0 0.0
    %5554 = vmatpush1.msra.mxu0 0.0
    %5555 = vmatprep.subr.mxu0 0.0
    %5556 = vmatpush1.msra.mxu0 0.0
    %5557 = vmatprep.subr.mxu0 0.0
    %5558 = vmatpush1.msra.mxu0 0.0
    %5559 = vmatprep.subr.mxu0 0.0
    %5560 = vmatpush1.msra.mxu0 0.0
    %5561 = vmatprep.subr.mxu0 0.0
    %5562 = vmatpush1.msra.mxu0 0.0
    %5563 = vmatprep.subr.mxu0 0.0
    %5564 = vmatpush1.msra.mxu0 0.0
    %5565 = vmatprep.subr.mxu0 0.0
    %5566 = vmatpush1.msra.mxu0 0.0
    %5567 = vmatprep.subr.mxu0 0.0
    %5568 = vmatpush1.msra.mxu0 0.0
    %5569 = vmatprep.subr.mxu0 0.0
    %5570 = vmatpush1.msra.mxu0 0.0
    %5571 = vmatprep.subr.mxu0 0.0
    %5572 = vmatpush1.msra.mxu0 0.0
    %5573 = vmatprep.subr.mxu0 0.0
    %5574 = vmatpush1.msra.mxu0 0.0
    %5575 = vmatprep.subr.mxu0 0.0
    %5576 = vmatpush1.msra.mxu0 0.0
    %5577 = vmatprep.subr.mxu0 0.0
    %5578 = vmatpush1.msra.mxu0 0.0
    %5579 = vmatprep.subr.mxu0 0.0
    %5580 = vmatpush1.msra.mxu0 %v5547
    %5581 = vmatprep.subr.mxu0 0.0
    %5582 = vmatpush2.msra.mxu0 0.0
    %5583 = vmatprep.subr.mxu0 0.0
    %5584 = vmatpush2.msra.mxu0 0.0
    %5585 = vmatprep.subr.mxu0 0.0
    %5586 = vmatpush2.msra.mxu0 0.0
    %5587 = vmatprep.subr.mxu0 0.0
    %5588 = vmatpush2.msra.mxu0 0.0
    %5589 = vmatprep.subr.mxu0 0.0
    %5590 = vmatpush2.msra.mxu0 0.0
    %5591 = vmatprep.subr.mxu0 0.0
    %5592 = vmatpush2.msra.mxu0 0.0
    %5593 = vmatprep.subr.mxu0 0.0
    %5594 = vmatpush2.msra.mxu0 0.0
    %5595 = vmatprep.subr.mxu0 0.0
    %5596 = vmatpush2.msra.mxu0 0.0
    %5597 = vmatprep.subr.mxu0 0.0
    %5598 = vmatpush2.msra.mxu0 0.0
    %5599 = vmatprep.subr.mxu0 0.0
    %5600 = vmatpush2.msra.mxu0 0.0
    %5601 = vmatprep.subr.mxu0 0.0
    %5602 = vmatpush2.msra.mxu0 0.0
    %5603 = vmatprep.subr.mxu0 0.0
    %5604 = vmatpush2.msra.mxu0 0.0
    %5605 = vmatprep.subr.mxu0 0.0
    %5606 = vmatpush2.msra.mxu0 0.0
    %5607 = vmatprep.subr.mxu0 0.0
    %5608 = vmatpush2.msra.mxu0 0.0
    %5609 = vmatprep.subr.mxu0 0.0
    %5610 = vmatpush2.msra.mxu0 0.0
    %5611 = vmatprep.subr.mxu0 0.0
    %5612 = vmatpush2.msra.mxu0 0.0
    %5613 = vmatprep.mubr.f32.mxu0 0.0
    %5614 = vmatmul.mubr.f32.gmra.mxu0 %v5498
    %v5615 = vpop.f32.mrf.mxu0
    %v5616 = vadd.f32 0.0, %v5615
    %v5617 = vpop.f32.mrf.mxu0
    %5618 = vmatprep.mubr.f32.mxu0 0.0
    %5619 = vmatmul.mubr.f32.gmra.mxu0 %v5501
    %v5620 = vpop.f32.mrf.mxu0
    %v5621 = vadd.f32 0.0, %v5620
    %v5622 = vpop.f32.mrf.mxu0
    %5623 = vmatprep.mubr.f32.mxu0 0.0
    %5624 = vmatmul.mubr.f32.gmra.mxu0 %v5504
    %v5625 = vpop.f32.mrf.mxu0
    %v5626 = vadd.f32 0.0, %v5625
    %v5627 = vpop.f32.mrf.mxu0
    %5628 = vmatprep.mubr.f32.mxu0 0.0
    %5629 = vmatmul.mubr.f32.gmra.mxu0 %v5507
    %v5630 = vpop.f32.mrf.mxu0
    %v5631 = vadd.f32 0.0, %v5630
    %v5632 = vpop.f32.mrf.mxu0
    %5633 = vmatprep.mubr.f32.mxu0 0.0
    %5634 = vmatmul.mubr.f32.gmra.mxu0 %v5510
    %v5635 = vpop.f32.mrf.mxu0
    %v5636 = vadd.f32 0.0, %v5635
    %v5637 = vpop.f32.mrf.mxu0
    %5638 = vmatprep.mubr.f32.mxu0 0.0
    %5639 = vmatmul.mubr.f32.gmra.mxu0 %v5513
    %v5640 = vpop.f32.mrf.mxu0
    %v5641 = vadd.f32 0.0, %v5640
    %v5642 = vpop.f32.mrf.mxu0
    %5643 = vmatprep.mubr.f32.mxu0 0.0
    %5644 = vmatmul.mubr.f32.gmra.mxu0 %v5516
    %v5645 = vpop.f32.mrf.mxu0
    %v5646 = vadd.f32 0.0, %v5645
    %v5647 = vpop.f32.mrf.mxu0
    %5648 = vmatprep.mubr.f32.mxu0 0.0
    %5649 = vmatmul.mubr.f32.gmra.mxu0 %v5519
    %v5650 = vpop.f32.mrf.mxu0
    %v5651 = vadd.f32 0.0, %v5650
    %v5652 = vpop.f32.mrf.mxu0
    %5653 = vmatprep.mubr.f32.mxu0 0.0
    %5654 = vmatmul.mubr.f32.gmra.mxu0 %v5522
    %v5655 = vpop.f32.mrf.mxu0
    %v5656 = vadd.f32 0.0, %v5655
    %v5657 = vpop.f32.mrf.mxu0
    %5658 = vmatprep.mubr.f32.mxu0 0.0
    %5659 = vmatmul.mubr.f32.gmra.mxu0 %v5525
    %v5660 = vpop.f32.mrf.mxu0
    %v5661 = vadd.f32 0.0, %v5660
    %v5662 = vpop.f32.mrf.mxu0
    %5663 = vmatprep.mubr.f32.mxu0 0.0
    %5664 = vmatmul.mubr.f32.gmra.mxu0 %v5528
    %v5665 = vpop.f32.mrf.mxu0
    %v5666 = vadd.f32 0.0, %v5665
    %v5667 = vpop.f32.mrf.mxu0
    %5668 = vmatprep.mubr.f32.mxu0 0.0
    %5669 = vmatmul.mubr.f32.gmra.mxu0 %v5531
    %v5670 = vpop.f32.mrf.mxu0
    %v5671 = vadd.f32 0.0, %v5670
    %v5672 = vpop.f32.mrf.mxu0
    %5673 = vmatprep.mubr.f32.mxu0 0.0
    %5674 = vmatmul.mubr.f32.gmra.mxu0 %v5534
    %v5675 = vpop.f32.mrf.mxu0
    %v5676 = vadd.f32 0.0, %v5675
    %v5677 = vpop.f32.mrf.mxu0
    %5678 = vmatprep.mubr.f32.mxu0 0.0
    %5679 = vmatmul.mubr.f32.gmra.mxu0 %v5537
    %v5680 = vpop.f32.mrf.mxu0
    %v5681 = vadd.f32 0.0, %v5680
    %v5682 = vpop.f32.mrf.mxu0
    %5683 = vmatprep.mubr.f32.mxu0 0.0
    %5684 = vmatmul.mubr.f32.gmra.mxu0 %v5540
    %v5685 = vpop.f32.mrf.mxu0
    %v5686 = vadd.f32 0.0, %v5685
    %v5687 = vpop.f32.mrf.mxu0
    %5688 = vmatprep.mubr.f32.mxu0 0.0
    %5689 = vmatmul.mubr.f32.gmra.mxu0 %v5543
    %v5690 = vpop.f32.mrf.mxu0
    %v5691 = vadd.f32 0.0, %v5690
    %v5692 = vpop.f32.mrf.mxu0
    %5693 = vdwg.mxu0
    %v5694 = vmul.f32 %v5463, %v5616
    %v5695 = vmul.f32 %v5464, %v5621
    %v5696 = vmul.f32 %v5465, %v5626
    %v5697 = vmul.f32 %v5466, %v5631
    %v5698 = vmul.f32 %v5467, %v5636
    %v5699 = vmul.f32 %v5468, %v5641
    %v5700 = vmul.f32 %v5469, %v5646
    %v5701 = vmul.f32 %v5470, %v5651
    %v5702 = vmul.f32 %v5471, %v5656
    %v5703 = vmul.f32 %v5472, %v5661
    %v5704 = vmul.f32 %v5473, %v5666
    %v5705 = vmul.f32 %v5474, %v5671
    %v5706 = vmul.f32 %v5475, %v5676
    %v5707 = vmul.f32 %v5476, %v5681
    %v5708 = vmul.f32 %v5477, %v5686
    %v5709 = vmul.f32 %v5478, %v5691
    %v5710 = vld [vmem:[%s27] sm:$0xff]
    %v5711 = vld [vmem:[%s27 + $0x8] sm:$0xff]
    %v5712 = vld [vmem:[%s27 + $0x10] sm:$0xff]
    %v5713 = vld [vmem:[%s27 + $0x18] sm:$0xff]
    %v5714 = vld [vmem:[%s29] sm:$0x1]
    %v5716 = vlaneseq
    %v5717 = vshrl.u32 %v5716, 7
    %v5718 = vsub.s32 0, %v5717
    %v5719 = vrot.slane %v5714, %v5718
    %v5722 = vsel %vm160, %v5694, 0
    %v5725 = vsel %vm160, %v5695, 0
    %v5728 = vsel %vm160, %v5696, 0
    %v5731 = vsel %vm160, %v5697, 0
    %v5734 = vsel %vm160, %v5698, 0
    %v5737 = vsel %vm160, %v5699, 0
    %v5740 = vsel %vm160, %v5700, 0
    %v5743 = vsel %vm160, %v5701, 0
    %v5746 = vsel %vm160, %v5702, 0
    %v5749 = vsel %vm160, %v5703, 0
    %v5752 = vsel %vm160, %v5704, 0
    %v5755 = vsel %vm160, %v5705, 0
    %v5758 = vsel %vm160, %v5706, 0
    %v5761 = vsel %vm160, %v5707, 0
    %v5764 = vsel %vm160, %v5708, 0
    %v5767 = vsel %vm160, %v5709, 0
    %5769 = vmatprep.subr.mxu0 0.0
    %5770 = vmatpush1.msra.mxu0 0.0
    %5771 = vmatprep.subr.mxu0 0.0
    %5772 = vmatpush1.msra.mxu0 0.0
    %5773 = vmatprep.subr.mxu0 0.0
    %5774 = vmatpush1.msra.mxu0 0.0
    %5775 = vmatprep.subr.mxu0 0.0
    %5776 = vmatpush1.msra.mxu0 0.0
    %5777 = vmatprep.subr.mxu0 0.0
    %5778 = vmatpush1.msra.mxu0 0.0
    %5779 = vmatprep.subr.mxu0 0.0
    %5780 = vmatpush1.msra.mxu0 0.0
    %5781 = vmatprep.subr.mxu0 0.0
    %5782 = vmatpush1.msra.mxu0 0.0
    %5783 = vmatprep.subr.mxu0 0.0
    %5784 = vmatpush1.msra.mxu0 0.0
    %5785 = vmatprep.subr.mxu0 0.0
    %5786 = vmatpush1.msra.mxu0 0.0
    %5787 = vmatprep.subr.mxu0 0.0
    %5788 = vmatpush1.msra.mxu0 0.0
    %5789 = vmatprep.subr.mxu0 0.0
    %5790 = vmatpush1.msra.mxu0 0.0
    %5791 = vmatprep.subr.mxu0 0.0
    %5792 = vmatpush1.msra.mxu0 0.0
    %5793 = vmatprep.subr.mxu0 0.0
    %5794 = vmatpush1.msra.mxu0 %v5713
    %5795 = vmatprep.subr.mxu0 0.0
    %5796 = vmatpush1.msra.mxu0 %v5712
    %5797 = vmatprep.subr.mxu0 0.0
    %5798 = vmatpush1.msra.mxu0 %v5711
    %5799 = vmatprep.subr.mxu0 0.0
    %5800 = vmatpush1.msra.mxu0 %v5710
    %5801 = vmatprep.subr.mxu0 0.0
    %5802 = vmatpush2.msra.mxu0 0.0
    %5803 = vmatprep.subr.mxu0 0.0
    %5804 = vmatpush2.msra.mxu0 0.0
    %5805 = vmatprep.subr.mxu0 0.0
    %5806 = vmatpush2.msra.mxu0 0.0
    %5807 = vmatprep.subr.mxu0 0.0
    %5808 = vmatpush2.msra.mxu0 0.0
    %5809 = vmatprep.subr.mxu0 0.0
    %5810 = vmatpush2.msra.mxu0 0.0
    %5811 = vmatprep.subr.mxu0 0.0
    %5812 = vmatpush2.msra.mxu0 0.0
    %5813 = vmatprep.subr.mxu0 0.0
    %5814 = vmatpush2.msra.mxu0 0.0
    %5815 = vmatprep.subr.mxu0 0.0
    %5816 = vmatpush2.msra.mxu0 0.0
    %5817 = vmatprep.subr.mxu0 0.0
    %5818 = vmatpush2.msra.mxu0 0.0
    %5819 = vmatprep.subr.mxu0 0.0
    %5820 = vmatpush2.msra.mxu0 0.0
    %5821 = vmatprep.subr.mxu0 0.0
    %5822 = vmatpush2.msra.mxu0 0.0
    %5823 = vmatprep.subr.mxu0 0.0
    %5824 = vmatpush2.msra.mxu0 0.0
    %5825 = vmatprep.subr.mxu0 0.0
    %5826 = vmatpush2.msra.mxu0 0.0
    %5827 = vmatprep.subr.mxu0 0.0
    %5828 = vmatpush2.msra.mxu0 0.0
    %5829 = vmatprep.subr.mxu0 0.0
    %5830 = vmatpush2.msra.mxu0 0.0
    %5831 = vmatprep.subr.mxu0 0.0
    %5832 = vmatpush2.msra.mxu0 0.0
    %5833 = vmatprep.mubr.f32.mxu0 0.0
    %5834 = vmatmul.mubr.f32.gmra.mxu0 %v5722
    %v5835 = vpop.f32.mrf.mxu0
    %v5836 = vadd.f32 %v5719, %v5835
    %v5837 = vpop.f32.mrf.mxu0
    %5838 = vmatprep.mubr.f32.mxu0 0.0
    %5839 = vmatmul.mubr.f32.gmra.mxu0 %v5725
    %v5840 = vpop.f32.mrf.mxu0
    %v5841 = vadd.f32 %v5719, %v5840
    %v5842 = vpop.f32.mrf.mxu0
    %5843 = vmatprep.mubr.f32.mxu0 0.0
    %5844 = vmatmul.mubr.f32.gmra.mxu0 %v5728
    %v5845 = vpop.f32.mrf.mxu0
    %v5846 = vadd.f32 %v5719, %v5845
    %v5847 = vpop.f32.mrf.mxu0
    %5848 = vmatprep.mubr.f32.mxu0 0.0
    %5849 = vmatmul.mubr.f32.gmra.mxu0 %v5731
    %v5850 = vpop.f32.mrf.mxu0
    %v5851 = vadd.f32 %v5719, %v5850
    %v5852 = vpop.f32.mrf.mxu0
    %5853 = vmatprep.mubr.f32.mxu0 0.0
    %5854 = vmatmul.mubr.f32.gmra.mxu0 %v5734
    %v5855 = vpop.f32.mrf.mxu0
    %v5856 = vadd.f32 %v5719, %v5855
    %v5857 = vpop.f32.mrf.mxu0
    %5858 = vmatprep.mubr.f32.mxu0 0.0
    %5859 = vmatmul.mubr.f32.gmra.mxu0 %v5737
    %v5860 = vpop.f32.mrf.mxu0
    %v5861 = vadd.f32 %v5719, %v5860
    %v5862 = vpop.f32.mrf.mxu0
    %5863 = vmatprep.mubr.f32.mxu0 0.0
    %5864 = vmatmul.mubr.f32.gmra.mxu0 %v5740
    %v5865 = vpop.f32.mrf.mxu0
    %v5866 = vadd.f32 %v5719, %v5865
    %v5867 = vpop.f32.mrf.mxu0
    %5868 = vmatprep.mubr.f32.mxu0 0.0
    %5869 = vmatmul.mubr.f32.gmra.mxu0 %v5743
    %v5870 = vpop.f32.mrf.mxu0
    %v5871 = vadd.f32 %v5719, %v5870
    %v5872 = vpop.f32.mrf.mxu0
    %5873 = vmatprep.mubr.f32.mxu0 0.0
    %5874 = vmatmul.mubr.f32.gmra.mxu0 %v5746
    %v5875 = vpop.f32.mrf.mxu0
    %v5876 = vadd.f32 %v5719, %v5875
    %v5877 = vpop.f32.mrf.mxu0
    %5878 = vmatprep.mubr.f32.mxu0 0.0
    %5879 = vmatmul.mubr.f32.gmra.mxu0 %v5749
    %v5880 = vpop.f32.mrf.mxu0
    %v5881 = vadd.f32 %v5719, %v5880
    %v5882 = vpop.f32.mrf.mxu0
    %5883 = vmatprep.mubr.f32.mxu0 0.0
    %5884 = vmatmul.mubr.f32.gmra.mxu0 %v5752
    %v5885 = vpop.f32.mrf.mxu0
    %v5886 = vadd.f32 %v5719, %v5885
    %v5887 = vpop.f32.mrf.mxu0
    %5888 = vmatprep.mubr.f32.mxu0 0.0
    %5889 = vmatmul.mubr.f32.gmra.mxu0 %v5755
    %v5890 = vpop.f32.mrf.mxu0
    %v5891 = vadd.f32 %v5719, %v5890
    %v5892 = vpop.f32.mrf.mxu0
    %5893 = vmatprep.mubr.f32.mxu0 0.0
    %5894 = vmatmul.mubr.f32.gmra.mxu0 %v5758
    %v5895 = vpop.f32.mrf.mxu0
    %v5896 = vadd.f32 %v5719, %v5895
    %v5897 = vpop.f32.mrf.mxu0
    %5898 = vmatprep.mubr.f32.mxu0 0.0
    %5899 = vmatmul.mubr.f32.gmra.mxu0 %v5761
    %v5900 = vpop.f32.mrf.mxu0
    %v5901 = vadd.f32 %v5719, %v5900
    %v5902 = vpop.f32.mrf.mxu0
    %5903 = vmatprep.mubr.f32.mxu0 0.0
    %5904 = vmatmul.mubr.f32.gmra.mxu0 %v5764
    %v5905 = vpop.f32.mrf.mxu0
    %v5906 = vadd.f32 %v5719, %v5905
    %v5907 = vpop.f32.mrf.mxu0
    %5908 = vmatprep.mubr.f32.mxu0 0.0
    %5909 = vmatmul.mubr.f32.gmra.mxu0 %v5767
    %v5910 = vpop.f32.mrf.mxu0
    %v5911 = vadd.f32 %v5719, %v5910
    %v5912 = vpop.f32.mrf.mxu0
    %5913 = vdwg.mxu0
    %v5914 = vld [vmem:[%s5] sm:$0xff]
    %v5915 = vld [vmem:[%s5 + $0x8] sm:$0xff]
    %5916 = vmatprep.subr.mxu0 0.0
    %5917 = vmatpush1.msra.mxu0 %v5911
    %5918 = vmatprep.subr.mxu0 0.0
    %5919 = vmatpush1.msra.mxu0 %v5906
    %5920 = vmatprep.subr.mxu0 0.0
    %5921 = vmatpush1.msra.mxu0 %v5901
    %5922 = vmatprep.subr.mxu0 0.0
    %5923 = vmatpush1.msra.mxu0 %v5896
    %5924 = vmatprep.subr.mxu0 0.0
    %5925 = vmatpush1.msra.mxu0 %v5891
    %5926 = vmatprep.subr.mxu0 0.0
    %5927 = vmatpush1.msra.mxu0 %v5886
    %5928 = vmatprep.subr.mxu0 0.0
    %5929 = vmatpush1.msra.mxu0 %v5881
    %5930 = vmatprep.subr.mxu0 0.0
    %5931 = vmatpush1.msra.mxu0 %v5876
    %5932 = vmatprep.subr.mxu0 0.0
    %5933 = vmatpush1.msra.mxu0 %v5871
    %5934 = vmatprep.subr.mxu0 0.0
    %5935 = vmatpush1.msra.mxu0 %v5866
    %5936 = vmatprep.subr.mxu0 0.0
    %5937 = vmatpush1.msra.mxu0 %v5861
    %5938 = vmatprep.subr.mxu0 0.0
    %5939 = vmatpush1.msra.mxu0 %v5856
    %5940 = vmatprep.subr.mxu0 0.0
    %5941 = vmatpush1.msra.mxu0 %v5851
    %5942 = vmatprep.subr.mxu0 0.0
    %5943 = vmatpush1.msra.mxu0 %v5846
    %5944 = vmatprep.subr.mxu0 0.0
    %5945 = vmatpush1.msra.mxu0 %v5841
    %5946 = vmatprep.subr.mxu0 0.0
    %5947 = vmatpush1.msra.mxu0 %v5836
    %5948 = vmatprep.subr.mxu0 0.0
    %5949 = vmatpush2.msra.mxu0 0.0
    %5950 = vmatprep.subr.mxu0 0.0
    %5951 = vmatpush2.msra.mxu0 0.0
    %5952 = vmatprep.subr.mxu0 0.0
    %5953 = vmatpush2.msra.mxu0 0.0
    %5954 = vmatprep.subr.mxu0 0.0
    %5955 = vmatpush2.msra.mxu0 0.0
    %5956 = vmatprep.subr.mxu0 0.0
    %5957 = vmatpush2.msra.mxu0 0.0
    %5958 = vmatprep.subr.mxu0 0.0
    %5959 = vmatpush2.msra.mxu0 0.0
    %5960 = vmatprep.subr.mxu0 0.0
    %5961 = vmatpush2.msra.mxu0 0.0
    %5962 = vmatprep.subr.mxu0 0.0
    %5963 = vmatpush2.msra.mxu0 0.0
    %5964 = vmatprep.subr.mxu0 0.0
    %5965 = vmatpush2.msra.mxu0 0.0
    %5966 = vmatprep.subr.mxu0 0.0
    %5967 = vmatpush2.msra.mxu0 0.0
    %5968 = vmatprep.subr.mxu0 0.0
    %5969 = vmatpush2.msra.mxu0 0.0
    %5970 = vmatprep.subr.mxu0 0.0
    %5971 = vmatpush2.msra.mxu0 0.0
    %5972 = vmatprep.subr.mxu0 0.0
    %5973 = vmatpush2.msra.mxu0 0.0
    %5974 = vmatprep.subr.mxu0 0.0
    %5975 = vmatpush2.msra.mxu0 0.0
    %5976 = vmatprep.subr.mxu0 0.0
    %5977 = vmatpush2.msra.mxu0 0.0
    %5978 = vmatprep.subr.mxu0 0.0
    %5979 = vmatpush2.msra.mxu0 0.0
    %5980 = vmatprep.mubr.f32.mxu0 0.0
    %5981 = vmatmul.mubr.f32.gmra.mxu0 %v5914
    %v5982 = vpop.f32.mrf.mxu0
    %v5983 = vadd.f32 0.0, %v5982
    %v5984 = vpop.f32.mrf.mxu0
    %5985 = vmatprep.mubr.f32.mxu0 0.0
    %5986 = vmatmul.mubr.f32.gmra.mxu0 %v5915
    %v5987 = vpop.f32.mrf.mxu0
    %v5988 = vadd.f32 0.0, %v5987
    %v5989 = vpop.f32.mrf.mxu0
    %5990 = vdwg.mxu0
    %v5991 = vld [vmem:[%s31] sm:$0xff]
    %v5992 = vld [vmem:[%s31 + $0x8] sm:$0xff]
    %v5993 = vld [vmem:[%s31 + $0x10] sm:$0xff]
    %v5994 = vld [vmem:[%s31 + $0x18] sm:$0xff]
    %v5995 = vld [vmem:[%s33] sm:$0x1]
    %v5997 = vlaneseq
    %v5998 = vshrl.u32 %v5997, 7
    %v5999 = vsub.s32 0, %v5998
    %v6000 = vrot.slane %v5995, %v5999
    %v6003 = vsel %vm160, %v5983, 0
    %v6006 = vsel %vm160, %v5988, 0
    %6008 = vmatprep.subr.mxu0 0.0
    %6009 = vmatpush1.msra.mxu0 0.0
    %6010 = vmatprep.subr.mxu0 0.0
    %6011 = vmatpush1.msra.mxu0 0.0
    %6012 = vmatprep.subr.mxu0 0.0
    %6013 = vmatpush1.msra.mxu0 0.0
    %6014 = vmatprep.subr.mxu0 0.0
    %6015 = vmatpush1.msra.mxu0 0.0
    %6016 = vmatprep.subr.mxu0 0.0
    %6017 = vmatpush1.msra.mxu0 0.0
    %6018 = vmatprep.subr.mxu0 0.0
    %6019 = vmatpush1.msra.mxu0 0.0
    %6020 = vmatprep.subr.mxu0 0.0
    %6021 = vmatpush1.msra.mxu0 0.0
    %6022 = vmatprep.subr.mxu0 0.0
    %6023 = vmatpush1.msra.mxu0 0.0
    %6024 = vmatprep.subr.mxu0 0.0
    %6025 = vmatpush1.msra.mxu0 0.0
    %6026 = vmatprep.subr.mxu0 0.0
    %6027 = vmatpush1.msra.mxu0 0.0
    %6028 = vmatprep.subr.mxu0 0.0
    %6029 = vmatpush1.msra.mxu0 0.0
    %6030 = vmatprep.subr.mxu0 0.0
    %6031 = vmatpush1.msra.mxu0 0.0
    %6032 = vmatprep.subr.mxu0 0.0
    %6033 = vmatpush1.msra.mxu0 %v5994
    %6034 = vmatprep.subr.mxu0 0.0
    %6035 = vmatpush1.msra.mxu0 %v5993
    %6036 = vmatprep.subr.mxu0 0.0
    %6037 = vmatpush1.msra.mxu0 %v5992
    %6038 = vmatprep.subr.mxu0 0.0
    %6039 = vmatpush1.msra.mxu0 %v5991
    %6040 = vmatprep.subr.mxu0 0.0
    %6041 = vmatpush2.msra.mxu0 0.0
    %6042 = vmatprep.subr.mxu0 0.0
    %6043 = vmatpush2.msra.mxu0 0.0
    %6044 = vmatprep.subr.mxu0 0.0
    %6045 = vmatpush2.msra.mxu0 0.0
    %6046 = vmatprep.subr.mxu0 0.0
    %6047 = vmatpush2.msra.mxu0 0.0
    %6048 = vmatprep.subr.mxu0 0.0
    %6049 = vmatpush2.msra.mxu0 0.0
    %6050 = vmatprep.subr.mxu0 0.0
    %6051 = vmatpush2.msra.mxu0 0.0
    %6052 = vmatprep.subr.mxu0 0.0
    %6053 = vmatpush2.msra.mxu0 0.0
    %6054 = vmatprep.subr.mxu0 0.0
    %6055 = vmatpush2.msra.mxu0 0.0
    %6056 = vmatprep.subr.mxu0 0.0
    %6057 = vmatpush2.msra.mxu0 0.0
    %6058 = vmatprep.subr.mxu0 0.0
    %6059 = vmatpush2.msra.mxu0 0.0
    %6060 = vmatprep.subr.mxu0 0.0
    %6061 = vmatpush2.msra.mxu0 0.0
    %6062 = vmatprep.subr.mxu0 0.0
    %6063 = vmatpush2.msra.mxu0 0.0
    %6064 = vmatprep.subr.mxu0 0.0
    %6065 = vmatpush2.msra.mxu0 0.0
    %6066 = vmatprep.subr.mxu0 0.0
    %6067 = vmatpush2.msra.mxu0 0.0
    %6068 = vmatprep.subr.mxu0 0.0
    %6069 = vmatpush2.msra.mxu0 0.0
    %6070 = vmatprep.subr.mxu0 0.0
    %6071 = vmatpush2.msra.mxu0 0.0
    %6072 = vmatprep.mubr.f32.mxu0 0.0
    %6073 = vmatmul.mubr.f32.gmra.mxu0 %v6003
    %v6074 = vpop.f32.mrf.mxu0
    %v6075 = vadd.f32 %v6000, %v6074
    %v6076 = vpop.f32.mrf.mxu0
    %6077 = vmatprep.mubr.f32.mxu0 0.0
    %6078 = vmatmul.mubr.f32.gmra.mxu0 %v6006
    %v6079 = vpop.f32.mrf.mxu0
    %v6080 = vadd.f32 %v6000, %v6079
    %v6081 = vpop.f32.mrf.mxu0
    %6082 = vdwg.mxu0
    %v6083 = vsel %vm494, %v6075, 0.0
    %6084 = vadd.xlane.f32.xlu0 %v6083
    %v6085 = vpop.xlane.xlu0 %6084
    %v6086 = vsel %vm494, %v6080, 0.0
    %6087 = vadd.xlane.f32.xlu0 %v6086
    %v6088 = vpop.xlane.xlu0 %6087
    %v6089 = vrcp.pop 16.0
    %v6090 = vmul.f32 %v6085, %v6089
    %v6091 = vmul.f32 %v6088, %v6089
    %v6092 = vsub.f32 %v6075, %v6090
    %v6093 = vsub.f32 %v6080, %v6091
    %v6094 = vmul.f32 %v6092, %v6092
    %v6095 = vmul.f32 %v6093, %v6093
    %v6096 = vsel %vm494, %v6094, 0.0
    %6097 = vadd.xlane.f32.xlu0 %v6096
    %v6098 = vpop.xlane.xlu0 %6097
    %v6099 = vsel %vm494, %v6095, 0.0
    %6100 = vadd.xlane.f32.xlu0 %v6099
    %v6101 = vpop.xlane.xlu0 %6100
    %v6102 = vmul.f32 %v6098, %v6089
    %v6103 = vmul.f32 %v6101, %v6089
    %v6104 = vadd.f32 %v6102, 1e-05
    %v6105 = vadd.f32 %v6103, 1e-05
    %v6106 = vrsqrt.pop %v6104
    %v6107 = vrsqrt.pop %v6105
    %v6108 = vmul.f32 %v6092, %v6106
    %v6109 = vmul.f32 %v6093, %v6107
    %v6110 = vld [vmem:[%s35] sm:$0x1]
    %v6112 = vlaneseq
    %v6113 = vshrl.u32 %v6112, 7
    %v6114 = vsub.s32 0, %v6113
    %v6115 = vrot.slane %v6110, %v6114
    %v6117 = vmul.f32 %v6108, %v6115
    %v6118 = vmul.f32 %v6109, %v6115
    %v6119 = vld [vmem:[%s37] sm:$0x1]
    %v6121 = vlaneseq
    %v6122 = vshrl.u32 %v6121, 7
    %v6123 = vsub.s32 0, %v6122
    %v6124 = vrot.slane %v6119, %v6123
    %v6126 = vadd.f32 %v6117, %v6124
    %v6127 = vadd.f32 %v6118, %v6124
    %v6128 = vld [vmem:[%s7] sm:$0xff]
    %v6129 = vld [vmem:[%s7 + $0x8] sm:$0xff]
    %v6130 = vld [vmem:[%s39] sm:$0xff]
    %v6131 = vld [vmem:[%s39 + $0x8] sm:$0xff]
    %v6133 = vsel %vm494, %v6126, 0
    %v6136 = vsel %vm494, %v6127, 0
    %6138 = vmatprep.subr.mxu0 0.0
    %6139 = vmatpush1.msra.mxu0 0.0
    %6140 = vmatprep.subr.mxu0 0.0
    %6141 = vmatpush1.msra.mxu0 0.0
    %6142 = vmatprep.subr.mxu0 0.0
    %6143 = vmatpush1.msra.mxu0 0.0
    %6144 = vmatprep.subr.mxu0 0.0
    %6145 = vmatpush1.msra.mxu0 0.0
    %6146 = vmatprep.subr.mxu0 0.0
    %6147 = vmatpush1.msra.mxu0 0.0
    %6148 = vmatprep.subr.mxu0 0.0
    %6149 = vmatpush1.msra.mxu0 0.0
    %6150 = vmatprep.subr.mxu0 0.0
    %6151 = vmatpush1.msra.mxu0 0.0
    %6152 = vmatprep.subr.mxu0 0.0
    %6153 = vmatpush1.msra.mxu0 0.0
    %6154 = vmatprep.subr.mxu0 0.0
    %6155 = vmatpush1.msra.mxu0 0.0
    %6156 = vmatprep.subr.mxu0 0.0
    %6157 = vmatpush1.msra.mxu0 0.0
    %6158 = vmatprep.subr.mxu0 0.0
    %6159 = vmatpush1.msra.mxu0 0.0
    %6160 = vmatprep.subr.mxu0 0.0
    %6161 = vmatpush1.msra.mxu0 0.0
    %6162 = vmatprep.subr.mxu0 0.0
    %6163 = vmatpush1.msra.mxu0 0.0
    %6164 = vmatprep.subr.mxu0 0.0
    %6165 = vmatpush1.msra.mxu0 0.0
    %6166 = vmatprep.subr.mxu0 0.0
    %6167 = vmatpush1.msra.mxu0 %v6131
    %6168 = vmatprep.subr.mxu0 0.0
    %6169 = vmatpush1.msra.mxu0 %v6130
    %6170 = vmatprep.subr.mxu0 0.0
    %6171 = vmatpush2.msra.mxu0 0.0
    %6172 = vmatprep.subr.mxu0 0.0
    %6173 = vmatpush2.msra.mxu0 0.0
    %6174 = vmatprep.subr.mxu0 0.0
    %6175 = vmatpush2.msra.mxu0 0.0
    %6176 = vmatprep.subr.mxu0 0.0
    %6177 = vmatpush2.msra.mxu0 0.0
    %6178 = vmatprep.subr.mxu0 0.0
    %6179 = vmatpush2.msra.mxu0 0.0
    %6180 = vmatprep.subr.mxu0 0.0
    %6181 = vmatpush2.msra.mxu0 0.0
    %6182 = vmatprep.subr.mxu0 0.0
    %6183 = vmatpush2.msra.mxu0 0.0
    %6184 = vmatprep.subr.mxu0 0.0
    %6185 = vmatpush2.msra.mxu0 0.0
    %6186 = vmatprep.subr.mxu0 0.0
    %6187 = vmatpush2.msra.mxu0 0.0
    %6188 = vmatprep.subr.mxu0 0.0
    %6189 = vmatpush2.msra.mxu0 0.0
    %6190 = vmatprep.subr.mxu0 0.0
    %6191 = vmatpush2.msra.mxu0 0.0
    %6192 = vmatprep.subr.mxu0 0.0
    %6193 = vmatpush2.msra.mxu0 0.0
    %6194 = vmatprep.subr.mxu0 0.0
    %6195 = vmatpush2.msra.mxu0 0.0
    %6196 = vmatprep.subr.mxu0 0.0
    %6197 = vmatpush2.msra.mxu0 0.0
    %6198 = vmatprep.subr.mxu0 0.0
    %6199 = vmatpush2.msra.mxu0 0.0
    %6200 = vmatprep.subr.mxu0 0.0
    %6201 = vmatpush2.msra.mxu0 0.0
    %6202 = vmatprep.mubr.f32.mxu0 0.0
    %6203 = vmatmul.mubr.f32.gmra.mxu0 %v6133
    %v6204 = vpop.f32.mrf.mxu0
    %v6205 = vadd.f32 0.0, %v6204
    %v6206 = vpop.f32.mrf.mxu0
    %6207 = vmatprep.mubr.f32.mxu0 0.0
    %6208 = vmatmul.mubr.f32.gmra.mxu0 %v6136
    %v6209 = vpop.f32.mrf.mxu0
    %v6210 = vadd.f32 0.0, %v6209
    %v6211 = vpop.f32.mrf.mxu0
    %6212 = vdwg.mxu0
    %v6213 = vld [vmem:[%s41] sm:$0x1]
    %v6215 = vlaneseq
    %v6216 = vshrl.u32 %v6215, 7
    %v6217 = vsub.s32 0, %v6216
    %v6218 = vrot.slane %v6213, %v6217
    %v6221 = vsel %vm494, %v6128, 0
    %v6224 = vsel %vm494, %v6129, 0
    %6226 = vmatprep.subr.mxu0 0.0
    %6227 = vmatpush1.msra.mxu0 0.0
    %6228 = vmatprep.subr.mxu0 0.0
    %6229 = vmatpush1.msra.mxu0 0.0
    %6230 = vmatprep.subr.mxu0 0.0
    %6231 = vmatpush1.msra.mxu0 0.0
    %6232 = vmatprep.subr.mxu0 0.0
    %6233 = vmatpush1.msra.mxu0 0.0
    %6234 = vmatprep.subr.mxu0 0.0
    %6235 = vmatpush1.msra.mxu0 0.0
    %6236 = vmatprep.subr.mxu0 0.0
    %6237 = vmatpush1.msra.mxu0 0.0
    %6238 = vmatprep.subr.mxu0 0.0
    %6239 = vmatpush1.msra.mxu0 0.0
    %6240 = vmatprep.subr.mxu0 0.0
    %6241 = vmatpush1.msra.mxu0 0.0
    %6242 = vmatprep.subr.mxu0 0.0
    %6243 = vmatpush1.msra.mxu0 0.0
    %6244 = vmatprep.subr.mxu0 0.0
    %6245 = vmatpush1.msra.mxu0 0.0
    %6246 = vmatprep.subr.mxu0 0.0
    %6247 = vmatpush1.msra.mxu0 0.0
    %6248 = vmatprep.subr.mxu0 0.0
    %6249 = vmatpush1.msra.mxu0 0.0
    %6250 = vmatprep.subr.mxu0 0.0
    %6251 = vmatpush1.msra.mxu0 0.0
    %6252 = vmatprep.subr.mxu0 0.0
    %6253 = vmatpush1.msra.mxu0 0.0
    %6254 = vmatprep.subr.mxu0 0.0
    %6255 = vmatpush1.msra.mxu0 %v6210
    %6256 = vmatprep.subr.mxu0 0.0
    %6257 = vmatpush1.msra.mxu0 %v6205
    %6258 = vmatprep.subr.mxu0 0.0
    %6259 = vmatpush2.msra.mxu0 0.0
    %6260 = vmatprep.subr.mxu0 0.0
    %6261 = vmatpush2.msra.mxu0 0.0
    %6262 = vmatprep.subr.mxu0 0.0
    %6263 = vmatpush2.msra.mxu0 0.0
    %6264 = vmatprep.subr.mxu0 0.0
    %6265 = vmatpush2.msra.mxu0 0.0
    %6266 = vmatprep.subr.mxu0 0.0
    %6267 = vmatpush2.msra.mxu0 0.0
    %6268 = vmatprep.subr.mxu0 0.0
    %6269 = vmatpush2.msra.mxu0 0.0
    %6270 = vmatprep.subr.mxu0 0.0
    %6271 = vmatpush2.msra.mxu0 0.0
    %6272 = vmatprep.subr.mxu0 0.0
    %6273 = vmatpush2.msra.mxu0 0.0
    %6274 = vmatprep.subr.mxu0 0.0
    %6275 = vmatpush2.msra.mxu0 0.0
    %6276 = vmatprep.subr.mxu0 0.0
    %6277 = vmatpush2.msra.mxu0 0.0
    %6278 = vmatprep.subr.mxu0 0.0
    %6279 = vmatpush2.msra.mxu0 0.0
    %6280 = vmatprep.subr.mxu0 0.0
    %6281 = vmatpush2.msra.mxu0 0.0
    %6282 = vmatprep.subr.mxu0 0.0
    %6283 = vmatpush2.msra.mxu0 0.0
    %6284 = vmatprep.subr.mxu0 0.0
    %6285 = vmatpush2.msra.mxu0 0.0
    %6286 = vmatprep.subr.mxu0 0.0
    %6287 = vmatpush2.msra.mxu0 0.0
    %6288 = vmatprep.subr.mxu0 0.0
    %6289 = vmatpush2.msra.mxu0 0.0
    %6290 = vmatprep.mubr.f32.mxu0 0.0
    %6291 = vmatmul.mubr.f32.gmra.mxu0 %v6221
    %v6292 = vpop.f32.mrf.mxu0
    %v6293 = vadd.f32 %v6218, %v6292
    %v6294 = vpop.f32.mrf.mxu0
    %6295 = vmatprep.mubr.f32.mxu0 0.0
    %6296 = vmatmul.mubr.f32.gmra.mxu0 %v6224
    %v6297 = vpop.f32.mrf.mxu0
    %v6298 = vadd.f32 %v6218, %v6297
    %v6299 = vpop.f32.mrf.mxu0
    %6300 = vdwg.mxu0
    %v6301 = vmax.f32 %v6293, 0.0
    %v6302 = vmax.f32 %v6298, 0.0
    %v6303 = vld [vmem:[%s43] sm:$0xff]
    %v6304 = vld [vmem:[%s43 + $0x8] sm:$0xff]
    %v6305 = vld [vmem:[%s45] sm:$0x1]
    %v6307 = vlaneseq
    %v6308 = vshrl.u32 %v6307, 7
    %v6309 = vsub.s32 0, %v6308
    %v6310 = vrot.slane %v6305, %v6309
    %6312 = vmatprep.subr.mxu0 0.0
    %6313 = vmatpush1.msra.mxu0 0.0
    %6314 = vmatprep.subr.mxu0 0.0
    %6315 = vmatpush1.msra.mxu0 0.0
    %6316 = vmatprep.subr.mxu0 0.0
    %6317 = vmatpush1.msra.mxu0 0.0
    %6318 = vmatprep.subr.mxu0 0.0
    %6319 = vmatpush1.msra.mxu0 0.0
    %6320 = vmatprep.subr.mxu0 0.0
    %6321 = vmatpush1.msra.mxu0 0.0
    %6322 = vmatprep.subr.mxu0 0.0
    %6323 = vmatpush1.msra.mxu0 0.0
    %6324 = vmatprep.subr.mxu0 0.0
    %6325 = vmatpush1.msra.mxu0 0.0
    %6326 = vmatprep.subr.mxu0 0.0
    %6327 = vmatpush1.msra.mxu0 0.0
    %6328 = vmatprep.subr.mxu0 0.0
    %6329 = vmatpush1.msra.mxu0 0.0
    %6330 = vmatprep.subr.mxu0 0.0
    %6331 = vmatpush1.msra.mxu0 0.0
    %6332 = vmatprep.subr.mxu0 0.0
    %6333 = vmatpush1.msra.mxu0 0.0
    %6334 = vmatprep.subr.mxu0 0.0
    %6335 = vmatpush1.msra.mxu0 0.0
    %6336 = vmatprep.subr.mxu0 0.0
    %6337 = vmatpush1.msra.mxu0 0.0
    %6338 = vmatprep.subr.mxu0 0.0
    %6339 = vmatpush1.msra.mxu0 0.0
    %6340 = vmatprep.subr.mxu0 0.0
    %6341 = vmatpush1.msra.mxu0 %v6304
    %6342 = vmatprep.subr.mxu0 0.0
    %6343 = vmatpush1.msra.mxu0 %v6303
    %6344 = vmatprep.subr.mxu0 0.0
    %6345 = vmatpush2.msra.mxu0 0.0
    %6346 = vmatprep.subr.mxu0 0.0
    %6347 = vmatpush2.msra.mxu0 0.0
    %6348 = vmatprep.subr.mxu0 0.0
    %6349 = vmatpush2.msra.mxu0 0.0
    %6350 = vmatprep.subr.mxu0 0.0
    %6351 = vmatpush2.msra.mxu0 0.0
    %6352 = vmatprep.subr.mxu0 0.0
    %6353 = vmatpush2.msra.mxu0 0.0
    %6354 = vmatprep.subr.mxu0 0.0
    %6355 = vmatpush2.msra.mxu0 0.0
    %6356 = vmatprep.subr.mxu0 0.0
    %6357 = vmatpush2.msra.mxu0 0.0
    %6358 = vmatprep.subr.mxu0 0.0
    %6359 = vmatpush2.msra.mxu0 0.0
    %6360 = vmatprep.subr.mxu0 0.0
    %6361 = vmatpush2.msra.mxu0 0.0
    %6362 = vmatprep.subr.mxu0 0.0
    %6363 = vmatpush2.msra.mxu0 0.0
    %6364 = vmatprep.subr.mxu0 0.0
    %6365 = vmatpush2.msra.mxu0 0.0
    %6366 = vmatprep.subr.mxu0 0.0
    %6367 = vmatpush2.msra.mxu0 0.0
    %6368 = vmatprep.subr.mxu0 0.0
    %6369 = vmatpush2.msra.mxu0 0.0
    %6370 = vmatprep.subr.mxu0 0.0
    %6371 = vmatpush2.msra.mxu0 0.0
    %6372 = vmatprep.subr.mxu0 0.0
    %6373 = vmatpush2.msra.mxu0 0.0
    %6374 = vmatprep.subr.mxu0 0.0
    %6375 = vmatpush2.msra.mxu0 0.0
    %6376 = vmatprep.mubr.f32.mxu0 0.0
    %6377 = vmatmul.mubr.f32.gmra.mxu0 %v6133
    %v6378 = vpop.f32.mrf.mxu0
    %v6379 = vadd.f32 %v6310, %v6378
    %v6380 = vpop.f32.mrf.mxu0
    %6381 = vmatprep.mubr.f32.mxu0 0.0
    %6382 = vmatmul.mubr.f32.gmra.mxu0 %v6136
    %v6383 = vpop.f32.mrf.mxu0
    %v6384 = vadd.f32 %v6310, %v6383
    %v6385 = vpop.f32.mrf.mxu0
    %6386 = vdwg.mxu0
    %v6387 = vadd.f32 %v6301, %v6379
    %v6388 = vadd.f32 %v6302, %v6384
    %v6389 = vld [vmem:[%s47] sm:$0xff]
    %v6390 = vld [vmem:[%s47 + $0x8] sm:$0xff]
    %v6391 = vld [vmem:[%s47 + $0x10] sm:$0xff]
    %v6392 = vld [vmem:[%s47 + $0x18] sm:$0xff]
    %v6394 = vsel %vm160, %v6387, 0
    %v6397 = vsel %vm160, %v6388, 0
    %6399 = vmatprep.subr.mxu0 0.0
    %6400 = vmatpush1.msra.mxu0 0.0
    %6401 = vmatprep.subr.mxu0 0.0
    %6402 = vmatpush1.msra.mxu0 0.0
    %6403 = vmatprep.subr.mxu0 0.0
    %6404 = vmatpush1.msra.mxu0 0.0
    %6405 = vmatprep.subr.mxu0 0.0
    %6406 = vmatpush1.msra.mxu0 0.0
    %6407 = vmatprep.subr.mxu0 0.0
    %6408 = vmatpush1.msra.mxu0 0.0
    %6409 = vmatprep.subr.mxu0 0.0
    %6410 = vmatpush1.msra.mxu0 0.0
    %6411 = vmatprep.subr.mxu0 0.0
    %6412 = vmatpush1.msra.mxu0 0.0
    %6413 = vmatprep.subr.mxu0 0.0
    %6414 = vmatpush1.msra.mxu0 0.0
    %6415 = vmatprep.subr.mxu0 0.0
    %6416 = vmatpush1.msra.mxu0 0.0
    %6417 = vmatprep.subr.mxu0 0.0
    %6418 = vmatpush1.msra.mxu0 0.0
    %6419 = vmatprep.subr.mxu0 0.0
    %6420 = vmatpush1.msra.mxu0 0.0
    %6421 = vmatprep.subr.mxu0 0.0
    %6422 = vmatpush1.msra.mxu0 0.0
    %6423 = vmatprep.subr.mxu0 0.0
    %6424 = vmatpush1.msra.mxu0 %v6392
    %6425 = vmatprep.subr.mxu0 0.0
    %6426 = vmatpush1.msra.mxu0 %v6391
    %6427 = vmatprep.subr.mxu0 0.0
    %6428 = vmatpush1.msra.mxu0 %v6390
    %6429 = vmatprep.subr.mxu0 0.0
    %6430 = vmatpush1.msra.mxu0 %v6389
    %6431 = vmatprep.subr.mxu0 0.0
    %6432 = vmatpush2.msra.mxu0 0.0
    %6433 = vmatprep.subr.mxu0 0.0
    %6434 = vmatpush2.msra.mxu0 0.0
    %6435 = vmatprep.subr.mxu0 0.0
    %6436 = vmatpush2.msra.mxu0 0.0
    %6437 = vmatprep.subr.mxu0 0.0
    %6438 = vmatpush2.msra.mxu0 0.0
    %6439 = vmatprep.subr.mxu0 0.0
    %6440 = vmatpush2.msra.mxu0 0.0
    %6441 = vmatprep.subr.mxu0 0.0
    %6442 = vmatpush2.msra.mxu0 0.0
    %6443 = vmatprep.subr.mxu0 0.0
    %6444 = vmatpush2.msra.mxu0 0.0
    %6445 = vmatprep.subr.mxu0 0.0
    %6446 = vmatpush2.msra.mxu0 0.0
    %6447 = vmatprep.subr.mxu0 0.0
    %6448 = vmatpush2.msra.mxu0 0.0
    %6449 = vmatprep.subr.mxu0 0.0
    %6450 = vmatpush2.msra.mxu0 0.0
    %6451 = vmatprep.subr.mxu0 0.0
    %6452 = vmatpush2.msra.mxu0 0.0
    %6453 = vmatprep.subr.mxu0 0.0
    %6454 = vmatpush2.msra.mxu0 0.0
    %6455 = vmatprep.subr.mxu0 0.0
    %6456 = vmatpush2.msra.mxu0 0.0
    %6457 = vmatprep.subr.mxu0 0.0
    %6458 = vmatpush2.msra.mxu0 0.0
    %6459 = vmatprep.subr.mxu0 0.0
    %6460 = vmatpush2.msra.mxu0 0.0
    %6461 = vmatprep.subr.mxu0 0.0
    %6462 = vmatpush2.msra.mxu0 0.0
    %6463 = vmatprep.mubr.f32.mxu0 0.0
    %6464 = vmatmul.mubr.f32.gmra.mxu0 %v6394
    %v6465 = vpop.f32.mrf.mxu0
    %v6466 = vadd.f32 0.0, %v6465
    %v6467 = vpop.f32.mrf.mxu0
    %6468 = vmatprep.mubr.f32.mxu0 0.0
    %6469 = vmatmul.mubr.f32.gmra.mxu0 %v6397
    %v6470 = vpop.f32.mrf.mxu0
    %v6471 = vadd.f32 0.0, %v6470
    %v6472 = vpop.f32.mrf.mxu0
    %6473 = vdwg.mxu0
    %v6474 = vld [vmem:[%s49] sm:$0x1]
    %v6476 = vlaneseq
    %v6477 = vshrl.u32 %v6476, 7
    %v6478 = vsub.s32 0, %v6477
    %v6479 = vrot.slane %v6474, %v6478
    %6481 = vmatprep.subr.mxu0 0.0
    %6482 = vmatpush1.msra.mxu0 0.0
    %6483 = vmatprep.subr.mxu0 0.0
    %6484 = vmatpush1.msra.mxu0 0.0
    %6485 = vmatprep.subr.mxu0 0.0
    %6486 = vmatpush1.msra.mxu0 0.0
    %6487 = vmatprep.subr.mxu0 0.0
    %6488 = vmatpush1.msra.mxu0 0.0
    %6489 = vmatprep.subr.mxu0 0.0
    %6490 = vmatpush1.msra.mxu0 0.0
    %6491 = vmatprep.subr.mxu0 0.0
    %6492 = vmatpush1.msra.mxu0 0.0
    %6493 = vmatprep.subr.mxu0 0.0
    %6494 = vmatpush1.msra.mxu0 0.0
    %6495 = vmatprep.subr.mxu0 0.0
    %6496 = vmatpush1.msra.mxu0 0.0
    %6497 = vmatprep.subr.mxu0 0.0
    %6498 = vmatpush1.msra.mxu0 0.0
    %6499 = vmatprep.subr.mxu0 0.0
    %6500 = vmatpush1.msra.mxu0 0.0
    %6501 = vmatprep.subr.mxu0 0.0
    %6502 = vmatpush1.msra.mxu0 0.0
    %6503 = vmatprep.subr.mxu0 0.0
    %6504 = vmatpush1.msra.mxu0 0.0
    %6505 = vmatprep.subr.mxu0 0.0
    %6506 = vmatpush1.msra.mxu0 0.0
    %6507 = vmatprep.subr.mxu0 0.0
    %6508 = vmatpush1.msra.mxu0 0.0
    %6509 = vmatprep.subr.mxu0 0.0
    %6510 = vmatpush1.msra.mxu0 %v6471
    %6511 = vmatprep.subr.mxu0 0.0
    %6512 = vmatpush1.msra.mxu0 %v6466
    %6513 = vmatprep.subr.mxu0 0.0
    %6514 = vmatpush2.msra.mxu0 0.0
    %6515 = vmatprep.subr.mxu0 0.0
    %6516 = vmatpush2.msra.mxu0 0.0
    %6517 = vmatprep.subr.mxu0 0.0
    %6518 = vmatpush2.msra.mxu0 0.0
    %6519 = vmatprep.subr.mxu0 0.0
    %6520 = vmatpush2.msra.mxu0 0.0
    %6521 = vmatprep.subr.mxu0 0.0
    %6522 = vmatpush2.msra.mxu0 0.0
    %6523 = vmatprep.subr.mxu0 0.0
    %6524 = vmatpush2.msra.mxu0 0.0
    %6525 = vmatprep.subr.mxu0 0.0
    %6526 = vmatpush2.msra.mxu0 0.0
    %6527 = vmatprep.subr.mxu0 0.0
    %6528 = vmatpush2.msra.mxu0 0.0
    %6529 = vmatprep.subr.mxu0 0.0
    %6530 = vmatpush2.msra.mxu0 0.0
    %6531 = vmatprep.subr.mxu0 0.0
    %6532 = vmatpush2.msra.mxu0 0.0
    %6533 = vmatprep.subr.mxu0 0.0
    %6534 = vmatpush2.msra.mxu0 0.0
    %6535 = vmatprep.subr.mxu0 0.0
    %6536 = vmatpush2.msra.mxu0 0.0
    %6537 = vmatprep.subr.mxu0 0.0
    %6538 = vmatpush2.msra.mxu0 0.0
    %6539 = vmatprep.subr.mxu0 0.0
    %6540 = vmatpush2.msra.mxu0 0.0
    %6541 = vmatprep.subr.mxu0 0.0
    %6542 = vmatpush2.msra.mxu0 0.0
    %6543 = vmatprep.subr.mxu0 0.0
    %6544 = vmatpush2.msra.mxu0 0.0
    %6545 = vmatprep.mubr.f32.mxu0 0.0
    %6546 = vmatmul.mubr.f32.gmra.mxu0 %v6221
    %v6547 = vpop.f32.mrf.mxu0
    %v6548 = vadd.f32 %v6479, %v6547
    %v6549 = vpop.f32.mrf.mxu0
    %6550 = vmatprep.mubr.f32.mxu0 0.0
    %6551 = vmatmul.mubr.f32.gmra.mxu0 %v6224
    %v6552 = vpop.f32.mrf.mxu0
    %v6553 = vadd.f32 %v6479, %v6552
    %v6554 = vpop.f32.mrf.mxu0
    %6555 = vdwg.mxu0
    %v6556 = vsel %vm160, %v6548, 0.0
    %6557 = vadd.xlane.f32.xlu0 %v6556
    %v6558 = vpop.xlane.xlu0 %6557
    %v6559 = vsel %vm160, %v6553, 0.0
    %6560 = vadd.xlane.f32.xlu0 %v6559
    %v6561 = vpop.xlane.xlu0 %6560
    %v6562 = vrcp.pop 32.0
    %v6563 = vmul.f32 %v6558, %v6562
    %v6564 = vmul.f32 %v6561, %v6562
    %v6565 = vsub.f32 %v6548, %v6563
    %v6566 = vsub.f32 %v6553, %v6564
    %v6567 = vmul.f32 %v6565, %v6565
    %v6568 = vmul.f32 %v6566, %v6566
    %v6569 = vsel %vm160, %v6567, 0.0
    %6570 = vadd.xlane.f32.xlu0 %v6569
    %v6571 = vpop.xlane.xlu0 %6570
    %v6572 = vsel %vm160, %v6568, 0.0
    %6573 = vadd.xlane.f32.xlu0 %v6572
    %v6574 = vpop.xlane.xlu0 %6573
    %v6575 = vmul.f32 %v6571, %v6562
    %v6576 = vmul.f32 %v6574, %v6562
    %v6577 = vadd.f32 %v6575, 1e-05
    %v6578 = vadd.f32 %v6576, 1e-05
    %v6579 = vrsqrt.pop %v6577
    %v6580 = vrsqrt.pop %v6578
    %v6581 = vmul.f32 %v6565, %v6579
    %v6582 = vmul.f32 %v6566, %v6580
    %v6583 = vld [vmem:[%s51] sm:$0x1]
    %v6585 = vlaneseq
    %v6586 = vshrl.u32 %v6585, 7
    %v6587 = vsub.s32 0, %v6586
    %v6588 = vrot.slane %v6583, %v6587
    %v6590 = vmul.f32 %v6581, %v6588
    %v6591 = vmul.f32 %v6582, %v6588
    %v6592 = vld [vmem:[%s53] sm:$0x1]
    %v6594 = vlaneseq
    %v6595 = vshrl.u32 %v6594, 7
    %v6596 = vsub.s32 0, %v6595
    %v6597 = vrot.slane %v6592, %v6596
    %v6599 = vadd.f32 %v6590, %v6597
    %v6600 = vadd.f32 %v6591, %v6597
    %v6601 = vmax.f32 %v6599, 0.0
    %v6602 = vmax.f32 %v6600, 0.0
    %v6603 = vadd.f32 %v6601, %v6387
    %v6604 = vadd.f32 %v6602, %v6388
    %s6605 = scalar_lea.vmem %s47, 32
    %v6606 = vld [vmem:[%s6605] sm:$0xff]
    %v6607 = vld [vmem:[%s6605 + $0x8] sm:$0xff]
    %v6608 = vld [vmem:[%s6605 + $0x10] sm:$0xff]
    %v6609 = vld [vmem:[%s6605 + $0x18] sm:$0xff]
    %v6611 = vsel %vm160, %v6603, 0
    %v6614 = vsel %vm160, %v6604, 0
    %6616 = vmatprep.subr.mxu0 0.0
    %6617 = vmatpush1.msra.mxu0 0.0
    %6618 = vmatprep.subr.mxu0 0.0
    %6619 = vmatpush1.msra.mxu0 0.0
    %6620 = vmatprep.subr.mxu0 0.0
    %6621 = vmatpush1.msra.mxu0 0.0
    %6622 = vmatprep.subr.mxu0 0.0
    %6623 = vmatpush1.msra.mxu0 0.0
    %6624 = vmatprep.subr.mxu0 0.0
    %6625 = vmatpush1.msra.mxu0 0.0
    %6626 = vmatprep.subr.mxu0 0.0
    %6627 = vmatpush1.msra.mxu0 0.0
    %6628 = vmatprep.subr.mxu0 0.0
    %6629 = vmatpush1.msra.mxu0 0.0
    %6630 = vmatprep.subr.mxu0 0.0
    %6631 = vmatpush1.msra.mxu0 0.0
    %6632 = vmatprep.subr.mxu0 0.0
    %6633 = vmatpush1.msra.mxu0 0.0
    %6634 = vmatprep.subr.mxu0 0.0
    %6635 = vmatpush1.msra.mxu0 0.0
    %6636 = vmatprep.subr.mxu0 0.0
    %6637 = vmatpush1.msra.mxu0 0.0
    %6638 = vmatprep.subr.mxu0 0.0
    %6639 = vmatpush1.msra.mxu0 0.0
    %6640 = vmatprep.subr.mxu0 0.0
    %6641 = vmatpush1.msra.mxu0 %v6609
    %6642 = vmatprep.subr.mxu0 0.0
    %6643 = vmatpush1.msra.mxu0 %v6608
    %6644 = vmatprep.subr.mxu0 0.0
    %6645 = vmatpush1.msra.mxu0 %v6607
    %6646 = vmatprep.subr.mxu0 0.0
    %6647 = vmatpush1.msra.mxu0 %v6606
    %6648 = vmatprep.subr.mxu0 0.0
    %6649 = vmatpush2.msra.mxu0 0.0
    %6650 = vmatprep.subr.mxu0 0.0
    %6651 = vmatpush2.msra.mxu0 0.0
    %6652 = vmatprep.subr.mxu0 0.0
    %6653 = vmatpush2.msra.mxu0 0.0
    %6654 = vmatprep.subr.mxu0 0.0
    %6655 = vmatpush2.msra.mxu0 0.0
    %6656 = vmatprep.subr.mxu0 0.0
    %6657 = vmatpush2.msra.mxu0 0.0
    %6658 = vmatprep.subr.mxu0 0.0
    %6659 = vmatpush2.msra.mxu0 0.0
    %6660 = vmatprep.subr.mxu0 0.0
    %6661 = vmatpush2.msra.mxu0 0.0
    %6662 = vmatprep.subr.mxu0 0.0
    %6663 = vmatpush2.msra.mxu0 0.0
    %6664 = vmatprep.subr.mxu0 0.0
    %6665 = vmatpush2.msra.mxu0 0.0
    %6666 = vmatprep.subr.mxu0 0.0
    %6667 = vmatpush2.msra.mxu0 0.0
    %6668 = vmatprep.subr.mxu0 0.0
    %6669 = vmatpush2.msra.mxu0 0.0
    %6670 = vmatprep.subr.mxu0 0.0
    %6671 = vmatpush2.msra.mxu0 0.0
    %6672 = vmatprep.subr.mxu0 0.0
    %6673 = vmatpush2.msra.mxu0 0.0
    %6674 = vmatprep.subr.mxu0 0.0
    %6675 = vmatpush2.msra.mxu0 0.0
    %6676 = vmatprep.subr.mxu0 0.0
    %6677 = vmatpush2.msra.mxu0 0.0
    %6678 = vmatprep.subr.mxu0 0.0
    %6679 = vmatpush2.msra.mxu0 0.0
    %6680 = vmatprep.mubr.f32.mxu0 0.0
    %6681 = vmatmul.mubr.f32.gmra.mxu0 %v6611
    %v6682 = vpop.f32.mrf.mxu0
    %v6683 = vadd.f32 0.0, %v6682
    %v6684 = vpop.f32.mrf.mxu0
    %6685 = vmatprep.mubr.f32.mxu0 0.0
    %6686 = vmatmul.mubr.f32.gmra.mxu0 %v6614
    %v6687 = vpop.f32.mrf.mxu0
    %v6688 = vadd.f32 0.0, %v6687
    %v6689 = vpop.f32.mrf.mxu0
    %6690 = vdwg.mxu0
    %s6691 = scalar_lea.vmem %s49, 1
    %v6692 = vld [vmem:[%s6691] sm:$0x1]
    %v6694 = vlaneseq
    %v6695 = vshrl.u32 %v6694, 7
    %v6696 = vsub.s32 0, %v6695
    %v6697 = vrot.slane %v6692, %v6696
    %6699 = vmatprep.subr.mxu0 0.0
    %6700 = vmatpush1.msra.mxu0 0.0
    %6701 = vmatprep.subr.mxu0 0.0
    %6702 = vmatpush1.msra.mxu0 0.0
    %6703 = vmatprep.subr.mxu0 0.0
    %6704 = vmatpush1.msra.mxu0 0.0
    %6705 = vmatprep.subr.mxu0 0.0
    %6706 = vmatpush1.msra.mxu0 0.0
    %6707 = vmatprep.subr.mxu0 0.0
    %6708 = vmatpush1.msra.mxu0 0.0
    %6709 = vmatprep.subr.mxu0 0.0
    %6710 = vmatpush1.msra.mxu0 0.0
    %6711 = vmatprep.subr.mxu0 0.0
    %6712 = vmatpush1.msra.mxu0 0.0
    %6713 = vmatprep.subr.mxu0 0.0
    %6714 = vmatpush1.msra.mxu0 0.0
    %6715 = vmatprep.subr.mxu0 0.0
    %6716 = vmatpush1.msra.mxu0 0.0
    %6717 = vmatprep.subr.mxu0 0.0
    %6718 = vmatpush1.msra.mxu0 0.0
    %6719 = vmatprep.subr.mxu0 0.0
    %6720 = vmatpush1.msra.mxu0 0.0
    %6721 = vmatprep.subr.mxu0 0.0
    %6722 = vmatpush1.msra.mxu0 0.0
    %6723 = vmatprep.subr.mxu0 0.0
    %6724 = vmatpush1.msra.mxu0 0.0
    %6725 = vmatprep.subr.mxu0 0.0
    %6726 = vmatpush1.msra.mxu0 0.0
    %6727 = vmatprep.subr.mxu0 0.0
    %6728 = vmatpush1.msra.mxu0 %v6688
    %6729 = vmatprep.subr.mxu0 0.0
    %6730 = vmatpush1.msra.mxu0 %v6683
    %6731 = vmatprep.subr.mxu0 0.0
    %6732 = vmatpush2.msra.mxu0 0.0
    %6733 = vmatprep.subr.mxu0 0.0
    %6734 = vmatpush2.msra.mxu0 0.0
    %6735 = vmatprep.subr.mxu0 0.0
    %6736 = vmatpush2.msra.mxu0 0.0
    %6737 = vmatprep.subr.mxu0 0.0
    %6738 = vmatpush2.msra.mxu0 0.0
    %6739 = vmatprep.subr.mxu0 0.0
    %6740 = vmatpush2.msra.mxu0 0.0
    %6741 = vmatprep.subr.mxu0 0.0
    %6742 = vmatpush2.msra.mxu0 0.0
    %6743 = vmatprep.subr.mxu0 0.0
    %6744 = vmatpush2.msra.mxu0 0.0
    %6745 = vmatprep.subr.mxu0 0.0
    %6746 = vmatpush2.msra.mxu0 0.0
    %6747 = vmatprep.subr.mxu0 0.0
    %6748 = vmatpush2.msra.mxu0 0.0
    %6749 = vmatprep.subr.mxu0 0.0
    %6750 = vmatpush2.msra.mxu0 0.0
    %6751 = vmatprep.subr.mxu0 0.0
    %6752 = vmatpush2.msra.mxu0 0.0
    %6753 = vmatprep.subr.mxu0 0.0
    %6754 = vmatpush2.msra.mxu0 0.0
    %6755 = vmatprep.subr.mxu0 0.0
    %6756 = vmatpush2.msra.mxu0 0.0
    %6757 = vmatprep.subr.mxu0 0.0
    %6758 = vmatpush2.msra.mxu0 0.0
    %6759 = vmatprep.subr.mxu0 0.0
    %6760 = vmatpush2.msra.mxu0 0.0
    %6761 = vmatprep.subr.mxu0 0.0
    %6762 = vmatpush2.msra.mxu0 0.0
    %6763 = vmatprep.mubr.f32.mxu0 0.0
    %6764 = vmatmul.mubr.f32.gmra.mxu0 %v6221
    %v6765 = vpop.f32.mrf.mxu0
    %v6766 = vadd.f32 %v6697, %v6765
    %v6767 = vpop.f32.mrf.mxu0
    %6768 = vmatprep.mubr.f32.mxu0 0.0
    %6769 = vmatmul.mubr.f32.gmra.mxu0 %v6224
    %v6770 = vpop.f32.mrf.mxu0
    %v6771 = vadd.f32 %v6697, %v6770
    %v6772 = vpop.f32.mrf.mxu0
    %6773 = vdwg.mxu0
    %v6774 = vsel %vm160, %v6766, 0.0
    %6775 = vadd.xlane.f32.xlu0 %v6774
    %v6776 = vpop.xlane.xlu0 %6775
    %v6777 = vsel %vm160, %v6771, 0.0
    %6778 = vadd.xlane.f32.xlu0 %v6777
    %v6779 = vpop.xlane.xlu0 %6778
    %v6780 = vmul.f32 %v6776, %v6562
    %v6781 = vmul.f32 %v6779, %v6562
    %v6782 = vsub.f32 %v6766, %v6780
    %v6783 = vsub.f32 %v6771, %v6781
    %v6784 = vmul.f32 %v6782, %v6782
    %v6785 = vmul.f32 %v6783, %v6783
    %v6786 = vsel %vm160, %v6784, 0.0
    %6787 = vadd.xlane.f32.xlu0 %v6786
    %v6788 = vpop.xlane.xlu0 %6787
    %v6789 = vsel %vm160, %v6785, 0.0
    %6790 = vadd.xlane.f32.xlu0 %v6789
    %v6791 = vpop.xlane.xlu0 %6790
    %v6792 = vmul.f32 %v6788, %v6562
    %v6793 = vmul.f32 %v6791, %v6562
    %v6794 = vadd.f32 %v6792, 1e-05
    %v6795 = vadd.f32 %v6793, 1e-05
    %v6796 = vrsqrt.pop %v6794
    %v6797 = vrsqrt.pop %v6795
    %v6798 = vmul.f32 %v6782, %v6796
    %v6799 = vmul.f32 %v6783, %v6797
    %s6800 = scalar_lea.vmem %s51, 1
    %v6801 = vld [vmem:[%s6800] sm:$0x1]
    %v6803 = vlaneseq
    %v6804 = vshrl.u32 %v6803, 7
    %v6805 = vsub.s32 0, %v6804
    %v6806 = vrot.slane %v6801, %v6805
    %v6808 = vmul.f32 %v6798, %v6806
    %v6809 = vmul.f32 %v6799, %v6806
    %s6810 = scalar_lea.vmem %s53, 1
    %v6811 = vld [vmem:[%s6810] sm:$0x1]
    %v6813 = vlaneseq
    %v6814 = vshrl.u32 %v6813, 7
    %v6815 = vsub.s32 0, %v6814
    %v6816 = vrot.slane %v6811, %v6815
    %v6818 = vadd.f32 %v6808, %v6816
    %v6819 = vadd.f32 %v6809, %v6816
    %v6820 = vmax.f32 %v6818, 0.0
    %v6821 = vmax.f32 %v6819, 0.0
    %v6822 = vadd.f32 %v6820, %v6603
    %v6823 = vadd.f32 %v6821, %v6604
    %v6824 = vld [vmem:[%s55] sm:$0xff]
    %v6825 = vld [vmem:[%s55 + $0x8] sm:$0xff]
    %v6826 = vld [vmem:[%s55 + $0x10] sm:$0xff]
    %v6827 = vld [vmem:[%s55 + $0x18] sm:$0xff]
    %v6828 = vld [vmem:[%s57] sm:$0x1]
    %v6830 = vlaneseq
    %v6831 = vshrl.u32 %v6830, 7
    %v6832 = vsub.s32 0, %v6831
    %v6833 = vrot.slane %v6828, %v6832
    %v6836 = vsel %vm160, %v6822, 0
    %v6839 = vsel %vm160, %v6823, 0
    %6841 = vmatprep.subr.mxu0 0.0
    %6842 = vmatpush1.msra.mxu0 0.0
    %6843 = vmatprep.subr.mxu0 0.0
    %6844 = vmatpush1.msra.mxu0 0.0
    %6845 = vmatprep.subr.mxu0 0.0
    %6846 = vmatpush1.msra.mxu0 0.0
    %6847 = vmatprep.subr.mxu0 0.0
    %6848 = vmatpush1.msra.mxu0 0.0
    %6849 = vmatprep.subr.mxu0 0.0
    %6850 = vmatpush1.msra.mxu0 0.0
    %6851 = vmatprep.subr.mxu0 0.0
    %6852 = vmatpush1.msra.mxu0 0.0
    %6853 = vmatprep.subr.mxu0 0.0
    %6854 = vmatpush1.msra.mxu0 0.0
    %6855 = vmatprep.subr.mxu0 0.0
    %6856 = vmatpush1.msra.mxu0 0.0
    %6857 = vmatprep.subr.mxu0 0.0
    %6858 = vmatpush1.msra.mxu0 0.0
    %6859 = vmatprep.subr.mxu0 0.0
    %6860 = vmatpush1.msra.mxu0 0.0
    %6861 = vmatprep.subr.mxu0 0.0
    %6862 = vmatpush1.msra.mxu0 0.0
    %6863 = vmatprep.subr.mxu0 0.0
    %6864 = vmatpush1.msra.mxu0 0.0
    %6865 = vmatprep.subr.mxu0 0.0
    %6866 = vmatpush1.msra.mxu0 %v6827
    %6867 = vmatprep.subr.mxu0 0.0
    %6868 = vmatpush1.msra.mxu0 %v6826
    %6869 = vmatprep.subr.mxu0 0.0
    %6870 = vmatpush1.msra.mxu0 %v6825
    %6871 = vmatprep.subr.mxu0 0.0
    %6872 = vmatpush1.msra.mxu0 %v6824
    %6873 = vmatprep.subr.mxu0 0.0
    %6874 = vmatpush2.msra.mxu0 0.0
    %6875 = vmatprep.subr.mxu0 0.0
    %6876 = vmatpush2.msra.mxu0 0.0
    %6877 = vmatprep.subr.mxu0 0.0
    %6878 = vmatpush2.msra.mxu0 0.0
    %6879 = vmatprep.subr.mxu0 0.0
    %6880 = vmatpush2.msra.mxu0 0.0
    %6881 = vmatprep.subr.mxu0 0.0
    %6882 = vmatpush2.msra.mxu0 0.0
    %6883 = vmatprep.subr.mxu0 0.0
    %6884 = vmatpush2.msra.mxu0 0.0
    %6885 = vmatprep.subr.mxu0 0.0
    %6886 = vmatpush2.msra.mxu0 0.0
    %6887 = vmatprep.subr.mxu0 0.0
    %6888 = vmatpush2.msra.mxu0 0.0
    %6889 = vmatprep.subr.mxu0 0.0
    %6890 = vmatpush2.msra.mxu0 0.0
    %6891 = vmatprep.subr.mxu0 0.0
    %6892 = vmatpush2.msra.mxu0 0.0
    %6893 = vmatprep.subr.mxu0 0.0
    %6894 = vmatpush2.msra.mxu0 0.0
    %6895 = vmatprep.subr.mxu0 0.0
    %6896 = vmatpush2.msra.mxu0 0.0
    %6897 = vmatprep.subr.mxu0 0.0
    %6898 = vmatpush2.msra.mxu0 0.0
    %6899 = vmatprep.subr.mxu0 0.0
    %6900 = vmatpush2.msra.mxu0 0.0
    %6901 = vmatprep.subr.mxu0 0.0
    %6902 = vmatpush2.msra.mxu0 0.0
    %6903 = vmatprep.subr.mxu0 0.0
    %6904 = vmatpush2.msra.mxu0 0.0
    %6905 = vmatprep.mubr.f32.mxu0 0.0
    %6906 = vmatmul.mubr.f32.gmra.mxu0 %v6836
    %v6907 = vpop.f32.mrf.mxu0
    %v6908 = vadd.f32 %v6833, %v6907
    %v6909 = vpop.f32.mrf.mxu0
    %6910 = vmatprep.mubr.f32.mxu0 0.0
    %6911 = vmatmul.mubr.f32.gmra.mxu0 %v6839
    %v6912 = vpop.f32.mrf.mxu0
    %v6913 = vadd.f32 %v6833, %v6912
    %v6914 = vpop.f32.mrf.mxu0
    %6915 = vdwg.mxu0
    %v6916 = vmax.f32 %v6908, 0.0
    %v6917 = vmax.f32 %v6913, 0.0
    %v6918 = vld [vmem:[%s59] sm:$0xff]
    %v6919 = vld [vmem:[#allocation3] sm:$0x1]
    %v6921 = vlaneseq
    %v6922 = vshrl.u32 %v6921, 7
    %v6923 = vsub.s32 0, %v6922
    %v6924 = vrot.slane %v6919, %v6923
    %vm6926 = vcmask 64512
    %v6928 = vsel %vm6926, %v6916, 0
    %v6931 = vsel %vm6926, %v6917, 0
    %6933 = vmatprep.subr.mxu0 0.0
    %6934 = vmatpush1.msra.mxu0 0.0
    %6935 = vmatprep.subr.mxu0 0.0
    %6936 = vmatpush1.msra.mxu0 0.0
    %6937 = vmatprep.subr.mxu0 0.0
    %6938 = vmatpush1.msra.mxu0 0.0
    %6939 = vmatprep.subr.mxu0 0.0
    %6940 = vmatpush1.msra.mxu0 0.0
    %6941 = vmatprep.subr.mxu0 0.0
    %6942 = vmatpush1.msra.mxu0 0.0
    %6943 = vmatprep.subr.mxu0 0.0
    %6944 = vmatpush1.msra.mxu0 0.0
    %6945 = vmatprep.subr.mxu0 0.0
    %6946 = vmatpush1.msra.mxu0 0.0
    %6947 = vmatprep.subr.mxu0 0.0
    %6948 = vmatpush1.msra.mxu0 0.0
    %6949 = vmatprep.subr.mxu0 0.0
    %6950 = vmatpush1.msra.mxu0 0.0
    %6951 = vmatprep.subr.mxu0 0.0
    %6952 = vmatpush1.msra.mxu0 0.0
    %6953 = vmatprep.subr.mxu0 0.0
    %6954 = vmatpush1.msra.mxu0 0.0
    %6955 = vmatprep.subr.mxu0 0.0
    %6956 = vmatpush1.msra.mxu0 0.0
    %6957 = vmatprep.subr.mxu0 0.0
    %6958 = vmatpush1.msra.mxu0 0.0
    %6959 = vmatprep.subr.mxu0 0.0
    %6960 = vmatpush1.msra.mxu0 0.0
    %6961 = vmatprep.subr.mxu0 0.0
    %6962 = vmatpush1.msra.mxu0 0.0
    %6963 = vmatprep.subr.mxu0 0.0
    %6964 = vmatpush1.msra.mxu0 %v6918
    %6965 = vmatprep.subr.mxu0 0.0
    %6966 = vmatpush2.msra.mxu0 0.0
    %6967 = vmatprep.subr.mxu0 0.0
    %6968 = vmatpush2.msra.mxu0 0.0
    %6969 = vmatprep.subr.mxu0 0.0
    %6970 = vmatpush2.msra.mxu0 0.0
    %6971 = vmatprep.subr.mxu0 0.0
    %6972 = vmatpush2.msra.mxu0 0.0
    %6973 = vmatprep.subr.mxu0 0.0
    %6974 = vmatpush2.msra.mxu0 0.0
    %6975 = vmatprep.subr.mxu0 0.0
    %6976 = vmatpush2.msra.mxu0 0.0
    %6977 = vmatprep.subr.mxu0 0.0
    %6978 = vmatpush2.msra.mxu0 0.0
    %6979 = vmatprep.subr.mxu0 0.0
    %6980 = vmatpush2.msra.mxu0 0.0
    %6981 = vmatprep.subr.mxu0 0.0
    %6982 = vmatpush2.msra.mxu0 0.0
    %6983 = vmatprep.subr.mxu0 0.0
    %6984 = vmatpush2.msra.mxu0 0.0
    %6985 = vmatprep.subr.mxu0 0.0
    %6986 = vmatpush2.msra.mxu0 0.0
    %6987 = vmatprep.subr.mxu0 0.0
    %6988 = vmatpush2.msra.mxu0 0.0
    %6989 = vmatprep.subr.mxu0 0.0
    %6990 = vmatpush2.msra.mxu0 0.0
    %6991 = vmatprep.subr.mxu0 0.0
    %6992 = vmatpush2.msra.mxu0 0.0
    %6993 = vmatprep.subr.mxu0 0.0
    %6994 = vmatpush2.msra.mxu0 0.0
    %6995 = vmatprep.subr.mxu0 0.0
    %6996 = vmatpush2.msra.mxu0 0.0
    %6997 = vmatprep.mubr.f32.mxu0 0.0
    %6998 = vmatmul.mubr.f32.gmra.mxu0 %v6928
    %v6999 = vpop.f32.mrf.mxu0
    %v7000 = vadd.f32 %v6924, %v6999
    %v7001 = vpop.f32.mrf.mxu0
    %7002 = vmatprep.mubr.f32.mxu0 0.0
    %7003 = vmatmul.mubr.f32.gmra.mxu0 %v6931
    %v7004 = vpop.f32.mrf.mxu0
    %v7005 = vadd.f32 %v6924, %v7004
    %v7006 = vpop.f32.mrf.mxu0
    %7007 = vdwg.mxu0
    %v7008 = vld [vmem:[%s9] sm:$0xff]
    %v7009 = vld [vmem:[%s9 + $0x8] sm:$0xff]
    %vm7010 = vcmp.gt.f32.partialorder %v7008, 0.5
    %vm7011 = vcmp.gt.f32.partialorder %v7009, 0.5
    %7013 = vset.pattern.permute.xlu0 0
    %7014 = vperm.xlu0 %7013, %v7000
    %v7015 = vpop.permute.xlu0 %7014
    %7018 = vset.pattern.permute.xlu0 0
    %7019 = vperm.xlu0 %7018, %v7005
    %v7020 = vpop.permute.xlu0 %7019
    %v7022 = vsel %vm7010, %v7015, -1e+30
    %v7023 = vsel %vm7011, %v7020, -1e+30
    %vm7024 = vcmask 15360
    %v7025 = vsel %vm7024, %v7022, -inf
    %v7026 = vsel %vm7024, %v7023, -inf
    %v7027 = vmax.f32 %v7025, %v7026
    %v7028 = vrot.slane %v7027, 4
    %v7029 = vmax.f32 %v7027, %v7028
    %v7030 = vrot.slane %v7029, 2
    %v7031 = vmax.f32 %v7029, %v7030
    %v7032 = vrot.slane %v7031, 1
    %v7033 = vmax.f32 %v7031, %v7032
    %v7034 = vsub.f32 %v7022, %v7033
    %v7035 = vsub.f32 %v7023, %v7033
    %v7036 = vmul.f32 %v7034, 1.442695
    %v7037 = vpow.pop %v7036
    %v7038 = vmul.f32 %v7035, 1.442695
    %v7039 = vpow.pop %v7038
    %v7040 = vsel %vm7010, %v7037, 0.0
    %v7041 = vsel %vm7011, %v7039, 0.0
    %v7042 = vsel %vm7024, %v7040, 0.0
    %v7043 = vsel %vm7024, %v7041, 0.0
    %v7044 = vadd.f32 %v7042, %v7043
    %v7045 = vrot.slane %v7044, 4
    %v7046 = vadd.f32 %v7044, %v7045
    %v7047 = vrot.slane %v7046, 2
    %v7048 = vadd.f32 %v7046, %v7047
    %v7049 = vrot.slane %v7048, 1
    %v7050 = vadd.f32 %v7048, %v7049
    %v7051 = vrcp.pop %v7050
    %v7052 = vmul.f32 %v7040, %v7051
    %v7053 = vmul.f32 %v7041, %v7051
    %7054 = vxpose.xlu0.b32.start [1/16] %v7052, 128
    %7055 = vxpose.xlu0.b32.cont [2/16] %v7053, 128
    %7056 = vxpose.xlu0.b32.cont [3/16] 0.0, 128
    %7057 = vxpose.xlu0.b32.cont [4/16] 0.0, 128
    %7058 = vxpose.xlu0.b32.cont [5/16] 0.0, 128
    %7059 = vxpose.xlu0.b32.cont [6/16] 0.0, 128
    %7060 = vxpose.xlu0.b32.cont [7/16] 0.0, 128
    %7061 = vxpose.xlu0.b32.cont [8/16] 0.0, 128
    %7062 = vxpose.xlu0.b32.cont [9/16] 0.0, 128
    %7063 = vxpose.xlu0.b32.cont [10/16] 0.0, 128
    %7064 = vxpose.xlu0.b32.cont [11/16] 0.0, 128
    %7065 = vxpose.xlu0.b32.cont [12/16] 0.0, 128
    %7066 = vxpose.xlu0.b32.cont [13/16] 0.0, 128
    %7067 = vxpose.xlu0.b32.cont [14/16] 0.0, 128
    %7068 = vxpose.xlu0.b32.cont [15/16] 0.0, 128
    %7069 = vxpose.xlu0.b32.end [16/16] 0.0, 128
    %v7070 = vpop.trf.xlu0
    %v7071 = vpop.trf.xlu0
    %v7072 = vpop.trf.xlu0
    %v7073 = vpop.trf.xlu0
    %v7074 = vpop.trf.xlu0
    %v7075 = vpop.trf.xlu0
    %v7076 = vpop.trf.xlu0
    %v7077 = vpop.trf.xlu0
    %v7078 = vpop.trf.xlu0
    %v7079 = vpop.trf.xlu0
    %v7080 = vpop.trf.xlu0
    %v7081 = vpop.trf.xlu0
    %v7082 = vpop.trf.xlu0
    %v7083 = vpop.trf.xlu0
    %v7084 = vpop.trf.xlu0
    %v7085 = vpop.trf.xlu0
    %v7087 = vsel %vm494, %v7070, 0
    %7089 = vmatprep.subr.mxu0 0.0
    %7090 = vmatpush1.msra.mxu0 0.0
    %7091 = vmatprep.subr.mxu0 0.0
    %7092 = vmatpush1.msra.mxu0 0.0
    %7093 = vmatprep.subr.mxu0 0.0
    %7094 = vmatpush1.msra.mxu0 0.0
    %7095 = vmatprep.subr.mxu0 0.0
    %7096 = vmatpush1.msra.mxu0 0.0
    %7097 = vmatprep.subr.mxu0 0.0
    %7098 = vmatpush1.msra.mxu0 0.0
    %7099 = vmatprep.subr.mxu0 0.0
    %7100 = vmatpush1.msra.mxu0 0.0
    %7101 = vmatprep.subr.mxu0 0.0
    %7102 = vmatpush1.msra.mxu0 0.0
    %7103 = vmatprep.subr.mxu0 0.0
    %7104 = vmatpush1.msra.mxu0 0.0
    %7105 = vmatprep.subr.mxu0 0.0
    %7106 = vmatpush1.msra.mxu0 0.0
    %7107 = vmatprep.subr.mxu0 0.0
    %7108 = vmatpush1.msra.mxu0 0.0
    %7109 = vmatprep.subr.mxu0 0.0
    %7110 = vmatpush1.msra.mxu0 0.0
    %7111 = vmatprep.subr.mxu0 0.0
    %7112 = vmatpush1.msra.mxu0 0.0
    %7113 = vmatprep.subr.mxu0 0.0
    %7114 = vmatpush1.msra.mxu0 0.0
    %7115 = vmatprep.subr.mxu0 0.0
    %7116 = vmatpush1.msra.mxu0 0.0
    %7117 = vmatprep.subr.mxu0 0.0
    %7118 = vmatpush1.msra.mxu0 %v6823
    %7119 = vmatprep.subr.mxu0 0.0
    %7120 = vmatpush1.msra.mxu0 %v6822
    %7121 = vmatprep.subr.mxu0 0.0
    %7122 = vmatpush2.msra.mxu0 0.0
    %7123 = vmatprep.subr.mxu0 0.0
    %7124 = vmatpush2.msra.mxu0 0.0
    %7125 = vmatprep.subr.mxu0 0.0
    %7126 = vmatpush2.msra.mxu0 0.0
    %7127 = vmatprep.subr.mxu0 0.0
    %7128 = vmatpush2.msra.mxu0 0.0
    %7129 = vmatprep.subr.mxu0 0.0
    %7130 = vmatpush2.msra.mxu0 0.0
    %7131 = vmatprep.subr.mxu0 0.0
    %7132 = vmatpush2.msra.mxu0 0.0
    %7133 = vmatprep.subr.mxu0 0.0
    %7134 = vmatpush2.msra.mxu0 0.0
    %7135 = vmatprep.subr.mxu0 0.0
    %7136 = vmatpush2.msra.mxu0 0.0
    %7137 = vmatprep.subr.mxu0 0.0
    %7138 = vmatpush2.msra.mxu0 0.0
    %7139 = vmatprep.subr.mxu0 0.0
    %7140 = vmatpush2.msra.mxu0 0.0
    %7141 = vmatprep.subr.mxu0 0.0
    %7142 = vmatpush2.msra.mxu0 0.0
    %7143 = vmatprep.subr.mxu0 0.0
    %7144 = vmatpush2.msra.mxu0 0.0
    %7145 = vmatprep.subr.mxu0 0.0
    %7146 = vmatpush2.msra.mxu0 0.0
    %7147 = vmatprep.subr.mxu0 0.0
    %7148 = vmatpush2.msra.mxu0 0.0
    %7149 = vmatprep.subr.mxu0 0.0
    %7150 = vmatpush2.msra.mxu0 0.0
    %7151 = vmatprep.subr.mxu0 0.0
    %7152 = vmatpush2.msra.mxu0 0.0
    %7153 = vmatprep.mubr.f32.mxu0 0.0
    %7154 = vmatmul.mubr.f32.gmra.mxu0 %v7087
    %v7155 = vpop.f32.mrf.mxu0
    %v7156 = vadd.f32 0.0, %v7155
    %v7157 = vpop.f32.mrf.mxu0
    %7158 = vdwg.mxu0
    %vm7159 = vcmask 254976
    %7160 = vst.msk [vmem:[#allocation4] sm:$0x3] %vm7159, %v7156
    // Predicated region
    $region126: #{memory_efficient_graph_encoder.1} parent=1 // pred_check
      _
    $region127: #{memory_efficient_graph_encoder.1} parent=1 // pred_check_branch
      %7162 = sbr.rel (0) target = $region129
    $region128: #{memory_efficient_graph_encoder.1} parent=1 // pred_region
      %s7164 = ssub.s32 32, 32
      %7165 = vsyncadd [#allocation5], %s7164
      %s7167 = sshll.u32 [#allocation4], 4
      %s7168 = int_to_ptr.vmem [resolvable:$true] %s7167
      %7170 = dma.vmem_to_hbm [thread:$0]  %s7168, 32, %s63, [#allocation5]
    $region129: #{memory_efficient_graph_encoder.1} parent=1 // pred_fallthru
      _
    // Predicated region
    $region130: #{memory_efficient_graph_encoder.1} parent=1 // pred_check
      _
    $region131: #{memory_efficient_graph_encoder.1} parent=1 // pred_check_branch
      %7172 = sbr.rel (0) target = $region133
    $region132: #{memory_efficient_graph_encoder.1} parent=1 // pred_region
      %7173 = dma.done [#allocation5], 32
    $region133: #{memory_efficient_graph_encoder.1} parent=1 // pred_fallthru
      _
    %7174 = vsyncpa [#allocation5], 1

</llo_original>
